<compile_context>
chip_gen: v7x
topology: tpu7x:2x2x1
jax: 0.10.0
libtpu: 0.0.40
codegen_flags: <defaults>
</compile_context>

<pallas_src>
import jax
import jax.numpy as jnp
import numpy as np
from jax import lax
from jax.experimental import pallas as pl
from jax.experimental.pallas import tpu as pltpu

EPS = 1e-5


def _silu_eup(v):
    # x * sigmoid(x); exp and the approximate reciprocal both run on the EUP slot.
    return v * pl.reciprocal(1.0 + jnp.exp(-v), approx=True)


def _make_vss_kernel(H, W, T):
    """Kernel over one haloed spatial tile of T = rows_per_tile * W pixels."""
    L = T + 2 * W          # loaded rows: interior T plus one image row of halo each side
    inv_w = 1.0 / float(W)

    def kernel(x_ref, g1_ref, b1_ref, wia_ref, wib_ref, taps_ref, cb_ref,
               dtb_ref, wm1_ref, wm2_ref, g2_ref, b2_ref, wo_ref, o_ref):
        xf = x_ref[...]                                      # (L, C) f32, haloed tile

        # --- outer LayerNorm(dim), two-pass variance ---
        mu = jnp.mean(xf, axis=-1, keepdims=True)
        d0 = xf - mu
        var = jnp.mean(d0 * d0, axis=-1, keepdims=True)
        xn = d0 * lax.rsqrt(var + EPS) * g1_ref[...] + b1_ref[...]
        xn16 = xn.astype(jnp.bfloat16)

        # --- in_proj, x branch only (z deferred to the gate to cut live VMEM) ---
        x_part = jnp.dot(xn16, wia_ref[...], preferred_element_type=jnp.float32)

        # --- global row/col edge masks for the 3x3 depthwise conv ---
        base = (pl.program_id(1) * T - W).astype(jnp.float32)
        n = lax.broadcasted_iota(jnp.int32, (L, 1), 0).astype(jnp.float32) + base
        rowf = jnp.floor((n + 0.5) * inv_w)
        colf = n - rowf * float(W)
        row_m = {0: jnp.where(rowf > 0.5, 1.0, 0.0),
                 2: jnp.where(rowf < float(H) - 1.5, 1.0, 0.0)}
        col_m = {0: jnp.where(colf > 0.5, 1.0, 0.0),
                 2: jnp.where(colf < float(W) - 1.5, 1.0, 0.0)}
        emask = {}                                           # hoisted out of the tap loop
        for i in range(3):
            for j in range(3):
                if (i, j) == (1, 1):
                    continue
                if i == 1:
                    emask[(i, j)] = col_m[j]
                elif j == 1:
                    emask[(i, j)] = row_m[i]
                else:
                    emask[(i, j)] = row_m[i] * col_m[j]

        taps = taps_ref[...]                                 # (9, D)
        tap_rows = [taps[k:k + 1, :] for k in range(9)]

        # --- depthwise 3x3 conv (padding=1, bias): 8 sublane rolls + edge masks.
        #     Accumulator starts at bias + centre tap (no zero-init add). ---
        acc = cb_ref[...] + x_part * tap_rows[4]
        for i in range(3):
            for j in range(3):
                if (i, j) == (1, 1):
                    continue
                delta = (i - 1) * W + (j - 1)                # neighbour offset, flattened
                shifted = pltpu.roll(x_part, shift=(-delta) % L, axis=0)
                acc = acc + (shifted * emask[(i, j)]) * tap_rows[i * 3 + j]
        xc = _silu_eup(acc)

        # --- drop halo rows before the pointwise matmuls (everything after the
        #     conv is per-pixel, so interior-only compute is exact) ---
        xc_i = xc[W:W + T, :]
        xn16_i = xn16[W:W + T, :]
        xf_i = xf[W:W + T, :]

        # --- mamba: Linear -> SiLU -> Linear (bf16 MXU, f32 accumulation) ---
        seq16 = (xc_i + dtb_ref[...]).astype(jnp.bfloat16)
        m1 = _silu_eup(jnp.dot(seq16, wm1_ref[...],
                               preferred_element_type=jnp.float32))
        m = jnp.dot(m1.astype(jnp.bfloat16), wm2_ref[...],
                    preferred_element_type=jnp.float32)

        # --- inner LayerNorm(d_inner) ---
        mu2 = jnp.mean(m, axis=-1, keepdims=True)
        d2 = m - mu2
        var2 = jnp.mean(d2 * d2, axis=-1, keepdims=True)
        xn2 = d2 * lax.rsqrt(var2 + EPS) * g2_ref[...] + b2_ref[...]

        # --- z projection (deferred), SiLU gate, out_proj, residual ---
        z = jnp.dot(xn16_i, wib_ref[...], preferred_element_type=jnp.float32)
        gated16 = (xn2 * _silu_eup(z)).astype(jnp.bfloat16)
        out = jnp.dot(gated16, wo_ref[...], preferred_element_type=jnp.float32)
        # TODO(synk): nn.Dropout(p=0.0) is an identity at inference; nothing to do.
        o_ref[...] = xf_i + out

    return kernel


def _weight_spec(shape, single_buffer):
    """Constant-index weight spec; request 1-deep buffering when supported."""
    nd = len(shape)
    idx = lambda b, t, nd=nd: (0,) * nd
    if single_buffer and hasattr(pl, "Buffered"):
        try:
            return pl.BlockSpec(shape, idx, pipeline_mode=pl.Buffered(1))
        except (TypeError, AttributeError):
            pass
    return pl.BlockSpec(shape, idx)


def _build_call(B, H, W, C, D, T, n_tiles, single_buffer_weights):
    HW = H * W
    L = T + 2 * W
    in_specs = [
        pl.BlockSpec((None, None, L, C), lambda b, t: (b, t, 0, 0)),  # haloed x tiles
        _weight_spec((1, C), single_buffer_weights),                  # outer LN gamma
        _weight_spec((1, C), single_buffer_weights),                  # outer LN beta
        _weight_spec((C, D), single_buffer_weights),                  # in_proj -> x_part
        _weight_spec((C, D), single_buffer_weights),                  # in_proj -> z
        _weight_spec((9, D), single_buffer_weights),                  # conv taps
        _weight_spec((1, D), single_buffer_weights),                  # conv bias
        _weight_spec((1, D), single_buffer_weights),                  # dt_bias
        _weight_spec((D, D), single_buffer_weights),                  # mamba w1
        _weight_spec((D, D), single_buffer_weights),                  # mamba w2
        _weight_spec((1, D), single_buffer_weights),                  # inner LN gamma
        _weight_spec((1, D), single_buffer_weights),                  # inner LN beta
        _weight_spec((D, C), single_buffer_weights),                  # out_proj
    ]
    # TODO(synk): when C >= 128 (production dims) the output store is already
    # lane-dense; at toy C it lowers to masked partial stores.
    out_spec = pl.BlockSpec((None, T, C), lambda b, t: (b, t, 0))

    flops = 2 * B * HW * (2 * C * D + 9 * D + 2 * D * D + D * C)
    bytes_accessed = int(
        2 * B * HW * C * 4                       # x in + out (f32)
        + (2 * C * D + 2 * D * D + D * C) * 2    # bf16 weights
        + (9 * D + 4 * D + 2 * C) * 4)           # taps, biases, LN params
    cost = pl.CostEstimate(flops=flops,
                           transcendentals=B * HW * (6 * D + 2),
                           bytes_accessed=bytes_accessed)

    return pl.pallas_call(
        _make_vss_kernel(H, W, T),
        out_shape=jax.ShapeDtypeStruct((B, HW, C), jnp.float32),
        grid_spec=pltpu.PrefetchScalarGridSpec(
            num_scalar_prefetch=0,
            grid=(B, n_tiles),
            in_specs=in_specs,
            out_specs=out_spec,
        ),
        compiler_params=pltpu.CompilerParams(
            dimension_semantics=("parallel", "parallel"),
            vmem_limit_bytes=32 * 1024 * 1024),
        cost_estimate=cost,
    )


def vss_block(x, p, *, tile_rows=None):
    B, H, W, C = x.shape
    D = p['wm1'].shape[0]
    HW = H * W

    # --- spatial tiling over whole image rows, 1-row halo on each side ---
    if tile_rows is None:
        # ~512 flattened rows/tile is VMEM-safe on v7x (64 MiB); v6e/v5e
        # (128 MiB physical) can take ~2x larger tiles via this knob.
        tile_rows = max(1, 512 // max(W, 1))
    rpt = int(min(H, max(1, tile_rows)))
    while rpt > 1 and H % rpt != 0:
        rpt -= 1
    T = rpt * W
    if T % 8 != 0 and T != HW:
        rpt, T = H, HW                       # single tile: full dims are always legal
    n_tiles = H // rpt
    L = T + 2 * W

    # Wrapper-side flattening: free metadata reshape, no in-kernel relayout.
    xf = x.reshape(B, HW, C)
    xpad = jnp.pad(xf, ((0, 0), (W, W), (0, 0)))
    tiles = jnp.stack([xpad[:, t * T: t * T + L, :] for t in range(n_tiles)],
                      axis=1)                # (B, n_tiles, T + 2W, C)
    # TODO(synk): at production H*W, replace this window copy with an
    # Element-indexed overlapping BlockSpec or a manual halo DMA so x is not
    # duplicated in HBM.

    # bf16 weight copies (halves weight traffic; accumulation stays f32).
    # TODO(synk): when D % 128 == 0, fuse wia/wib back into one (C, 2D) matmul
    # and slice at the tile-aligned D boundary; the split avoids a misaligned
    # lane slice at toy D.  On v7x, fp8 (e4m3) weights are a further option.
    wia = p['w_in'][:, :D].astype(jnp.bfloat16)
    wib = p['w_in'][:, D:].astype(jnp.bfloat16)
    wm1 = p['wm1'].astype(jnp.bfloat16)
    wm2 = p['wm2'].astype(jnp.bfloat16)
    wo = p['w_out'].astype(jnp.bfloat16)
    args = (tiles, p['g1'], p['b1'], wia, wib, p['taps'], p['cb'], p['dtb'],
            wm1, wm2, p['g2'], p['b2'], wo)

    try:
        out = _build_call(B, H, W, C, D, T, n_tiles, True)(*args)
    except Exception:
        # pipeline_mode=pl.Buffered(1) not supported on this jax version:
        # rebuild with default double-buffered weight specs.
        out = _build_call(B, H, W, C, D, T, n_tiles, False)(*args)
    return out.reshape(B, H, W, C)


def init_params(key, dim, expand=2):
    D = dim * expand
    ks = jax.random.split(key, 9)
    s = 0.2
    conv_w = jax.random.normal(ks[4], (D, 3, 3), jnp.float32) * s  # (D, kh, kw)
    return dict(
        g1=1.0 + 0.1 * jax.random.normal(ks[0], (1, dim), jnp.float32),
        b1=0.1 * jax.random.normal(ks[1], (1, dim), jnp.float32),
        w_in=jax.random.normal(ks[2], (dim, 2 * D), jnp.float32) * s,
        conv_w=conv_w,
        taps=conv_w.reshape(D, 9).T,          # (9, D): taps[i*3+j, d] = conv_w[d,i,j]
        cb=0.1 * jax.random.normal(ks[3], (1, D), jnp.float32),
        dtb=0.1 * jax.random.normal(ks[5], (1, D), jnp.float32),
        wm1=jax.random.normal(ks[6], (D, D), jnp.float32) * s,
        wm2=jax.random.normal(ks[7], (D, D), jnp.float32) * s,
        g2=jnp.ones((1, D), jnp.float32),
        b2=jnp.zeros((1, D), jnp.float32),
        w_out=jax.random.normal(ks[8], (D, dim), jnp.float32) * s,
    )


def reference(x, p):
    # Pure-JAX f32 reference of VSSBlock.forward (validation only).
    B, H, W, C = x.shape
    D = p['wm1'].shape[0]
    prec = lax.Precision.HIGHEST
    mu = x.mean(-1, keepdims=True)
    var = ((x - mu) ** 2).mean(-1, keepdims=True)
    xn = (x - mu) * lax.rsqrt(var + EPS) * p['g1'].reshape(C) + p['b1'].reshape(C)
    xz = jnp.dot(xn, p['w_in'], precision=prec)
    xp, z = xz[..., :D], xz[..., D:]
    k_hwio = jnp.transpose(p['conv_w'], (1, 2, 0))[:, :, None, :]   # (3,3,1,D)
    conv = lax.conv_general_dilated(
        xp, k_hwio, (1, 1), 'SAME',
        dimension_numbers=('NHWC', 'HWIO', 'NHWC'),
        feature_group_count=D, precision=prec) + p['cb'].reshape(D)
    xp = jax.nn.silu(conv)
    seq = xp + p['dtb'].reshape(D)
    m = jnp.dot(jax.nn.silu(jnp.dot(seq, p['wm1'], precision=prec)),
                p['wm2'], precision=prec)
    mu2 = m.mean(-1, keepdims=True)
    var2 = ((m - mu2) ** 2).mean(-1, keepdims=True)
    xn2 = (m - mu2) * lax.rsqrt(var2 + EPS) * p['g2'].reshape(D) + p['b2'].reshape(D)
    xn2 = xn2 * jax.nn.silu(z)
    return x + jnp.dot(xn2, p['w_out'], precision=prec)


if __name__ == "__main__":
    key = jax.random.PRNGKey(0)
    kx, kp = jax.random.split(key)
    B, H, W, C = 2, 16, 16, 4          # dim=4 -> d_inner=8
    x = jax.random.normal(kx, (B, H, W, C), jnp.float32)
    params = init_params(kp, C)

    ref = reference(x, params)

    # Exercise both the multi-tile halo path (tile_rows=8 -> 2 spatial tiles)
    # and the single-tile path (default tile size covers the whole image).
    for tr in (8, None):
        out = jax.block_until_ready(vss_block(x, params, tile_rows=tr))
        assert out.shape == (B, H, W, C)
        # Kernel matmuls run in bf16 (f32 accumulation) and SiLU uses the
        # approximate EUP reciprocal, so compare with a loose-but-meaningful
        # tolerance against the f32 reference.
        if not np.allclose(np.asarray(out), np.asarray(ref), atol=3e-2, rtol=3e-2):
            err = float(jnp.max(jnp.abs(out - ref)))
            raise AssertionError(
                f"kernel/reference mismatch (tile_rows={tr}), max abs err {err}")
    print("KERNEL_OK")
</pallas_src>

<mosaic_0001>
module attributes {stable_mosaic.version = 11 : i64} {
  func.func @kernel(%arg0: i32, %arg1: i32, %arg2: memref<1x1x160x4xf32, #tpu.memory_space<vmem>>, %arg3: memref<1x4xf32, #tpu.memory_space<vmem>>, %arg4: memref<1x4xf32, #tpu.memory_space<vmem>>, %arg5: memref<4x8xbf16, #tpu.memory_space<vmem>>, %arg6: memref<4x8xbf16, #tpu.memory_space<vmem>>, %arg7: memref<9x8xf32, #tpu.memory_space<vmem>>, %arg8: memref<1x8xf32, #tpu.memory_space<vmem>>, %arg9: memref<1x8xf32, #tpu.memory_space<vmem>>, %arg10: memref<8x8xbf16, #tpu.memory_space<vmem>>, %arg11: memref<8x8xbf16, #tpu.memory_space<vmem>>, %arg12: memref<1x8xf32, #tpu.memory_space<vmem>>, %arg13: memref<1x8xf32, #tpu.memory_space<vmem>>, %arg14: memref<8x4xbf16, #tpu.memory_space<vmem>>, %arg15: memref<1x128x4xf32, #tpu.memory_space<vmem>>) attributes {dimension_semantics = [#tpu.dimension_semantics<parallel>, #tpu.dimension_semantics<parallel>], iteration_bounds = array<i64: 2, 2>, scalar_prefetch = 0 : i64, scratch_operands = 0 : i64, tpu.core_type = #tpu.core_type<tc>, window_params = [{transform_indices = @transform_0, window_bounds = array<i64: 1, 1, 160, 4>}, {pipeline_mode = #tpu.pipeline_mode<synchronous>, transform_indices = @transform_1, window_bounds = array<i64: 1, 4>}, {pipeline_mode = #tpu.pipeline_mode<synchronous>, transform_indices = @transform_2, window_bounds = array<i64: 1, 4>}, {pipeline_mode = #tpu.pipeline_mode<synchronous>, transform_indices = @transform_3, window_bounds = array<i64: 4, 8>}, {pipeline_mode = #tpu.pipeline_mode<synchronous>, transform_indices = @transform_4, window_bounds = array<i64: 4, 8>}, {pipeline_mode = #tpu.pipeline_mode<synchronous>, transform_indices = @transform_5, window_bounds = array<i64: 9, 8>}, {pipeline_mode = #tpu.pipeline_mode<synchronous>, transform_indices = @transform_6, window_bounds = array<i64: 1, 8>}, {pipeline_mode = #tpu.pipeline_mode<synchronous>, transform_indices = @transform_7, window_bounds = array<i64: 1, 8>}, {pipeline_mode = #tpu.pipeline_mode<synchronous>, transform_indices = @transform_8, window_bounds = array<i64: 8, 8>}, {pipeline_mode = #tpu.pipeline_mode<synchronous>, transform_indices = @transform_9, window_bounds = array<i64: 8, 8>}, {pipeline_mode = #tpu.pipeline_mode<synchronous>, transform_indices = @transform_10, window_bounds = array<i64: 1, 8>}, {pipeline_mode = #tpu.pipeline_mode<synchronous>, transform_indices = @transform_11, window_bounds = array<i64: 1, 8>}, {pipeline_mode = #tpu.pipeline_mode<synchronous>, transform_indices = @transform_12, window_bounds = array<i64: 8, 4>}, {transform_indices = @transform_13, window_bounds = array<i64: 1, 128, 4>}]} {
    %c0 = arith.constant 0 : index
    %c0_0 = arith.constant 0 : index
    %c0_1 = arith.constant 0 : index
    %c0_2 = arith.constant 0 : index
    %0 = vector.load %arg2[%c0, %c0_0, %c0_1, %c0_2] : memref<1x1x160x4xf32, #tpu.memory_space<vmem>>, vector<1x1x160x4xf32>
    %1 = vector.shape_cast %0 : vector<1x1x160x4xf32> to vector<160x4xf32>
    %cst = arith.constant dense<0.000000e+00> : vector<160xf32>
    %2 = vector.multi_reduction <add>, %1, %cst [1] : vector<160x4xf32> to vector<160xf32>
    %3 = vector.shape_cast %2 : vector<160xf32> to vector<160x1xf32>
    %cst_3 = arith.constant 4.000000e+00 : f32
    %4 = vector.broadcast %cst_3 : f32 to vector<160x1xf32>
    %5 = arith.divf %3, %4 : vector<160x1xf32>
    %6 = vector.broadcast %5 : vector<160x1xf32> to vector<160x4xf32>
    %7 = arith.subf %1, %6 : vector<160x4xf32>
    %8 = arith.mulf %7, %7 : vector<160x4xf32>
    %cst_4 = arith.constant dense<0.000000e+00> : vector<160xf32>
    %9 = vector.multi_reduction <add>, %8, %cst_4 [1] : vector<160x4xf32> to vector<160xf32>
    %10 = vector.shape_cast %9 : vector<160xf32> to vector<160x1xf32>
    %cst_5 = arith.constant 4.000000e+00 : f32
    %11 = vector.broadcast %cst_5 : f32 to vector<160x1xf32>
    %12 = arith.divf %10, %11 : vector<160x1xf32>
    %cst_6 = arith.constant 9.99999974E-6 : f32
    %13 = vector.broadcast %cst_6 : f32 to vector<160x1xf32>
    %14 = arith.addf %12, %13 : vector<160x1xf32>
    %15 = math.rsqrt %14 : vector<160x1xf32>
    %16 = vector.broadcast %15 : vector<160x1xf32> to vector<160x4xf32>
    %17 = arith.mulf %7, %16 : vector<160x4xf32>
    %c0_7 = arith.constant 0 : index
    %c0_8 = arith.constant 0 : index
    %18 = vector.load %arg3[%c0_7, %c0_8] : memref<1x4xf32, #tpu.memory_space<vmem>>, vector<1x4xf32>
    %19 = vector.broadcast %18 : vector<1x4xf32> to vector<160x4xf32>
    %20 = arith.mulf %17, %19 : vector<160x4xf32>
    %c0_9 = arith.constant 0 : index
    %c0_10 = arith.constant 0 : index
    %21 = vector.load %arg4[%c0_9, %c0_10] : memref<1x4xf32, #tpu.memory_space<vmem>>, vector<1x4xf32>
    %22 = vector.broadcast %21 : vector<1x4xf32> to vector<160x4xf32>
    %23 = arith.addf %20, %22 : vector<160x4xf32>
    %24 = arith.truncf %23 : vector<160x4xf32> to vector<160x4xbf16>
    %c0_11 = arith.constant 0 : index
    %c0_12 = arith.constant 0 : index
    %25 = vector.load %arg5[%c0_11, %c0_12] : memref<4x8xbf16, #tpu.memory_space<vmem>>, vector<4x8xbf16>
    %cst_13 = arith.constant dense<0.000000e+00> : vector<160x8xf32>
    %26 = tpu.matmul %24, %25, %cst_13 {dimension_numbers = #tpu.dot_dimension_numbers<[1], [0], [0], [1], [0, 0, 1, 1], [], []>} : vector<160x4xbf16>, vector<4x8xbf16>, vector<160x8xf32> -> vector<160x8xf32>
    %c128_i32 = arith.constant 128 : i32
    %27 = arith.muli %arg1, %c128_i32 : i32
    %c16_i32 = arith.constant 16 : i32
    %28 = arith.subi %27, %c16_i32 : i32
    %29 = arith.sitofp %28 : i32 to f32
    %30 = tpu.iota {dimensions = array<i32: 0>} : vector<160x1xi32>
    %31 = arith.sitofp %30 : vector<160x1xi32> to vector<160x1xf32>
    %32 = vector.broadcast %29 : f32 to vector<160x1xf32>
    %33 = arith.addf %31, %32 : vector<160x1xf32>
    %cst_14 = arith.constant 5.000000e-01 : f32
    %34 = vector.broadcast %cst_14 : f32 to vector<160x1xf32>
    %35 = arith.addf %33, %34 : vector<160x1xf32>
    %cst_15 = arith.constant 6.250000e-02 : f32
    %36 = vector.broadcast %cst_15 : f32 to vector<160x1xf32>
    %37 = arith.mulf %35, %36 : vector<160x1xf32>
    %38 = math.floor %37 : vector<160x1xf32>
    %cst_16 = arith.constant 1.600000e+01 : f32
    %39 = vector.broadcast %cst_16 : f32 to vector<160x1xf32>
    %40 = arith.mulf %38, %39 : vector<160x1xf32>
    %41 = arith.subf %33, %40 : vector<160x1xf32>
    %cst_17 = arith.constant 5.000000e-01 : f32
    %42 = vector.broadcast %cst_17 : f32 to vector<160x1xf32>
    %43 = arith.cmpf ogt, %38, %42 : vector<160x1xf32>
    %cst_18 = arith.constant 1.000000e+00 : f32
    %cst_19 = arith.constant 0.000000e+00 : f32
    %44 = vector.broadcast %cst_18 : f32 to vector<160x1xf32>
    %45 = vector.broadcast %cst_19 : f32 to vector<160x1xf32>
    %46 = arith.select %43, %44, %45 : vector<160x1xi1>, vector<160x1xf32>
    %cst_20 = arith.constant 1.450000e+01 : f32
    %47 = vector.broadcast %cst_20 : f32 to vector<160x1xf32>
    %48 = arith.cmpf olt, %38, %47 : vector<160x1xf32>
    %cst_21 = arith.constant 1.000000e+00 : f32
    %cst_22 = arith.constant 0.000000e+00 : f32
    %49 = vector.broadcast %cst_21 : f32 to vector<160x1xf32>
    %50 = vector.broadcast %cst_22 : f32 to vector<160x1xf32>
    %51 = arith.select %48, %49, %50 : vector<160x1xi1>, vector<160x1xf32>
    %cst_23 = arith.constant 5.000000e-01 : f32
    %52 = vector.broadcast %cst_23 : f32 to vector<160x1xf32>
    %53 = arith.cmpf ogt, %41, %52 : vector<160x1xf32>
    %cst_24 = arith.constant 1.000000e+00 : f32
    %cst_25 = arith.constant 0.000000e+00 : f32
    %54 = vector.broadcast %cst_24 : f32 to vector<160x1xf32>
    %55 = vector.broadcast %cst_25 : f32 to vector<160x1xf32>
    %56 = arith.select %53, %54, %55 : vector<160x1xi1>, vector<160x1xf32>
    %cst_26 = arith.constant 1.450000e+01 : f32
    %57 = vector.broadcast %cst_26 : f32 to vector<160x1xf32>
    %58 = arith.cmpf olt, %41, %57 : vector<160x1xf32>
    %cst_27 = arith.constant 1.000000e+00 : f32
    %cst_28 = arith.constant 0.000000e+00 : f32
    %59 = vector.broadcast %cst_27 : f32 to vector<160x1xf32>
    %60 = vector.broadcast %cst_28 : f32 to vector<160x1xf32>
    %61 = arith.select %58, %59, %60 : vector<160x1xi1>, vector<160x1xf32>
    %62 = arith.mulf %46, %56 : vector<160x1xf32>
    %63 = arith.mulf %46, %61 : vector<160x1xf32>
    %64 = arith.mulf %51, %56 : vector<160x1xf32>
    %65 = arith.mulf %51, %61 : vector<160x1xf32>
    %c0_29 = arith.constant 0 : index
    %c0_30 = arith.constant 0 : index
    %66 = vector.load %arg7[%c0_29, %c0_30] : memref<9x8xf32, #tpu.memory_space<vmem>>, vector<9x8xf32>
    %67 = vector.extract_strided_slice %66 {offsets = [0, 0], sizes = [1, 8], strides = [1, 1]} : vector<9x8xf32> to vector<1x8xf32>
    %68 = vector.extract_strided_slice %66 {offsets = [1, 0], sizes = [1, 8], strides = [1, 1]} : vector<9x8xf32> to vector<1x8xf32>
    %69 = vector.extract_strided_slice %66 {offsets = [2, 0], sizes = [1, 8], strides = [1, 1]} : vector<9x8xf32> to vector<1x8xf32>
    %70 = vector.extract_strided_slice %66 {offsets = [3, 0], sizes = [1, 8], strides = [1, 1]} : vector<9x8xf32> to vector<1x8xf32>
    %71 = vector.extract_strided_slice %66 {offsets = [4, 0], sizes = [1, 8], strides = [1, 1]} : vector<9x8xf32> to vector<1x8xf32>
    %72 = vector.extract_strided_slice %66 {offsets = [5, 0], sizes = [1, 8], strides = [1, 1]} : vector<9x8xf32> to vector<1x8xf32>
    %73 = vector.extract_strided_slice %66 {offsets = [6, 0], sizes = [1, 8], strides = [1, 1]} : vector<9x8xf32> to vector<1x8xf32>
    %74 = vector.extract_strided_slice %66 {offsets = [7, 0], sizes = [1, 8], strides = [1, 1]} : vector<9x8xf32> to vector<1x8xf32>
    %75 = vector.extract_strided_slice %66 {offsets = [8, 0], sizes = [1, 8], strides = [1, 1]} : vector<9x8xf32> to vector<1x8xf32>
    %c0_31 = arith.constant 0 : index
    %c0_32 = arith.constant 0 : index
    %76 = vector.load %arg8[%c0_31, %c0_32] : memref<1x8xf32, #tpu.memory_space<vmem>>, vector<1x8xf32>
    %77 = vector.broadcast %71 : vector<1x8xf32> to vector<160x8xf32>
    %78 = arith.mulf %26, %77 : vector<160x8xf32>
    %79 = vector.broadcast %76 : vector<1x8xf32> to vector<160x8xf32>
    %80 = arith.addf %79, %78 : vector<160x8xf32>
    %c17_i32 = arith.constant 17 : i32
    %81 = tpu.dynamic_rotate %26 by %c17_i32 dim 0 : vector<160x8xf32>, i32 -> vector<160x8xf32>
    %82 = vector.broadcast %62 : vector<160x1xf32> to vector<160x8xf32>
    %83 = arith.mulf %81, %82 : vector<160x8xf32>
    %84 = vector.broadcast %67 : vector<1x8xf32> to vector<160x8xf32>
    %85 = arith.mulf %83, %84 : vector<160x8xf32>
    %86 = arith.addf %80, %85 : vector<160x8xf32>
    %c16_i32_33 = arith.constant 16 : i32
    %87 = tpu.dynamic_rotate %26 by %c16_i32_33 dim 0 : vector<160x8xf32>, i32 -> vector<160x8xf32>
    %88 = vector.broadcast %46 : vector<160x1xf32> to vector<160x8xf32>
    %89 = arith.mulf %87, %88 : vector<160x8xf32>
    %90 = vector.broadcast %68 : vector<1x8xf32> to vector<160x8xf32>
    %91 = arith.mulf %89, %90 : vector<160x8xf32>
    %92 = arith.addf %86, %91 : vector<160x8xf32>
    %c15_i32 = arith.constant 15 : i32
    %93 = tpu.dynamic_rotate %26 by %c15_i32 dim 0 : vector<160x8xf32>, i32 -> vector<160x8xf32>
    %94 = vector.broadcast %63 : vector<160x1xf32> to vector<160x8xf32>
    %95 = arith.mulf %93, %94 : vector<160x8xf32>
    %96 = vector.broadcast %69 : vector<1x8xf32> to vector<160x8xf32>
    %97 = arith.mulf %95, %96 : vector<160x8xf32>
    %98 = arith.addf %92, %97 : vector<160x8xf32>
    %c1_i32 = arith.constant 1 : i32
    %99 = tpu.dynamic_rotate %26 by %c1_i32 dim 0 : vector<160x8xf32>, i32 -> vector<160x8xf32>
    %100 = vector.broadcast %56 : vector<160x1xf32> to vector<160x8xf32>
    %101 = arith.mulf %99, %100 : vector<160x8xf32>
    %102 = vector.broadcast %70 : vector<1x8xf32> to vector<160x8xf32>
    %103 = arith.mulf %101, %102 : vector<160x8xf32>
    %104 = arith.addf %98, %103 : vector<160x8xf32>
    %c159_i32 = arith.constant 159 : i32
    %105 = tpu.dynamic_rotate %26 by %c159_i32 dim 0 : vector<160x8xf32>, i32 -> vector<160x8xf32>
    %106 = vector.broadcast %61 : vector<160x1xf32> to vector<160x8xf32>
    %107 = arith.mulf %105, %106 : vector<160x8xf32>
    %108 = vector.broadcast %72 : vector<1x8xf32> to vector<160x8xf32>
    %109 = arith.mulf %107, %108 : vector<160x8xf32>
    %110 = arith.addf %104, %109 : vector<160x8xf32>
    %c145_i32 = arith.constant 145 : i32
    %111 = tpu.dynamic_rotate %26 by %c145_i32 dim 0 : vector<160x8xf32>, i32 -> vector<160x8xf32>
    %112 = vector.broadcast %64 : vector<160x1xf32> to vector<160x8xf32>
    %113 = arith.mulf %111, %112 : vector<160x8xf32>
    %114 = vector.broadcast %73 : vector<1x8xf32> to vector<160x8xf32>
    %115 = arith.mulf %113, %114 : vector<160x8xf32>
    %116 = arith.addf %110, %115 : vector<160x8xf32>
    %c144_i32 = arith.constant 144 : i32
    %117 = tpu.dynamic_rotate %26 by %c144_i32 dim 0 : vector<160x8xf32>, i32 -> vector<160x8xf32>
    %118 = vector.broadcast %51 : vector<160x1xf32> to vector<160x8xf32>
    %119 = arith.mulf %117, %118 : vector<160x8xf32>
    %120 = vector.broadcast %74 : vector<1x8xf32> to vector<160x8xf32>
    %121 = arith.mulf %119, %120 : vector<160x8xf32>
    %122 = arith.addf %116, %121 : vector<160x8xf32>
    %c143_i32 = arith.constant 143 : i32
    %123 = tpu.dynamic_rotate %26 by %c143_i32 dim 0 : vector<160x8xf32>, i32 -> vector<160x8xf32>
    %124 = vector.broadcast %65 : vector<160x1xf32> to vector<160x8xf32>
    %125 = arith.mulf %123, %124 : vector<160x8xf32>
    %126 = vector.broadcast %75 : vector<1x8xf32> to vector<160x8xf32>
    %127 = arith.mulf %125, %126 : vector<160x8xf32>
    %128 = arith.addf %122, %127 : vector<160x8xf32>
    %cst_34 = arith.constant 0.000000e+00 : f32
    %129 = vector.broadcast %cst_34 : f32 to vector<160x8xf32>
    %130 = arith.subf %129, %128 : vector<160x8xf32>
    %131 = math.exp %130 : vector<160x8xf32>
    %cst_35 = arith.constant 1.000000e+00 : f32
    %132 = vector.broadcast %cst_35 : f32 to vector<160x8xf32>
    %133 = arith.addf %132, %131 : vector<160x8xf32>
    %134 = tpu.reciprocal %133 {approx = true} : vector<160x8xf32> -> vector<160x8xf32>
    %135 = arith.mulf %128, %134 : vector<160x8xf32>
    %136 = vector.extract_strided_slice %135 {offsets = [16, 0], sizes = [128, 8], strides = [1, 1]} : vector<160x8xf32> to vector<128x8xf32>
    %137 = vector.extract_strided_slice %24 {offsets = [16, 0], sizes = [128, 4], strides = [1, 1]} : vector<160x4xbf16> to vector<128x4xbf16>
    %138 = vector.extract_strided_slice %1 {offsets = [16, 0], sizes = [128, 4], strides = [1, 1]} : vector<160x4xf32> to vector<128x4xf32>
    %c0_36 = arith.constant 0 : index
    %c0_37 = arith.constant 0 : index
    %139 = vector.load %arg9[%c0_36, %c0_37] : memref<1x8xf32, #tpu.memory_space<vmem>>, vector<1x8xf32>
    %140 = vector.broadcast %139 : vector<1x8xf32> to vector<128x8xf32>
    %141 = arith.addf %136, %140 : vector<128x8xf32>
    %142 = arith.truncf %141 : vector<128x8xf32> to vector<128x8xbf16>
    %c0_38 = arith.constant 0 : index
    %c0_39 = arith.constant 0 : index
    %143 = vector.load %arg10[%c0_38, %c0_39] : memref<8x8xbf16, #tpu.memory_space<vmem>>, vector<8x8xbf16>
    %cst_40 = arith.constant dense<0.000000e+00> : vector<128x8xf32>
    %144 = tpu.matmul %142, %143, %cst_40 {dimension_numbers = #tpu.dot_dimension_numbers<[1], [0], [0], [1], [0, 0, 1, 1], [], []>} : vector<128x8xbf16>, vector<8x8xbf16>, vector<128x8xf32> -> vector<128x8xf32>
    %cst_41 = arith.constant 0.000000e+00 : f32
    %145 = vector.broadcast %cst_41 : f32 to vector<128x8xf32>
    %146 = arith.subf %145, %144 : vector<128x8xf32>
    %147 = math.exp %146 : vector<128x8xf32>
    %cst_42 = arith.constant 1.000000e+00 : f32
    %148 = vector.broadcast %cst_42 : f32 to vector<128x8xf32>
    %149 = arith.addf %148, %147 : vector<128x8xf32>
    %150 = tpu.reciprocal %149 {approx = true} : vector<128x8xf32> -> vector<128x8xf32>
    %151 = arith.mulf %144, %150 : vector<128x8xf32>
    %152 = arith.truncf %151 : vector<128x8xf32> to vector<128x8xbf16>
    %c0_43 = arith.constant 0 : index
    %c0_44 = arith.constant 0 : index
    %153 = vector.load %arg11[%c0_43, %c0_44] : memref<8x8xbf16, #tpu.memory_space<vmem>>, vector<8x8xbf16>
    %cst_45 = arith.constant dense<0.000000e+00> : vector<128x8xf32>
    %154 = tpu.matmul %152, %153, %cst_45 {dimension_numbers = #tpu.dot_dimension_numbers<[1], [0], [0], [1], [0, 0, 1, 1], [], []>} : vector<128x8xbf16>, vector<8x8xbf16>, vector<128x8xf32> -> vector<128x8xf32>
    %cst_46 = arith.constant dense<0.000000e+00> : vector<128xf32>
    %155 = vector.multi_reduction <add>, %154, %cst_46 [1] : vector<128x8xf32> to vector<128xf32>
    %156 = vector.shape_cast %155 : vector<128xf32> to vector<128x1xf32>
    %cst_47 = arith.constant 8.000000e+00 : f32
    %157 = vector.broadcast %cst_47 : f32 to vector<128x1xf32>
    %158 = arith.divf %156, %157 : vector<128x1xf32>
    %159 = vector.broadcast %158 : vector<128x1xf32> to vector<128x8xf32>
    %160 = arith.subf %154, %159 : vector<128x8xf32>
    %161 = arith.mulf %160, %160 : vector<128x8xf32>
    %cst_48 = arith.constant dense<0.000000e+00> : vector<128xf32>
    %162 = vector.multi_reduction <add>, %161, %cst_48 [1] : vector<128x8xf32> to vector<128xf32>
    %163 = vector.shape_cast %162 : vector<128xf32> to vector<128x1xf32>
    %cst_49 = arith.constant 8.000000e+00 : f32
    %164 = vector.broadcast %cst_49 : f32 to vector<128x1xf32>
    %165 = arith.divf %163, %164 : vector<128x1xf32>
    %cst_50 = arith.constant 9.99999974E-6 : f32
    %166 = vector.broadcast %cst_50 : f32 to vector<128x1xf32>
    %167 = arith.addf %165, %166 : vector<128x1xf32>
    %168 = math.rsqrt %167 : vector<128x1xf32>
    %169 = vector.broadcast %168 : vector<128x1xf32> to vector<128x8xf32>
    %170 = arith.mulf %160, %169 : vector<128x8xf32>
    %c0_51 = arith.constant 0 : index
    %c0_52 = arith.constant 0 : index
    %171 = vector.load %arg12[%c0_51, %c0_52] : memref<1x8xf32, #tpu.memory_space<vmem>>, vector<1x8xf32>
    %172 = vector.broadcast %171 : vector<1x8xf32> to vector<128x8xf32>
    %173 = arith.mulf %170, %172 : vector<128x8xf32>
    %c0_53 = arith.constant 0 : index
    %c0_54 = arith.constant 0 : index
    %174 = vector.load %arg13[%c0_53, %c0_54] : memref<1x8xf32, #tpu.memory_space<vmem>>, vector<1x8xf32>
    %175 = vector.broadcast %174 : vector<1x8xf32> to vector<128x8xf32>
    %176 = arith.addf %173, %175 : vector<128x8xf32>
    %c0_55 = arith.constant 0 : index
    %c0_56 = arith.constant 0 : index
    %177 = vector.load %arg6[%c0_55, %c0_56] : memref<4x8xbf16, #tpu.memory_space<vmem>>, vector<4x8xbf16>
    %cst_57 = arith.constant dense<0.000000e+00> : vector<128x8xf32>
    %178 = tpu.matmul %137, %177, %cst_57 {dimension_numbers = #tpu.dot_dimension_numbers<[1], [0], [0], [1], [0, 0, 1, 1], [], []>} : vector<128x4xbf16>, vector<4x8xbf16>, vector<128x8xf32> -> vector<128x8xf32>
    %cst_58 = arith.constant 0.000000e+00 : f32
    %179 = vector.broadcast %cst_58 : f32 to vector<128x8xf32>
    %180 = arith.subf %179, %178 : vector<128x8xf32>
    %181 = math.exp %180 : vector<128x8xf32>
    %cst_59 = arith.constant 1.000000e+00 : f32
    %182 = vector.broadcast %cst_59 : f32 to vector<128x8xf32>
    %183 = arith.addf %182, %181 : vector<128x8xf32>
    %184 = tpu.reciprocal %183 {approx = true} : vector<128x8xf32> -> vector<128x8xf32>
    %185 = arith.mulf %178, %184 : vector<128x8xf32>
    %186 = arith.mulf %176, %185 : vector<128x8xf32>
    %187 = arith.truncf %186 : vector<128x8xf32> to vector<128x8xbf16>
    %c0_60 = arith.constant 0 : index
    %c0_61 = arith.constant 0 : index
    %188 = vector.load %arg14[%c0_60, %c0_61] : memref<8x4xbf16, #tpu.memory_space<vmem>>, vector<8x4xbf16>
    %cst_62 = arith.constant dense<0.000000e+00> : vector<128x4xf32>
    %189 = tpu.matmul %187, %188, %cst_62 {dimension_numbers = #tpu.dot_dimension_numbers<[1], [0], [0], [1], [0, 0, 1, 1], [], []>} : vector<128x8xbf16>, vector<8x4xbf16>, vector<128x4xf32> -> vector<128x4xf32>
    %190 = arith.addf %138, %189 : vector<128x4xf32>
    %c0_63 = arith.constant 0 : index
    %c0_64 = arith.constant 0 : index
    %c0_65 = arith.constant 0 : index
    %191 = vector.load %arg15[%c0_63, %c0_64, %c0_65] : memref<1x128x4xf32, #tpu.memory_space<vmem>>, vector<1x128x4xf32>
    %192 = vector.shape_cast %191 : vector<1x128x4xf32> to vector<128x4xf32>
    %193 = vector.shape_cast %190 : vector<128x4xf32> to vector<1x128x4xf32>
    tpu.vector_store %arg15[%c0_63, %c0_64, %c0_65], %193 {strides = array<i32>} : memref<1x128x4xf32, #tpu.memory_space<vmem>>, vector<1x128x4xf32>,
    return
  }
  func.func @transform_0(%arg0: i32, %arg1: i32) -> (i32, i32, i32, i32) {
    %c0_i32 = arith.constant 0 : i32
    %c0_i32_0 = arith.constant 0 : i32
    %c0_i32_1 = arith.constant 0 : i32
    return %arg0, %arg1, %c0_i32, %c0_i32_0 : i32, i32, i32, i32
  }
  func.func @transform_1(%arg0: i32, %arg1: i32) -> (i32, i32) {
    %c0_i32 = arith.constant 0 : i32
    %c0_i32_0 = arith.constant 0 : i32
    %c0_i32_1 = arith.constant 0 : i32
    return %c0_i32, %c0_i32_0 : i32, i32
  }
  func.func @transform_2(%arg0: i32, %arg1: i32) -> (i32, i32) {
    %c0_i32 = arith.constant 0 : i32
    %c0_i32_0 = arith.constant 0 : i32
    %c0_i32_1 = arith.constant 0 : i32
    return %c0_i32, %c0_i32_0 : i32, i32
  }
  func.func @transform_3(%arg0: i32, %arg1: i32) -> (i32, i32) {
    %c0_i32 = arith.constant 0 : i32
    %c0_i32_0 = arith.constant 0 : i32
    %c0_i32_1 = arith.constant 0 : i32
    return %c0_i32, %c0_i32_0 : i32, i32
  }
  func.func @transform_4(%arg0: i32, %arg1: i32) -> (i32, i32) {
    %c0_i32 = arith.constant 0 : i32
    %c0_i32_0 = arith.constant 0 : i32
    %c0_i32_1 = arith.constant 0 : i32
    return %c0_i32, %c0_i32_0 : i32, i32
  }
  func.func @transform_5(%arg0: i32, %arg1: i32) -> (i32, i32) {
    %c0_i32 = arith.constant 0 : i32
    %c0_i32_0 = arith.constant 0 : i32
    %c0_i32_1 = arith.constant 0 : i32
    return %c0_i32, %c0_i32_0 : i32, i32
  }
  func.func @transform_6(%arg0: i32, %arg1: i32) -> (i32, i32) {
    %c0_i32 = arith.constant 0 : i32
    %c0_i32_0 = arith.constant 0 : i32
    %c0_i32_1 = arith.constant 0 : i32
    return %c0_i32, %c0_i32_0 : i32, i32
  }
  func.func @transform_7(%arg0: i32, %arg1: i32) -> (i32, i32) {
    %c0_i32 = arith.constant 0 : i32
    %c0_i32_0 = arith.constant 0 : i32
    %c0_i32_1 = arith.constant 0 : i32
    return %c0_i32, %c0_i32_0 : i32, i32
  }
  func.func @transform_8(%arg0: i32, %arg1: i32) -> (i32, i32) {
    %c0_i32 = arith.constant 0 : i32
    %c0_i32_0 = arith.constant 0 : i32
    %c0_i32_1 = arith.constant 0 : i32
    return %c0_i32, %c0_i32_0 : i32, i32
  }
  func.func @transform_9(%arg0: i32, %arg1: i32) -> (i32, i32) {
    %c0_i32 = arith.constant 0 : i32
    %c0_i32_0 = arith.constant 0 : i32
    %c0_i32_1 = arith.constant 0 : i32
    return %c0_i32, %c0_i32_0 : i32, i32
  }
  func.func @transform_10(%arg0: i32, %arg1: i32) -> (i32, i32) {
    %c0_i32 = arith.constant 0 : i32
    %c0_i32_0 = arith.constant 0 : i32
    %c0_i32_1 = arith.constant 0 : i32
    return %c0_i32, %c0_i32_0 : i32, i32
  }
  func.func @transform_11(%arg0: i32, %arg1: i32) -> (i32, i32) {
    %c0_i32 = arith.constant 0 : i32
    %c0_i32_0 = arith.constant 0 : i32
    %c0_i32_1 = arith.constant 0 : i32
    return %c0_i32, %c0_i32_0 : i32, i32
  }
  func.func @transform_12(%arg0: i32, %arg1: i32) -> (i32, i32) {
    %c0_i32 = arith.constant 0 : i32
    %c0_i32_0 = arith.constant 0 : i32
    %c0_i32_1 = arith.constant 0 : i32
    return %c0_i32, %c0_i32_0 : i32, i32
  }
  func.func @transform_13(%arg0: i32, %arg1: i32) -> (i32, i32, i32) {
    %c0_i32 = arith.constant 0 : i32
    %c0_i32_0 = arith.constant 0 : i32
    return %arg0, %arg1, %c0_i32 : i32, i32, i32
  }
}

module attributes {stable_mosaic.version = 11 : i64} {
  func.func @kernel(%arg0: i32, %arg1: i32, %arg2: memref<1x1x160x4xf32, #tpu.memory_space<vmem>>, %arg3: memref<1x4xf32, #tpu.memory_space<vmem>>, %arg4: memref<1x4xf32, #tpu.memory_space<vmem>>, %arg5: memref<4x8xbf16, #tpu.memory_space<vmem>>, %arg6: memref<4x8xbf16, #tpu.memory_space<vmem>>, %arg7: memref<9x8xf32, #tpu.memory_space<vmem>>, %arg8: memref<1x8xf32, #tpu.memory_space<vmem>>, %arg9: memref<1x8xf32, #tpu.memory_space<vmem>>, %arg10: memref<8x8xbf16, #tpu.memory_space<vmem>>, %arg11: memref<8x8xbf16, #tpu.memory_space<vmem>>, %arg12: memref<1x8xf32, #tpu.memory_space<vmem>>, %arg13: memref<1x8xf32, #tpu.memory_space<vmem>>, %arg14: memref<8x4xbf16, #tpu.memory_space<vmem>>, %arg15: memref<1x128x4xf32, #tpu.memory_space<vmem>>) attributes {dimension_semantics = [#tpu.dimension_semantics<parallel>, #tpu.dimension_semantics<parallel>], iteration_bounds = array<i64: 2, 2>, scalar_prefetch = 0 : i64, scratch_operands = 0 : i64, tpu.core_type = #tpu.core_type<tc>, window_params = [{transform_indices = @transform_0, window_bounds = array<i64: 1, 1, 160, 4>}, {pipeline_mode = #tpu.pipeline_mode<synchronous>, transform_indices = @transform_1, window_bounds = array<i64: 1, 4>}, {pipeline_mode = #tpu.pipeline_mode<synchronous>, transform_indices = @transform_2, window_bounds = array<i64: 1, 4>}, {pipeline_mode = #tpu.pipeline_mode<synchronous>, transform_indices = @transform_3, window_bounds = array<i64: 4, 8>}, {pipeline_mode = #tpu.pipeline_mode<synchronous>, transform_indices = @transform_4, window_bounds = array<i64: 4, 8>}, {pipeline_mode = #tpu.pipeline_mode<synchronous>, transform_indices = @transform_5, window_bounds = array<i64: 9, 8>}, {pipeline_mode = #tpu.pipeline_mode<synchronous>, transform_indices = @transform_6, window_bounds = array<i64: 1, 8>}, {pipeline_mode = #tpu.pipeline_mode<synchronous>, transform_indices = @transform_7, window_bounds = array<i64: 1, 8>}, {pipeline_mode = #tpu.pipeline_mode<synchronous>, transform_indices = @transform_8, window_bounds = array<i64: 8, 8>}, {pipeline_mode = #tpu.pipeline_mode<synchronous>, transform_indices = @transform_9, window_bounds = array<i64: 8, 8>}, {pipeline_mode = #tpu.pipeline_mode<synchronous>, transform_indices = @transform_10, window_bounds = array<i64: 1, 8>}, {pipeline_mode = #tpu.pipeline_mode<synchronous>, transform_indices = @transform_11, window_bounds = array<i64: 1, 8>}, {pipeline_mode = #tpu.pipeline_mode<synchronous>, transform_indices = @transform_12, window_bounds = array<i64: 8, 4>}, {transform_indices = @transform_13, window_bounds = array<i64: 1, 128, 4>}]} {
    %c0 = arith.constant 0 : index
    %c0_0 = arith.constant 0 : index
    %c0_1 = arith.constant 0 : index
    %c0_2 = arith.constant 0 : index
    %0 = vector.load %arg2[%c0, %c0_0, %c0_1, %c0_2] : memref<1x1x160x4xf32, #tpu.memory_space<vmem>>, vector<1x1x160x4xf32>
    %1 = vector.shape_cast %0 : vector<1x1x160x4xf32> to vector<160x4xf32>
    %cst = arith.constant dense<0.000000e+00> : vector<160xf32>
    %2 = vector.multi_reduction <add>, %1, %cst [1] : vector<160x4xf32> to vector<160xf32>
    %3 = vector.shape_cast %2 : vector<160xf32> to vector<160x1xf32>
    %cst_3 = arith.constant 4.000000e+00 : f32
    %4 = vector.broadcast %cst_3 : f32 to vector<160x1xf32>
    %5 = arith.divf %3, %4 : vector<160x1xf32>
    %6 = vector.broadcast %5 : vector<160x1xf32> to vector<160x4xf32>
    %7 = arith.subf %1, %6 : vector<160x4xf32>
    %8 = arith.mulf %7, %7 : vector<160x4xf32>
    %cst_4 = arith.constant dense<0.000000e+00> : vector<160xf32>
    %9 = vector.multi_reduction <add>, %8, %cst_4 [1] : vector<160x4xf32> to vector<160xf32>
    %10 = vector.shape_cast %9 : vector<160xf32> to vector<160x1xf32>
    %cst_5 = arith.constant 4.000000e+00 : f32
    %11 = vector.broadcast %cst_5 : f32 to vector<160x1xf32>
    %12 = arith.divf %10, %11 : vector<160x1xf32>
    %cst_6 = arith.constant 9.99999974E-6 : f32
    %13 = vector.broadcast %cst_6 : f32 to vector<160x1xf32>
    %14 = arith.addf %12, %13 : vector<160x1xf32>
    %15 = math.rsqrt %14 : vector<160x1xf32>
    %16 = vector.broadcast %15 : vector<160x1xf32> to vector<160x4xf32>
    %17 = arith.mulf %7, %16 : vector<160x4xf32>
    %c0_7 = arith.constant 0 : index
    %c0_8 = arith.constant 0 : index
    %18 = vector.load %arg3[%c0_7, %c0_8] : memref<1x4xf32, #tpu.memory_space<vmem>>, vector<1x4xf32>
    %19 = vector.broadcast %18 : vector<1x4xf32> to vector<160x4xf32>
    %20 = arith.mulf %17, %19 : vector<160x4xf32>
    %c0_9 = arith.constant 0 : index
    %c0_10 = arith.constant 0 : index
    %21 = vector.load %arg4[%c0_9, %c0_10] : memref<1x4xf32, #tpu.memory_space<vmem>>, vector<1x4xf32>
    %22 = vector.broadcast %21 : vector<1x4xf32> to vector<160x4xf32>
    %23 = arith.addf %20, %22 : vector<160x4xf32>
    %24 = arith.truncf %23 : vector<160x4xf32> to vector<160x4xbf16>
    %c0_11 = arith.constant 0 : index
    %c0_12 = arith.constant 0 : index
    %25 = vector.load %arg5[%c0_11, %c0_12] : memref<4x8xbf16, #tpu.memory_space<vmem>>, vector<4x8xbf16>
    %cst_13 = arith.constant dense<0.000000e+00> : vector<160x8xf32>
    %26 = tpu.matmul %24, %25, %cst_13 {dimension_numbers = #tpu.dot_dimension_numbers<[1], [0], [0], [1], [0, 0, 1, 1], [], []>} : vector<160x4xbf16>, vector<4x8xbf16>, vector<160x8xf32> -> vector<160x8xf32>
    %c128_i32 = arith.constant 128 : i32
    %27 = arith.muli %arg1, %c128_i32 : i32
    %c16_i32 = arith.constant 16 : i32
    %28 = arith.subi %27, %c16_i32 : i32
    %29 = arith.sitofp %28 : i32 to f32
    %30 = tpu.iota {dimensions = array<i32: 0>} : vector<160x1xi32>
    %31 = arith.sitofp %30 : vector<160x1xi32> to vector<160x1xf32>
    %32 = vector.broadcast %29 : f32 to vector<160x1xf32>
    %33 = arith.addf %31, %32 : vector<160x1xf32>
    %cst_14 = arith.constant 5.000000e-01 : f32
    %34 = vector.broadcast %cst_14 : f32 to vector<160x1xf32>
    %35 = arith.addf %33, %34 : vector<160x1xf32>
    %cst_15 = arith.constant 6.250000e-02 : f32
    %36 = vector.broadcast %cst_15 : f32 to vector<160x1xf32>
    %37 = arith.mulf %35, %36 : vector<160x1xf32>
    %38 = math.floor %37 : vector<160x1xf32>
    %cst_16 = arith.constant 1.600000e+01 : f32
    %39 = vector.broadcast %cst_16 : f32 to vector<160x1xf32>
    %40 = arith.mulf %38, %39 : vector<160x1xf32>
    %41 = arith.subf %33, %40 : vector<160x1xf32>
    %cst_17 = arith.constant 5.000000e-01 : f32
    %42 = vector.broadcast %cst_17 : f32 to vector<160x1xf32>
    %43 = arith.cmpf ogt, %38, %42 : vector<160x1xf32>
    %cst_18 = arith.constant 1.000000e+00 : f32
    %cst_19 = arith.constant 0.000000e+00 : f32
    %44 = vector.broadcast %cst_18 : f32 to vector<160x1xf32>
    %45 = vector.broadcast %cst_19 : f32 to vector<160x1xf32>
    %46 = arith.select %43, %44, %45 : vector<160x1xi1>, vector<160x1xf32>
    %cst_20 = arith.constant 1.450000e+01 : f32
    %47 = vector.broadcast %cst_20 : f32 to vector<160x1xf32>
    %48 = arith.cmpf olt, %38, %47 : vector<160x1xf32>
    %cst_21 = arith.constant 1.000000e+00 : f32
    %cst_22 = arith.constant 0.000000e+00 : f32
    %49 = vector.broadcast %cst_21 : f32 to vector<160x1xf32>
    %50 = vector.broadcast %cst_22 : f32 to vector<160x1xf32>
    %51 = arith.select %48, %49, %50 : vector<160x1xi1>, vector<160x1xf32>
    %cst_23 = arith.constant 5.000000e-01 : f32
    %52 = vector.broadcast %cst_23 : f32 to vector<160x1xf32>
    %53 = arith.cmpf ogt, %41, %52 : vector<160x1xf32>
    %cst_24 = arith.constant 1.000000e+00 : f32
    %cst_25 = arith.constant 0.000000e+00 : f32
    %54 = vector.broadcast %cst_24 : f32 to vector<160x1xf32>
    %55 = vector.broadcast %cst_25 : f32 to vector<160x1xf32>
    %56 = arith.select %53, %54, %55 : vector<160x1xi1>, vector<160x1xf32>
    %cst_26 = arith.constant 1.450000e+01 : f32
    %57 = vector.broadcast %cst_26 : f32 to vector<160x1xf32>
    %58 = arith.cmpf olt, %41, %57 : vector<160x1xf32>
    %cst_27 = arith.constant 1.000000e+00 : f32
    %cst_28 = arith.constant 0.000000e+00 : f32
    %59 = vector.broadcast %cst_27 : f32 to vector<160x1xf32>
    %60 = vector.broadcast %cst_28 : f32 to vector<160x1xf32>
    %61 = arith.select %58, %59, %60 : vector<160x1xi1>, vector<160x1xf32>
    %62 = arith.mulf %46, %56 : vector<160x1xf32>
    %63 = arith.mulf %46, %61 : vector<160x1xf32>
    %64 = arith.mulf %51, %56 : vector<160x1xf32>
    %65 = arith.mulf %51, %61 : vector<160x1xf32>
    %c0_29 = arith.constant 0 : index
    %c0_30 = arith.constant 0 : index
    %66 = vector.load %arg7[%c0_29, %c0_30] : memref<9x8xf32, #tpu.memory_space<vmem>>, vector<9x8xf32>
    %67 = vector.extract_strided_slice %66 {offsets = [0, 0], sizes = [1, 8], strides = [1, 1]} : vector<9x8xf32> to vector<1x8xf32>
    %68 = vector.extract_strided_slice %66 {offsets = [1, 0], sizes = [1, 8], strides = [1, 1]} : vector<9x8xf32> to vector<1x8xf32>
    %69 = vector.extract_strided_slice %66 {offsets = [2, 0], sizes = [1, 8], strides = [1, 1]} : vector<9x8xf32> to vector<1x8xf32>
    %70 = vector.extract_strided_slice %66 {offsets = [3, 0], sizes = [1, 8], strides = [1, 1]} : vector<9x8xf32> to vector<1x8xf32>
    %71 = vector.extract_strided_slice %66 {offsets = [4, 0], sizes = [1, 8], strides = [1, 1]} : vector<9x8xf32> to vector<1x8xf32>
    %72 = vector.extract_strided_slice %66 {offsets = [5, 0], sizes = [1, 8], strides = [1, 1]} : vector<9x8xf32> to vector<1x8xf32>
    %73 = vector.extract_strided_slice %66 {offsets = [6, 0], sizes = [1, 8], strides = [1, 1]} : vector<9x8xf32> to vector<1x8xf32>
    %74 = vector.extract_strided_slice %66 {offsets = [7, 0], sizes = [1, 8], strides = [1, 1]} : vector<9x8xf32> to vector<1x8xf32>
    %75 = vector.extract_strided_slice %66 {offsets = [8, 0], sizes = [1, 8], strides = [1, 1]} : vector<9x8xf32> to vector<1x8xf32>
    %c0_31 = arith.constant 0 : index
    %c0_32 = arith.constant 0 : index
    %76 = vector.load %arg8[%c0_31, %c0_32] : memref<1x8xf32, #tpu.memory_space<vmem>>, vector<1x8xf32>
    %77 = vector.broadcast %71 : vector<1x8xf32> to vector<160x8xf32>
    %78 = arith.mulf %26, %77 : vector<160x8xf32>
    %79 = vector.broadcast %76 : vector<1x8xf32> to vector<160x8xf32>
    %80 = arith.addf %79, %78 : vector<160x8xf32>
    %c17_i32 = arith.constant 17 : i32
    %81 = tpu.dynamic_rotate %26 by %c17_i32 dim 0 : vector<160x8xf32>, i32 -> vector<160x8xf32>
    %82 = vector.broadcast %62 : vector<160x1xf32> to vector<160x8xf32>
    %83 = arith.mulf %81, %82 : vector<160x8xf32>
    %84 = vector.broadcast %67 : vector<1x8xf32> to vector<160x8xf32>
    %85 = arith.mulf %83, %84 : vector<160x8xf32>
    %86 = arith.addf %80, %85 : vector<160x8xf32>
    %c16_i32_33 = arith.constant 16 : i32
    %87 = tpu.dynamic_rotate %26 by %c16_i32_33 dim 0 : vector<160x8xf32>, i32 -> vector<160x8xf32>
    %88 = vector.broadcast %46 : vector<160x1xf32> to vector<160x8xf32>
    %89 = arith.mulf %87, %88 : vector<160x8xf32>
    %90 = vector.broadcast %68 : vector<1x8xf32> to vector<160x8xf32>
    %91 = arith.mulf %89, %90 : vector<160x8xf32>
    %92 = arith.addf %86, %91 : vector<160x8xf32>
    %c15_i32 = arith.constant 15 : i32
    %93 = tpu.dynamic_rotate %26 by %c15_i32 dim 0 : vector<160x8xf32>, i32 -> vector<160x8xf32>
    %94 = vector.broadcast %63 : vector<160x1xf32> to vector<160x8xf32>
    %95 = arith.mulf %93, %94 : vector<160x8xf32>
    %96 = vector.broadcast %69 : vector<1x8xf32> to vector<160x8xf32>
    %97 = arith.mulf %95, %96 : vector<160x8xf32>
    %98 = arith.addf %92, %97 : vector<160x8xf32>
    %c1_i32 = arith.constant 1 : i32
    %99 = tpu.dynamic_rotate %26 by %c1_i32 dim 0 : vector<160x8xf32>, i32 -> vector<160x8xf32>
    %100 = vector.broadcast %56 : vector<160x1xf32> to vector<160x8xf32>
    %101 = arith.mulf %99, %100 : vector<160x8xf32>
    %102 = vector.broadcast %70 : vector<1x8xf32> to vector<160x8xf32>
    %103 = arith.mulf %101, %102 : vector<160x8xf32>
    %104 = arith.addf %98, %103 : vector<160x8xf32>
    %c159_i32 = arith.constant 159 : i32
    %105 = tpu.dynamic_rotate %26 by %c159_i32 dim 0 : vector<160x8xf32>, i32 -> vector<160x8xf32>
    %106 = vector.broadcast %61 : vector<160x1xf32> to vector<160x8xf32>
    %107 = arith.mulf %105, %106 : vector<160x8xf32>
    %108 = vector.broadcast %72 : vector<1x8xf32> to vector<160x8xf32>
    %109 = arith.mulf %107, %108 : vector<160x8xf32>
    %110 = arith.addf %104, %109 : vector<160x8xf32>
    %c145_i32 = arith.constant 145 : i32
    %111 = tpu.dynamic_rotate %26 by %c145_i32 dim 0 : vector<160x8xf32>, i32 -> vector<160x8xf32>
    %112 = vector.broadcast %64 : vector<160x1xf32> to vector<160x8xf32>
    %113 = arith.mulf %111, %112 : vector<160x8xf32>
    %114 = vector.broadcast %73 : vector<1x8xf32> to vector<160x8xf32>
    %115 = arith.mulf %113, %114 : vector<160x8xf32>
    %116 = arith.addf %110, %115 : vector<160x8xf32>
    %c144_i32 = arith.constant 144 : i32
    %117 = tpu.dynamic_rotate %26 by %c144_i32 dim 0 : vector<160x8xf32>, i32 -> vector<160x8xf32>
    %118 = vector.broadcast %51 : vector<160x1xf32> to vector<160x8xf32>
    %119 = arith.mulf %117, %118 : vector<160x8xf32>
    %120 = vector.broadcast %74 : vector<1x8xf32> to vector<160x8xf32>
    %121 = arith.mulf %119, %120 : vector<160x8xf32>
    %122 = arith.addf %116, %121 : vector<160x8xf32>
    %c143_i32 = arith.constant 143 : i32
    %123 = tpu.dynamic_rotate %26 by %c143_i32 dim 0 : vector<160x8xf32>, i32 -> vector<160x8xf32>
    %124 = vector.broadcast %65 : vector<160x1xf32> to vector<160x8xf32>
    %125 = arith.mulf %123, %124 : vector<160x8xf32>
    %126 = vector.broadcast %75 : vector<1x8xf32> to vector<160x8xf32>
    %127 = arith.mulf %125, %126 : vector<160x8xf32>
    %128 = arith.addf %122, %127 : vector<160x8xf32>
    %cst_34 = arith.constant 0.000000e+00 : f32
    %129 = vector.broadcast %cst_34 : f32 to vector<160x8xf32>
    %130 = arith.subf %129, %128 : vector<160x8xf32>
    %131 = math.exp %130 : vector<160x8xf32>
    %cst_35 = arith.constant 1.000000e+00 : f32
    %132 = vector.broadcast %cst_35 : f32 to vector<160x8xf32>
    %133 = arith.addf %132, %131 : vector<160x8xf32>
    %134 = tpu.reciprocal %133 {approx = true} : vector<160x8xf32> -> vector<160x8xf32>
    %135 = arith.mulf %128, %134 : vector<160x8xf32>
    %136 = vector.extract_strided_slice %135 {offsets = [16, 0], sizes = [128, 8], strides = [1, 1]} : vector<160x8xf32> to vector<128x8xf32>
    %137 = vector.extract_strided_slice %24 {offsets = [16, 0], sizes = [128, 4], strides = [1, 1]} : vector<160x4xbf16> to vector<128x4xbf16>
    %138 = vector.extract_strided_slice %1 {offsets = [16, 0], sizes = [128, 4], strides = [1, 1]} : vector<160x4xf32> to vector<128x4xf32>
    %c0_36 = arith.constant 0 : index
    %c0_37 = arith.constant 0 : index
    %139 = vector.load %arg9[%c0_36, %c0_37] : memref<1x8xf32, #tpu.memory_space<vmem>>, vector<1x8xf32>
    %140 = vector.broadcast %139 : vector<1x8xf32> to vector<128x8xf32>
    %141 = arith.addf %136, %140 : vector<128x8xf32>
    %142 = arith.truncf %141 : vector<128x8xf32> to vector<128x8xbf16>
    %c0_38 = arith.constant 0 : index
    %c0_39 = arith.constant 0 : index
    %143 = vector.load %arg10[%c0_38, %c0_39] : memref<8x8xbf16, #tpu.memory_space<vmem>>, vector<8x8xbf16>
    %cst_40 = arith.constant dense<0.000000e+00> : vector<128x8xf32>
    %144 = tpu.matmul %142, %143, %cst_40 {dimension_numbers = #tpu.dot_dimension_numbers<[1], [0], [0], [1], [0, 0, 1, 1], [], []>} : vector<128x8xbf16>, vector<8x8xbf16>, vector<128x8xf32> -> vector<128x8xf32>
    %cst_41 = arith.constant 0.000000e+00 : f32
    %145 = vector.broadcast %cst_41 : f32 to vector<128x8xf32>
    %146 = arith.subf %145, %144 : vector<128x8xf32>
    %147 = math.exp %146 : vector<128x8xf32>
    %cst_42 = arith.constant 1.000000e+00 : f32
    %148 = vector.broadcast %cst_42 : f32 to vector<128x8xf32>
    %149 = arith.addf %148, %147 : vector<128x8xf32>
    %150 = tpu.reciprocal %149 {approx = true} : vector<128x8xf32> -> vector<128x8xf32>
    %151 = arith.mulf %144, %150 : vector<128x8xf32>
    %152 = arith.truncf %151 : vector<128x8xf32> to vector<128x8xbf16>
    %c0_43 = arith.constant 0 : index
    %c0_44 = arith.constant 0 : index
    %153 = vector.load %arg11[%c0_43, %c0_44] : memref<8x8xbf16, #tpu.memory_space<vmem>>, vector<8x8xbf16>
    %cst_45 = arith.constant dense<0.000000e+00> : vector<128x8xf32>
    %154 = tpu.matmul %152, %153, %cst_45 {dimension_numbers = #tpu.dot_dimension_numbers<[1], [0], [0], [1], [0, 0, 1, 1], [], []>} : vector<128x8xbf16>, vector<8x8xbf16>, vector<128x8xf32> -> vector<128x8xf32>
    %cst_46 = arith.constant dense<0.000000e+00> : vector<128xf32>
    %155 = vector.multi_reduction <add>, %154, %cst_46 [1] : vector<128x8xf32> to vector<128xf32>
    %156 = vector.shape_cast %155 : vector<128xf32> to vector<128x1xf32>
    %cst_47 = arith.constant 8.000000e+00 : f32
    %157 = vector.broadcast %cst_47 : f32 to vector<128x1xf32>
    %158 = arith.divf %156, %157 : vector<128x1xf32>
    %159 = vector.broadcast %158 : vector<128x1xf32> to vector<128x8xf32>
    %160 = arith.subf %154, %159 : vector<128x8xf32>
    %161 = arith.mulf %160, %160 : vector<128x8xf32>
    %cst_48 = arith.constant dense<0.000000e+00> : vector<128xf32>
    %162 = vector.multi_reduction <add>, %161, %cst_48 [1] : vector<128x8xf32> to vector<128xf32>
    %163 = vector.shape_cast %162 : vector<128xf32> to vector<128x1xf32>
    %cst_49 = arith.constant 8.000000e+00 : f32
    %164 = vector.broadcast %cst_49 : f32 to vector<128x1xf32>
    %165 = arith.divf %163, %164 : vector<128x1xf32>
    %cst_50 = arith.constant 9.99999974E-6 : f32
    %166 = vector.broadcast %cst_50 : f32 to vector<128x1xf32>
    %167 = arith.addf %165, %166 : vector<128x1xf32>
    %168 = math.rsqrt %167 : vector<128x1xf32>
    %169 = vector.broadcast %168 : vector<128x1xf32> to vector<128x8xf32>
    %170 = arith.mulf %160, %169 : vector<128x8xf32>
    %c0_51 = arith.constant 0 : index
    %c0_52 = arith.constant 0 : index
    %171 = vector.load %arg12[%c0_51, %c0_52] : memref<1x8xf32, #tpu.memory_space<vmem>>, vector<1x8xf32>
    %172 = vector.broadcast %171 : vector<1x8xf32> to vector<128x8xf32>
    %173 = arith.mulf %170, %172 : vector<128x8xf32>
    %c0_53 = arith.constant 0 : index
    %c0_54 = arith.constant 0 : index
    %174 = vector.load %arg13[%c0_53, %c0_54] : memref<1x8xf32, #tpu.memory_space<vmem>>, vector<1x8xf32>
    %175 = vector.broadcast %174 : vector<1x8xf32> to vector<128x8xf32>
    %176 = arith.addf %173, %175 : vector<128x8xf32>
    %c0_55 = arith.constant 0 : index
    %c0_56 = arith.constant 0 : index
    %177 = vector.load %arg6[%c0_55, %c0_56] : memref<4x8xbf16, #tpu.memory_space<vmem>>, vector<4x8xbf16>
    %cst_57 = arith.constant dense<0.000000e+00> : vector<128x8xf32>
    %178 = tpu.matmul %137, %177, %cst_57 {dimension_numbers = #tpu.dot_dimension_numbers<[1], [0], [0], [1], [0, 0, 1, 1], [], []>} : vector<128x4xbf16>, vector<4x8xbf16>, vector<128x8xf32> -> vector<128x8xf32>
    %cst_58 = arith.constant 0.000000e+00 : f32
    %179 = vector.broadcast %cst_58 : f32 to vector<128x8xf32>
    %180 = arith.subf %179, %178 : vector<128x8xf32>
    %181 = math.exp %180 : vector<128x8xf32>
    %cst_59 = arith.constant 1.000000e+00 : f32
    %182 = vector.broadcast %cst_59 : f32 to vector<128x8xf32>
    %183 = arith.addf %182, %181 : vector<128x8xf32>
    %184 = tpu.reciprocal %183 {approx = true} : vector<128x8xf32> -> vector<128x8xf32>
    %185 = arith.mulf %178, %184 : vector<128x8xf32>
    %186 = arith.mulf %176, %185 : vector<128x8xf32>
    %187 = arith.truncf %186 : vector<128x8xf32> to vector<128x8xbf16>
    %c0_60 = arith.constant 0 : index
    %c0_61 = arith.constant 0 : index
    %188 = vector.load %arg14[%c0_60, %c0_61] : memref<8x4xbf16, #tpu.memory_space<vmem>>, vector<8x4xbf16>
    %cst_62 = arith.constant dense<0.000000e+00> : vector<128x4xf32>
    %189 = tpu.matmul %187, %188, %cst_62 {dimension_numbers = #tpu.dot_dimension_numbers<[1], [0], [0], [1], [0, 0, 1, 1], [], []>} : vector<128x8xbf16>, vector<8x4xbf16>, vector<128x4xf32> -> vector<128x4xf32>
    %190 = arith.addf %138, %189 : vector<128x4xf32>
    %c0_63 = arith.constant 0 : index
    %c0_64 = arith.constant 0 : index
    %c0_65 = arith.constant 0 : index
    %191 = vector.load %arg15[%c0_63, %c0_64, %c0_65] : memref<1x128x4xf32, #tpu.memory_space<vmem>>, vector<1x128x4xf32>
    %192 = vector.shape_cast %191 : vector<1x128x4xf32> to vector<128x4xf32>
    %193 = vector.shape_cast %190 : vector<128x4xf32> to vector<1x128x4xf32>
    tpu.vector_store %arg15[%c0_63, %c0_64, %c0_65], %193 {strides = array<i32>} : memref<1x128x4xf32, #tpu.memory_space<vmem>>, vector<1x128x4xf32>,
    return
  }
  func.func @transform_0(%arg0: i32, %arg1: i32) -> (i32, i32, i32, i32) {
    %c0_i32 = arith.constant 0 : i32
    %c0_i32_0 = arith.constant 0 : i32
    %c0_i32_1 = arith.constant 0 : i32
    return %arg0, %arg1, %c0_i32, %c0_i32_0 : i32, i32, i32, i32
  }
  func.func @transform_1(%arg0: i32, %arg1: i32) -> (i32, i32) {
    %c0_i32 = arith.constant 0 : i32
    %c0_i32_0 = arith.constant 0 : i32
    %c0_i32_1 = arith.constant 0 : i32
    return %c0_i32, %c0_i32_0 : i32, i32
  }
  func.func @transform_2(%arg0: i32, %arg1: i32) -> (i32, i32) {
    %c0_i32 = arith.constant 0 : i32
    %c0_i32_0 = arith.constant 0 : i32
    %c0_i32_1 = arith.constant 0 : i32
    return %c0_i32, %c0_i32_0 : i32, i32
  }
  func.func @transform_3(%arg0: i32, %arg1: i32) -> (i32, i32) {
    %c0_i32 = arith.constant 0 : i32
    %c0_i32_0 = arith.constant 0 : i32
    %c0_i32_1 = arith.constant 0 : i32
    return %c0_i32, %c0_i32_0 : i32, i32
  }
  func.func @transform_4(%arg0: i32, %arg1: i32) -> (i32, i32) {
    %c0_i32 = arith.constant 0 : i32
    %c0_i32_0 = arith.constant 0 : i32
    %c0_i32_1 = arith.constant 0 : i32
    return %c0_i32, %c0_i32_0 : i32, i32
  }
  func.func @transform_5(%arg0: i32, %arg1: i32) -> (i32, i32) {
    %c0_i32 = arith.constant 0 : i32
    %c0_i32_0 = arith.constant 0 : i32
    %c0_i32_1 = arith.constant 0 : i32
    return %c0_i32, %c0_i32_0 : i32, i32
  }
  func.func @transform_6(%arg0: i32, %arg1: i32) -> (i32, i32) {
    %c0_i32 = arith.constant 0 : i32
    %c0_i32_0 = arith.constant 0 : i32
    %c0_i32_1 = arith.constant 0 : i32
    return %c0_i32, %c0_i32_0 : i32, i32
  }
  func.func @transform_7(%arg0: i32, %arg1: i32) -> (i32, i32) {
    %c0_i32 = arith.constant 0 : i32
    %c0_i32_0 = arith.constant 0 : i32
    %c0_i32_1 = arith.constant 0 : i32
    return %c0_i32, %c0_i32_0 : i32, i32
  }
  func.func @transform_8(%arg0: i32, %arg1: i32) -> (i32, i32) {
    %c0_i32 = arith.constant 0 : i32
    %c0_i32_0 = arith.constant 0 : i32
    %c0_i32_1 = arith.constant 0 : i32
    return %c0_i32, %c0_i32_0 : i32, i32
  }
  func.func @transform_9(%arg0: i32, %arg1: i32) -> (i32, i32) {
    %c0_i32 = arith.constant 0 : i32
    %c0_i32_0 = arith.constant 0 : i32
    %c0_i32_1 = arith.constant 0 : i32
    return %c0_i32, %c0_i32_0 : i32, i32
  }
  func.func @transform_10(%arg0: i32, %arg1: i32) -> (i32, i32) {
    %c0_i32 = arith.constant 0 : i32
    %c0_i32_0 = arith.constant 0 : i32
    %c0_i32_1 = arith.constant 0 : i32
    return %c0_i32, %c0_i32_0 : i32, i32
  }
  func.func @transform_11(%arg0: i32, %arg1: i32) -> (i32, i32) {
    %c0_i32 = arith.constant 0 : i32
    %c0_i32_0 = arith.constant 0 : i32
    %c0_i32_1 = arith.constant 0 : i32
    return %c0_i32, %c0_i32_0 : i32, i32
  }
  func.func @transform_12(%arg0: i32, %arg1: i32) -> (i32, i32) {
    %c0_i32 = arith.constant 0 : i32
    %c0_i32_0 = arith.constant 0 : i32
    %c0_i32_1 = arith.constant 0 : i32
    return %c0_i32, %c0_i32_0 : i32, i32
  }
  func.func @transform_13(%arg0: i32, %arg1: i32) -> (i32, i32, i32) {
    %c0_i32 = arith.constant 0 : i32
    %c0_i32_0 = arith.constant 0 : i32
    return %arg0, %arg1, %c0_i32 : i32, i32, i32
  }
}

</mosaic_0001>

<llo_original>
// kernel: tpu_custom_call.1
$region0: #{tpu_custom_call.1}
  #allocation0 [shape = 'u32[]', space=smem, size = 0x4, offset = 0x4, fixed_abs, tag = 'smem constant byte address 0x4 - core index']
  #allocation1 [shape = 'u32[144,128]{1,0:T(1,128)}', space=vmem, size = 0x12000, scoped, tag = 'internal scratch']
  %s0 = inlined_call_operand.vmem [shape: f32[2,2,160,4], index: 0, kind: input, shape index: {}]
  %s1 = inlined_call_operand.vmem [shape: f32[1,4], index: 1, kind: input, shape index: {}]
  %s2 = inlined_call_operand.vmem [shape: f32[1,4], index: 2, kind: input, shape index: {}]
  %s3 = inlined_call_operand.vmem [shape: bf16[4,8], index: 3, kind: input, shape index: {}]
  %s4 = inlined_call_operand.vmem [shape: bf16[4,8], index: 4, kind: input, shape index: {}]
  %s5 = inlined_call_operand.vmem [shape: f32[9,8], index: 5, kind: input, shape index: {}]
  %s6 = inlined_call_operand.vmem [shape: f32[1,8], index: 6, kind: input, shape index: {}]
  %s7 = inlined_call_operand.vmem [shape: f32[1,8], index: 7, kind: input, shape index: {}]
  %s8 = inlined_call_operand.vmem [shape: bf16[8,8], index: 8, kind: input, shape index: {}]
  %s9 = inlined_call_operand.vmem [shape: bf16[8,8], index: 9, kind: input, shape index: {}]
  %s10 = inlined_call_operand.vmem [shape: f32[1,8], index: 10, kind: input, shape index: {}]
  %s11 = inlined_call_operand.vmem [shape: f32[1,8], index: 11, kind: input, shape index: {}]
  %s12 = inlined_call_operand.vmem [shape: bf16[8,4], index: 12, kind: input, shape index: {}]
  %s13 = inlined_call_operand.vmem [shape: f32[2,256,4], index: 13, kind: output, shape index: {}]
  %s14 = sld [smem:[#allocation0]]
  $region85: #{tpu_custom_call.1} parent=0
    _
  %s16 = ssub.s32 1, %s14
  %s17 = scalar_select 0, %s16, %s14
  loop: start=0, step=1, limit=6
  $region2: #{tpu_custom_call.1} parent=0 // loop_pre_header
    _
  $region3: #{tpu_custom_call.1} parent=0 // loop_header
    %s19 = sphi 0, %s23
    %p20 = scmp.ge.s32.totalorder %s19, 6
    %s26 = sphi 0, %s38
    %s27 = sphi 0, %s34
    %s28 = sphi 0, %s26
    %s29 = sphi 0, %s27
    %s30 = sphi 0, %s28
    %s31 = sphi 0, %s29
    %s43 = sphi 0, %s45
    %s46 = sphi 0, %s43
    %s47 = sphi 0, %s46
    %s63 = sphi 0, %s47
    %s67 = sphi 0, %s67
    %s69 = sphi 0, %s67
    %s70 = sphi 0, %s69
    %s84 = sphi 0, %s70
    %s88 = sphi 0, %s88
    %s90 = sphi 0, %s88
    %s91 = sphi 0, %s90
    %s105 = sphi 0, %s91
    %s109 = sphi 0, %s109
    %s111 = sphi 0, %s109
    %s112 = sphi 0, %s111
    %s126 = sphi 0, %s112
    %s130 = sphi 0, %s130
    %s132 = sphi 0, %s130
    %s133 = sphi 0, %s132
    %s147 = sphi 0, %s133
    %s151 = sphi 0, %s151
    %s153 = sphi 0, %s151
    %s154 = sphi 0, %s153
    %s168 = sphi 0, %s154
    %s172 = sphi 0, %s172
    %s174 = sphi 0, %s172
    %s175 = sphi 0, %s174
    %s189 = sphi 0, %s175
    %s193 = sphi 0, %s193
    %s195 = sphi 0, %s193
    %s196 = sphi 0, %s195
    %s210 = sphi 0, %s196
    %s214 = sphi 0, %s214
    %s216 = sphi 0, %s214
    %s217 = sphi 0, %s216
    %s231 = sphi 0, %s217
    %s235 = sphi 0, %s235
    %s237 = sphi 0, %s235
    %s238 = sphi 0, %s237
    %s252 = sphi 0, %s238
    %s256 = sphi 0, %s256
    %s258 = sphi 0, %s256
    %s259 = sphi 0, %s258
    %s273 = sphi 0, %s259
    %s277 = sphi 0, %s277
    %s279 = sphi 0, %s277
    %s280 = sphi 0, %s279
    %s294 = sphi 0, %s280
    %s298 = sphi 0, %s298
    %s300 = sphi 0, %s298
    %s301 = sphi 0, %s300
    %s315 = sphi 0, %s301
    %s323 = sphi 0, %s325
    %s326 = sphi 0, %s323
    %s327 = sphi 0, %s326
    %s343 = sphi 0, %s327
  $region4: #{tpu_custom_call.1} parent=0 // loop_header_branch
    %22 = sbr.rel (%p20) target = $region8
  $region5: #{tpu_custom_call.1} parent=0 // loop_body
    %s24 = ssub.s32 %s19, 1
    %s25 = ssub.s32 %s19, 2
    %s32 = sadd.s32 1, %s27
    %p33 = scmp.ge.s32.totalorder %s32, 2
    %s34 = scalar_select %p33, 0, %s32
    %s35 = sadd.s32 1, %s26
    %s36 = scalar_select %p33, %s35, %s26
    %p37 = scmp.ge.s32.totalorder %s36, 2
    %s38 = scalar_select %p37, 0, %s36
    %s39 = ssub.s32 %s26, %s38
    %s40 = ssub.s32 %s27, %s34
    %s41 = sor.u32 %s39, %s40
    %p42 = scmp.eq.s32.totalorder %s41, 0
    %s44 = sadd.s32 %s43, 1
    %s45 = scalar_select %p42, %s43, %s44
    %p48 = pneg %p42
    %p49 = scmp.eq.s32.totalorder %s19, 3
    %p50 = por %p48, %p49
    %p51 = scmp.ne.s32.totalorder %s43, %s46
    %p52 = scmp.eq.s32.totalorder %s19, 0
    %p53 = por %p51, %p52
    %p54 = scmp.ne.s32.totalorder %s43, %s46
    %p55 = scmp.eq.s32.totalorder %s24, 3
    %p56 = por %p54, %p55
    %p57 = scmp.ne.s32.totalorder %s46, %s47
    %p58 = scmp.eq.s32.totalorder %s24, 0
    %p59 = por %p57, %p58
    %p60 = scmp.ne.s32.totalorder %s46, %s47
    %p61 = scmp.eq.s32.totalorder %s25, 3
    %p62 = por %p60, %p61
    %p64 = scmp.ne.s32.totalorder %s47, %s63
    %p65 = scmp.eq.s32.totalorder %s25, 0
    %p66 = por %p64, %p65
    %s68 = sadd.s32 %s67, 1
    %p71 = scmp.eq.s32.totalorder %s19, 3
    %p72 = scmp.ne.s32.totalorder %s67, %s69
    %p73 = scmp.eq.s32.totalorder %s19, 0
    %p74 = por %p72, %p73
    %p75 = scmp.ne.s32.totalorder %s67, %s69
    %p76 = scmp.eq.s32.totalorder %s24, 3
    %p77 = por %p75, %p76
    %p78 = scmp.ne.s32.totalorder %s69, %s70
    %p79 = scmp.eq.s32.totalorder %s24, 0
    %p80 = por %p78, %p79
    %p81 = scmp.ne.s32.totalorder %s69, %s70
    %p82 = scmp.eq.s32.totalorder %s25, 3
    %p83 = por %p81, %p82
    %p85 = scmp.ne.s32.totalorder %s70, %s84
    %p86 = scmp.eq.s32.totalorder %s25, 0
    %p87 = por %p85, %p86
    %s89 = sadd.s32 %s88, 1
    %p92 = scmp.eq.s32.totalorder %s19, 3
    %p93 = scmp.ne.s32.totalorder %s88, %s90
    %p94 = scmp.eq.s32.totalorder %s19, 0
    %p95 = por %p93, %p94
    %p96 = scmp.ne.s32.totalorder %s88, %s90
    %p97 = scmp.eq.s32.totalorder %s24, 3
    %p98 = por %p96, %p97
    %p99 = scmp.ne.s32.totalorder %s90, %s91
    %p100 = scmp.eq.s32.totalorder %s24, 0
    %p101 = por %p99, %p100
    %p102 = scmp.ne.s32.totalorder %s90, %s91
    %p103 = scmp.eq.s32.totalorder %s25, 3
    %p104 = por %p102, %p103
    %p106 = scmp.ne.s32.totalorder %s91, %s105
    %p107 = scmp.eq.s32.totalorder %s25, 0
    %p108 = por %p106, %p107
    %s110 = sadd.s32 %s109, 1
    %p113 = scmp.eq.s32.totalorder %s19, 3
    %p114 = scmp.ne.s32.totalorder %s109, %s111
    %p115 = scmp.eq.s32.totalorder %s19, 0
    %p116 = por %p114, %p115
    %p117 = scmp.ne.s32.totalorder %s109, %s111
    %p118 = scmp.eq.s32.totalorder %s24, 3
    %p119 = por %p117, %p118
    %p120 = scmp.ne.s32.totalorder %s111, %s112
    %p121 = scmp.eq.s32.totalorder %s24, 0
    %p122 = por %p120, %p121
    %p123 = scmp.ne.s32.totalorder %s111, %s112
    %p124 = scmp.eq.s32.totalorder %s25, 3
    %p125 = por %p123, %p124
    %p127 = scmp.ne.s32.totalorder %s112, %s126
    %p128 = scmp.eq.s32.totalorder %s25, 0
    %p129 = por %p127, %p128
    %s131 = sadd.s32 %s130, 1
    %p134 = scmp.eq.s32.totalorder %s19, 3
    %p135 = scmp.ne.s32.totalorder %s130, %s132
    %p136 = scmp.eq.s32.totalorder %s19, 0
    %p137 = por %p135, %p136
    %p138 = scmp.ne.s32.totalorder %s130, %s132
    %p139 = scmp.eq.s32.totalorder %s24, 3
    %p140 = por %p138, %p139
    %p141 = scmp.ne.s32.totalorder %s132, %s133
    %p142 = scmp.eq.s32.totalorder %s24, 0
    %p143 = por %p141, %p142
    %p144 = scmp.ne.s32.totalorder %s132, %s133
    %p145 = scmp.eq.s32.totalorder %s25, 3
    %p146 = por %p144, %p145
    %p148 = scmp.ne.s32.totalorder %s133, %s147
    %p149 = scmp.eq.s32.totalorder %s25, 0
    %p150 = por %p148, %p149
    %s152 = sadd.s32 %s151, 1
    %p155 = scmp.eq.s32.totalorder %s19, 3
    %p156 = scmp.ne.s32.totalorder %s151, %s153
    %p157 = scmp.eq.s32.totalorder %s19, 0
    %p158 = por %p156, %p157
    %p159 = scmp.ne.s32.totalorder %s151, %s153
    %p160 = scmp.eq.s32.totalorder %s24, 3
    %p161 = por %p159, %p160
    %p162 = scmp.ne.s32.totalorder %s153, %s154
    %p163 = scmp.eq.s32.totalorder %s24, 0
    %p164 = por %p162, %p163
    %p165 = scmp.ne.s32.totalorder %s153, %s154
    %p166 = scmp.eq.s32.totalorder %s25, 3
    %p167 = por %p165, %p166
    %p169 = scmp.ne.s32.totalorder %s154, %s168
    %p170 = scmp.eq.s32.totalorder %s25, 0
    %p171 = por %p169, %p170
    %s173 = sadd.s32 %s172, 1
    %p176 = scmp.eq.s32.totalorder %s19, 3
    %p177 = scmp.ne.s32.totalorder %s172, %s174
    %p178 = scmp.eq.s32.totalorder %s19, 0
    %p179 = por %p177, %p178
    %p180 = scmp.ne.s32.totalorder %s172, %s174
    %p181 = scmp.eq.s32.totalorder %s24, 3
    %p182 = por %p180, %p181
    %p183 = scmp.ne.s32.totalorder %s174, %s175
    %p184 = scmp.eq.s32.totalorder %s24, 0
    %p185 = por %p183, %p184
    %p186 = scmp.ne.s32.totalorder %s174, %s175
    %p187 = scmp.eq.s32.totalorder %s25, 3
    %p188 = por %p186, %p187
    %p190 = scmp.ne.s32.totalorder %s175, %s189
    %p191 = scmp.eq.s32.totalorder %s25, 0
    %p192 = por %p190, %p191
    %s194 = sadd.s32 %s193, 1
    %p197 = scmp.eq.s32.totalorder %s19, 3
    %p198 = scmp.ne.s32.totalorder %s193, %s195
    %p199 = scmp.eq.s32.totalorder %s19, 0
    %p200 = por %p198, %p199
    %p201 = scmp.ne.s32.totalorder %s193, %s195
    %p202 = scmp.eq.s32.totalorder %s24, 3
    %p203 = por %p201, %p202
    %p204 = scmp.ne.s32.totalorder %s195, %s196
    %p205 = scmp.eq.s32.totalorder %s24, 0
    %p206 = por %p204, %p205
    %p207 = scmp.ne.s32.totalorder %s195, %s196
    %p208 = scmp.eq.s32.totalorder %s25, 3
    %p209 = por %p207, %p208
    %p211 = scmp.ne.s32.totalorder %s196, %s210
    %p212 = scmp.eq.s32.totalorder %s25, 0
    %p213 = por %p211, %p212
    %s215 = sadd.s32 %s214, 1
    %p218 = scmp.eq.s32.totalorder %s19, 3
    %p219 = scmp.ne.s32.totalorder %s214, %s216
    %p220 = scmp.eq.s32.totalorder %s19, 0
    %p221 = por %p219, %p220
    %p222 = scmp.ne.s32.totalorder %s214, %s216
    %p223 = scmp.eq.s32.totalorder %s24, 3
    %p224 = por %p222, %p223
    %p225 = scmp.ne.s32.totalorder %s216, %s217
    %p226 = scmp.eq.s32.totalorder %s24, 0
    %p227 = por %p225, %p226
    %p228 = scmp.ne.s32.totalorder %s216, %s217
    %p229 = scmp.eq.s32.totalorder %s25, 3
    %p230 = por %p228, %p229
    %p232 = scmp.ne.s32.totalorder %s217, %s231
    %p233 = scmp.eq.s32.totalorder %s25, 0
    %p234 = por %p232, %p233
    %s236 = sadd.s32 %s235, 1
    %p239 = scmp.eq.s32.totalorder %s19, 3
    %p240 = scmp.ne.s32.totalorder %s235, %s237
    %p241 = scmp.eq.s32.totalorder %s19, 0
    %p242 = por %p240, %p241
    %p243 = scmp.ne.s32.totalorder %s235, %s237
    %p244 = scmp.eq.s32.totalorder %s24, 3
    %p245 = por %p243, %p244
    %p246 = scmp.ne.s32.totalorder %s237, %s238
    %p247 = scmp.eq.s32.totalorder %s24, 0
    %p248 = por %p246, %p247
    %p249 = scmp.ne.s32.totalorder %s237, %s238
    %p250 = scmp.eq.s32.totalorder %s25, 3
    %p251 = por %p249, %p250
    %p253 = scmp.ne.s32.totalorder %s238, %s252
    %p254 = scmp.eq.s32.totalorder %s25, 0
    %p255 = por %p253, %p254
    %s257 = sadd.s32 %s256, 1
    %p260 = scmp.eq.s32.totalorder %s19, 3
    %p261 = scmp.ne.s32.totalorder %s256, %s258
    %p262 = scmp.eq.s32.totalorder %s19, 0
    %p263 = por %p261, %p262
    %p264 = scmp.ne.s32.totalorder %s256, %s258
    %p265 = scmp.eq.s32.totalorder %s24, 3
    %p266 = por %p264, %p265
    %p267 = scmp.ne.s32.totalorder %s258, %s259
    %p268 = scmp.eq.s32.totalorder %s24, 0
    %p269 = por %p267, %p268
    %p270 = scmp.ne.s32.totalorder %s258, %s259
    %p271 = scmp.eq.s32.totalorder %s25, 3
    %p272 = por %p270, %p271
    %p274 = scmp.ne.s32.totalorder %s259, %s273
    %p275 = scmp.eq.s32.totalorder %s25, 0
    %p276 = por %p274, %p275
    %s278 = sadd.s32 %s277, 1
    %p281 = scmp.eq.s32.totalorder %s19, 3
    %p282 = scmp.ne.s32.totalorder %s277, %s279
    %p283 = scmp.eq.s32.totalorder %s19, 0
    %p284 = por %p282, %p283
    %p285 = scmp.ne.s32.totalorder %s277, %s279
    %p286 = scmp.eq.s32.totalorder %s24, 3
    %p287 = por %p285, %p286
    %p288 = scmp.ne.s32.totalorder %s279, %s280
    %p289 = scmp.eq.s32.totalorder %s24, 0
    %p290 = por %p288, %p289
    %p291 = scmp.ne.s32.totalorder %s279, %s280
    %p292 = scmp.eq.s32.totalorder %s25, 3
    %p293 = por %p291, %p292
    %p295 = scmp.ne.s32.totalorder %s280, %s294
    %p296 = scmp.eq.s32.totalorder %s25, 0
    %p297 = por %p295, %p296
    %s299 = sadd.s32 %s298, 1
    %p302 = scmp.eq.s32.totalorder %s19, 3
    %p303 = scmp.ne.s32.totalorder %s298, %s300
    %p304 = scmp.eq.s32.totalorder %s19, 0
    %p305 = por %p303, %p304
    %p306 = scmp.ne.s32.totalorder %s298, %s300
    %p307 = scmp.eq.s32.totalorder %s24, 3
    %p308 = por %p306, %p307
    %p309 = scmp.ne.s32.totalorder %s300, %s301
    %p310 = scmp.eq.s32.totalorder %s24, 0
    %p311 = por %p309, %p310
    %p312 = scmp.ne.s32.totalorder %s300, %s301
    %p313 = scmp.eq.s32.totalorder %s25, 3
    %p314 = por %p312, %p313
    %p316 = scmp.ne.s32.totalorder %s301, %s315
    %p317 = scmp.eq.s32.totalorder %s25, 0
    %p318 = por %p316, %p317
    %s319 = ssub.s32 %s26, %s38
    %s320 = ssub.s32 %s27, %s34
    %s321 = sor.u32 %s319, %s320
    %p322 = scmp.eq.s32.totalorder %s321, 0
    %s324 = sadd.s32 %s323, 1
    %s325 = scalar_select %p322, %s323, %s324
    %p328 = pneg %p322
    %p329 = scmp.eq.s32.totalorder %s19, 3
    %p330 = por %p328, %p329
    %p331 = scmp.ne.s32.totalorder %s323, %s326
    %p332 = scmp.eq.s32.totalorder %s19, 0
    %p333 = por %p331, %p332
    %p334 = scmp.ne.s32.totalorder %s323, %s326
    %p335 = scmp.eq.s32.totalorder %s24, 3
    %p336 = por %p334, %p335
    %p337 = scmp.ne.s32.totalorder %s326, %s327
    %p338 = scmp.eq.s32.totalorder %s24, 0
    %p339 = por %p337, %p338
    %p340 = scmp.ne.s32.totalorder %s326, %s327
    %p341 = scmp.eq.s32.totalorder %s25, 3
    %p342 = por %p340, %p341
    %p344 = scmp.ne.s32.totalorder %s327, %s343
    %p345 = scmp.eq.s32.totalorder %s25, 0
    %p346 = por %p344, %p345
    %p347 = scmp.le.s32.totalorder 1, %s19
    %p348 = scmp.lt.s32.totalorder %s19, 5
    %p349 = pnand %p347, %p348
    %p350 = pneg %p349
    // Predicated region
    $region9: #{tpu_custom_call.1} parent=5 // pred_check
      _
    $region10: #{tpu_custom_call.1} parent=5 // pred_check_branch
      %352 = sbr.rel (%p349) target = $region12
    $region11: #{tpu_custom_call.1} parent=5 // pred_region
      %s353 = ssub.s32 %s19, 1
      // Predicated region
      $region13: #{tpu_custom_call.1} parent=11 // pred_check
        %p354 = pneg %p80
      $region14: #{tpu_custom_call.1} parent=11 // pred_check_branch
        %356 = sbr.rel (%p354) target = $region16
      $region15: #{tpu_custom_call.1} parent=11 // pred_region
        _
      $region16: #{tpu_custom_call.1} parent=11 // pred_fallthru
        _
      // Predicated region
      $region17: #{tpu_custom_call.1} parent=11 // pred_check
        %p357 = pneg %p101
      $region18: #{tpu_custom_call.1} parent=11 // pred_check_branch
        %359 = sbr.rel (%p357) target = $region20
      $region19: #{tpu_custom_call.1} parent=11 // pred_region
        _
      $region20: #{tpu_custom_call.1} parent=11 // pred_fallthru
        _
      // Predicated region
      $region21: #{tpu_custom_call.1} parent=11 // pred_check
        %p360 = pneg %p122
      $region22: #{tpu_custom_call.1} parent=11 // pred_check_branch
        %362 = sbr.rel (%p360) target = $region24
      $region23: #{tpu_custom_call.1} parent=11 // pred_region
        _
      $region24: #{tpu_custom_call.1} parent=11 // pred_fallthru
        _
      // Predicated region
      $region25: #{tpu_custom_call.1} parent=11 // pred_check
        %p363 = pneg %p143
      $region26: #{tpu_custom_call.1} parent=11 // pred_check_branch
        %365 = sbr.rel (%p363) target = $region28
      $region27: #{tpu_custom_call.1} parent=11 // pred_region
        _
      $region28: #{tpu_custom_call.1} parent=11 // pred_fallthru
        _
      // Predicated region
      $region29: #{tpu_custom_call.1} parent=11 // pred_check
        %p366 = pneg %p164
      $region30: #{tpu_custom_call.1} parent=11 // pred_check_branch
        %368 = sbr.rel (%p366) target = $region32
      $region31: #{tpu_custom_call.1} parent=11 // pred_region
        _
      $region32: #{tpu_custom_call.1} parent=11 // pred_fallthru
        _
      // Predicated region
      $region33: #{tpu_custom_call.1} parent=11 // pred_check
        %p369 = pneg %p185
      $region34: #{tpu_custom_call.1} parent=11 // pred_check_branch
        %371 = sbr.rel (%p369) target = $region36
      $region35: #{tpu_custom_call.1} parent=11 // pred_region
        _
      $region36: #{tpu_custom_call.1} parent=11 // pred_fallthru
        _
      // Predicated region
      $region37: #{tpu_custom_call.1} parent=11 // pred_check
        %p372 = pneg %p206
      $region38: #{tpu_custom_call.1} parent=11 // pred_check_branch
        %374 = sbr.rel (%p372) target = $region40
      $region39: #{tpu_custom_call.1} parent=11 // pred_region
        _
      $region40: #{tpu_custom_call.1} parent=11 // pred_fallthru
        _
      // Predicated region
      $region41: #{tpu_custom_call.1} parent=11 // pred_check
        %p375 = pneg %p227
      $region42: #{tpu_custom_call.1} parent=11 // pred_check_branch
        %377 = sbr.rel (%p375) target = $region44
      $region43: #{tpu_custom_call.1} parent=11 // pred_region
        _
      $region44: #{tpu_custom_call.1} parent=11 // pred_fallthru
        _
      // Predicated region
      $region45: #{tpu_custom_call.1} parent=11 // pred_check
        %p378 = pneg %p248
      $region46: #{tpu_custom_call.1} parent=11 // pred_check_branch
        %380 = sbr.rel (%p378) target = $region48
      $region47: #{tpu_custom_call.1} parent=11 // pred_region
        _
      $region48: #{tpu_custom_call.1} parent=11 // pred_fallthru
        _
      // Predicated region
      $region49: #{tpu_custom_call.1} parent=11 // pred_check
        %p381 = pneg %p269
      $region50: #{tpu_custom_call.1} parent=11 // pred_check_branch
        %383 = sbr.rel (%p381) target = $region52
      $region51: #{tpu_custom_call.1} parent=11 // pred_region
        _
      $region52: #{tpu_custom_call.1} parent=11 // pred_fallthru
        _
      // Predicated region
      $region53: #{tpu_custom_call.1} parent=11 // pred_check
        %p384 = pneg %p290
      $region54: #{tpu_custom_call.1} parent=11 // pred_check_branch
        %386 = sbr.rel (%p384) target = $region56
      $region55: #{tpu_custom_call.1} parent=11 // pred_region
        _
      $region56: #{tpu_custom_call.1} parent=11 // pred_fallthru
        _
      // Predicated region
      $region57: #{tpu_custom_call.1} parent=11 // pred_check
        %p387 = pneg %p311
      $region58: #{tpu_custom_call.1} parent=11 // pred_check_branch
        %389 = sbr.rel (%p387) target = $region60
      $region59: #{tpu_custom_call.1} parent=11 // pred_region
        _
      $region60: #{tpu_custom_call.1} parent=11 // pred_fallthru
        _
    $region12: #{tpu_custom_call.1} parent=5 // pred_fallthru
      _
    %p390 = scmp.lt.s32.totalorder %s19, 4
    // Predicated region
    $region61: #{tpu_custom_call.1} parent=5 // pred_check
      %p391 = pneg %p390
    $region62: #{tpu_custom_call.1} parent=5 // pred_check_branch
      %393 = sbr.rel (%p391) target = $region64
    $region63: #{tpu_custom_call.1} parent=5 // pred_region
      // Predicated region
      $region65: #{tpu_custom_call.1} parent=63 // pred_check
        %p394 = pneg %p53
      $region66: #{tpu_custom_call.1} parent=63 // pred_check_branch
        %396 = sbr.rel (%p394) target = $region68
      $region67: #{tpu_custom_call.1} parent=63 // pred_region
        %p397 = scmp.lt.s32.totalorder %s26, 1
        %s398 = scalar_select %p397, %s26, 1
        %p399 = scmp.lt.s32.totalorder %s27, 1
        %s400 = scalar_select %p399, %s27, 1
        %s401 = smul.addr %s400, 20
        %s402 = smul.addr %s398, 40
        %s403 = sadd.s32 %s401, %s402
        %s404 = smul.addr %s403, 8
        %s405 = scalar_lea.vmem %s0, %s404
      $region68: #{tpu_custom_call.1} parent=63 // pred_fallthru
        _
    $region64: #{tpu_custom_call.1} parent=5 // pred_fallthru
      _
    %p406 = scmp.le.s32.totalorder 1, %s19
    %p407 = scmp.lt.s32.totalorder %s19, 5
    %p408 = pnand %p406, %p407
    %p409 = pneg %p408
    // Predicated region
    $region69: #{tpu_custom_call.1} parent=5 // pred_check
      _
    $region70: #{tpu_custom_call.1} parent=5 // pred_check_branch
      %411 = sbr.rel (%p408) target = $region72
    $region71: #{tpu_custom_call.1} parent=5 // pred_region
      %s412 = ssub.s32 %s19, 1
      %p413 = scmp.lt.s32.totalorder %s28, 1
      %s414 = scalar_select %p413, %s28, 1
      %p415 = scmp.lt.s32.totalorder %s29, 1
      %s416 = scalar_select %p415, %s29, 1
      %s417 = smul.addr %s416, 20
      %s418 = smul.addr %s414, 40
      %s419 = sadd.s32 %s417, %s418
      %s420 = smul.addr %s419, 8
      %s421 = scalar_lea.vmem %s0, %s420
      %p422 = pneg %p59
      %p423 = pneg %p56
      %p424 = pneg %p80
      %p425 = pneg %p77
      %p426 = pneg %p101
      %p427 = pneg %p98
      %p428 = pneg %p122
      %p429 = pneg %p119
      %p430 = pneg %p143
      %p431 = pneg %p140
      %p432 = pneg %p164
      %p433 = pneg %p161
      %p434 = pneg %p185
      %p435 = pneg %p182
      %p436 = pneg %p206
      %p437 = pneg %p203
      %p438 = pneg %p227
      %p439 = pneg %p224
      %p440 = pneg %p248
      %p441 = pneg %p245
      %p442 = pneg %p269
      %p443 = pneg %p266
      %p444 = pneg %p290
      %p445 = pneg %p287
      %p446 = pneg %p311
      %p447 = pneg %p308
      %p448 = pneg %p339
      %p449 = pneg %p336
      %s450 = smul.u32 16, %s29
      %p451 = scmp.lt.s32.totalorder %s28, 1
      %s452 = scalar_select %p451, %s28, 1
      %p453 = scmp.lt.s32.totalorder %s450, 31
      %s454 = scalar_select %p453, %s450, 31
      %s455 = smul.addr %s452, 32
      %s456 = sadd.s32 %s454, %s455
      %s457 = smul.addr %s456, 8
      %s458 = scalar_lea.vmem %s13, %s457
      %p459 = scmp.lt.s32.totalorder %s28, 1
      %s460 = scalar_select %p459, %s28, 1
      %p461 = scmp.lt.s32.totalorder %s29, 1
      %s462 = scalar_select %p461, %s29, 1
      %s463 = smul.addr %s462, 20
      %s464 = smul.addr %s460, 40
      %s465 = sadd.s32 %s463, %s464
      %s466 = smul.addr %s465, 8
      %s467 = scalar_lea.vmem %s0, %s466
      %s468 = smul.u32 16, %s29
      %p469 = scmp.lt.s32.totalorder %s28, 1
      %s470 = scalar_select %p469, %s28, 1
      %p471 = scmp.lt.s32.totalorder %s468, 31
      %s472 = scalar_select %p471, %s468, 31
      %s473 = smul.addr %s470, 32
      %s474 = sadd.s32 %s472, %s473
      %s475 = smul.addr %s474, 8
      %s476 = scalar_lea.vmem %s13, %s475
      %s477 = smul.u32 16, %s29
      %v479 = vld [vmem:[%s467] sm:$0xff]
      %v480 = vld [vmem:[%s467 + $0x8] sm:$0xff]
      %v481 = vld [vmem:[%s467 + $0x10] sm:$0xff]
      %v482 = vld [vmem:[%s467 + $0x18] sm:$0xff]
      %v483 = vld [vmem:[%s467 + $0x20] sm:$0xff]
      %v484 = vld [vmem:[%s467 + $0x28] sm:$0xff]
      %v485 = vld [vmem:[%s467 + $0x30] sm:$0xff]
      %v486 = vld [vmem:[%s467 + $0x38] sm:$0xff]
      %v487 = vld [vmem:[%s467 + $0x40] sm:$0xff]
      %v488 = vld [vmem:[%s467 + $0x48] sm:$0xff]
      %v489 = vld [vmem:[%s467 + $0x50] sm:$0xff]
      %v490 = vld [vmem:[%s467 + $0x58] sm:$0xff]
      %v491 = vld [vmem:[%s467 + $0x60] sm:$0xff]
      %v492 = vld [vmem:[%s467 + $0x68] sm:$0xff]
      %v493 = vld [vmem:[%s467 + $0x70] sm:$0xff]
      %v494 = vld [vmem:[%s467 + $0x78] sm:$0xff]
      %v495 = vld [vmem:[%s467 + $0x80] sm:$0xff]
      %v496 = vld [vmem:[%s467 + $0x88] sm:$0xff]
      %v497 = vld [vmem:[%s467 + $0x90] sm:$0xff]
      %v498 = vld [vmem:[%s467 + $0x98] sm:$0xff]
      %vm499 = vcmask 31744
      %v500 = vsel %vm499, %v479, 0.0
      %501 = vadd.xlane.f32.xlu0 %v500
      %v502 = vpop.xlane.xlu0 %501
      %v503 = vsel %vm499, %v480, 0.0
      %504 = vadd.xlane.f32.xlu0 %v503
      %v505 = vpop.xlane.xlu0 %504
      %v506 = vsel %vm499, %v481, 0.0
      %507 = vadd.xlane.f32.xlu0 %v506
      %v508 = vpop.xlane.xlu0 %507
      %v509 = vsel %vm499, %v482, 0.0
      %510 = vadd.xlane.f32.xlu0 %v509
      %v511 = vpop.xlane.xlu0 %510
      %v512 = vsel %vm499, %v483, 0.0
      %513 = vadd.xlane.f32.xlu0 %v512
      %v514 = vpop.xlane.xlu0 %513
      %v515 = vsel %vm499, %v484, 0.0
      %516 = vadd.xlane.f32.xlu0 %v515
      %v517 = vpop.xlane.xlu0 %516
      %v518 = vsel %vm499, %v485, 0.0
      %519 = vadd.xlane.f32.xlu0 %v518
      %v520 = vpop.xlane.xlu0 %519
      %v521 = vsel %vm499, %v486, 0.0
      %522 = vadd.xlane.f32.xlu0 %v521
      %v523 = vpop.xlane.xlu0 %522
      %v524 = vsel %vm499, %v487, 0.0
      %525 = vadd.xlane.f32.xlu0 %v524
      %v526 = vpop.xlane.xlu0 %525
      %v527 = vsel %vm499, %v488, 0.0
      %528 = vadd.xlane.f32.xlu0 %v527
      %v529 = vpop.xlane.xlu0 %528
      %v530 = vsel %vm499, %v489, 0.0
      %531 = vadd.xlane.f32.xlu0 %v530
      %v532 = vpop.xlane.xlu0 %531
      %v533 = vsel %vm499, %v490, 0.0
      %534 = vadd.xlane.f32.xlu0 %v533
      %v535 = vpop.xlane.xlu0 %534
      %v536 = vsel %vm499, %v491, 0.0
      %537 = vadd.xlane.f32.xlu0 %v536
      %v538 = vpop.xlane.xlu0 %537
      %v539 = vsel %vm499, %v492, 0.0
      %540 = vadd.xlane.f32.xlu0 %v539
      %v541 = vpop.xlane.xlu0 %540
      %v542 = vsel %vm499, %v493, 0.0
      %543 = vadd.xlane.f32.xlu0 %v542
      %v544 = vpop.xlane.xlu0 %543
      %v545 = vsel %vm499, %v494, 0.0
      %546 = vadd.xlane.f32.xlu0 %v545
      %v547 = vpop.xlane.xlu0 %546
      %v548 = vsel %vm499, %v495, 0.0
      %549 = vadd.xlane.f32.xlu0 %v548
      %v550 = vpop.xlane.xlu0 %549
      %v551 = vsel %vm499, %v496, 0.0
      %552 = vadd.xlane.f32.xlu0 %v551
      %v553 = vpop.xlane.xlu0 %552
      %v554 = vsel %vm499, %v497, 0.0
      %555 = vadd.xlane.f32.xlu0 %v554
      %v556 = vpop.xlane.xlu0 %555
      %v557 = vsel %vm499, %v498, 0.0
      %558 = vadd.xlane.f32.xlu0 %v557
      %v559 = vpop.xlane.xlu0 %558
      %v560 = vrcp.pop 4.0
      %v561 = vmul.f32 %v502, %v560
      %v562 = vmul.f32 %v505, %v560
      %v563 = vmul.f32 %v508, %v560
      %v564 = vmul.f32 %v511, %v560
      %v565 = vmul.f32 %v514, %v560
      %v566 = vmul.f32 %v517, %v560
      %v567 = vmul.f32 %v520, %v560
      %v568 = vmul.f32 %v523, %v560
      %v569 = vmul.f32 %v526, %v560
      %v570 = vmul.f32 %v529, %v560
      %v571 = vmul.f32 %v532, %v560
      %v572 = vmul.f32 %v535, %v560
      %v573 = vmul.f32 %v538, %v560
      %v574 = vmul.f32 %v541, %v560
      %v575 = vmul.f32 %v544, %v560
      %v576 = vmul.f32 %v547, %v560
      %v577 = vmul.f32 %v550, %v560
      %v578 = vmul.f32 %v553, %v560
      %v579 = vmul.f32 %v556, %v560
      %v580 = vmul.f32 %v559, %v560
      %v581 = vsub.f32 %v479, %v561
      %v582 = vsub.f32 %v480, %v562
      %v583 = vsub.f32 %v481, %v563
      %v584 = vsub.f32 %v482, %v564
      %v585 = vsub.f32 %v483, %v565
      %v586 = vsub.f32 %v484, %v566
      %v587 = vsub.f32 %v485, %v567
      %v588 = vsub.f32 %v486, %v568
      %v589 = vsub.f32 %v487, %v569
      %v590 = vsub.f32 %v488, %v570
      %v591 = vsub.f32 %v489, %v571
      %v592 = vsub.f32 %v490, %v572
      %v593 = vsub.f32 %v491, %v573
      %v594 = vsub.f32 %v492, %v574
      %v595 = vsub.f32 %v493, %v575
      %v596 = vsub.f32 %v494, %v576
      %v597 = vsub.f32 %v495, %v577
      %v598 = vsub.f32 %v496, %v578
      %v599 = vsub.f32 %v497, %v579
      %v600 = vsub.f32 %v498, %v580
      %v601 = vmul.f32 %v581, %v581
      %v602 = vmul.f32 %v582, %v582
      %v603 = vmul.f32 %v583, %v583
      %v604 = vmul.f32 %v584, %v584
      %v605 = vmul.f32 %v585, %v585
      %v606 = vmul.f32 %v586, %v586
      %v607 = vmul.f32 %v587, %v587
      %v608 = vmul.f32 %v588, %v588
      %v609 = vmul.f32 %v589, %v589
      %v610 = vmul.f32 %v590, %v590
      %v611 = vmul.f32 %v591, %v591
      %v612 = vmul.f32 %v592, %v592
      %v613 = vmul.f32 %v593, %v593
      %v614 = vmul.f32 %v594, %v594
      %v615 = vmul.f32 %v595, %v595
      %v616 = vmul.f32 %v596, %v596
      %v617 = vmul.f32 %v597, %v597
      %v618 = vmul.f32 %v598, %v598
      %v619 = vmul.f32 %v599, %v599
      %v620 = vmul.f32 %v600, %v600
      %v621 = vsel %vm499, %v601, 0.0
      %622 = vadd.xlane.f32.xlu0 %v621
      %v623 = vpop.xlane.xlu0 %622
      %v624 = vsel %vm499, %v602, 0.0
      %625 = vadd.xlane.f32.xlu0 %v624
      %v626 = vpop.xlane.xlu0 %625
      %v627 = vsel %vm499, %v603, 0.0
      %628 = vadd.xlane.f32.xlu0 %v627
      %v629 = vpop.xlane.xlu0 %628
      %v630 = vsel %vm499, %v604, 0.0
      %631 = vadd.xlane.f32.xlu0 %v630
      %v632 = vpop.xlane.xlu0 %631
      %v633 = vsel %vm499, %v605, 0.0
      %634 = vadd.xlane.f32.xlu0 %v633
      %v635 = vpop.xlane.xlu0 %634
      %v636 = vsel %vm499, %v606, 0.0
      %637 = vadd.xlane.f32.xlu0 %v636
      %v638 = vpop.xlane.xlu0 %637
      %v639 = vsel %vm499, %v607, 0.0
      %640 = vadd.xlane.f32.xlu0 %v639
      %v641 = vpop.xlane.xlu0 %640
      %v642 = vsel %vm499, %v608, 0.0
      %643 = vadd.xlane.f32.xlu0 %v642
      %v644 = vpop.xlane.xlu0 %643
      %v645 = vsel %vm499, %v609, 0.0
      %646 = vadd.xlane.f32.xlu0 %v645
      %v647 = vpop.xlane.xlu0 %646
      %v648 = vsel %vm499, %v610, 0.0
      %649 = vadd.xlane.f32.xlu0 %v648
      %v650 = vpop.xlane.xlu0 %649
      %v651 = vsel %vm499, %v611, 0.0
      %652 = vadd.xlane.f32.xlu0 %v651
      %v653 = vpop.xlane.xlu0 %652
      %v654 = vsel %vm499, %v612, 0.0
      %655 = vadd.xlane.f32.xlu0 %v654
      %v656 = vpop.xlane.xlu0 %655
      %v657 = vsel %vm499, %v613, 0.0
      %658 = vadd.xlane.f32.xlu0 %v657
      %v659 = vpop.xlane.xlu0 %658
      %v660 = vsel %vm499, %v614, 0.0
      %661 = vadd.xlane.f32.xlu0 %v660
      %v662 = vpop.xlane.xlu0 %661
      %v663 = vsel %vm499, %v615, 0.0
      %664 = vadd.xlane.f32.xlu0 %v663
      %v665 = vpop.xlane.xlu0 %664
      %v666 = vsel %vm499, %v616, 0.0
      %667 = vadd.xlane.f32.xlu0 %v666
      %v668 = vpop.xlane.xlu0 %667
      %v669 = vsel %vm499, %v617, 0.0
      %670 = vadd.xlane.f32.xlu0 %v669
      %v671 = vpop.xlane.xlu0 %670
      %v672 = vsel %vm499, %v618, 0.0
      %673 = vadd.xlane.f32.xlu0 %v672
      %v674 = vpop.xlane.xlu0 %673
      %v675 = vsel %vm499, %v619, 0.0
      %676 = vadd.xlane.f32.xlu0 %v675
      %v677 = vpop.xlane.xlu0 %676
      %v678 = vsel %vm499, %v620, 0.0
      %679 = vadd.xlane.f32.xlu0 %v678
      %v680 = vpop.xlane.xlu0 %679
      %v681 = vmul.f32 %v623, %v560
      %v682 = vmul.f32 %v626, %v560
      %v683 = vmul.f32 %v629, %v560
      %v684 = vmul.f32 %v632, %v560
      %v685 = vmul.f32 %v635, %v560
      %v686 = vmul.f32 %v638, %v560
      %v687 = vmul.f32 %v641, %v560
      %v688 = vmul.f32 %v644, %v560
      %v689 = vmul.f32 %v647, %v560
      %v690 = vmul.f32 %v650, %v560
      %v691 = vmul.f32 %v653, %v560
      %v692 = vmul.f32 %v656, %v560
      %v693 = vmul.f32 %v659, %v560
      %v694 = vmul.f32 %v662, %v560
      %v695 = vmul.f32 %v665, %v560
      %v696 = vmul.f32 %v668, %v560
      %v697 = vmul.f32 %v671, %v560
      %v698 = vmul.f32 %v674, %v560
      %v699 = vmul.f32 %v677, %v560
      %v700 = vmul.f32 %v680, %v560
      %v701 = vadd.f32 %v681, 1e-05
      %v702 = vadd.f32 %v682, 1e-05
      %v703 = vadd.f32 %v683, 1e-05
      %v704 = vadd.f32 %v684, 1e-05
      %v705 = vadd.f32 %v685, 1e-05
      %v706 = vadd.f32 %v686, 1e-05
      %v707 = vadd.f32 %v687, 1e-05
      %v708 = vadd.f32 %v688, 1e-05
      %v709 = vadd.f32 %v689, 1e-05
      %v710 = vadd.f32 %v690, 1e-05
      %v711 = vadd.f32 %v691, 1e-05
      %v712 = vadd.f32 %v692, 1e-05
      %v713 = vadd.f32 %v693, 1e-05
      %v714 = vadd.f32 %v694, 1e-05
      %v715 = vadd.f32 %v695, 1e-05
      %v716 = vadd.f32 %v696, 1e-05
      %v717 = vadd.f32 %v697, 1e-05
      %v718 = vadd.f32 %v698, 1e-05
      %v719 = vadd.f32 %v699, 1e-05
      %v720 = vadd.f32 %v700, 1e-05
      %v721 = vrsqrt.pop %v701
      %v722 = vrsqrt.pop %v702
      %v723 = vrsqrt.pop %v703
      %v724 = vrsqrt.pop %v704
      %v725 = vrsqrt.pop %v705
      %v726 = vrsqrt.pop %v706
      %v727 = vrsqrt.pop %v707
      %v728 = vrsqrt.pop %v708
      %v729 = vrsqrt.pop %v709
      %v730 = vrsqrt.pop %v710
      %v731 = vrsqrt.pop %v711
      %v732 = vrsqrt.pop %v712
      %v733 = vrsqrt.pop %v713
      %v734 = vrsqrt.pop %v714
      %v735 = vrsqrt.pop %v715
      %v736 = vrsqrt.pop %v716
      %v737 = vrsqrt.pop %v717
      %v738 = vrsqrt.pop %v718
      %v739 = vrsqrt.pop %v719
      %v740 = vrsqrt.pop %v720
      %v741 = vmul.f32 %v581, %v721
      %v742 = vmul.f32 %v582, %v722
      %v743 = vmul.f32 %v583, %v723
      %v744 = vmul.f32 %v584, %v724
      %v745 = vmul.f32 %v585, %v725
      %v746 = vmul.f32 %v586, %v726
      %v747 = vmul.f32 %v587, %v727
      %v748 = vmul.f32 %v588, %v728
      %v749 = vmul.f32 %v589, %v729
      %v750 = vmul.f32 %v590, %v730
      %v751 = vmul.f32 %v591, %v731
      %v752 = vmul.f32 %v592, %v732
      %v753 = vmul.f32 %v593, %v733
      %v754 = vmul.f32 %v594, %v734
      %v755 = vmul.f32 %v595, %v735
      %v756 = vmul.f32 %v596, %v736
      %v757 = vmul.f32 %v597, %v737
      %v758 = vmul.f32 %v598, %v738
      %v759 = vmul.f32 %v599, %v739
      %v760 = vmul.f32 %v600, %v740
      %v761 = vld [vmem:[%s1] sm:$0x1]
      %v763 = vlaneseq
      %v764 = vshrl.u32 %v763, 7
      %v765 = vsub.s32 0, %v764
      %v766 = vrot.slane %v761, %v765
      %v768 = vmul.f32 %v741, %v766
      %v769 = vmul.f32 %v742, %v766
      %v770 = vmul.f32 %v743, %v766
      %v771 = vmul.f32 %v744, %v766
      %v772 = vmul.f32 %v745, %v766
      %v773 = vmul.f32 %v746, %v766
      %v774 = vmul.f32 %v747, %v766
      %v775 = vmul.f32 %v748, %v766
      %v776 = vmul.f32 %v749, %v766
      %v777 = vmul.f32 %v750, %v766
      %v778 = vmul.f32 %v751, %v766
      %v779 = vmul.f32 %v752, %v766
      %v780 = vmul.f32 %v753, %v766
      %v781 = vmul.f32 %v754, %v766
      %v782 = vmul.f32 %v755, %v766
      %v783 = vmul.f32 %v756, %v766
      %v784 = vmul.f32 %v757, %v766
      %v785 = vmul.f32 %v758, %v766
      %v786 = vmul.f32 %v759, %v766
      %v787 = vmul.f32 %v760, %v766
      %v788 = vld [vmem:[%s2] sm:$0x1]
      %v790 = vlaneseq
      %v791 = vshrl.u32 %v790, 7
      %v792 = vsub.s32 0, %v791
      %v793 = vrot.slane %v788, %v792
      %v795 = vadd.f32 %v768, %v793
      %v796 = vadd.f32 %v769, %v793
      %v797 = vadd.f32 %v770, %v793
      %v798 = vadd.f32 %v771, %v793
      %v799 = vadd.f32 %v772, %v793
      %v800 = vadd.f32 %v773, %v793
      %v801 = vadd.f32 %v774, %v793
      %v802 = vadd.f32 %v775, %v793
      %v803 = vadd.f32 %v776, %v793
      %v804 = vadd.f32 %v777, %v793
      %v805 = vadd.f32 %v778, %v793
      %v806 = vadd.f32 %v779, %v793
      %v807 = vadd.f32 %v780, %v793
      %v808 = vadd.f32 %v781, %v793
      %v809 = vadd.f32 %v782, %v793
      %v810 = vadd.f32 %v783, %v793
      %v811 = vadd.f32 %v784, %v793
      %v812 = vadd.f32 %v785, %v793
      %v813 = vadd.f32 %v786, %v793
      %v814 = vadd.f32 %v787, %v793
      %v815 = vpack.c.bf16 %v796, %v795
      %v816 = vpack.c.bf16 %v798, %v797
      %v817 = vpack.c.bf16 %v800, %v799
      %v818 = vpack.c.bf16 %v802, %v801
      %v819 = vpack.c.bf16 %v804, %v803
      %v820 = vpack.c.bf16 %v806, %v805
      %v821 = vpack.c.bf16 %v808, %v807
      %v822 = vpack.c.bf16 %v810, %v809
      %v823 = vpack.c.bf16 %v812, %v811
      %v824 = vpack.c.bf16 %v814, %v813
      %v825 = vld [vmem:[%s3] sm:$0x3]
      %v827 = vsel %vm499, %v815, 0
      %v830 = vsel %vm499, %v816, 0
      %v833 = vsel %vm499, %v817, 0
      %v836 = vsel %vm499, %v818, 0
      %v839 = vsel %vm499, %v819, 0
      %v842 = vsel %vm499, %v820, 0
      %v845 = vsel %vm499, %v821, 0
      %v848 = vsel %vm499, %v822, 0
      %v851 = vsel %vm499, %v823, 0
      %v854 = vsel %vm499, %v824, 0
      %vm856 = vcmask 1041408
      %v858 = vsel %vm856, %v825, 0
      %860 = vmatprep.subr.bf16.mxu0 0
      %861 = vmatpush1.bf16.msra.mxu0 %v858
      %862 = vmatprep.subr.bf16.mxu0 0
      %863 = vmatpush1.bf16.msra.mxu0 0
      %864 = vmatprep.subr.bf16.mxu0 0
      %865 = vmatpush1.bf16.msra.mxu0 0
      %866 = vmatprep.subr.bf16.mxu0 0
      %867 = vmatpush1.bf16.msra.mxu0 0
      %868 = vmatprep.subr.bf16.mxu0 0
      %869 = vmatpush1.bf16.msra.mxu0 0
      %870 = vmatprep.subr.bf16.mxu0 0
      %871 = vmatpush1.bf16.msra.mxu0 0
      %872 = vmatprep.subr.bf16.mxu0 0
      %873 = vmatpush1.bf16.msra.mxu0 0
      %874 = vmatprep.subr.bf16.mxu0 0
      %875 = vmatpush1.bf16.msra.mxu0 0
      %876 = vmatprep.subr.bf16.mxu0 0
      %877 = vmatpush1.bf16.msra.mxu0 0
      %878 = vmatprep.subr.bf16.mxu0 0
      %879 = vmatpush1.bf16.msra.mxu0 0
      %880 = vmatprep.subr.bf16.mxu0 0
      %881 = vmatpush1.bf16.msra.mxu0 0
      %882 = vmatprep.subr.bf16.mxu0 0
      %883 = vmatpush1.bf16.msra.mxu0 0
      %884 = vmatprep.subr.bf16.mxu0 0
      %885 = vmatpush1.bf16.msra.mxu0 0
      %886 = vmatprep.subr.bf16.mxu0 0
      %887 = vmatpush1.bf16.msra.mxu0 0
      %888 = vmatprep.subr.bf16.mxu0 0
      %889 = vmatpush1.bf16.msra.mxu0 0
      %890 = vmatprep.subr.bf16.mxu0 0
      %891 = vmatpush1.bf16.msra.mxu0 0
      %892 = vmatprep.mubr.bf16.mxu0 0
      %893 = vmatmul.mubr.bf16.gmra.mrb[0].mxu0 %v827
      %v894 = vpop.f32.mrb[0].mxu0
      %v895 = vadd.f32 0.0, %v894
      %v896 = vpop.f32.mrb[0].mxu0
      %v897 = vpop.f32.mrb[0].mxu0
      %v898 = vadd.f32 0.0, %v897
      %v899 = vpop.f32.mrb[0].mxu0
      %900 = vmatprep.mubr.bf16.mxu0 0
      %901 = vmatmul.mubr.bf16.gmra.mrb[0].mxu0 %v830
      %v902 = vpop.f32.mrb[0].mxu0
      %v903 = vadd.f32 0.0, %v902
      %v904 = vpop.f32.mrb[0].mxu0
      %v905 = vpop.f32.mrb[0].mxu0
      %v906 = vadd.f32 0.0, %v905
      %v907 = vpop.f32.mrb[0].mxu0
      %908 = vmatprep.mubr.bf16.mxu0 0
      %909 = vmatmul.mubr.bf16.gmra.mrb[0].mxu0 %v833
      %v910 = vpop.f32.mrb[0].mxu0
      %v911 = vadd.f32 0.0, %v910
      %v912 = vpop.f32.mrb[0].mxu0
      %v913 = vpop.f32.mrb[0].mxu0
      %v914 = vadd.f32 0.0, %v913
      %v915 = vpop.f32.mrb[0].mxu0
      %916 = vmatprep.mubr.bf16.mxu0 0
      %917 = vmatmul.mubr.bf16.gmra.mrb[0].mxu0 %v836
      %v918 = vpop.f32.mrb[0].mxu0
      %v919 = vadd.f32 0.0, %v918
      %v920 = vpop.f32.mrb[0].mxu0
      %v921 = vpop.f32.mrb[0].mxu0
      %v922 = vadd.f32 0.0, %v921
      %v923 = vpop.f32.mrb[0].mxu0
      %924 = vmatprep.mubr.bf16.mxu0 0
      %925 = vmatmul.mubr.bf16.gmra.mrb[0].mxu0 %v839
      %v926 = vpop.f32.mrb[0].mxu0
      %v927 = vadd.f32 0.0, %v926
      %v928 = vpop.f32.mrb[0].mxu0
      %v929 = vpop.f32.mrb[0].mxu0
      %v930 = vadd.f32 0.0, %v929
      %v931 = vpop.f32.mrb[0].mxu0
      %932 = vmatprep.mubr.bf16.mxu0 0
      %933 = vmatmul.mubr.bf16.gmra.mrb[0].mxu0 %v842
      %v934 = vpop.f32.mrb[0].mxu0
      %v935 = vadd.f32 0.0, %v934
      %v936 = vpop.f32.mrb[0].mxu0
      %v937 = vpop.f32.mrb[0].mxu0
      %v938 = vadd.f32 0.0, %v937
      %v939 = vpop.f32.mrb[0].mxu0
      %940 = vmatprep.mubr.bf16.mxu0 0
      %941 = vmatmul.mubr.bf16.gmra.mrb[0].mxu0 %v845
      %v942 = vpop.f32.mrb[0].mxu0
      %v943 = vadd.f32 0.0, %v942
      %v944 = vpop.f32.mrb[0].mxu0
      %v945 = vpop.f32.mrb[0].mxu0
      %v946 = vadd.f32 0.0, %v945
      %v947 = vpop.f32.mrb[0].mxu0
      %948 = vmatprep.mubr.bf16.mxu0 0
      %949 = vmatmul.mubr.bf16.gmra.mrb[0].mxu0 %v848
      %v950 = vpop.f32.mrb[0].mxu0
      %v951 = vadd.f32 0.0, %v950
      %v952 = vpop.f32.mrb[0].mxu0
      %v953 = vpop.f32.mrb[0].mxu0
      %v954 = vadd.f32 0.0, %v953
      %v955 = vpop.f32.mrb[0].mxu0
      %956 = vmatprep.mubr.bf16.mxu0 0
      %957 = vmatmul.mubr.bf16.gmra.mrb[0].mxu0 %v851
      %v958 = vpop.f32.mrb[0].mxu0
      %v959 = vadd.f32 0.0, %v958
      %v960 = vpop.f32.mrb[0].mxu0
      %v961 = vpop.f32.mrb[0].mxu0
      %v962 = vadd.f32 0.0, %v961
      %v963 = vpop.f32.mrb[0].mxu0
      %964 = vmatprep.mubr.bf16.mxu0 0
      %965 = vmatmul.mubr.bf16.gmra.mrb[0].mxu0 %v854
      %v966 = vpop.f32.mrb[0].mxu0
      %v967 = vadd.f32 0.0, %v966
      %v968 = vpop.f32.mrb[0].mxu0
      %v969 = vpop.f32.mrb[0].mxu0
      %v970 = vadd.f32 0.0, %v969
      %v971 = vpop.f32.mrb[0].mxu0
      %972 = vdwg.mxu0
      %s973 = smul.u32 %s29, 128
      %s974 = ssub.s32 %s973, 16
      %s975 = scvt.s32.f32 %s974
      %v976 = vlaneseq
      %v977 = vshrl.u32 %v976, 7
      %v978 = vadd.s32 %v977, 16
      %v979 = vadd.s32 %v977, 24
      %v980 = vadd.s32 %v977, 32
      %v981 = vadd.s32 %v977, 40
      %v982 = vadd.s32 %v977, 48
      %v983 = vadd.s32 %v977, 56
      %v984 = vadd.s32 %v977, 64
      %v985 = vadd.s32 %v977, 72
      %v986 = vadd.s32 %v977, 80
      %v987 = vadd.s32 %v977, 88
      %v988 = vadd.s32 %v977, 96
      %v989 = vadd.s32 %v977, 104
      %v990 = vadd.s32 %v977, 112
      %v991 = vadd.s32 %v977, 120
      %v992 = vadd.s32 %v977, 128
      %v993 = vadd.s32 %v977, 136
      %v994 = vcvt.s32.f32 %v978
      %v995 = vcvt.s32.f32 %v979
      %v996 = vcvt.s32.f32 %v980
      %v997 = vcvt.s32.f32 %v981
      %v998 = vcvt.s32.f32 %v982
      %v999 = vcvt.s32.f32 %v983
      %v1000 = vcvt.s32.f32 %v984
      %v1001 = vcvt.s32.f32 %v985
      %v1002 = vcvt.s32.f32 %v986
      %v1003 = vcvt.s32.f32 %v987
      %v1004 = vcvt.s32.f32 %v988
      %v1005 = vcvt.s32.f32 %v989
      %v1006 = vcvt.s32.f32 %v990
      %v1007 = vcvt.s32.f32 %v991
      %v1008 = vcvt.s32.f32 %v992
      %v1009 = vcvt.s32.f32 %v993
      %v1010 = vstv %s975
      %v1011 = vadd.f32 %v994, %v1010
      %v1012 = vadd.f32 %v995, %v1010
      %v1013 = vadd.f32 %v996, %v1010
      %v1014 = vadd.f32 %v997, %v1010
      %v1015 = vadd.f32 %v998, %v1010
      %v1016 = vadd.f32 %v999, %v1010
      %v1017 = vadd.f32 %v1000, %v1010
      %v1018 = vadd.f32 %v1001, %v1010
      %v1019 = vadd.f32 %v1002, %v1010
      %v1020 = vadd.f32 %v1003, %v1010
      %v1021 = vadd.f32 %v1004, %v1010
      %v1022 = vadd.f32 %v1005, %v1010
      %v1023 = vadd.f32 %v1006, %v1010
      %v1024 = vadd.f32 %v1007, %v1010
      %v1025 = vadd.f32 %v1008, %v1010
      %v1026 = vadd.f32 %v1009, %v1010
      %v1027 = vadd.f32 %v1011, 0.5
      %v1028 = vadd.f32 %v1012, 0.5
      %v1029 = vadd.f32 %v1013, 0.5
      %v1030 = vadd.f32 %v1014, 0.5
      %v1031 = vadd.f32 %v1015, 0.5
      %v1032 = vadd.f32 %v1016, 0.5
      %v1033 = vadd.f32 %v1017, 0.5
      %v1034 = vadd.f32 %v1018, 0.5
      %v1035 = vadd.f32 %v1019, 0.5
      %v1036 = vadd.f32 %v1020, 0.5
      %v1037 = vadd.f32 %v1021, 0.5
      %v1038 = vadd.f32 %v1022, 0.5
      %v1039 = vadd.f32 %v1023, 0.5
      %v1040 = vadd.f32 %v1024, 0.5
      %v1041 = vadd.f32 %v1025, 0.5
      %v1042 = vadd.f32 %v1026, 0.5
      %v1043 = vmul.f32 %v1027, 0.0625
      %v1044 = vmul.f32 %v1028, 0.0625
      %v1045 = vmul.f32 %v1029, 0.0625
      %v1046 = vmul.f32 %v1030, 0.0625
      %v1047 = vmul.f32 %v1031, 0.0625
      %v1048 = vmul.f32 %v1032, 0.0625
      %v1049 = vmul.f32 %v1033, 0.0625
      %v1050 = vmul.f32 %v1034, 0.0625
      %v1051 = vmul.f32 %v1035, 0.0625
      %v1052 = vmul.f32 %v1036, 0.0625
      %v1053 = vmul.f32 %v1037, 0.0625
      %v1054 = vmul.f32 %v1038, 0.0625
      %v1055 = vmul.f32 %v1039, 0.0625
      %v1056 = vmul.f32 %v1040, 0.0625
      %v1057 = vmul.f32 %v1041, 0.0625
      %v1058 = vmul.f32 %v1042, 0.0625
      %v1059 = vfloor.f32 %v1043
      %v1060 = vfloor.f32 %v1044
      %v1061 = vfloor.f32 %v1045
      %v1062 = vfloor.f32 %v1046
      %v1063 = vfloor.f32 %v1047
      %v1064 = vfloor.f32 %v1048
      %v1065 = vfloor.f32 %v1049
      %v1066 = vfloor.f32 %v1050
      %v1067 = vfloor.f32 %v1051
      %v1068 = vfloor.f32 %v1052
      %v1069 = vfloor.f32 %v1053
      %v1070 = vfloor.f32 %v1054
      %v1071 = vfloor.f32 %v1055
      %v1072 = vfloor.f32 %v1056
      %v1073 = vfloor.f32 %v1057
      %v1074 = vfloor.f32 %v1058
      %v1075 = vmul.f32 %v1059, 16.0
      %v1076 = vmul.f32 %v1060, 16.0
      %v1077 = vmul.f32 %v1061, 16.0
      %v1078 = vmul.f32 %v1062, 16.0
      %v1079 = vmul.f32 %v1063, 16.0
      %v1080 = vmul.f32 %v1064, 16.0
      %v1081 = vmul.f32 %v1065, 16.0
      %v1082 = vmul.f32 %v1066, 16.0
      %v1083 = vmul.f32 %v1067, 16.0
      %v1084 = vmul.f32 %v1068, 16.0
      %v1085 = vmul.f32 %v1069, 16.0
      %v1086 = vmul.f32 %v1070, 16.0
      %v1087 = vmul.f32 %v1071, 16.0
      %v1088 = vmul.f32 %v1072, 16.0
      %v1089 = vmul.f32 %v1073, 16.0
      %v1090 = vmul.f32 %v1074, 16.0
      %v1091 = vsub.f32 %v1011, %v1075
      %v1092 = vsub.f32 %v1012, %v1076
      %v1093 = vsub.f32 %v1013, %v1077
      %v1094 = vsub.f32 %v1014, %v1078
      %v1095 = vsub.f32 %v1015, %v1079
      %v1096 = vsub.f32 %v1016, %v1080
      %v1097 = vsub.f32 %v1017, %v1081
      %v1098 = vsub.f32 %v1018, %v1082
      %v1099 = vsub.f32 %v1019, %v1083
      %v1100 = vsub.f32 %v1020, %v1084
      %v1101 = vsub.f32 %v1021, %v1085
      %v1102 = vsub.f32 %v1022, %v1086
      %v1103 = vsub.f32 %v1023, %v1087
      %v1104 = vsub.f32 %v1024, %v1088
      %v1105 = vsub.f32 %v1025, %v1089
      %v1106 = vsub.f32 %v1026, %v1090
      %vm1107 = vcmp.gt.f32.partialorder %v1059, 0.5
      %vm1108 = vcmp.gt.f32.partialorder %v1060, 0.5
      %vm1109 = vcmp.gt.f32.partialorder %v1061, 0.5
      %vm1110 = vcmp.gt.f32.partialorder %v1062, 0.5
      %vm1111 = vcmp.gt.f32.partialorder %v1063, 0.5
      %vm1112 = vcmp.gt.f32.partialorder %v1064, 0.5
      %vm1113 = vcmp.gt.f32.partialorder %v1065, 0.5
      %vm1114 = vcmp.gt.f32.partialorder %v1066, 0.5
      %vm1115 = vcmp.gt.f32.partialorder %v1067, 0.5
      %vm1116 = vcmp.gt.f32.partialorder %v1068, 0.5
      %vm1117 = vcmp.gt.f32.partialorder %v1069, 0.5
      %vm1118 = vcmp.gt.f32.partialorder %v1070, 0.5
      %vm1119 = vcmp.gt.f32.partialorder %v1071, 0.5
      %vm1120 = vcmp.gt.f32.partialorder %v1072, 0.5
      %vm1121 = vcmp.gt.f32.partialorder %v1073, 0.5
      %vm1122 = vcmp.gt.f32.partialorder %v1074, 0.5
      %v1123 = vsel %vm1107, 1.0, 0.0
      %v1124 = vsel %vm1108, 1.0, 0.0
      %v1125 = vsel %vm1109, 1.0, 0.0
      %v1126 = vsel %vm1110, 1.0, 0.0
      %v1127 = vsel %vm1111, 1.0, 0.0
      %v1128 = vsel %vm1112, 1.0, 0.0
      %v1129 = vsel %vm1113, 1.0, 0.0
      %v1130 = vsel %vm1114, 1.0, 0.0
      %v1131 = vsel %vm1115, 1.0, 0.0
      %v1132 = vsel %vm1116, 1.0, 0.0
      %v1133 = vsel %vm1117, 1.0, 0.0
      %v1134 = vsel %vm1118, 1.0, 0.0
      %v1135 = vsel %vm1119, 1.0, 0.0
      %v1136 = vsel %vm1120, 1.0, 0.0
      %v1137 = vsel %vm1121, 1.0, 0.0
      %v1138 = vsel %vm1122, 1.0, 0.0
      %vm1139 = vcmp.lt.f32.partialorder %v1059, 14.5
      %vm1140 = vcmp.lt.f32.partialorder %v1060, 14.5
      %vm1141 = vcmp.lt.f32.partialorder %v1061, 14.5
      %vm1142 = vcmp.lt.f32.partialorder %v1062, 14.5
      %vm1143 = vcmp.lt.f32.partialorder %v1063, 14.5
      %vm1144 = vcmp.lt.f32.partialorder %v1064, 14.5
      %vm1145 = vcmp.lt.f32.partialorder %v1065, 14.5
      %vm1146 = vcmp.lt.f32.partialorder %v1066, 14.5
      %vm1147 = vcmp.lt.f32.partialorder %v1067, 14.5
      %vm1148 = vcmp.lt.f32.partialorder %v1068, 14.5
      %vm1149 = vcmp.lt.f32.partialorder %v1069, 14.5
      %vm1150 = vcmp.lt.f32.partialorder %v1070, 14.5
      %vm1151 = vcmp.lt.f32.partialorder %v1071, 14.5
      %vm1152 = vcmp.lt.f32.partialorder %v1072, 14.5
      %vm1153 = vcmp.lt.f32.partialorder %v1073, 14.5
      %vm1154 = vcmp.lt.f32.partialorder %v1074, 14.5
      %v1155 = vsel %vm1139, 1.0, 0.0
      %v1156 = vsel %vm1140, 1.0, 0.0
      %v1157 = vsel %vm1141, 1.0, 0.0
      %v1158 = vsel %vm1142, 1.0, 0.0
      %v1159 = vsel %vm1143, 1.0, 0.0
      %v1160 = vsel %vm1144, 1.0, 0.0
      %v1161 = vsel %vm1145, 1.0, 0.0
      %v1162 = vsel %vm1146, 1.0, 0.0
      %v1163 = vsel %vm1147, 1.0, 0.0
      %v1164 = vsel %vm1148, 1.0, 0.0
      %v1165 = vsel %vm1149, 1.0, 0.0
      %v1166 = vsel %vm1150, 1.0, 0.0
      %v1167 = vsel %vm1151, 1.0, 0.0
      %v1168 = vsel %vm1152, 1.0, 0.0
      %v1169 = vsel %vm1153, 1.0, 0.0
      %v1170 = vsel %vm1154, 1.0, 0.0
      %vm1171 = vcmp.gt.f32.partialorder %v1091, 0.5
      %vm1172 = vcmp.gt.f32.partialorder %v1092, 0.5
      %vm1173 = vcmp.gt.f32.partialorder %v1093, 0.5
      %vm1174 = vcmp.gt.f32.partialorder %v1094, 0.5
      %vm1175 = vcmp.gt.f32.partialorder %v1095, 0.5
      %vm1176 = vcmp.gt.f32.partialorder %v1096, 0.5
      %vm1177 = vcmp.gt.f32.partialorder %v1097, 0.5
      %vm1178 = vcmp.gt.f32.partialorder %v1098, 0.5
      %vm1179 = vcmp.gt.f32.partialorder %v1099, 0.5
      %vm1180 = vcmp.gt.f32.partialorder %v1100, 0.5
      %vm1181 = vcmp.gt.f32.partialorder %v1101, 0.5
      %vm1182 = vcmp.gt.f32.partialorder %v1102, 0.5
      %vm1183 = vcmp.gt.f32.partialorder %v1103, 0.5
      %vm1184 = vcmp.gt.f32.partialorder %v1104, 0.5
      %vm1185 = vcmp.gt.f32.partialorder %v1105, 0.5
      %vm1186 = vcmp.gt.f32.partialorder %v1106, 0.5
      %v1187 = vsel %vm1171, 1.0, 0.0
      %v1188 = vsel %vm1172, 1.0, 0.0
      %v1189 = vsel %vm1173, 1.0, 0.0
      %v1190 = vsel %vm1174, 1.0, 0.0
      %v1191 = vsel %vm1175, 1.0, 0.0
      %v1192 = vsel %vm1176, 1.0, 0.0
      %v1193 = vsel %vm1177, 1.0, 0.0
      %v1194 = vsel %vm1178, 1.0, 0.0
      %v1195 = vsel %vm1179, 1.0, 0.0
      %v1196 = vsel %vm1180, 1.0, 0.0
      %v1197 = vsel %vm1181, 1.0, 0.0
      %v1198 = vsel %vm1182, 1.0, 0.0
      %v1199 = vsel %vm1183, 1.0, 0.0
      %v1200 = vsel %vm1184, 1.0, 0.0
      %v1201 = vsel %vm1185, 1.0, 0.0
      %v1202 = vsel %vm1186, 1.0, 0.0
      %vm1203 = vcmp.lt.f32.partialorder %v1091, 14.5
      %vm1204 = vcmp.lt.f32.partialorder %v1092, 14.5
      %vm1205 = vcmp.lt.f32.partialorder %v1093, 14.5
      %vm1206 = vcmp.lt.f32.partialorder %v1094, 14.5
      %vm1207 = vcmp.lt.f32.partialorder %v1095, 14.5
      %vm1208 = vcmp.lt.f32.partialorder %v1096, 14.5
      %vm1209 = vcmp.lt.f32.partialorder %v1097, 14.5
      %vm1210 = vcmp.lt.f32.partialorder %v1098, 14.5
      %vm1211 = vcmp.lt.f32.partialorder %v1099, 14.5
      %vm1212 = vcmp.lt.f32.partialorder %v1100, 14.5
      %vm1213 = vcmp.lt.f32.partialorder %v1101, 14.5
      %vm1214 = vcmp.lt.f32.partialorder %v1102, 14.5
      %vm1215 = vcmp.lt.f32.partialorder %v1103, 14.5
      %vm1216 = vcmp.lt.f32.partialorder %v1104, 14.5
      %vm1217 = vcmp.lt.f32.partialorder %v1105, 14.5
      %vm1218 = vcmp.lt.f32.partialorder %v1106, 14.5
      %v1219 = vsel %vm1203, 1.0, 0.0
      %v1220 = vsel %vm1204, 1.0, 0.0
      %v1221 = vsel %vm1205, 1.0, 0.0
      %v1222 = vsel %vm1206, 1.0, 0.0
      %v1223 = vsel %vm1207, 1.0, 0.0
      %v1224 = vsel %vm1208, 1.0, 0.0
      %v1225 = vsel %vm1209, 1.0, 0.0
      %v1226 = vsel %vm1210, 1.0, 0.0
      %v1227 = vsel %vm1211, 1.0, 0.0
      %v1228 = vsel %vm1212, 1.0, 0.0
      %v1229 = vsel %vm1213, 1.0, 0.0
      %v1230 = vsel %vm1214, 1.0, 0.0
      %v1231 = vsel %vm1215, 1.0, 0.0
      %v1232 = vsel %vm1216, 1.0, 0.0
      %v1233 = vsel %vm1217, 1.0, 0.0
      %v1234 = vsel %vm1218, 1.0, 0.0
      %v1235 = vmul.f32 %v1123, %v1187
      %v1236 = vmul.f32 %v1124, %v1188
      %v1237 = vmul.f32 %v1125, %v1189
      %v1238 = vmul.f32 %v1126, %v1190
      %v1239 = vmul.f32 %v1127, %v1191
      %v1240 = vmul.f32 %v1128, %v1192
      %v1241 = vmul.f32 %v1129, %v1193
      %v1242 = vmul.f32 %v1130, %v1194
      %v1243 = vmul.f32 %v1131, %v1195
      %v1244 = vmul.f32 %v1132, %v1196
      %v1245 = vmul.f32 %v1133, %v1197
      %v1246 = vmul.f32 %v1134, %v1198
      %v1247 = vmul.f32 %v1135, %v1199
      %v1248 = vmul.f32 %v1136, %v1200
      %v1249 = vmul.f32 %v1137, %v1201
      %v1250 = vmul.f32 %v1138, %v1202
      %v1251 = vmul.f32 %v1123, %v1219
      %v1252 = vmul.f32 %v1124, %v1220
      %v1253 = vmul.f32 %v1125, %v1221
      %v1254 = vmul.f32 %v1126, %v1222
      %v1255 = vmul.f32 %v1127, %v1223
      %v1256 = vmul.f32 %v1128, %v1224
      %v1257 = vmul.f32 %v1129, %v1225
      %v1258 = vmul.f32 %v1130, %v1226
      %v1259 = vmul.f32 %v1131, %v1227
      %v1260 = vmul.f32 %v1132, %v1228
      %v1261 = vmul.f32 %v1133, %v1229
      %v1262 = vmul.f32 %v1134, %v1230
      %v1263 = vmul.f32 %v1135, %v1231
      %v1264 = vmul.f32 %v1136, %v1232
      %v1265 = vmul.f32 %v1137, %v1233
      %v1266 = vmul.f32 %v1138, %v1234
      %v1267 = vmul.f32 %v1155, %v1187
      %v1268 = vmul.f32 %v1156, %v1188
      %v1269 = vmul.f32 %v1157, %v1189
      %v1270 = vmul.f32 %v1158, %v1190
      %v1271 = vmul.f32 %v1159, %v1191
      %v1272 = vmul.f32 %v1160, %v1192
      %v1273 = vmul.f32 %v1161, %v1193
      %v1274 = vmul.f32 %v1162, %v1194
      %v1275 = vmul.f32 %v1163, %v1195
      %v1276 = vmul.f32 %v1164, %v1196
      %v1277 = vmul.f32 %v1165, %v1197
      %v1278 = vmul.f32 %v1166, %v1198
      %v1279 = vmul.f32 %v1167, %v1199
      %v1280 = vmul.f32 %v1168, %v1200
      %v1281 = vmul.f32 %v1169, %v1201
      %v1282 = vmul.f32 %v1170, %v1202
      %v1283 = vmul.f32 %v1155, %v1219
      %v1284 = vmul.f32 %v1156, %v1220
      %v1285 = vmul.f32 %v1157, %v1221
      %v1286 = vmul.f32 %v1158, %v1222
      %v1287 = vmul.f32 %v1159, %v1223
      %v1288 = vmul.f32 %v1160, %v1224
      %v1289 = vmul.f32 %v1161, %v1225
      %v1290 = vmul.f32 %v1162, %v1226
      %v1291 = vmul.f32 %v1163, %v1227
      %v1292 = vmul.f32 %v1164, %v1228
      %v1293 = vmul.f32 %v1165, %v1229
      %v1294 = vmul.f32 %v1166, %v1230
      %v1295 = vmul.f32 %v1167, %v1231
      %v1296 = vmul.f32 %v1168, %v1232
      %v1297 = vmul.f32 %v1169, %v1233
      %v1298 = vmul.f32 %v1170, %v1234
      %v1299 = vld [vmem:[%s5] sm:$0xff]
      %v1300 = vld [vmem:[%s5 + $0x8] sm:$0x1]
      %v1301 = vld [vmem:[%s6] sm:$0x1]
      %v1302 = vlaneseq
      %v1303 = vshrl.u32 %v1302, 7
      %v1304 = vsub.s32 4, %v1303
      %v1305 = vrot.slane %v1299, %v1304
      %v1306 = vmul.f32 %v903, %v1305
      %v1307 = vmul.f32 %v906, %v1305
      %v1308 = vmul.f32 %v911, %v1305
      %v1309 = vmul.f32 %v914, %v1305
      %v1310 = vmul.f32 %v919, %v1305
      %v1311 = vmul.f32 %v922, %v1305
      %v1312 = vmul.f32 %v927, %v1305
      %v1313 = vmul.f32 %v930, %v1305
      %v1314 = vmul.f32 %v935, %v1305
      %v1315 = vmul.f32 %v938, %v1305
      %v1316 = vmul.f32 %v943, %v1305
      %v1317 = vmul.f32 %v946, %v1305
      %v1318 = vmul.f32 %v951, %v1305
      %v1319 = vmul.f32 %v954, %v1305
      %v1320 = vmul.f32 %v959, %v1305
      %v1321 = vmul.f32 %v962, %v1305
      %v1323 = vlaneseq
      %v1324 = vshrl.u32 %v1323, 7
      %v1325 = vsub.s32 0, %v1324
      %v1326 = vrot.slane %v1301, %v1325
      %v1328 = vadd.f32 %v1326, %v1306
      %v1329 = vadd.f32 %v1326, %v1307
      %v1330 = vadd.f32 %v1326, %v1308
      %v1331 = vadd.f32 %v1326, %v1309
      %v1332 = vadd.f32 %v1326, %v1310
      %v1333 = vadd.f32 %v1326, %v1311
      %v1334 = vadd.f32 %v1326, %v1312
      %v1335 = vadd.f32 %v1326, %v1313
      %v1336 = vadd.f32 %v1326, %v1314
      %v1337 = vadd.f32 %v1326, %v1315
      %v1338 = vadd.f32 %v1326, %v1316
      %v1339 = vadd.f32 %v1326, %v1317
      %v1340 = vadd.f32 %v1326, %v1318
      %v1341 = vadd.f32 %v1326, %v1319
      %v1342 = vadd.f32 %v1326, %v1320
      %v1343 = vadd.f32 %v1326, %v1321
      %v1344 = vrot.slane %v895, 7
      %v1345 = vrot.slane %v898, 7
      %v1346 = vrot.slane %v903, 7
      %v1347 = vrot.slane %v906, 7
      %v1348 = vrot.slane %v911, 7
      %v1349 = vrot.slane %v914, 7
      %v1350 = vrot.slane %v919, 7
      %v1351 = vrot.slane %v922, 7
      %v1352 = vrot.slane %v927, 7
      %v1353 = vrot.slane %v930, 7
      %v1354 = vrot.slane %v935, 7
      %v1355 = vrot.slane %v938, 7
      %v1356 = vrot.slane %v943, 7
      %v1357 = vrot.slane %v946, 7
      %v1358 = vrot.slane %v951, 7
      %v1359 = vrot.slane %v954, 7
      %v1360 = vrot.slane %v970, 7
      %vm1361 = vcmp.lt.s32.totalorder %v977, 1
      %v1362 = vsel %vm1361, %v1358, %v1359
      %v1363 = vsel %vm1361, %v1357, %v1358
      %v1364 = vsel %vm1361, %v1356, %v1357
      %v1365 = vsel %vm1361, %v1355, %v1356
      %v1366 = vsel %vm1361, %v1354, %v1355
      %v1367 = vsel %vm1361, %v1353, %v1354
      %v1368 = vsel %vm1361, %v1352, %v1353
      %v1369 = vsel %vm1361, %v1351, %v1352
      %v1370 = vsel %vm1361, %v1350, %v1351
      %v1371 = vsel %vm1361, %v1349, %v1350
      %v1372 = vsel %vm1361, %v1348, %v1349
      %v1373 = vsel %vm1361, %v1347, %v1348
      %v1374 = vsel %vm1361, %v1346, %v1347
      %v1375 = vsel %vm1361, %v1345, %v1346
      %v1376 = vsel %vm1361, %v1344, %v1345
      %v1377 = vsel %vm1361, %v1360, %v1344
      %v1378 = vmul.f32 %v1377, %v1235
      %v1379 = vmul.f32 %v1376, %v1236
      %v1380 = vmul.f32 %v1375, %v1237
      %v1381 = vmul.f32 %v1374, %v1238
      %v1382 = vmul.f32 %v1373, %v1239
      %v1383 = vmul.f32 %v1372, %v1240
      %v1384 = vmul.f32 %v1371, %v1241
      %v1385 = vmul.f32 %v1370, %v1242
      %v1386 = vmul.f32 %v1369, %v1243
      %v1387 = vmul.f32 %v1368, %v1244
      %v1388 = vmul.f32 %v1367, %v1245
      %v1389 = vmul.f32 %v1366, %v1246
      %v1390 = vmul.f32 %v1365, %v1247
      %v1391 = vmul.f32 %v1364, %v1248
      %v1392 = vmul.f32 %v1363, %v1249
      %v1393 = vmul.f32 %v1362, %v1250
      %v1394 = vlaneseq
      %v1395 = vshrl.u32 %v1394, 7
      %v1396 = vsub.s32 0, %v1395
      %v1397 = vrot.slane %v1299, %v1396
      %v1398 = vmul.f32 %v1378, %v1397
      %v1399 = vmul.f32 %v1379, %v1397
      %v1400 = vmul.f32 %v1380, %v1397
      %v1401 = vmul.f32 %v1381, %v1397
      %v1402 = vmul.f32 %v1382, %v1397
      %v1403 = vmul.f32 %v1383, %v1397
      %v1404 = vmul.f32 %v1384, %v1397
      %v1405 = vmul.f32 %v1385, %v1397
      %v1406 = vmul.f32 %v1386, %v1397
      %v1407 = vmul.f32 %v1387, %v1397
      %v1408 = vmul.f32 %v1388, %v1397
      %v1409 = vmul.f32 %v1389, %v1397
      %v1410 = vmul.f32 %v1390, %v1397
      %v1411 = vmul.f32 %v1391, %v1397
      %v1412 = vmul.f32 %v1392, %v1397
      %v1413 = vmul.f32 %v1393, %v1397
      %v1414 = vadd.f32 %v1328, %v1398
      %v1415 = vadd.f32 %v1329, %v1399
      %v1416 = vadd.f32 %v1330, %v1400
      %v1417 = vadd.f32 %v1331, %v1401
      %v1418 = vadd.f32 %v1332, %v1402
      %v1419 = vadd.f32 %v1333, %v1403
      %v1420 = vadd.f32 %v1334, %v1404
      %v1421 = vadd.f32 %v1335, %v1405
      %v1422 = vadd.f32 %v1336, %v1406
      %v1423 = vadd.f32 %v1337, %v1407
      %v1424 = vadd.f32 %v1338, %v1408
      %v1425 = vadd.f32 %v1339, %v1409
      %v1426 = vadd.f32 %v1340, %v1410
      %v1427 = vadd.f32 %v1341, %v1411
      %v1428 = vadd.f32 %v1342, %v1412
      %v1429 = vadd.f32 %v1343, %v1413
      %v1430 = vmul.f32 %v895, %v1123
      %v1431 = vmul.f32 %v898, %v1124
      %v1432 = vmul.f32 %v903, %v1125
      %v1433 = vmul.f32 %v906, %v1126
      %v1434 = vmul.f32 %v911, %v1127
      %v1435 = vmul.f32 %v914, %v1128
      %v1436 = vmul.f32 %v919, %v1129
      %v1437 = vmul.f32 %v922, %v1130
      %v1438 = vmul.f32 %v927, %v1131
      %v1439 = vmul.f32 %v930, %v1132
      %v1440 = vmul.f32 %v935, %v1133
      %v1441 = vmul.f32 %v938, %v1134
      %v1442 = vmul.f32 %v943, %v1135
      %v1443 = vmul.f32 %v946, %v1136
      %v1444 = vmul.f32 %v951, %v1137
      %v1445 = vmul.f32 %v954, %v1138
      %v1446 = vlaneseq
      %v1447 = vshrl.u32 %v1446, 7
      %v1448 = vsub.s32 1, %v1447
      %v1449 = vrot.slane %v1299, %v1448
      %v1450 = vmul.f32 %v1430, %v1449
      %v1451 = vmul.f32 %v1431, %v1449
      %v1452 = vmul.f32 %v1432, %v1449
      %v1453 = vmul.f32 %v1433, %v1449
      %v1454 = vmul.f32 %v1434, %v1449
      %v1455 = vmul.f32 %v1435, %v1449
      %v1456 = vmul.f32 %v1436, %v1449
      %v1457 = vmul.f32 %v1437, %v1449
      %v1458 = vmul.f32 %v1438, %v1449
      %v1459 = vmul.f32 %v1439, %v1449
      %v1460 = vmul.f32 %v1440, %v1449
      %v1461 = vmul.f32 %v1441, %v1449
      %v1462 = vmul.f32 %v1442, %v1449
      %v1463 = vmul.f32 %v1443, %v1449
      %v1464 = vmul.f32 %v1444, %v1449
      %v1465 = vmul.f32 %v1445, %v1449
      %v1466 = vadd.f32 %v1414, %v1450
      %v1467 = vadd.f32 %v1415, %v1451
      %v1468 = vadd.f32 %v1416, %v1452
      %v1469 = vadd.f32 %v1417, %v1453
      %v1470 = vadd.f32 %v1418, %v1454
      %v1471 = vadd.f32 %v1419, %v1455
      %v1472 = vadd.f32 %v1420, %v1456
      %v1473 = vadd.f32 %v1421, %v1457
      %v1474 = vadd.f32 %v1422, %v1458
      %v1475 = vadd.f32 %v1423, %v1459
      %v1476 = vadd.f32 %v1424, %v1460
      %v1477 = vadd.f32 %v1425, %v1461
      %v1478 = vadd.f32 %v1426, %v1462
      %v1479 = vadd.f32 %v1427, %v1463
      %v1480 = vadd.f32 %v1428, %v1464
      %v1481 = vadd.f32 %v1429, %v1465
      %v1482 = vrot.slane %v895, 1
      %v1483 = vrot.slane %v898, 1
      %v1484 = vrot.slane %v903, 1
      %v1485 = vrot.slane %v906, 1
      %v1486 = vrot.slane %v911, 1
      %v1487 = vrot.slane %v914, 1
      %v1488 = vrot.slane %v919, 1
      %v1489 = vrot.slane %v922, 1
      %v1490 = vrot.slane %v927, 1
      %v1491 = vrot.slane %v930, 1
      %v1492 = vrot.slane %v935, 1
      %v1493 = vrot.slane %v938, 1
      %v1494 = vrot.slane %v943, 1
      %v1495 = vrot.slane %v946, 1
      %v1496 = vrot.slane %v951, 1
      %v1497 = vrot.slane %v954, 1
      %v1498 = vrot.slane %v959, 1
      %vm1499 = vcmp.lt.s32.totalorder %v977, 7
      %v1500 = vsel %vm1499, %v1497, %v1498
      %v1501 = vsel %vm1499, %v1496, %v1497
      %v1502 = vsel %vm1499, %v1495, %v1496
      %v1503 = vsel %vm1499, %v1494, %v1495
      %v1504 = vsel %vm1499, %v1493, %v1494
      %v1505 = vsel %vm1499, %v1492, %v1493
      %v1506 = vsel %vm1499, %v1491, %v1492
      %v1507 = vsel %vm1499, %v1490, %v1491
      %v1508 = vsel %vm1499, %v1489, %v1490
      %v1509 = vsel %vm1499, %v1488, %v1489
      %v1510 = vsel %vm1499, %v1487, %v1488
      %v1511 = vsel %vm1499, %v1486, %v1487
      %v1512 = vsel %vm1499, %v1485, %v1486
      %v1513 = vsel %vm1499, %v1484, %v1485
      %v1514 = vsel %vm1499, %v1483, %v1484
      %v1515 = vsel %vm1499, %v1482, %v1483
      %v1516 = vmul.f32 %v1515, %v1251
      %v1517 = vmul.f32 %v1514, %v1252
      %v1518 = vmul.f32 %v1513, %v1253
      %v1519 = vmul.f32 %v1512, %v1254
      %v1520 = vmul.f32 %v1511, %v1255
      %v1521 = vmul.f32 %v1510, %v1256
      %v1522 = vmul.f32 %v1509, %v1257
      %v1523 = vmul.f32 %v1508, %v1258
      %v1524 = vmul.f32 %v1507, %v1259
      %v1525 = vmul.f32 %v1506, %v1260
      %v1526 = vmul.f32 %v1505, %v1261
      %v1527 = vmul.f32 %v1504, %v1262
      %v1528 = vmul.f32 %v1503, %v1263
      %v1529 = vmul.f32 %v1502, %v1264
      %v1530 = vmul.f32 %v1501, %v1265
      %v1531 = vmul.f32 %v1500, %v1266
      %v1532 = vlaneseq
      %v1533 = vshrl.u32 %v1532, 7
      %v1534 = vsub.s32 2, %v1533
      %v1535 = vrot.slane %v1299, %v1534
      %v1536 = vmul.f32 %v1516, %v1535
      %v1537 = vmul.f32 %v1517, %v1535
      %v1538 = vmul.f32 %v1518, %v1535
      %v1539 = vmul.f32 %v1519, %v1535
      %v1540 = vmul.f32 %v1520, %v1535
      %v1541 = vmul.f32 %v1521, %v1535
      %v1542 = vmul.f32 %v1522, %v1535
      %v1543 = vmul.f32 %v1523, %v1535
      %v1544 = vmul.f32 %v1524, %v1535
      %v1545 = vmul.f32 %v1525, %v1535
      %v1546 = vmul.f32 %v1526, %v1535
      %v1547 = vmul.f32 %v1527, %v1535
      %v1548 = vmul.f32 %v1528, %v1535
      %v1549 = vmul.f32 %v1529, %v1535
      %v1550 = vmul.f32 %v1530, %v1535
      %v1551 = vmul.f32 %v1531, %v1535
      %v1552 = vadd.f32 %v1466, %v1536
      %v1553 = vadd.f32 %v1467, %v1537
      %v1554 = vadd.f32 %v1468, %v1538
      %v1555 = vadd.f32 %v1469, %v1539
      %v1556 = vadd.f32 %v1470, %v1540
      %v1557 = vadd.f32 %v1471, %v1541
      %v1558 = vadd.f32 %v1472, %v1542
      %v1559 = vadd.f32 %v1473, %v1543
      %v1560 = vadd.f32 %v1474, %v1544
      %v1561 = vadd.f32 %v1475, %v1545
      %v1562 = vadd.f32 %v1476, %v1546
      %v1563 = vadd.f32 %v1477, %v1547
      %v1564 = vadd.f32 %v1478, %v1548
      %v1565 = vadd.f32 %v1479, %v1549
      %v1566 = vadd.f32 %v1480, %v1550
      %v1567 = vadd.f32 %v1481, %v1551
      %v1568 = vrot.slane %v959, 7
      %v1569 = vrot.slane %v962, 7
      %v1570 = vsel %vm1361, %v1568, %v1569
      %v1571 = vsel %vm1361, %v1359, %v1568
      %v1572 = vmul.f32 %v1375, %v1187
      %v1573 = vmul.f32 %v1374, %v1188
      %v1574 = vmul.f32 %v1373, %v1189
      %v1575 = vmul.f32 %v1372, %v1190
      %v1576 = vmul.f32 %v1371, %v1191
      %v1577 = vmul.f32 %v1370, %v1192
      %v1578 = vmul.f32 %v1369, %v1193
      %v1579 = vmul.f32 %v1368, %v1194
      %v1580 = vmul.f32 %v1367, %v1195
      %v1581 = vmul.f32 %v1366, %v1196
      %v1582 = vmul.f32 %v1365, %v1197
      %v1583 = vmul.f32 %v1364, %v1198
      %v1584 = vmul.f32 %v1363, %v1199
      %v1585 = vmul.f32 %v1362, %v1200
      %v1586 = vmul.f32 %v1571, %v1201
      %v1587 = vmul.f32 %v1570, %v1202
      %v1588 = vlaneseq
      %v1589 = vshrl.u32 %v1588, 7
      %v1590 = vsub.s32 3, %v1589
      %v1591 = vrot.slane %v1299, %v1590
      %v1592 = vmul.f32 %v1572, %v1591
      %v1593 = vmul.f32 %v1573, %v1591
      %v1594 = vmul.f32 %v1574, %v1591
      %v1595 = vmul.f32 %v1575, %v1591
      %v1596 = vmul.f32 %v1576, %v1591
      %v1597 = vmul.f32 %v1577, %v1591
      %v1598 = vmul.f32 %v1578, %v1591
      %v1599 = vmul.f32 %v1579, %v1591
      %v1600 = vmul.f32 %v1580, %v1591
      %v1601 = vmul.f32 %v1581, %v1591
      %v1602 = vmul.f32 %v1582, %v1591
      %v1603 = vmul.f32 %v1583, %v1591
      %v1604 = vmul.f32 %v1584, %v1591
      %v1605 = vmul.f32 %v1585, %v1591
      %v1606 = vmul.f32 %v1586, %v1591
      %v1607 = vmul.f32 %v1587, %v1591
      %v1608 = vadd.f32 %v1552, %v1592
      %v1609 = vadd.f32 %v1553, %v1593
      %v1610 = vadd.f32 %v1554, %v1594
      %v1611 = vadd.f32 %v1555, %v1595
      %v1612 = vadd.f32 %v1556, %v1596
      %v1613 = vadd.f32 %v1557, %v1597
      %v1614 = vadd.f32 %v1558, %v1598
      %v1615 = vadd.f32 %v1559, %v1599
      %v1616 = vadd.f32 %v1560, %v1600
      %v1617 = vadd.f32 %v1561, %v1601
      %v1618 = vadd.f32 %v1562, %v1602
      %v1619 = vadd.f32 %v1563, %v1603
      %v1620 = vadd.f32 %v1564, %v1604
      %v1621 = vadd.f32 %v1565, %v1605
      %v1622 = vadd.f32 %v1566, %v1606
      %v1623 = vadd.f32 %v1567, %v1607
      %v1624 = vrot.slane %v962, 1
      %v1625 = vrot.slane %v967, 1
      %v1626 = vsel %vm1499, %v1624, %v1625
      %v1627 = vsel %vm1499, %v1498, %v1624
      %v1628 = vmul.f32 %v1513, %v1219
      %v1629 = vmul.f32 %v1512, %v1220
      %v1630 = vmul.f32 %v1511, %v1221
      %v1631 = vmul.f32 %v1510, %v1222
      %v1632 = vmul.f32 %v1509, %v1223
      %v1633 = vmul.f32 %v1508, %v1224
      %v1634 = vmul.f32 %v1507, %v1225
      %v1635 = vmul.f32 %v1506, %v1226
      %v1636 = vmul.f32 %v1505, %v1227
      %v1637 = vmul.f32 %v1504, %v1228
      %v1638 = vmul.f32 %v1503, %v1229
      %v1639 = vmul.f32 %v1502, %v1230
      %v1640 = vmul.f32 %v1501, %v1231
      %v1641 = vmul.f32 %v1500, %v1232
      %v1642 = vmul.f32 %v1627, %v1233
      %v1643 = vmul.f32 %v1626, %v1234
      %v1644 = vlaneseq
      %v1645 = vshrl.u32 %v1644, 7
      %v1646 = vsub.s32 5, %v1645
      %v1647 = vrot.slane %v1299, %v1646
      %v1648 = vmul.f32 %v1628, %v1647
      %v1649 = vmul.f32 %v1629, %v1647
      %v1650 = vmul.f32 %v1630, %v1647
      %v1651 = vmul.f32 %v1631, %v1647
      %v1652 = vmul.f32 %v1632, %v1647
      %v1653 = vmul.f32 %v1633, %v1647
      %v1654 = vmul.f32 %v1634, %v1647
      %v1655 = vmul.f32 %v1635, %v1647
      %v1656 = vmul.f32 %v1636, %v1647
      %v1657 = vmul.f32 %v1637, %v1647
      %v1658 = vmul.f32 %v1638, %v1647
      %v1659 = vmul.f32 %v1639, %v1647
      %v1660 = vmul.f32 %v1640, %v1647
      %v1661 = vmul.f32 %v1641, %v1647
      %v1662 = vmul.f32 %v1642, %v1647
      %v1663 = vmul.f32 %v1643, %v1647
      %v1664 = vadd.f32 %v1608, %v1648
      %v1665 = vadd.f32 %v1609, %v1649
      %v1666 = vadd.f32 %v1610, %v1650
      %v1667 = vadd.f32 %v1611, %v1651
      %v1668 = vadd.f32 %v1612, %v1652
      %v1669 = vadd.f32 %v1613, %v1653
      %v1670 = vadd.f32 %v1614, %v1654
      %v1671 = vadd.f32 %v1615, %v1655
      %v1672 = vadd.f32 %v1616, %v1656
      %v1673 = vadd.f32 %v1617, %v1657
      %v1674 = vadd.f32 %v1618, %v1658
      %v1675 = vadd.f32 %v1619, %v1659
      %v1676 = vadd.f32 %v1620, %v1660
      %v1677 = vadd.f32 %v1621, %v1661
      %v1678 = vadd.f32 %v1622, %v1662
      %v1679 = vadd.f32 %v1623, %v1663
      %v1680 = vrot.slane %v967, 7
      %v1681 = vsel %vm1361, %v1680, %v1360
      %v1682 = vsel %vm1361, %v1569, %v1680
      %v1683 = vmul.f32 %v1373, %v1267
      %v1684 = vmul.f32 %v1372, %v1268
      %v1685 = vmul.f32 %v1371, %v1269
      %v1686 = vmul.f32 %v1370, %v1270
      %v1687 = vmul.f32 %v1369, %v1271
      %v1688 = vmul.f32 %v1368, %v1272
      %v1689 = vmul.f32 %v1367, %v1273
      %v1690 = vmul.f32 %v1366, %v1274
      %v1691 = vmul.f32 %v1365, %v1275
      %v1692 = vmul.f32 %v1364, %v1276
      %v1693 = vmul.f32 %v1363, %v1277
      %v1694 = vmul.f32 %v1362, %v1278
      %v1695 = vmul.f32 %v1571, %v1279
      %v1696 = vmul.f32 %v1570, %v1280
      %v1697 = vmul.f32 %v1682, %v1281
      %v1698 = vmul.f32 %v1681, %v1282
      %v1699 = vlaneseq
      %v1700 = vshrl.u32 %v1699, 7
      %v1701 = vsub.s32 6, %v1700
      %v1702 = vrot.slane %v1299, %v1701
      %v1703 = vmul.f32 %v1683, %v1702
      %v1704 = vmul.f32 %v1684, %v1702
      %v1705 = vmul.f32 %v1685, %v1702
      %v1706 = vmul.f32 %v1686, %v1702
      %v1707 = vmul.f32 %v1687, %v1702
      %v1708 = vmul.f32 %v1688, %v1702
      %v1709 = vmul.f32 %v1689, %v1702
      %v1710 = vmul.f32 %v1690, %v1702
      %v1711 = vmul.f32 %v1691, %v1702
      %v1712 = vmul.f32 %v1692, %v1702
      %v1713 = vmul.f32 %v1693, %v1702
      %v1714 = vmul.f32 %v1694, %v1702
      %v1715 = vmul.f32 %v1695, %v1702
      %v1716 = vmul.f32 %v1696, %v1702
      %v1717 = vmul.f32 %v1697, %v1702
      %v1718 = vmul.f32 %v1698, %v1702
      %v1719 = vadd.f32 %v1664, %v1703
      %v1720 = vadd.f32 %v1665, %v1704
      %v1721 = vadd.f32 %v1666, %v1705
      %v1722 = vadd.f32 %v1667, %v1706
      %v1723 = vadd.f32 %v1668, %v1707
      %v1724 = vadd.f32 %v1669, %v1708
      %v1725 = vadd.f32 %v1670, %v1709
      %v1726 = vadd.f32 %v1671, %v1710
      %v1727 = vadd.f32 %v1672, %v1711
      %v1728 = vadd.f32 %v1673, %v1712
      %v1729 = vadd.f32 %v1674, %v1713
      %v1730 = vadd.f32 %v1675, %v1714
      %v1731 = vadd.f32 %v1676, %v1715
      %v1732 = vadd.f32 %v1677, %v1716
      %v1733 = vadd.f32 %v1678, %v1717
      %v1734 = vadd.f32 %v1679, %v1718
      %v1735 = vmul.f32 %v911, %v1155
      %v1736 = vmul.f32 %v914, %v1156
      %v1737 = vmul.f32 %v919, %v1157
      %v1738 = vmul.f32 %v922, %v1158
      %v1739 = vmul.f32 %v927, %v1159
      %v1740 = vmul.f32 %v930, %v1160
      %v1741 = vmul.f32 %v935, %v1161
      %v1742 = vmul.f32 %v938, %v1162
      %v1743 = vmul.f32 %v943, %v1163
      %v1744 = vmul.f32 %v946, %v1164
      %v1745 = vmul.f32 %v951, %v1165
      %v1746 = vmul.f32 %v954, %v1166
      %v1747 = vmul.f32 %v959, %v1167
      %v1748 = vmul.f32 %v962, %v1168
      %v1749 = vmul.f32 %v967, %v1169
      %v1750 = vmul.f32 %v970, %v1170
      %v1751 = vlaneseq
      %v1752 = vshrl.u32 %v1751, 7
      %v1753 = vsub.s32 7, %v1752
      %v1754 = vrot.slane %v1299, %v1753
      %v1755 = vmul.f32 %v1735, %v1754
      %v1756 = vmul.f32 %v1736, %v1754
      %v1757 = vmul.f32 %v1737, %v1754
      %v1758 = vmul.f32 %v1738, %v1754
      %v1759 = vmul.f32 %v1739, %v1754
      %v1760 = vmul.f32 %v1740, %v1754
      %v1761 = vmul.f32 %v1741, %v1754
      %v1762 = vmul.f32 %v1742, %v1754
      %v1763 = vmul.f32 %v1743, %v1754
      %v1764 = vmul.f32 %v1744, %v1754
      %v1765 = vmul.f32 %v1745, %v1754
      %v1766 = vmul.f32 %v1746, %v1754
      %v1767 = vmul.f32 %v1747, %v1754
      %v1768 = vmul.f32 %v1748, %v1754
      %v1769 = vmul.f32 %v1749, %v1754
      %v1770 = vmul.f32 %v1750, %v1754
      %v1771 = vadd.f32 %v1719, %v1755
      %v1772 = vadd.f32 %v1720, %v1756
      %v1773 = vadd.f32 %v1721, %v1757
      %v1774 = vadd.f32 %v1722, %v1758
      %v1775 = vadd.f32 %v1723, %v1759
      %v1776 = vadd.f32 %v1724, %v1760
      %v1777 = vadd.f32 %v1725, %v1761
      %v1778 = vadd.f32 %v1726, %v1762
      %v1779 = vadd.f32 %v1727, %v1763
      %v1780 = vadd.f32 %v1728, %v1764
      %v1781 = vadd.f32 %v1729, %v1765
      %v1782 = vadd.f32 %v1730, %v1766
      %v1783 = vadd.f32 %v1731, %v1767
      %v1784 = vadd.f32 %v1732, %v1768
      %v1785 = vadd.f32 %v1733, %v1769
      %v1786 = vadd.f32 %v1734, %v1770
      %v1787 = vrot.slane %v970, 1
      %v1788 = vsel %vm1499, %v1625, %v1787
      %v1789 = vsel %vm1499, %v1787, %v1482
      %v1790 = vmul.f32 %v1511, %v1283
      %v1791 = vmul.f32 %v1510, %v1284
      %v1792 = vmul.f32 %v1509, %v1285
      %v1793 = vmul.f32 %v1508, %v1286
      %v1794 = vmul.f32 %v1507, %v1287
      %v1795 = vmul.f32 %v1506, %v1288
      %v1796 = vmul.f32 %v1505, %v1289
      %v1797 = vmul.f32 %v1504, %v1290
      %v1798 = vmul.f32 %v1503, %v1291
      %v1799 = vmul.f32 %v1502, %v1292
      %v1800 = vmul.f32 %v1501, %v1293
      %v1801 = vmul.f32 %v1500, %v1294
      %v1802 = vmul.f32 %v1627, %v1295
      %v1803 = vmul.f32 %v1626, %v1296
      %v1804 = vmul.f32 %v1788, %v1297
      %v1805 = vmul.f32 %v1789, %v1298
      %v1806 = vlaneseq
      %v1807 = vshrl.u32 %v1806, 7
      %v1808 = vsub.s32 0, %v1807
      %v1809 = vrot.slane %v1300, %v1808
      %v1810 = vmul.f32 %v1790, %v1809
      %v1811 = vmul.f32 %v1791, %v1809
      %v1812 = vmul.f32 %v1792, %v1809
      %v1813 = vmul.f32 %v1793, %v1809
      %v1814 = vmul.f32 %v1794, %v1809
      %v1815 = vmul.f32 %v1795, %v1809
      %v1816 = vmul.f32 %v1796, %v1809
      %v1817 = vmul.f32 %v1797, %v1809
      %v1818 = vmul.f32 %v1798, %v1809
      %v1819 = vmul.f32 %v1799, %v1809
      %v1820 = vmul.f32 %v1800, %v1809
      %v1821 = vmul.f32 %v1801, %v1809
      %v1822 = vmul.f32 %v1802, %v1809
      %v1823 = vmul.f32 %v1803, %v1809
      %v1824 = vmul.f32 %v1804, %v1809
      %v1825 = vmul.f32 %v1805, %v1809
      %v1826 = vadd.f32 %v1771, %v1810
      %v1827 = vadd.f32 %v1772, %v1811
      %v1828 = vadd.f32 %v1773, %v1812
      %v1829 = vadd.f32 %v1774, %v1813
      %v1830 = vadd.f32 %v1775, %v1814
      %v1831 = vadd.f32 %v1776, %v1815
      %v1832 = vadd.f32 %v1777, %v1816
      %v1833 = vadd.f32 %v1778, %v1817
      %v1834 = vadd.f32 %v1779, %v1818
      %v1835 = vadd.f32 %v1780, %v1819
      %v1836 = vadd.f32 %v1781, %v1820
      %v1837 = vadd.f32 %v1782, %v1821
      %v1838 = vadd.f32 %v1783, %v1822
      %v1839 = vadd.f32 %v1784, %v1823
      %v1840 = vadd.f32 %v1785, %v1824
      %v1841 = vadd.f32 %v1786, %v1825
      %v1842 = vsub.f32 0.0, %v1826
      %v1843 = vsub.f32 0.0, %v1827
      %v1844 = vsub.f32 0.0, %v1828
      %v1845 = vsub.f32 0.0, %v1829
      %v1846 = vsub.f32 0.0, %v1830
      %v1847 = vsub.f32 0.0, %v1831
      %v1848 = vsub.f32 0.0, %v1832
      %v1849 = vsub.f32 0.0, %v1833
      %v1850 = vsub.f32 0.0, %v1834
      %v1851 = vsub.f32 0.0, %v1835
      %v1852 = vsub.f32 0.0, %v1836
      %v1853 = vsub.f32 0.0, %v1837
      %v1854 = vsub.f32 0.0, %v1838
      %v1855 = vsub.f32 0.0, %v1839
      %v1856 = vsub.f32 0.0, %v1840
      %v1857 = vsub.f32 0.0, %v1841
      %v1858 = vmul.f32 %v1842, 1.442695
      %v1859 = vpow.pop %v1858
      %v1860 = vmul.f32 %v1843, 1.442695
      %v1861 = vpow.pop %v1860
      %v1862 = vmul.f32 %v1844, 1.442695
      %v1863 = vpow.pop %v1862
      %v1864 = vmul.f32 %v1845, 1.442695
      %v1865 = vpow.pop %v1864
      %v1866 = vmul.f32 %v1846, 1.442695
      %v1867 = vpow.pop %v1866
      %v1868 = vmul.f32 %v1847, 1.442695
      %v1869 = vpow.pop %v1868
      %v1870 = vmul.f32 %v1848, 1.442695
      %v1871 = vpow.pop %v1870
      %v1872 = vmul.f32 %v1849, 1.442695
      %v1873 = vpow.pop %v1872
      %v1874 = vmul.f32 %v1850, 1.442695
      %v1875 = vpow.pop %v1874
      %v1876 = vmul.f32 %v1851, 1.442695
      %v1877 = vpow.pop %v1876
      %v1878 = vmul.f32 %v1852, 1.442695
      %v1879 = vpow.pop %v1878
      %v1880 = vmul.f32 %v1853, 1.442695
      %v1881 = vpow.pop %v1880
      %v1882 = vmul.f32 %v1854, 1.442695
      %v1883 = vpow.pop %v1882
      %v1884 = vmul.f32 %v1855, 1.442695
      %v1885 = vpow.pop %v1884
      %v1886 = vmul.f32 %v1856, 1.442695
      %v1887 = vpow.pop %v1886
      %v1888 = vmul.f32 %v1857, 1.442695
      %v1889 = vpow.pop %v1888
      %v1890 = vadd.f32 %v1859, 1.0
      %v1891 = vadd.f32 %v1861, 1.0
      %v1892 = vadd.f32 %v1863, 1.0
      %v1893 = vadd.f32 %v1865, 1.0
      %v1894 = vadd.f32 %v1867, 1.0
      %v1895 = vadd.f32 %v1869, 1.0
      %v1896 = vadd.f32 %v1871, 1.0
      %v1897 = vadd.f32 %v1873, 1.0
      %v1898 = vadd.f32 %v1875, 1.0
      %v1899 = vadd.f32 %v1877, 1.0
      %v1900 = vadd.f32 %v1879, 1.0
      %v1901 = vadd.f32 %v1881, 1.0
      %v1902 = vadd.f32 %v1883, 1.0
      %v1903 = vadd.f32 %v1885, 1.0
      %v1904 = vadd.f32 %v1887, 1.0
      %v1905 = vadd.f32 %v1889, 1.0
      %v1906 = vrcp.pop %v1890
      %v1907 = vrcp.pop %v1891
      %v1908 = vrcp.pop %v1892
      %v1909 = vrcp.pop %v1893
      %v1910 = vrcp.pop %v1894
      %v1911 = vrcp.pop %v1895
      %v1912 = vrcp.pop %v1896
      %v1913 = vrcp.pop %v1897
      %v1914 = vrcp.pop %v1898
      %v1915 = vrcp.pop %v1899
      %v1916 = vrcp.pop %v1900
      %v1917 = vrcp.pop %v1901
      %v1918 = vrcp.pop %v1902
      %v1919 = vrcp.pop %v1903
      %v1920 = vrcp.pop %v1904
      %v1921 = vrcp.pop %v1905
      %v1922 = vmul.f32 %v1826, %v1906
      %v1923 = vmul.f32 %v1827, %v1907
      %v1924 = vmul.f32 %v1828, %v1908
      %v1925 = vmul.f32 %v1829, %v1909
      %v1926 = vmul.f32 %v1830, %v1910
      %v1927 = vmul.f32 %v1831, %v1911
      %v1928 = vmul.f32 %v1832, %v1912
      %v1929 = vmul.f32 %v1833, %v1913
      %v1930 = vmul.f32 %v1834, %v1914
      %v1931 = vmul.f32 %v1835, %v1915
      %v1932 = vmul.f32 %v1836, %v1916
      %v1933 = vmul.f32 %v1837, %v1917
      %v1934 = vmul.f32 %v1838, %v1918
      %v1935 = vmul.f32 %v1839, %v1919
      %v1936 = vmul.f32 %v1840, %v1920
      %v1937 = vmul.f32 %v1841, %v1921
      %v1938 = vld [vmem:[%s7] sm:$0x1]
      %v1940 = vlaneseq
      %v1941 = vshrl.u32 %v1940, 7
      %v1942 = vsub.s32 0, %v1941
      %v1943 = vrot.slane %v1938, %v1942
      %v1945 = vadd.f32 %v1922, %v1943
      %v1946 = vadd.f32 %v1923, %v1943
      %v1947 = vadd.f32 %v1924, %v1943
      %v1948 = vadd.f32 %v1925, %v1943
      %v1949 = vadd.f32 %v1926, %v1943
      %v1950 = vadd.f32 %v1927, %v1943
      %v1951 = vadd.f32 %v1928, %v1943
      %v1952 = vadd.f32 %v1929, %v1943
      %v1953 = vadd.f32 %v1930, %v1943
      %v1954 = vadd.f32 %v1931, %v1943
      %v1955 = vadd.f32 %v1932, %v1943
      %v1956 = vadd.f32 %v1933, %v1943
      %v1957 = vadd.f32 %v1934, %v1943
      %v1958 = vadd.f32 %v1935, %v1943
      %v1959 = vadd.f32 %v1936, %v1943
      %v1960 = vadd.f32 %v1937, %v1943
      %v1961 = vpack.c.bf16 %v1946, %v1945
      %v1962 = vpack.c.bf16 %v1948, %v1947
      %v1963 = vpack.c.bf16 %v1950, %v1949
      %v1964 = vpack.c.bf16 %v1952, %v1951
      %v1965 = vpack.c.bf16 %v1954, %v1953
      %v1966 = vpack.c.bf16 %v1956, %v1955
      %v1967 = vpack.c.bf16 %v1958, %v1957
      %v1968 = vpack.c.bf16 %v1960, %v1959
      %v1969 = vld [vmem:[%s8] sm:$0xf]
      %vm1970 = vcmask 64512
      %v1972 = vsel %vm1970, %v1961, 0
      %v1975 = vsel %vm1970, %v1962, 0
      %v1978 = vsel %vm1970, %v1963, 0
      %v1981 = vsel %vm1970, %v1964, 0
      %v1984 = vsel %vm1970, %v1965, 0
      %v1987 = vsel %vm1970, %v1966, 0
      %v1990 = vsel %vm1970, %v1967, 0
      %v1993 = vsel %vm1970, %v1968, 0
      %vm1995 = vcmask 1043456
      %v1997 = vsel %vm1995, %v1969, 0
      %1999 = vmatprep.subr.bf16.mxu0 0
      %2000 = vmatpush1.bf16.msra.mxu0 %v1997
      %2001 = vmatprep.subr.bf16.mxu0 0
      %2002 = vmatpush1.bf16.msra.mxu0 0
      %2003 = vmatprep.subr.bf16.mxu0 0
      %2004 = vmatpush1.bf16.msra.mxu0 0
      %2005 = vmatprep.subr.bf16.mxu0 0
      %2006 = vmatpush1.bf16.msra.mxu0 0
      %2007 = vmatprep.subr.bf16.mxu0 0
      %2008 = vmatpush1.bf16.msra.mxu0 0
      %2009 = vmatprep.subr.bf16.mxu0 0
      %2010 = vmatpush1.bf16.msra.mxu0 0
      %2011 = vmatprep.subr.bf16.mxu0 0
      %2012 = vmatpush1.bf16.msra.mxu0 0
      %2013 = vmatprep.subr.bf16.mxu0 0
      %2014 = vmatpush1.bf16.msra.mxu0 0
      %2015 = vmatprep.subr.bf16.mxu0 0
      %2016 = vmatpush1.bf16.msra.mxu0 0
      %2017 = vmatprep.subr.bf16.mxu0 0
      %2018 = vmatpush1.bf16.msra.mxu0 0
      %2019 = vmatprep.subr.bf16.mxu0 0
      %2020 = vmatpush1.bf16.msra.mxu0 0
      %2021 = vmatprep.subr.bf16.mxu0 0
      %2022 = vmatpush1.bf16.msra.mxu0 0
      %2023 = vmatprep.subr.bf16.mxu0 0
      %2024 = vmatpush1.bf16.msra.mxu0 0
      %2025 = vmatprep.subr.bf16.mxu0 0
      %2026 = vmatpush1.bf16.msra.mxu0 0
      %2027 = vmatprep.subr.bf16.mxu0 0
      %2028 = vmatpush1.bf16.msra.mxu0 0
      %2029 = vmatprep.subr.bf16.mxu0 0
      %2030 = vmatpush1.bf16.msra.mxu0 0
      %2031 = vmatprep.mubr.bf16.mxu0 0
      %2032 = vmatmul.mubr.bf16.gmra.mrb[0].mxu0 %v1972
      %v2033 = vpop.f32.mrb[0].mxu0
      %v2034 = vadd.f32 0.0, %v2033
      %v2035 = vpop.f32.mrb[0].mxu0
      %v2036 = vpop.f32.mrb[0].mxu0
      %v2037 = vadd.f32 0.0, %v2036
      %v2038 = vpop.f32.mrb[0].mxu0
      %2039 = vmatprep.mubr.bf16.mxu0 0
      %2040 = vmatmul.mubr.bf16.gmra.mrb[0].mxu0 %v1975
      %v2041 = vpop.f32.mrb[0].mxu0
      %v2042 = vadd.f32 0.0, %v2041
      %v2043 = vpop.f32.mrb[0].mxu0
      %v2044 = vpop.f32.mrb[0].mxu0
      %v2045 = vadd.f32 0.0, %v2044
      %v2046 = vpop.f32.mrb[0].mxu0
      %2047 = vmatprep.mubr.bf16.mxu0 0
      %2048 = vmatmul.mubr.bf16.gmra.mrb[0].mxu0 %v1978
      %v2049 = vpop.f32.mrb[0].mxu0
      %v2050 = vadd.f32 0.0, %v2049
      %v2051 = vpop.f32.mrb[0].mxu0
      %v2052 = vpop.f32.mrb[0].mxu0
      %v2053 = vadd.f32 0.0, %v2052
      %v2054 = vpop.f32.mrb[0].mxu0
      %2055 = vmatprep.mubr.bf16.mxu0 0
      %2056 = vmatmul.mubr.bf16.gmra.mrb[0].mxu0 %v1981
      %v2057 = vpop.f32.mrb[0].mxu0
      %v2058 = vadd.f32 0.0, %v2057
      %v2059 = vpop.f32.mrb[0].mxu0
      %v2060 = vpop.f32.mrb[0].mxu0
      %v2061 = vadd.f32 0.0, %v2060
      %v2062 = vpop.f32.mrb[0].mxu0
      %2063 = vmatprep.mubr.bf16.mxu0 0
      %2064 = vmatmul.mubr.bf16.gmra.mrb[0].mxu0 %v1984
      %v2065 = vpop.f32.mrb[0].mxu0
      %v2066 = vadd.f32 0.0, %v2065
      %v2067 = vpop.f32.mrb[0].mxu0
      %v2068 = vpop.f32.mrb[0].mxu0
      %v2069 = vadd.f32 0.0, %v2068
      %v2070 = vpop.f32.mrb[0].mxu0
      %2071 = vmatprep.mubr.bf16.mxu0 0
      %2072 = vmatmul.mubr.bf16.gmra.mrb[0].mxu0 %v1987
      %v2073 = vpop.f32.mrb[0].mxu0
      %v2074 = vadd.f32 0.0, %v2073
      %v2075 = vpop.f32.mrb[0].mxu0
      %v2076 = vpop.f32.mrb[0].mxu0
      %v2077 = vadd.f32 0.0, %v2076
      %v2078 = vpop.f32.mrb[0].mxu0
      %2079 = vmatprep.mubr.bf16.mxu0 0
      %2080 = vmatmul.mubr.bf16.gmra.mrb[0].mxu0 %v1990
      %v2081 = vpop.f32.mrb[0].mxu0
      %v2082 = vadd.f32 0.0, %v2081
      %v2083 = vpop.f32.mrb[0].mxu0
      %v2084 = vpop.f32.mrb[0].mxu0
      %v2085 = vadd.f32 0.0, %v2084
      %v2086 = vpop.f32.mrb[0].mxu0
      %2087 = vmatprep.mubr.bf16.mxu0 0
      %2088 = vmatmul.mubr.bf16.gmra.mrb[0].mxu0 %v1993
      %v2089 = vpop.f32.mrb[0].mxu0
      %v2090 = vadd.f32 0.0, %v2089
      %v2091 = vpop.f32.mrb[0].mxu0
      %v2092 = vpop.f32.mrb[0].mxu0
      %v2093 = vadd.f32 0.0, %v2092
      %v2094 = vpop.f32.mrb[0].mxu0
      %2095 = vdwg.mxu0
      %v2096 = vsub.f32 0.0, %v2034
      %v2097 = vsub.f32 0.0, %v2037
      %v2098 = vsub.f32 0.0, %v2042
      %v2099 = vsub.f32 0.0, %v2045
      %v2100 = vsub.f32 0.0, %v2050
      %v2101 = vsub.f32 0.0, %v2053
      %v2102 = vsub.f32 0.0, %v2058
      %v2103 = vsub.f32 0.0, %v2061
      %v2104 = vsub.f32 0.0, %v2066
      %v2105 = vsub.f32 0.0, %v2069
      %v2106 = vsub.f32 0.0, %v2074
      %v2107 = vsub.f32 0.0, %v2077
      %v2108 = vsub.f32 0.0, %v2082
      %v2109 = vsub.f32 0.0, %v2085
      %v2110 = vsub.f32 0.0, %v2090
      %v2111 = vsub.f32 0.0, %v2093
      %v2112 = vmul.f32 %v2096, 1.442695
      %v2113 = vpow.pop %v2112
      %v2114 = vmul.f32 %v2097, 1.442695
      %v2115 = vpow.pop %v2114
      %v2116 = vmul.f32 %v2098, 1.442695
      %v2117 = vpow.pop %v2116
      %v2118 = vmul.f32 %v2099, 1.442695
      %v2119 = vpow.pop %v2118
      %v2120 = vmul.f32 %v2100, 1.442695
      %v2121 = vpow.pop %v2120
      %v2122 = vmul.f32 %v2101, 1.442695
      %v2123 = vpow.pop %v2122
      %v2124 = vmul.f32 %v2102, 1.442695
      %v2125 = vpow.pop %v2124
      %v2126 = vmul.f32 %v2103, 1.442695
      %v2127 = vpow.pop %v2126
      %v2128 = vmul.f32 %v2104, 1.442695
      %v2129 = vpow.pop %v2128
      %v2130 = vmul.f32 %v2105, 1.442695
      %v2131 = vpow.pop %v2130
      %v2132 = vmul.f32 %v2106, 1.442695
      %v2133 = vpow.pop %v2132
      %v2134 = vmul.f32 %v2107, 1.442695
      %v2135 = vpow.pop %v2134
      %v2136 = vmul.f32 %v2108, 1.442695
      %v2137 = vpow.pop %v2136
      %v2138 = vmul.f32 %v2109, 1.442695
      %v2139 = vpow.pop %v2138
      %v2140 = vmul.f32 %v2110, 1.442695
      %v2141 = vpow.pop %v2140
      %v2142 = vmul.f32 %v2111, 1.442695
      %v2143 = vpow.pop %v2142
      %v2144 = vadd.f32 %v2113, 1.0
      %v2145 = vadd.f32 %v2115, 1.0
      %v2146 = vadd.f32 %v2117, 1.0
      %v2147 = vadd.f32 %v2119, 1.0
      %v2148 = vadd.f32 %v2121, 1.0
      %v2149 = vadd.f32 %v2123, 1.0
      %v2150 = vadd.f32 %v2125, 1.0
      %v2151 = vadd.f32 %v2127, 1.0
      %v2152 = vadd.f32 %v2129, 1.0
      %v2153 = vadd.f32 %v2131, 1.0
      %v2154 = vadd.f32 %v2133, 1.0
      %v2155 = vadd.f32 %v2135, 1.0
      %v2156 = vadd.f32 %v2137, 1.0
      %v2157 = vadd.f32 %v2139, 1.0
      %v2158 = vadd.f32 %v2141, 1.0
      %v2159 = vadd.f32 %v2143, 1.0
      %v2160 = vrcp.pop %v2144
      %v2161 = vrcp.pop %v2145
      %v2162 = vrcp.pop %v2146
      %v2163 = vrcp.pop %v2147
      %v2164 = vrcp.pop %v2148
      %v2165 = vrcp.pop %v2149
      %v2166 = vrcp.pop %v2150
      %v2167 = vrcp.pop %v2151
      %v2168 = vrcp.pop %v2152
      %v2169 = vrcp.pop %v2153
      %v2170 = vrcp.pop %v2154
      %v2171 = vrcp.pop %v2155
      %v2172 = vrcp.pop %v2156
      %v2173 = vrcp.pop %v2157
      %v2174 = vrcp.pop %v2158
      %v2175 = vrcp.pop %v2159
      %v2176 = vmul.f32 %v2034, %v2160
      %v2177 = vmul.f32 %v2037, %v2161
      %v2178 = vmul.f32 %v2042, %v2162
      %v2179 = vmul.f32 %v2045, %v2163
      %v2180 = vmul.f32 %v2050, %v2164
      %v2181 = vmul.f32 %v2053, %v2165
      %v2182 = vmul.f32 %v2058, %v2166
      %v2183 = vmul.f32 %v2061, %v2167
      %v2184 = vmul.f32 %v2066, %v2168
      %v2185 = vmul.f32 %v2069, %v2169
      %v2186 = vmul.f32 %v2074, %v2170
      %v2187 = vmul.f32 %v2077, %v2171
      %v2188 = vmul.f32 %v2082, %v2172
      %v2189 = vmul.f32 %v2085, %v2173
      %v2190 = vmul.f32 %v2090, %v2174
      %v2191 = vmul.f32 %v2093, %v2175
      %v2192 = vpack.c.bf16 %v2177, %v2176
      %v2193 = vpack.c.bf16 %v2179, %v2178
      %v2194 = vpack.c.bf16 %v2181, %v2180
      %v2195 = vpack.c.bf16 %v2183, %v2182
      %v2196 = vpack.c.bf16 %v2185, %v2184
      %v2197 = vpack.c.bf16 %v2187, %v2186
      %v2198 = vpack.c.bf16 %v2189, %v2188
      %v2199 = vpack.c.bf16 %v2191, %v2190
      %v2200 = vld [vmem:[%s9] sm:$0xf]
      %v2202 = vsel %vm1970, %v2192, 0
      %v2205 = vsel %vm1970, %v2193, 0
      %v2208 = vsel %vm1970, %v2194, 0
      %v2211 = vsel %vm1970, %v2195, 0
      %v2214 = vsel %vm1970, %v2196, 0
      %v2217 = vsel %vm1970, %v2197, 0
      %v2220 = vsel %vm1970, %v2198, 0
      %v2223 = vsel %vm1970, %v2199, 0
      %v2226 = vsel %vm1995, %v2200, 0
      %2228 = vmatprep.subr.bf16.mxu0 0
      %2229 = vmatpush1.bf16.msra.mxu0 %v2226
      %2230 = vmatprep.subr.bf16.mxu0 0
      %2231 = vmatpush1.bf16.msra.mxu0 0
      %2232 = vmatprep.subr.bf16.mxu0 0
      %2233 = vmatpush1.bf16.msra.mxu0 0
      %2234 = vmatprep.subr.bf16.mxu0 0
      %2235 = vmatpush1.bf16.msra.mxu0 0
      %2236 = vmatprep.subr.bf16.mxu0 0
      %2237 = vmatpush1.bf16.msra.mxu0 0
      %2238 = vmatprep.subr.bf16.mxu0 0
      %2239 = vmatpush1.bf16.msra.mxu0 0
      %2240 = vmatprep.subr.bf16.mxu0 0
      %2241 = vmatpush1.bf16.msra.mxu0 0
      %2242 = vmatprep.subr.bf16.mxu0 0
      %2243 = vmatpush1.bf16.msra.mxu0 0
      %2244 = vmatprep.subr.bf16.mxu0 0
      %2245 = vmatpush1.bf16.msra.mxu0 0
      %2246 = vmatprep.subr.bf16.mxu0 0
      %2247 = vmatpush1.bf16.msra.mxu0 0
      %2248 = vmatprep.subr.bf16.mxu0 0
      %2249 = vmatpush1.bf16.msra.mxu0 0
      %2250 = vmatprep.subr.bf16.mxu0 0
      %2251 = vmatpush1.bf16.msra.mxu0 0
      %2252 = vmatprep.subr.bf16.mxu0 0
      %2253 = vmatpush1.bf16.msra.mxu0 0
      %2254 = vmatprep.subr.bf16.mxu0 0
      %2255 = vmatpush1.bf16.msra.mxu0 0
      %2256 = vmatprep.subr.bf16.mxu0 0
      %2257 = vmatpush1.bf16.msra.mxu0 0
      %2258 = vmatprep.subr.bf16.mxu0 0
      %2259 = vmatpush1.bf16.msra.mxu0 0
      %2260 = vmatprep.mubr.bf16.mxu0 0
      %2261 = vmatmul.mubr.bf16.gmra.mrb[0].mxu0 %v2202
      %v2262 = vpop.f32.mrb[0].mxu0
      %v2263 = vadd.f32 0.0, %v2262
      %v2264 = vpop.f32.mrb[0].mxu0
      %v2265 = vpop.f32.mrb[0].mxu0
      %v2266 = vadd.f32 0.0, %v2265
      %v2267 = vpop.f32.mrb[0].mxu0
      %2268 = vmatprep.mubr.bf16.mxu0 0
      %2269 = vmatmul.mubr.bf16.gmra.mrb[0].mxu0 %v2205
      %v2270 = vpop.f32.mrb[0].mxu0
      %v2271 = vadd.f32 0.0, %v2270
      %v2272 = vpop.f32.mrb[0].mxu0
      %v2273 = vpop.f32.mrb[0].mxu0
      %v2274 = vadd.f32 0.0, %v2273
      %v2275 = vpop.f32.mrb[0].mxu0
      %2276 = vmatprep.mubr.bf16.mxu0 0
      %2277 = vmatmul.mubr.bf16.gmra.mrb[0].mxu0 %v2208
      %v2278 = vpop.f32.mrb[0].mxu0
      %v2279 = vadd.f32 0.0, %v2278
      %v2280 = vpop.f32.mrb[0].mxu0
      %v2281 = vpop.f32.mrb[0].mxu0
      %v2282 = vadd.f32 0.0, %v2281
      %v2283 = vpop.f32.mrb[0].mxu0
      %2284 = vmatprep.mubr.bf16.mxu0 0
      %2285 = vmatmul.mubr.bf16.gmra.mrb[0].mxu0 %v2211
      %v2286 = vpop.f32.mrb[0].mxu0
      %v2287 = vadd.f32 0.0, %v2286
      %v2288 = vpop.f32.mrb[0].mxu0
      %v2289 = vpop.f32.mrb[0].mxu0
      %v2290 = vadd.f32 0.0, %v2289
      %v2291 = vpop.f32.mrb[0].mxu0
      %2292 = vmatprep.mubr.bf16.mxu0 0
      %2293 = vmatmul.mubr.bf16.gmra.mrb[0].mxu0 %v2214
      %v2294 = vpop.f32.mrb[0].mxu0
      %v2295 = vadd.f32 0.0, %v2294
      %v2296 = vpop.f32.mrb[0].mxu0
      %v2297 = vpop.f32.mrb[0].mxu0
      %v2298 = vadd.f32 0.0, %v2297
      %v2299 = vpop.f32.mrb[0].mxu0
      %2300 = vmatprep.mubr.bf16.mxu0 0
      %2301 = vmatmul.mubr.bf16.gmra.mrb[0].mxu0 %v2217
      %v2302 = vpop.f32.mrb[0].mxu0
      %v2303 = vadd.f32 0.0, %v2302
      %v2304 = vpop.f32.mrb[0].mxu0
      %v2305 = vpop.f32.mrb[0].mxu0
      %v2306 = vadd.f32 0.0, %v2305
      %v2307 = vpop.f32.mrb[0].mxu0
      %2308 = vmatprep.mubr.bf16.mxu0 0
      %2309 = vmatmul.mubr.bf16.gmra.mrb[0].mxu0 %v2220
      %v2310 = vpop.f32.mrb[0].mxu0
      %v2311 = vadd.f32 0.0, %v2310
      %v2312 = vpop.f32.mrb[0].mxu0
      %v2313 = vpop.f32.mrb[0].mxu0
      %v2314 = vadd.f32 0.0, %v2313
      %v2315 = vpop.f32.mrb[0].mxu0
      %2316 = vmatprep.mubr.bf16.mxu0 0
      %2317 = vmatmul.mubr.bf16.gmra.mrb[0].mxu0 %v2223
      %v2318 = vpop.f32.mrb[0].mxu0
      %v2319 = vadd.f32 0.0, %v2318
      %v2320 = vpop.f32.mrb[0].mxu0
      %v2321 = vpop.f32.mrb[0].mxu0
      %v2322 = vadd.f32 0.0, %v2321
      %v2323 = vpop.f32.mrb[0].mxu0
      %2324 = vdwg.mxu0
      %v2325 = vsel %vm1970, %v2263, 0.0
      %2326 = vadd.xlane.f32.xlu0 %v2325
      %v2327 = vpop.xlane.xlu0 %2326
      %v2328 = vsel %vm1970, %v2266, 0.0
      %2329 = vadd.xlane.f32.xlu0 %v2328
      %v2330 = vpop.xlane.xlu0 %2329
      %v2331 = vsel %vm1970, %v2271, 0.0
      %2332 = vadd.xlane.f32.xlu0 %v2331
      %v2333 = vpop.xlane.xlu0 %2332
      %v2334 = vsel %vm1970, %v2274, 0.0
      %2335 = vadd.xlane.f32.xlu0 %v2334
      %v2336 = vpop.xlane.xlu0 %2335
      %v2337 = vsel %vm1970, %v2279, 0.0
      %2338 = vadd.xlane.f32.xlu0 %v2337
      %v2339 = vpop.xlane.xlu0 %2338
      %v2340 = vsel %vm1970, %v2282, 0.0
      %2341 = vadd.xlane.f32.xlu0 %v2340
      %v2342 = vpop.xlane.xlu0 %2341
      %v2343 = vsel %vm1970, %v2287, 0.0
      %2344 = vadd.xlane.f32.xlu0 %v2343
      %v2345 = vpop.xlane.xlu0 %2344
      %v2346 = vsel %vm1970, %v2290, 0.0
      %2347 = vadd.xlane.f32.xlu0 %v2346
      %v2348 = vpop.xlane.xlu0 %2347
      %v2349 = vsel %vm1970, %v2295, 0.0
      %2350 = vadd.xlane.f32.xlu0 %v2349
      %v2351 = vpop.xlane.xlu0 %2350
      %v2352 = vsel %vm1970, %v2298, 0.0
      %2353 = vadd.xlane.f32.xlu0 %v2352
      %v2354 = vpop.xlane.xlu0 %2353
      %v2355 = vsel %vm1970, %v2303, 0.0
      %2356 = vadd.xlane.f32.xlu0 %v2355
      %v2357 = vpop.xlane.xlu0 %2356
      %v2358 = vsel %vm1970, %v2306, 0.0
      %2359 = vadd.xlane.f32.xlu0 %v2358
      %v2360 = vpop.xlane.xlu0 %2359
      %v2361 = vsel %vm1970, %v2311, 0.0
      %2362 = vadd.xlane.f32.xlu0 %v2361
      %v2363 = vpop.xlane.xlu0 %2362
      %v2364 = vsel %vm1970, %v2314, 0.0
      %2365 = vadd.xlane.f32.xlu0 %v2364
      %v2366 = vpop.xlane.xlu0 %2365
      %v2367 = vsel %vm1970, %v2319, 0.0
      %2368 = vadd.xlane.f32.xlu0 %v2367
      %v2369 = vpop.xlane.xlu0 %2368
      %v2370 = vsel %vm1970, %v2322, 0.0
      %2371 = vadd.xlane.f32.xlu0 %v2370
      %v2372 = vpop.xlane.xlu0 %2371
      %v2373 = vrcp.pop 8.0
      %v2374 = vmul.f32 %v2327, %v2373
      %v2375 = vmul.f32 %v2330, %v2373
      %v2376 = vmul.f32 %v2333, %v2373
      %v2377 = vmul.f32 %v2336, %v2373
      %v2378 = vmul.f32 %v2339, %v2373
      %v2379 = vmul.f32 %v2342, %v2373
      %v2380 = vmul.f32 %v2345, %v2373
      %v2381 = vmul.f32 %v2348, %v2373
      %v2382 = vmul.f32 %v2351, %v2373
      %v2383 = vmul.f32 %v2354, %v2373
      %v2384 = vmul.f32 %v2357, %v2373
      %v2385 = vmul.f32 %v2360, %v2373
      %v2386 = vmul.f32 %v2363, %v2373
      %v2387 = vmul.f32 %v2366, %v2373
      %v2388 = vmul.f32 %v2369, %v2373
      %v2389 = vmul.f32 %v2372, %v2373
      %v2390 = vsub.f32 %v2263, %v2374
      %v2391 = vsub.f32 %v2266, %v2375
      %v2392 = vsub.f32 %v2271, %v2376
      %v2393 = vsub.f32 %v2274, %v2377
      %v2394 = vsub.f32 %v2279, %v2378
      %v2395 = vsub.f32 %v2282, %v2379
      %v2396 = vsub.f32 %v2287, %v2380
      %v2397 = vsub.f32 %v2290, %v2381
      %v2398 = vsub.f32 %v2295, %v2382
      %v2399 = vsub.f32 %v2298, %v2383
      %v2400 = vsub.f32 %v2303, %v2384
      %v2401 = vsub.f32 %v2306, %v2385
      %v2402 = vsub.f32 %v2311, %v2386
      %v2403 = vsub.f32 %v2314, %v2387
      %v2404 = vsub.f32 %v2319, %v2388
      %v2405 = vsub.f32 %v2322, %v2389
      %v2406 = vmul.f32 %v2390, %v2390
      %v2407 = vmul.f32 %v2391, %v2391
      %v2408 = vmul.f32 %v2392, %v2392
      %v2409 = vmul.f32 %v2393, %v2393
      %v2410 = vmul.f32 %v2394, %v2394
      %v2411 = vmul.f32 %v2395, %v2395
      %v2412 = vmul.f32 %v2396, %v2396
      %v2413 = vmul.f32 %v2397, %v2397
      %v2414 = vmul.f32 %v2398, %v2398
      %v2415 = vmul.f32 %v2399, %v2399
      %v2416 = vmul.f32 %v2400, %v2400
      %v2417 = vmul.f32 %v2401, %v2401
      %v2418 = vmul.f32 %v2402, %v2402
      %v2419 = vmul.f32 %v2403, %v2403
      %v2420 = vmul.f32 %v2404, %v2404
      %v2421 = vmul.f32 %v2405, %v2405
      %v2422 = vsel %vm1970, %v2406, 0.0
      %2423 = vadd.xlane.f32.xlu0 %v2422
      %v2424 = vpop.xlane.xlu0 %2423
      %v2425 = vsel %vm1970, %v2407, 0.0
      %2426 = vadd.xlane.f32.xlu0 %v2425
      %v2427 = vpop.xlane.xlu0 %2426
      %v2428 = vsel %vm1970, %v2408, 0.0
      %2429 = vadd.xlane.f32.xlu0 %v2428
      %v2430 = vpop.xlane.xlu0 %2429
      %v2431 = vsel %vm1970, %v2409, 0.0
      %2432 = vadd.xlane.f32.xlu0 %v2431
      %v2433 = vpop.xlane.xlu0 %2432
      %v2434 = vsel %vm1970, %v2410, 0.0
      %2435 = vadd.xlane.f32.xlu0 %v2434
      %v2436 = vpop.xlane.xlu0 %2435
      %v2437 = vsel %vm1970, %v2411, 0.0
      %2438 = vadd.xlane.f32.xlu0 %v2437
      %v2439 = vpop.xlane.xlu0 %2438
      %v2440 = vsel %vm1970, %v2412, 0.0
      %2441 = vadd.xlane.f32.xlu0 %v2440
      %v2442 = vpop.xlane.xlu0 %2441
      %v2443 = vsel %vm1970, %v2413, 0.0
      %2444 = vadd.xlane.f32.xlu0 %v2443
      %v2445 = vpop.xlane.xlu0 %2444
      %v2446 = vsel %vm1970, %v2414, 0.0
      %2447 = vadd.xlane.f32.xlu0 %v2446
      %v2448 = vpop.xlane.xlu0 %2447
      %v2449 = vsel %vm1970, %v2415, 0.0
      %2450 = vadd.xlane.f32.xlu0 %v2449
      %v2451 = vpop.xlane.xlu0 %2450
      %v2452 = vsel %vm1970, %v2416, 0.0
      %2453 = vadd.xlane.f32.xlu0 %v2452
      %v2454 = vpop.xlane.xlu0 %2453
      %v2455 = vsel %vm1970, %v2417, 0.0
      %2456 = vadd.xlane.f32.xlu0 %v2455
      %v2457 = vpop.xlane.xlu0 %2456
      %v2458 = vsel %vm1970, %v2418, 0.0
      %2459 = vadd.xlane.f32.xlu0 %v2458
      %v2460 = vpop.xlane.xlu0 %2459
      %v2461 = vsel %vm1970, %v2419, 0.0
      %2462 = vadd.xlane.f32.xlu0 %v2461
      %v2463 = vpop.xlane.xlu0 %2462
      %v2464 = vsel %vm1970, %v2420, 0.0
      %2465 = vadd.xlane.f32.xlu0 %v2464
      %v2466 = vpop.xlane.xlu0 %2465
      %v2467 = vsel %vm1970, %v2421, 0.0
      %2468 = vadd.xlane.f32.xlu0 %v2467
      %v2469 = vpop.xlane.xlu0 %2468
      %v2470 = vmul.f32 %v2424, %v2373
      %v2471 = vmul.f32 %v2427, %v2373
      %v2472 = vmul.f32 %v2430, %v2373
      %v2473 = vmul.f32 %v2433, %v2373
      %v2474 = vmul.f32 %v2436, %v2373
      %v2475 = vmul.f32 %v2439, %v2373
      %v2476 = vmul.f32 %v2442, %v2373
      %v2477 = vmul.f32 %v2445, %v2373
      %v2478 = vmul.f32 %v2448, %v2373
      %v2479 = vmul.f32 %v2451, %v2373
      %v2480 = vmul.f32 %v2454, %v2373
      %v2481 = vmul.f32 %v2457, %v2373
      %v2482 = vmul.f32 %v2460, %v2373
      %v2483 = vmul.f32 %v2463, %v2373
      %v2484 = vmul.f32 %v2466, %v2373
      %v2485 = vmul.f32 %v2469, %v2373
      %v2486 = vadd.f32 %v2470, 1e-05
      %v2487 = vadd.f32 %v2471, 1e-05
      %v2488 = vadd.f32 %v2472, 1e-05
      %v2489 = vadd.f32 %v2473, 1e-05
      %v2490 = vadd.f32 %v2474, 1e-05
      %v2491 = vadd.f32 %v2475, 1e-05
      %v2492 = vadd.f32 %v2476, 1e-05
      %v2493 = vadd.f32 %v2477, 1e-05
      %v2494 = vadd.f32 %v2478, 1e-05
      %v2495 = vadd.f32 %v2479, 1e-05
      %v2496 = vadd.f32 %v2480, 1e-05
      %v2497 = vadd.f32 %v2481, 1e-05
      %v2498 = vadd.f32 %v2482, 1e-05
      %v2499 = vadd.f32 %v2483, 1e-05
      %v2500 = vadd.f32 %v2484, 1e-05
      %v2501 = vadd.f32 %v2485, 1e-05
      %v2502 = vrsqrt.pop %v2486
      %v2503 = vrsqrt.pop %v2487
      %v2504 = vrsqrt.pop %v2488
      %v2505 = vrsqrt.pop %v2489
      %v2506 = vrsqrt.pop %v2490
      %v2507 = vrsqrt.pop %v2491
      %v2508 = vrsqrt.pop %v2492
      %v2509 = vrsqrt.pop %v2493
      %v2510 = vrsqrt.pop %v2494
      %v2511 = vrsqrt.pop %v2495
      %v2512 = vrsqrt.pop %v2496
      %v2513 = vrsqrt.pop %v2497
      %v2514 = vrsqrt.pop %v2498
      %v2515 = vrsqrt.pop %v2499
      %v2516 = vrsqrt.pop %v2500
      %v2517 = vrsqrt.pop %v2501
      %v2518 = vmul.f32 %v2390, %v2502
      %v2519 = vmul.f32 %v2391, %v2503
      %v2520 = vmul.f32 %v2392, %v2504
      %v2521 = vmul.f32 %v2393, %v2505
      %v2522 = vmul.f32 %v2394, %v2506
      %v2523 = vmul.f32 %v2395, %v2507
      %v2524 = vmul.f32 %v2396, %v2508
      %v2525 = vmul.f32 %v2397, %v2509
      %v2526 = vmul.f32 %v2398, %v2510
      %v2527 = vmul.f32 %v2399, %v2511
      %v2528 = vmul.f32 %v2400, %v2512
      %v2529 = vmul.f32 %v2401, %v2513
      %v2530 = vmul.f32 %v2402, %v2514
      %v2531 = vmul.f32 %v2403, %v2515
      %v2532 = vmul.f32 %v2404, %v2516
      %v2533 = vmul.f32 %v2405, %v2517
      %v2534 = vld [vmem:[%s10] sm:$0x1]
      %v2536 = vlaneseq
      %v2537 = vshrl.u32 %v2536, 7
      %v2538 = vsub.s32 0, %v2537
      %v2539 = vrot.slane %v2534, %v2538
      %v2541 = vmul.f32 %v2518, %v2539
      %v2542 = vmul.f32 %v2519, %v2539
      %v2543 = vmul.f32 %v2520, %v2539
      %v2544 = vmul.f32 %v2521, %v2539
      %v2545 = vmul.f32 %v2522, %v2539
      %v2546 = vmul.f32 %v2523, %v2539
      %v2547 = vmul.f32 %v2524, %v2539
      %v2548 = vmul.f32 %v2525, %v2539
      %v2549 = vmul.f32 %v2526, %v2539
      %v2550 = vmul.f32 %v2527, %v2539
      %v2551 = vmul.f32 %v2528, %v2539
      %v2552 = vmul.f32 %v2529, %v2539
      %v2553 = vmul.f32 %v2530, %v2539
      %v2554 = vmul.f32 %v2531, %v2539
      %v2555 = vmul.f32 %v2532, %v2539
      %v2556 = vmul.f32 %v2533, %v2539
      %v2557 = vld [vmem:[%s11] sm:$0x1]
      %v2559 = vlaneseq
      %v2560 = vshrl.u32 %v2559, 7
      %v2561 = vsub.s32 0, %v2560
      %v2562 = vrot.slane %v2557, %v2561
      %v2564 = vadd.f32 %v2541, %v2562
      %v2565 = vadd.f32 %v2542, %v2562
      %v2566 = vadd.f32 %v2543, %v2562
      %v2567 = vadd.f32 %v2544, %v2562
      %v2568 = vadd.f32 %v2545, %v2562
      %v2569 = vadd.f32 %v2546, %v2562
      %v2570 = vadd.f32 %v2547, %v2562
      %v2571 = vadd.f32 %v2548, %v2562
      %v2572 = vadd.f32 %v2549, %v2562
      %v2573 = vadd.f32 %v2550, %v2562
      %v2574 = vadd.f32 %v2551, %v2562
      %v2575 = vadd.f32 %v2552, %v2562
      %v2576 = vadd.f32 %v2553, %v2562
      %v2577 = vadd.f32 %v2554, %v2562
      %v2578 = vadd.f32 %v2555, %v2562
      %v2579 = vadd.f32 %v2556, %v2562
      %v2580 = vld [vmem:[%s4] sm:$0x3]
      %v2582 = vsel %vm856, %v2580, 0
      %2584 = vmatprep.subr.bf16.mxu0 0
      %2585 = vmatpush1.bf16.msra.mxu0 %v2582
      %2586 = vmatprep.subr.bf16.mxu0 0
      %2587 = vmatpush1.bf16.msra.mxu0 0
      %2588 = vmatprep.subr.bf16.mxu0 0
      %2589 = vmatpush1.bf16.msra.mxu0 0
      %2590 = vmatprep.subr.bf16.mxu0 0
      %2591 = vmatpush1.bf16.msra.mxu0 0
      %2592 = vmatprep.subr.bf16.mxu0 0
      %2593 = vmatpush1.bf16.msra.mxu0 0
      %2594 = vmatprep.subr.bf16.mxu0 0
      %2595 = vmatpush1.bf16.msra.mxu0 0
      %2596 = vmatprep.subr.bf16.mxu0 0
      %2597 = vmatpush1.bf16.msra.mxu0 0
      %2598 = vmatprep.subr.bf16.mxu0 0
      %2599 = vmatpush1.bf16.msra.mxu0 0
      %2600 = vmatprep.subr.bf16.mxu0 0
      %2601 = vmatpush1.bf16.msra.mxu0 0
      %2602 = vmatprep.subr.bf16.mxu0 0
      %2603 = vmatpush1.bf16.msra.mxu0 0
      %2604 = vmatprep.subr.bf16.mxu0 0
      %2605 = vmatpush1.bf16.msra.mxu0 0
      %2606 = vmatprep.subr.bf16.mxu0 0
      %2607 = vmatpush1.bf16.msra.mxu0 0
      %2608 = vmatprep.subr.bf16.mxu0 0
      %2609 = vmatpush1.bf16.msra.mxu0 0
      %2610 = vmatprep.subr.bf16.mxu0 0
      %2611 = vmatpush1.bf16.msra.mxu0 0
      %2612 = vmatprep.subr.bf16.mxu0 0
      %2613 = vmatpush1.bf16.msra.mxu0 0
      %2614 = vmatprep.subr.bf16.mxu0 0
      %2615 = vmatpush1.bf16.msra.mxu0 0
      %2616 = vmatprep.mubr.bf16.mxu0 0
      %2617 = vmatmul.mubr.bf16.gmra.mrb[0].mxu0 %v830
      %v2618 = vpop.f32.mrb[0].mxu0
      %v2619 = vadd.f32 0.0, %v2618
      %v2620 = vpop.f32.mrb[0].mxu0
      %v2621 = vpop.f32.mrb[0].mxu0
      %v2622 = vadd.f32 0.0, %v2621
      %v2623 = vpop.f32.mrb[0].mxu0
      %2624 = vmatprep.mubr.bf16.mxu0 0
      %2625 = vmatmul.mubr.bf16.gmra.mrb[0].mxu0 %v833
      %v2626 = vpop.f32.mrb[0].mxu0
      %v2627 = vadd.f32 0.0, %v2626
      %v2628 = vpop.f32.mrb[0].mxu0
      %v2629 = vpop.f32.mrb[0].mxu0
      %v2630 = vadd.f32 0.0, %v2629
      %v2631 = vpop.f32.mrb[0].mxu0
      %2632 = vmatprep.mubr.bf16.mxu0 0
      %2633 = vmatmul.mubr.bf16.gmra.mrb[0].mxu0 %v836
      %v2634 = vpop.f32.mrb[0].mxu0
      %v2635 = vadd.f32 0.0, %v2634
      %v2636 = vpop.f32.mrb[0].mxu0
      %v2637 = vpop.f32.mrb[0].mxu0
      %v2638 = vadd.f32 0.0, %v2637
      %v2639 = vpop.f32.mrb[0].mxu0
      %2640 = vmatprep.mubr.bf16.mxu0 0
      %2641 = vmatmul.mubr.bf16.gmra.mrb[0].mxu0 %v839
      %v2642 = vpop.f32.mrb[0].mxu0
      %v2643 = vadd.f32 0.0, %v2642
      %v2644 = vpop.f32.mrb[0].mxu0
      %v2645 = vpop.f32.mrb[0].mxu0
      %v2646 = vadd.f32 0.0, %v2645
      %v2647 = vpop.f32.mrb[0].mxu0
      %2648 = vmatprep.mubr.bf16.mxu0 0
      %2649 = vmatmul.mubr.bf16.gmra.mrb[0].mxu0 %v842
      %v2650 = vpop.f32.mrb[0].mxu0
      %v2651 = vadd.f32 0.0, %v2650
      %v2652 = vpop.f32.mrb[0].mxu0
      %v2653 = vpop.f32.mrb[0].mxu0
      %v2654 = vadd.f32 0.0, %v2653
      %v2655 = vpop.f32.mrb[0].mxu0
      %2656 = vmatprep.mubr.bf16.mxu0 0
      %2657 = vmatmul.mubr.bf16.gmra.mrb[0].mxu0 %v845
      %v2658 = vpop.f32.mrb[0].mxu0
      %v2659 = vadd.f32 0.0, %v2658
      %v2660 = vpop.f32.mrb[0].mxu0
      %v2661 = vpop.f32.mrb[0].mxu0
      %v2662 = vadd.f32 0.0, %v2661
      %v2663 = vpop.f32.mrb[0].mxu0
      %2664 = vmatprep.mubr.bf16.mxu0 0
      %2665 = vmatmul.mubr.bf16.gmra.mrb[0].mxu0 %v848
      %v2666 = vpop.f32.mrb[0].mxu0
      %v2667 = vadd.f32 0.0, %v2666
      %v2668 = vpop.f32.mrb[0].mxu0
      %v2669 = vpop.f32.mrb[0].mxu0
      %v2670 = vadd.f32 0.0, %v2669
      %v2671 = vpop.f32.mrb[0].mxu0
      %2672 = vmatprep.mubr.bf16.mxu0 0
      %2673 = vmatmul.mubr.bf16.gmra.mrb[0].mxu0 %v851
      %v2674 = vpop.f32.mrb[0].mxu0
      %v2675 = vadd.f32 0.0, %v2674
      %v2676 = vpop.f32.mrb[0].mxu0
      %v2677 = vpop.f32.mrb[0].mxu0
      %v2678 = vadd.f32 0.0, %v2677
      %v2679 = vpop.f32.mrb[0].mxu0
      %2680 = vdwg.mxu0
      %v2681 = vsub.f32 0.0, %v2619
      %v2682 = vsub.f32 0.0, %v2622
      %v2683 = vsub.f32 0.0, %v2627
      %v2684 = vsub.f32 0.0, %v2630
      %v2685 = vsub.f32 0.0, %v2635
      %v2686 = vsub.f32 0.0, %v2638
      %v2687 = vsub.f32 0.0, %v2643
      %v2688 = vsub.f32 0.0, %v2646
      %v2689 = vsub.f32 0.0, %v2651
      %v2690 = vsub.f32 0.0, %v2654
      %v2691 = vsub.f32 0.0, %v2659
      %v2692 = vsub.f32 0.0, %v2662
      %v2693 = vsub.f32 0.0, %v2667
      %v2694 = vsub.f32 0.0, %v2670
      %v2695 = vsub.f32 0.0, %v2675
      %v2696 = vsub.f32 0.0, %v2678
      %v2697 = vmul.f32 %v2681, 1.442695
      %v2698 = vpow.pop %v2697
      %v2699 = vmul.f32 %v2682, 1.442695
      %v2700 = vpow.pop %v2699
      %v2701 = vmul.f32 %v2683, 1.442695
      %v2702 = vpow.pop %v2701
      %v2703 = vmul.f32 %v2684, 1.442695
      %v2704 = vpow.pop %v2703
      %v2705 = vmul.f32 %v2685, 1.442695
      %v2706 = vpow.pop %v2705
      %v2707 = vmul.f32 %v2686, 1.442695
      %v2708 = vpow.pop %v2707
      %v2709 = vmul.f32 %v2687, 1.442695
      %v2710 = vpow.pop %v2709
      %v2711 = vmul.f32 %v2688, 1.442695
      %v2712 = vpow.pop %v2711
      %v2713 = vmul.f32 %v2689, 1.442695
      %v2714 = vpow.pop %v2713
      %v2715 = vmul.f32 %v2690, 1.442695
      %v2716 = vpow.pop %v2715
      %v2717 = vmul.f32 %v2691, 1.442695
      %v2718 = vpow.pop %v2717
      %v2719 = vmul.f32 %v2692, 1.442695
      %v2720 = vpow.pop %v2719
      %v2721 = vmul.f32 %v2693, 1.442695
      %v2722 = vpow.pop %v2721
      %v2723 = vmul.f32 %v2694, 1.442695
      %v2724 = vpow.pop %v2723
      %v2725 = vmul.f32 %v2695, 1.442695
      %v2726 = vpow.pop %v2725
      %v2727 = vmul.f32 %v2696, 1.442695
      %v2728 = vpow.pop %v2727
      %v2729 = vadd.f32 %v2698, 1.0
      %v2730 = vadd.f32 %v2700, 1.0
      %v2731 = vadd.f32 %v2702, 1.0
      %v2732 = vadd.f32 %v2704, 1.0
      %v2733 = vadd.f32 %v2706, 1.0
      %v2734 = vadd.f32 %v2708, 1.0
      %v2735 = vadd.f32 %v2710, 1.0
      %v2736 = vadd.f32 %v2712, 1.0
      %v2737 = vadd.f32 %v2714, 1.0
      %v2738 = vadd.f32 %v2716, 1.0
      %v2739 = vadd.f32 %v2718, 1.0
      %v2740 = vadd.f32 %v2720, 1.0
      %v2741 = vadd.f32 %v2722, 1.0
      %v2742 = vadd.f32 %v2724, 1.0
      %v2743 = vadd.f32 %v2726, 1.0
      %v2744 = vadd.f32 %v2728, 1.0
      %v2745 = vrcp.pop %v2729
      %v2746 = vrcp.pop %v2730
      %v2747 = vrcp.pop %v2731
      %v2748 = vrcp.pop %v2732
      %v2749 = vrcp.pop %v2733
      %v2750 = vrcp.pop %v2734
      %v2751 = vrcp.pop %v2735
      %v2752 = vrcp.pop %v2736
      %v2753 = vrcp.pop %v2737
      %v2754 = vrcp.pop %v2738
      %v2755 = vrcp.pop %v2739
      %v2756 = vrcp.pop %v2740
      %v2757 = vrcp.pop %v2741
      %v2758 = vrcp.pop %v2742
      %v2759 = vrcp.pop %v2743
      %v2760 = vrcp.pop %v2744
      %v2761 = vmul.f32 %v2619, %v2745
      %v2762 = vmul.f32 %v2622, %v2746
      %v2763 = vmul.f32 %v2627, %v2747
      %v2764 = vmul.f32 %v2630, %v2748
      %v2765 = vmul.f32 %v2635, %v2749
      %v2766 = vmul.f32 %v2638, %v2750
      %v2767 = vmul.f32 %v2643, %v2751
      %v2768 = vmul.f32 %v2646, %v2752
      %v2769 = vmul.f32 %v2651, %v2753
      %v2770 = vmul.f32 %v2654, %v2754
      %v2771 = vmul.f32 %v2659, %v2755
      %v2772 = vmul.f32 %v2662, %v2756
      %v2773 = vmul.f32 %v2667, %v2757
      %v2774 = vmul.f32 %v2670, %v2758
      %v2775 = vmul.f32 %v2675, %v2759
      %v2776 = vmul.f32 %v2678, %v2760
      %v2777 = vmul.f32 %v2564, %v2761
      %v2778 = vmul.f32 %v2565, %v2762
      %v2779 = vmul.f32 %v2566, %v2763
      %v2780 = vmul.f32 %v2567, %v2764
      %v2781 = vmul.f32 %v2568, %v2765
      %v2782 = vmul.f32 %v2569, %v2766
      %v2783 = vmul.f32 %v2570, %v2767
      %v2784 = vmul.f32 %v2571, %v2768
      %v2785 = vmul.f32 %v2572, %v2769
      %v2786 = vmul.f32 %v2573, %v2770
      %v2787 = vmul.f32 %v2574, %v2771
      %v2788 = vmul.f32 %v2575, %v2772
      %v2789 = vmul.f32 %v2576, %v2773
      %v2790 = vmul.f32 %v2577, %v2774
      %v2791 = vmul.f32 %v2578, %v2775
      %v2792 = vmul.f32 %v2579, %v2776
      %v2793 = vpack.c.bf16 %v2778, %v2777
      %v2794 = vpack.c.bf16 %v2780, %v2779
      %v2795 = vpack.c.bf16 %v2782, %v2781
      %v2796 = vpack.c.bf16 %v2784, %v2783
      %v2797 = vpack.c.bf16 %v2786, %v2785
      %v2798 = vpack.c.bf16 %v2788, %v2787
      %v2799 = vpack.c.bf16 %v2790, %v2789
      %v2800 = vpack.c.bf16 %v2792, %v2791
      %v2801 = vld [vmem:[%s12] sm:$0xf]
      %v2803 = vsel %vm1970, %v2793, 0
      %v2806 = vsel %vm1970, %v2794, 0
      %v2809 = vsel %vm1970, %v2795, 0
      %v2812 = vsel %vm1970, %v2796, 0
      %v2815 = vsel %vm1970, %v2797, 0
      %v2818 = vsel %vm1970, %v2798, 0
      %v2821 = vsel %vm1970, %v2799, 0
      %v2824 = vsel %vm1970, %v2800, 0
      %v2827 = vsel %vm1995, %v2801, 0
      %2829 = vmatprep.subr.bf16.mxu0 0
      %2830 = vmatpush1.bf16.msra.mxu0 %v2827
      %2831 = vmatprep.subr.bf16.mxu0 0
      %2832 = vmatpush1.bf16.msra.mxu0 0
      %2833 = vmatprep.subr.bf16.mxu0 0
      %2834 = vmatpush1.bf16.msra.mxu0 0
      %2835 = vmatprep.subr.bf16.mxu0 0
      %2836 = vmatpush1.bf16.msra.mxu0 0
      %2837 = vmatprep.subr.bf16.mxu0 0
      %2838 = vmatpush1.bf16.msra.mxu0 0
      %2839 = vmatprep.subr.bf16.mxu0 0
      %2840 = vmatpush1.bf16.msra.mxu0 0
      %2841 = vmatprep.subr.bf16.mxu0 0
      %2842 = vmatpush1.bf16.msra.mxu0 0
      %2843 = vmatprep.subr.bf16.mxu0 0
      %2844 = vmatpush1.bf16.msra.mxu0 0
      %2845 = vmatprep.subr.bf16.mxu0 0
      %2846 = vmatpush1.bf16.msra.mxu0 0
      %2847 = vmatprep.subr.bf16.mxu0 0
      %2848 = vmatpush1.bf16.msra.mxu0 0
      %2849 = vmatprep.subr.bf16.mxu0 0
      %2850 = vmatpush1.bf16.msra.mxu0 0
      %2851 = vmatprep.subr.bf16.mxu0 0
      %2852 = vmatpush1.bf16.msra.mxu0 0
      %2853 = vmatprep.subr.bf16.mxu0 0
      %2854 = vmatpush1.bf16.msra.mxu0 0
      %2855 = vmatprep.subr.bf16.mxu0 0
      %2856 = vmatpush1.bf16.msra.mxu0 0
      %2857 = vmatprep.subr.bf16.mxu0 0
      %2858 = vmatpush1.bf16.msra.mxu0 0
      %2859 = vmatprep.subr.bf16.mxu0 0
      %2860 = vmatpush1.bf16.msra.mxu0 0
      %2861 = vmatprep.mubr.bf16.mxu0 0
      %2862 = vmatmul.mubr.bf16.gmra.mrb[0].mxu0 %v2803
      %v2863 = vpop.f32.mrb[0].mxu0
      %v2864 = vadd.f32 0.0, %v2863
      %v2865 = vpop.f32.mrb[0].mxu0
      %v2866 = vpop.f32.mrb[0].mxu0
      %v2867 = vadd.f32 0.0, %v2866
      %v2868 = vpop.f32.mrb[0].mxu0
      %2869 = vmatprep.mubr.bf16.mxu0 0
      %2870 = vmatmul.mubr.bf16.gmra.mrb[0].mxu0 %v2806
      %v2871 = vpop.f32.mrb[0].mxu0
      %v2872 = vadd.f32 0.0, %v2871
      %v2873 = vpop.f32.mrb[0].mxu0
      %v2874 = vpop.f32.mrb[0].mxu0
      %v2875 = vadd.f32 0.0, %v2874
      %v2876 = vpop.f32.mrb[0].mxu0
      %2877 = vmatprep.mubr.bf16.mxu0 0
      %2878 = vmatmul.mubr.bf16.gmra.mrb[0].mxu0 %v2809
      %v2879 = vpop.f32.mrb[0].mxu0
      %v2880 = vadd.f32 0.0, %v2879
      %v2881 = vpop.f32.mrb[0].mxu0
      %v2882 = vpop.f32.mrb[0].mxu0
      %v2883 = vadd.f32 0.0, %v2882
      %v2884 = vpop.f32.mrb[0].mxu0
      %2885 = vmatprep.mubr.bf16.mxu0 0
      %2886 = vmatmul.mubr.bf16.gmra.mrb[0].mxu0 %v2812
      %v2887 = vpop.f32.mrb[0].mxu0
      %v2888 = vadd.f32 0.0, %v2887
      %v2889 = vpop.f32.mrb[0].mxu0
      %v2890 = vpop.f32.mrb[0].mxu0
      %v2891 = vadd.f32 0.0, %v2890
      %v2892 = vpop.f32.mrb[0].mxu0
      %2893 = vmatprep.mubr.bf16.mxu0 0
      %2894 = vmatmul.mubr.bf16.gmra.mrb[0].mxu0 %v2815
      %v2895 = vpop.f32.mrb[0].mxu0
      %v2896 = vadd.f32 0.0, %v2895
      %v2897 = vpop.f32.mrb[0].mxu0
      %v2898 = vpop.f32.mrb[0].mxu0
      %v2899 = vadd.f32 0.0, %v2898
      %v2900 = vpop.f32.mrb[0].mxu0
      %2901 = vmatprep.mubr.bf16.mxu0 0
      %2902 = vmatmul.mubr.bf16.gmra.mrb[0].mxu0 %v2818
      %v2903 = vpop.f32.mrb[0].mxu0
      %v2904 = vadd.f32 0.0, %v2903
      %v2905 = vpop.f32.mrb[0].mxu0
      %v2906 = vpop.f32.mrb[0].mxu0
      %v2907 = vadd.f32 0.0, %v2906
      %v2908 = vpop.f32.mrb[0].mxu0
      %2909 = vmatprep.mubr.bf16.mxu0 0
      %2910 = vmatmul.mubr.bf16.gmra.mrb[0].mxu0 %v2821
      %v2911 = vpop.f32.mrb[0].mxu0
      %v2912 = vadd.f32 0.0, %v2911
      %v2913 = vpop.f32.mrb[0].mxu0
      %v2914 = vpop.f32.mrb[0].mxu0
      %v2915 = vadd.f32 0.0, %v2914
      %v2916 = vpop.f32.mrb[0].mxu0
      %2917 = vmatprep.mubr.bf16.mxu0 0
      %2918 = vmatmul.mubr.bf16.gmra.mrb[0].mxu0 %v2824
      %v2919 = vpop.f32.mrb[0].mxu0
      %v2920 = vadd.f32 0.0, %v2919
      %v2921 = vpop.f32.mrb[0].mxu0
      %v2922 = vpop.f32.mrb[0].mxu0
      %v2923 = vadd.f32 0.0, %v2922
      %v2924 = vpop.f32.mrb[0].mxu0
      %2925 = vdwg.mxu0
      %v2926 = vadd.f32 %v481, %v2864
      %v2927 = vadd.f32 %v482, %v2867
      %v2928 = vadd.f32 %v483, %v2872
      %v2929 = vadd.f32 %v484, %v2875
      %v2930 = vadd.f32 %v485, %v2880
      %v2931 = vadd.f32 %v486, %v2883
      %v2932 = vadd.f32 %v487, %v2888
      %v2933 = vadd.f32 %v488, %v2891
      %v2934 = vadd.f32 %v489, %v2896
      %v2935 = vadd.f32 %v490, %v2899
      %v2936 = vadd.f32 %v491, %v2904
      %v2937 = vadd.f32 %v492, %v2907
      %v2938 = vadd.f32 %v493, %v2912
      %v2939 = vadd.f32 %v494, %v2915
      %v2940 = vadd.f32 %v495, %v2920
      %v2941 = vadd.f32 %v496, %v2923
      %2942 = vst.msk [vmem:[%s476] sm:$0xff] %vm499, %v2926
      %2943 = vst.msk [vmem:[%s476 + $0x8] sm:$0xff] %vm499, %v2927
      %2944 = vst.msk [vmem:[%s476 + $0x10] sm:$0xff] %vm499, %v2928
      %2945 = vst.msk [vmem:[%s476 + $0x18] sm:$0xff] %vm499, %v2929
      %2946 = vst.msk [vmem:[%s476 + $0x20] sm:$0xff] %vm499, %v2930
      %2947 = vst.msk [vmem:[%s476 + $0x28] sm:$0xff] %vm499, %v2931
      %2948 = vst.msk [vmem:[%s476 + $0x30] sm:$0xff] %vm499, %v2932
      %2949 = vst.msk [vmem:[%s476 + $0x38] sm:$0xff] %vm499, %v2933
      %2950 = vst.msk [vmem:[%s476 + $0x40] sm:$0xff] %vm499, %v2934
      %2951 = vst.msk [vmem:[%s476 + $0x48] sm:$0xff] %vm499, %v2935
      %2952 = vst.msk [vmem:[%s476 + $0x50] sm:$0xff] %vm499, %v2936
      %2953 = vst.msk [vmem:[%s476 + $0x58] sm:$0xff] %vm499, %v2937
      %2954 = vst.msk [vmem:[%s476 + $0x60] sm:$0xff] %vm499, %v2938
      %2955 = vst.msk [vmem:[%s476 + $0x68] sm:$0xff] %vm499, %v2939
      %2956 = vst.msk [vmem:[%s476 + $0x70] sm:$0xff] %vm499, %v2940
      %2957 = vst.msk [vmem:[%s476 + $0x78] sm:$0xff] %vm499, %v2941
      %s2958 = smul.u32 16, %s29
      %p2959 = scmp.lt.s32.totalorder %s28, 1
      %s2960 = scalar_select %p2959, %s28, 1
      %p2961 = scmp.lt.s32.totalorder %s2958, 31
      %s2962 = scalar_select %p2961, %s2958, 31
      %s2963 = smul.addr %s2960, 32
      %s2964 = sadd.s32 %s2962, %s2963
      %s2965 = smul.addr %s2964, 8
      %s2966 = scalar_lea.vmem %s13, %s2965
      // Predicated region
      $region73: #{tpu_custom_call.1} parent=71 // pred_check
        %p2967 = pneg %p336
      $region74: #{tpu_custom_call.1} parent=71 // pred_check_branch
        %2969 = sbr.rel (%p2967) target = $region76
      $region75: #{tpu_custom_call.1} parent=71 // pred_region
        %s2970 = smul.u32 16, %s29
      $region76: #{tpu_custom_call.1} parent=71 // pred_fallthru
        _
    $region72: #{tpu_custom_call.1} parent=5 // pred_fallthru
      _
    %p2971 = scmp.le.s32.totalorder 2, %s19
    // Predicated region
    $region77: #{tpu_custom_call.1} parent=5 // pred_check
      %p2972 = pneg %p2971
    $region78: #{tpu_custom_call.1} parent=5 // pred_check_branch
      %2974 = sbr.rel (%p2972) target = $region80
    $region79: #{tpu_custom_call.1} parent=5 // pred_region
      %s2975 = ssub.s32 %s19, 2
      // Predicated region
      $region81: #{tpu_custom_call.1} parent=79 // pred_check
        %p2976 = pneg %p342
      $region82: #{tpu_custom_call.1} parent=79 // pred_check_branch
        %2978 = sbr.rel (%p2976) target = $region84
      $region83: #{tpu_custom_call.1} parent=79 // pred_region
        %s2979 = smul.u32 16, %s31
        %p2980 = scmp.lt.s32.totalorder %s30, 1
        %s2981 = scalar_select %p2980, %s30, 1
        %p2982 = scmp.lt.s32.totalorder %s2979, 31
        %s2983 = scalar_select %p2982, %s2979, 31
        %s2984 = smul.addr %s2981, 32
        %s2985 = sadd.s32 %s2983, %s2984
        %s2986 = smul.addr %s2985, 8
        %s2987 = scalar_lea.vmem %s13, %s2986
      $region84: #{tpu_custom_call.1} parent=79 // pred_fallthru
        _
    $region80: #{tpu_custom_call.1} parent=5 // pred_fallthru
      _
  $region6: #{tpu_custom_call.1} parent=0 // loop_footer
    %s23 = sadd.s32 1, %s19
  $region7: #{tpu_custom_call.1} parent=0 // loop_footer_branch
    %18 = sbr.rel target = $region3
  $region8: #{tpu_custom_call.1} parent=0 // loop_exit
    _

// kernel: tpu_custom_call.1
$region0: #{tpu_custom_call.1}
  #allocation0 [shape = 'u32[]', space=smem, size = 0x4, offset = 0x4, fixed_abs, tag = 'smem constant byte address 0x4 - core index']
  #allocation1 [shape = 'u32[144,128]{1,0:T(1,128)}', space=vmem, size = 0x12000, scoped, tag = 'internal scratch']
  %s0 = inlined_call_operand.vmem [shape: f32[2,2,160,4], index: 0, kind: input, shape index: {}]
  %s1 = inlined_call_operand.vmem [shape: f32[1,4], index: 1, kind: input, shape index: {}]
  %s2 = inlined_call_operand.vmem [shape: f32[1,4], index: 2, kind: input, shape index: {}]
  %s3 = inlined_call_operand.vmem [shape: bf16[4,8], index: 3, kind: input, shape index: {}]
  %s4 = inlined_call_operand.vmem [shape: bf16[4,8], index: 4, kind: input, shape index: {}]
  %s5 = inlined_call_operand.vmem [shape: f32[9,8], index: 5, kind: input, shape index: {}]
  %s6 = inlined_call_operand.vmem [shape: f32[1,8], index: 6, kind: input, shape index: {}]
  %s7 = inlined_call_operand.vmem [shape: f32[1,8], index: 7, kind: input, shape index: {}]
  %s8 = inlined_call_operand.vmem [shape: bf16[8,8], index: 8, kind: input, shape index: {}]
  %s9 = inlined_call_operand.vmem [shape: bf16[8,8], index: 9, kind: input, shape index: {}]
  %s10 = inlined_call_operand.vmem [shape: f32[1,8], index: 10, kind: input, shape index: {}]
  %s11 = inlined_call_operand.vmem [shape: f32[1,8], index: 11, kind: input, shape index: {}]
  %s12 = inlined_call_operand.vmem [shape: bf16[8,4], index: 12, kind: input, shape index: {}]
  %s13 = inlined_call_operand.vmem [shape: f32[2,256,4], index: 13, kind: output, shape index: {}]
  %s14 = sld [smem:[#allocation0]]
  $region85: #{tpu_custom_call.1} parent=0
    _
  %s16 = ssub.s32 1, %s14
  %s17 = scalar_select 0, %s16, %s14
  loop: start=0, step=1, limit=6
  $region2: #{tpu_custom_call.1} parent=0 // loop_pre_header
    _
  $region3: #{tpu_custom_call.1} parent=0 // loop_header
    %s19 = sphi 0, %s23
    %p20 = scmp.ge.s32.totalorder %s19, 6
    %s26 = sphi 0, %s38
    %s27 = sphi 0, %s34
    %s28 = sphi 0, %s26
    %s29 = sphi 0, %s27
    %s30 = sphi 0, %s28
    %s31 = sphi 0, %s29
    %s43 = sphi 0, %s45
    %s46 = sphi 0, %s43
    %s47 = sphi 0, %s46
    %s63 = sphi 0, %s47
    %s67 = sphi 0, %s67
    %s69 = sphi 0, %s67
    %s70 = sphi 0, %s69
    %s84 = sphi 0, %s70
    %s88 = sphi 0, %s88
    %s90 = sphi 0, %s88
    %s91 = sphi 0, %s90
    %s105 = sphi 0, %s91
    %s109 = sphi 0, %s109
    %s111 = sphi 0, %s109
    %s112 = sphi 0, %s111
    %s126 = sphi 0, %s112
    %s130 = sphi 0, %s130
    %s132 = sphi 0, %s130
    %s133 = sphi 0, %s132
    %s147 = sphi 0, %s133
    %s151 = sphi 0, %s151
    %s153 = sphi 0, %s151
    %s154 = sphi 0, %s153
    %s168 = sphi 0, %s154
    %s172 = sphi 0, %s172
    %s174 = sphi 0, %s172
    %s175 = sphi 0, %s174
    %s189 = sphi 0, %s175
    %s193 = sphi 0, %s193
    %s195 = sphi 0, %s193
    %s196 = sphi 0, %s195
    %s210 = sphi 0, %s196
    %s214 = sphi 0, %s214
    %s216 = sphi 0, %s214
    %s217 = sphi 0, %s216
    %s231 = sphi 0, %s217
    %s235 = sphi 0, %s235
    %s237 = sphi 0, %s235
    %s238 = sphi 0, %s237
    %s252 = sphi 0, %s238
    %s256 = sphi 0, %s256
    %s258 = sphi 0, %s256
    %s259 = sphi 0, %s258
    %s273 = sphi 0, %s259
    %s277 = sphi 0, %s277
    %s279 = sphi 0, %s277
    %s280 = sphi 0, %s279
    %s294 = sphi 0, %s280
    %s298 = sphi 0, %s298
    %s300 = sphi 0, %s298
    %s301 = sphi 0, %s300
    %s315 = sphi 0, %s301
    %s323 = sphi 0, %s325
    %s326 = sphi 0, %s323
    %s327 = sphi 0, %s326
    %s343 = sphi 0, %s327
  $region4: #{tpu_custom_call.1} parent=0 // loop_header_branch
    %22 = sbr.rel (%p20) target = $region8
  $region5: #{tpu_custom_call.1} parent=0 // loop_body
    %s24 = ssub.s32 %s19, 1
    %s25 = ssub.s32 %s19, 2
    %s32 = sadd.s32 1, %s27
    %p33 = scmp.ge.s32.totalorder %s32, 2
    %s34 = scalar_select %p33, 0, %s32
    %s35 = sadd.s32 1, %s26
    %s36 = scalar_select %p33, %s35, %s26
    %p37 = scmp.ge.s32.totalorder %s36, 2
    %s38 = scalar_select %p37, 0, %s36
    %s39 = ssub.s32 %s26, %s38
    %s40 = ssub.s32 %s27, %s34
    %s41 = sor.u32 %s39, %s40
    %p42 = scmp.eq.s32.totalorder %s41, 0
    %s44 = sadd.s32 %s43, 1
    %s45 = scalar_select %p42, %s43, %s44
    %p48 = pneg %p42
    %p49 = scmp.eq.s32.totalorder %s19, 3
    %p50 = por %p48, %p49
    %p51 = scmp.ne.s32.totalorder %s43, %s46
    %p52 = scmp.eq.s32.totalorder %s19, 0
    %p53 = por %p51, %p52
    %p54 = scmp.ne.s32.totalorder %s43, %s46
    %p55 = scmp.eq.s32.totalorder %s24, 3
    %p56 = por %p54, %p55
    %p57 = scmp.ne.s32.totalorder %s46, %s47
    %p58 = scmp.eq.s32.totalorder %s24, 0
    %p59 = por %p57, %p58
    %p60 = scmp.ne.s32.totalorder %s46, %s47
    %p61 = scmp.eq.s32.totalorder %s25, 3
    %p62 = por %p60, %p61
    %p64 = scmp.ne.s32.totalorder %s47, %s63
    %p65 = scmp.eq.s32.totalorder %s25, 0
    %p66 = por %p64, %p65
    %s68 = sadd.s32 %s67, 1
    %p71 = scmp.eq.s32.totalorder %s19, 3
    %p72 = scmp.ne.s32.totalorder %s67, %s69
    %p73 = scmp.eq.s32.totalorder %s19, 0
    %p74 = por %p72, %p73
    %p75 = scmp.ne.s32.totalorder %s67, %s69
    %p76 = scmp.eq.s32.totalorder %s24, 3
    %p77 = por %p75, %p76
    %p78 = scmp.ne.s32.totalorder %s69, %s70
    %p79 = scmp.eq.s32.totalorder %s24, 0
    %p80 = por %p78, %p79
    %p81 = scmp.ne.s32.totalorder %s69, %s70
    %p82 = scmp.eq.s32.totalorder %s25, 3
    %p83 = por %p81, %p82
    %p85 = scmp.ne.s32.totalorder %s70, %s84
    %p86 = scmp.eq.s32.totalorder %s25, 0
    %p87 = por %p85, %p86
    %s89 = sadd.s32 %s88, 1
    %p92 = scmp.eq.s32.totalorder %s19, 3
    %p93 = scmp.ne.s32.totalorder %s88, %s90
    %p94 = scmp.eq.s32.totalorder %s19, 0
    %p95 = por %p93, %p94
    %p96 = scmp.ne.s32.totalorder %s88, %s90
    %p97 = scmp.eq.s32.totalorder %s24, 3
    %p98 = por %p96, %p97
    %p99 = scmp.ne.s32.totalorder %s90, %s91
    %p100 = scmp.eq.s32.totalorder %s24, 0
    %p101 = por %p99, %p100
    %p102 = scmp.ne.s32.totalorder %s90, %s91
    %p103 = scmp.eq.s32.totalorder %s25, 3
    %p104 = por %p102, %p103
    %p106 = scmp.ne.s32.totalorder %s91, %s105
    %p107 = scmp.eq.s32.totalorder %s25, 0
    %p108 = por %p106, %p107
    %s110 = sadd.s32 %s109, 1
    %p113 = scmp.eq.s32.totalorder %s19, 3
    %p114 = scmp.ne.s32.totalorder %s109, %s111
    %p115 = scmp.eq.s32.totalorder %s19, 0
    %p116 = por %p114, %p115
    %p117 = scmp.ne.s32.totalorder %s109, %s111
    %p118 = scmp.eq.s32.totalorder %s24, 3
    %p119 = por %p117, %p118
    %p120 = scmp.ne.s32.totalorder %s111, %s112
    %p121 = scmp.eq.s32.totalorder %s24, 0
    %p122 = por %p120, %p121
    %p123 = scmp.ne.s32.totalorder %s111, %s112
    %p124 = scmp.eq.s32.totalorder %s25, 3
    %p125 = por %p123, %p124
    %p127 = scmp.ne.s32.totalorder %s112, %s126
    %p128 = scmp.eq.s32.totalorder %s25, 0
    %p129 = por %p127, %p128
    %s131 = sadd.s32 %s130, 1
    %p134 = scmp.eq.s32.totalorder %s19, 3
    %p135 = scmp.ne.s32.totalorder %s130, %s132
    %p136 = scmp.eq.s32.totalorder %s19, 0
    %p137 = por %p135, %p136
    %p138 = scmp.ne.s32.totalorder %s130, %s132
    %p139 = scmp.eq.s32.totalorder %s24, 3
    %p140 = por %p138, %p139
    %p141 = scmp.ne.s32.totalorder %s132, %s133
    %p142 = scmp.eq.s32.totalorder %s24, 0
    %p143 = por %p141, %p142
    %p144 = scmp.ne.s32.totalorder %s132, %s133
    %p145 = scmp.eq.s32.totalorder %s25, 3
    %p146 = por %p144, %p145
    %p148 = scmp.ne.s32.totalorder %s133, %s147
    %p149 = scmp.eq.s32.totalorder %s25, 0
    %p150 = por %p148, %p149
    %s152 = sadd.s32 %s151, 1
    %p155 = scmp.eq.s32.totalorder %s19, 3
    %p156 = scmp.ne.s32.totalorder %s151, %s153
    %p157 = scmp.eq.s32.totalorder %s19, 0
    %p158 = por %p156, %p157
    %p159 = scmp.ne.s32.totalorder %s151, %s153
    %p160 = scmp.eq.s32.totalorder %s24, 3
    %p161 = por %p159, %p160
    %p162 = scmp.ne.s32.totalorder %s153, %s154
    %p163 = scmp.eq.s32.totalorder %s24, 0
    %p164 = por %p162, %p163
    %p165 = scmp.ne.s32.totalorder %s153, %s154
    %p166 = scmp.eq.s32.totalorder %s25, 3
    %p167 = por %p165, %p166
    %p169 = scmp.ne.s32.totalorder %s154, %s168
    %p170 = scmp.eq.s32.totalorder %s25, 0
    %p171 = por %p169, %p170
    %s173 = sadd.s32 %s172, 1
    %p176 = scmp.eq.s32.totalorder %s19, 3
    %p177 = scmp.ne.s32.totalorder %s172, %s174
    %p178 = scmp.eq.s32.totalorder %s19, 0
    %p179 = por %p177, %p178
    %p180 = scmp.ne.s32.totalorder %s172, %s174
    %p181 = scmp.eq.s32.totalorder %s24, 3
    %p182 = por %p180, %p181
    %p183 = scmp.ne.s32.totalorder %s174, %s175
    %p184 = scmp.eq.s32.totalorder %s24, 0
    %p185 = por %p183, %p184
    %p186 = scmp.ne.s32.totalorder %s174, %s175
    %p187 = scmp.eq.s32.totalorder %s25, 3
    %p188 = por %p186, %p187
    %p190 = scmp.ne.s32.totalorder %s175, %s189
    %p191 = scmp.eq.s32.totalorder %s25, 0
    %p192 = por %p190, %p191
    %s194 = sadd.s32 %s193, 1
    %p197 = scmp.eq.s32.totalorder %s19, 3
    %p198 = scmp.ne.s32.totalorder %s193, %s195
    %p199 = scmp.eq.s32.totalorder %s19, 0
    %p200 = por %p198, %p199
    %p201 = scmp.ne.s32.totalorder %s193, %s195
    %p202 = scmp.eq.s32.totalorder %s24, 3
    %p203 = por %p201, %p202
    %p204 = scmp.ne.s32.totalorder %s195, %s196
    %p205 = scmp.eq.s32.totalorder %s24, 0
    %p206 = por %p204, %p205
    %p207 = scmp.ne.s32.totalorder %s195, %s196
    %p208 = scmp.eq.s32.totalorder %s25, 3
    %p209 = por %p207, %p208
    %p211 = scmp.ne.s32.totalorder %s196, %s210
    %p212 = scmp.eq.s32.totalorder %s25, 0
    %p213 = por %p211, %p212
    %s215 = sadd.s32 %s214, 1
    %p218 = scmp.eq.s32.totalorder %s19, 3
    %p219 = scmp.ne.s32.totalorder %s214, %s216
    %p220 = scmp.eq.s32.totalorder %s19, 0
    %p221 = por %p219, %p220
    %p222 = scmp.ne.s32.totalorder %s214, %s216
    %p223 = scmp.eq.s32.totalorder %s24, 3
    %p224 = por %p222, %p223
    %p225 = scmp.ne.s32.totalorder %s216, %s217
    %p226 = scmp.eq.s32.totalorder %s24, 0
    %p227 = por %p225, %p226
    %p228 = scmp.ne.s32.totalorder %s216, %s217
    %p229 = scmp.eq.s32.totalorder %s25, 3
    %p230 = por %p228, %p229
    %p232 = scmp.ne.s32.totalorder %s217, %s231
    %p233 = scmp.eq.s32.totalorder %s25, 0
    %p234 = por %p232, %p233
    %s236 = sadd.s32 %s235, 1
    %p239 = scmp.eq.s32.totalorder %s19, 3
    %p240 = scmp.ne.s32.totalorder %s235, %s237
    %p241 = scmp.eq.s32.totalorder %s19, 0
    %p242 = por %p240, %p241
    %p243 = scmp.ne.s32.totalorder %s235, %s237
    %p244 = scmp.eq.s32.totalorder %s24, 3
    %p245 = por %p243, %p244
    %p246 = scmp.ne.s32.totalorder %s237, %s238
    %p247 = scmp.eq.s32.totalorder %s24, 0
    %p248 = por %p246, %p247
    %p249 = scmp.ne.s32.totalorder %s237, %s238
    %p250 = scmp.eq.s32.totalorder %s25, 3
    %p251 = por %p249, %p250
    %p253 = scmp.ne.s32.totalorder %s238, %s252
    %p254 = scmp.eq.s32.totalorder %s25, 0
    %p255 = por %p253, %p254
    %s257 = sadd.s32 %s256, 1
    %p260 = scmp.eq.s32.totalorder %s19, 3
    %p261 = scmp.ne.s32.totalorder %s256, %s258
    %p262 = scmp.eq.s32.totalorder %s19, 0
    %p263 = por %p261, %p262
    %p264 = scmp.ne.s32.totalorder %s256, %s258
    %p265 = scmp.eq.s32.totalorder %s24, 3
    %p266 = por %p264, %p265
    %p267 = scmp.ne.s32.totalorder %s258, %s259
    %p268 = scmp.eq.s32.totalorder %s24, 0
    %p269 = por %p267, %p268
    %p270 = scmp.ne.s32.totalorder %s258, %s259
    %p271 = scmp.eq.s32.totalorder %s25, 3
    %p272 = por %p270, %p271
    %p274 = scmp.ne.s32.totalorder %s259, %s273
    %p275 = scmp.eq.s32.totalorder %s25, 0
    %p276 = por %p274, %p275
    %s278 = sadd.s32 %s277, 1
    %p281 = scmp.eq.s32.totalorder %s19, 3
    %p282 = scmp.ne.s32.totalorder %s277, %s279
    %p283 = scmp.eq.s32.totalorder %s19, 0
    %p284 = por %p282, %p283
    %p285 = scmp.ne.s32.totalorder %s277, %s279
    %p286 = scmp.eq.s32.totalorder %s24, 3
    %p287 = por %p285, %p286
    %p288 = scmp.ne.s32.totalorder %s279, %s280
    %p289 = scmp.eq.s32.totalorder %s24, 0
    %p290 = por %p288, %p289
    %p291 = scmp.ne.s32.totalorder %s279, %s280
    %p292 = scmp.eq.s32.totalorder %s25, 3
    %p293 = por %p291, %p292
    %p295 = scmp.ne.s32.totalorder %s280, %s294
    %p296 = scmp.eq.s32.totalorder %s25, 0
    %p297 = por %p295, %p296
    %s299 = sadd.s32 %s298, 1
    %p302 = scmp.eq.s32.totalorder %s19, 3
    %p303 = scmp.ne.s32.totalorder %s298, %s300
    %p304 = scmp.eq.s32.totalorder %s19, 0
    %p305 = por %p303, %p304
    %p306 = scmp.ne.s32.totalorder %s298, %s300
    %p307 = scmp.eq.s32.totalorder %s24, 3
    %p308 = por %p306, %p307
    %p309 = scmp.ne.s32.totalorder %s300, %s301
    %p310 = scmp.eq.s32.totalorder %s24, 0
    %p311 = por %p309, %p310
    %p312 = scmp.ne.s32.totalorder %s300, %s301
    %p313 = scmp.eq.s32.totalorder %s25, 3
    %p314 = por %p312, %p313
    %p316 = scmp.ne.s32.totalorder %s301, %s315
    %p317 = scmp.eq.s32.totalorder %s25, 0
    %p318 = por %p316, %p317
    %s319 = ssub.s32 %s26, %s38
    %s320 = ssub.s32 %s27, %s34
    %s321 = sor.u32 %s319, %s320
    %p322 = scmp.eq.s32.totalorder %s321, 0
    %s324 = sadd.s32 %s323, 1
    %s325 = scalar_select %p322, %s323, %s324
    %p328 = pneg %p322
    %p329 = scmp.eq.s32.totalorder %s19, 3
    %p330 = por %p328, %p329
    %p331 = scmp.ne.s32.totalorder %s323, %s326
    %p332 = scmp.eq.s32.totalorder %s19, 0
    %p333 = por %p331, %p332
    %p334 = scmp.ne.s32.totalorder %s323, %s326
    %p335 = scmp.eq.s32.totalorder %s24, 3
    %p336 = por %p334, %p335
    %p337 = scmp.ne.s32.totalorder %s326, %s327
    %p338 = scmp.eq.s32.totalorder %s24, 0
    %p339 = por %p337, %p338
    %p340 = scmp.ne.s32.totalorder %s326, %s327
    %p341 = scmp.eq.s32.totalorder %s25, 3
    %p342 = por %p340, %p341
    %p344 = scmp.ne.s32.totalorder %s327, %s343
    %p345 = scmp.eq.s32.totalorder %s25, 0
    %p346 = por %p344, %p345
    %p347 = scmp.le.s32.totalorder 1, %s19
    %p348 = scmp.lt.s32.totalorder %s19, 5
    %p349 = pnand %p347, %p348
    %p350 = pneg %p349
    // Predicated region
    $region9: #{tpu_custom_call.1} parent=5 // pred_check
      _
    $region10: #{tpu_custom_call.1} parent=5 // pred_check_branch
      %352 = sbr.rel (%p349) target = $region12
    $region11: #{tpu_custom_call.1} parent=5 // pred_region
      %s353 = ssub.s32 %s19, 1
      // Predicated region
      $region13: #{tpu_custom_call.1} parent=11 // pred_check
        %p354 = pneg %p80
      $region14: #{tpu_custom_call.1} parent=11 // pred_check_branch
        %356 = sbr.rel (%p354) target = $region16
      $region15: #{tpu_custom_call.1} parent=11 // pred_region
        _
      $region16: #{tpu_custom_call.1} parent=11 // pred_fallthru
        _
      // Predicated region
      $region17: #{tpu_custom_call.1} parent=11 // pred_check
        %p357 = pneg %p101
      $region18: #{tpu_custom_call.1} parent=11 // pred_check_branch
        %359 = sbr.rel (%p357) target = $region20
      $region19: #{tpu_custom_call.1} parent=11 // pred_region
        _
      $region20: #{tpu_custom_call.1} parent=11 // pred_fallthru
        _
      // Predicated region
      $region21: #{tpu_custom_call.1} parent=11 // pred_check
        %p360 = pneg %p122
      $region22: #{tpu_custom_call.1} parent=11 // pred_check_branch
        %362 = sbr.rel (%p360) target = $region24
      $region23: #{tpu_custom_call.1} parent=11 // pred_region
        _
      $region24: #{tpu_custom_call.1} parent=11 // pred_fallthru
        _
      // Predicated region
      $region25: #{tpu_custom_call.1} parent=11 // pred_check
        %p363 = pneg %p143
      $region26: #{tpu_custom_call.1} parent=11 // pred_check_branch
        %365 = sbr.rel (%p363) target = $region28
      $region27: #{tpu_custom_call.1} parent=11 // pred_region
        _
      $region28: #{tpu_custom_call.1} parent=11 // pred_fallthru
        _
      // Predicated region
      $region29: #{tpu_custom_call.1} parent=11 // pred_check
        %p366 = pneg %p164
      $region30: #{tpu_custom_call.1} parent=11 // pred_check_branch
        %368 = sbr.rel (%p366) target = $region32
      $region31: #{tpu_custom_call.1} parent=11 // pred_region
        _
      $region32: #{tpu_custom_call.1} parent=11 // pred_fallthru
        _
      // Predicated region
      $region33: #{tpu_custom_call.1} parent=11 // pred_check
        %p369 = pneg %p185
      $region34: #{tpu_custom_call.1} parent=11 // pred_check_branch
        %371 = sbr.rel (%p369) target = $region36
      $region35: #{tpu_custom_call.1} parent=11 // pred_region
        _
      $region36: #{tpu_custom_call.1} parent=11 // pred_fallthru
        _
      // Predicated region
      $region37: #{tpu_custom_call.1} parent=11 // pred_check
        %p372 = pneg %p206
      $region38: #{tpu_custom_call.1} parent=11 // pred_check_branch
        %374 = sbr.rel (%p372) target = $region40
      $region39: #{tpu_custom_call.1} parent=11 // pred_region
        _
      $region40: #{tpu_custom_call.1} parent=11 // pred_fallthru
        _
      // Predicated region
      $region41: #{tpu_custom_call.1} parent=11 // pred_check
        %p375 = pneg %p227
      $region42: #{tpu_custom_call.1} parent=11 // pred_check_branch
        %377 = sbr.rel (%p375) target = $region44
      $region43: #{tpu_custom_call.1} parent=11 // pred_region
        _
      $region44: #{tpu_custom_call.1} parent=11 // pred_fallthru
        _
      // Predicated region
      $region45: #{tpu_custom_call.1} parent=11 // pred_check
        %p378 = pneg %p248
      $region46: #{tpu_custom_call.1} parent=11 // pred_check_branch
        %380 = sbr.rel (%p378) target = $region48
      $region47: #{tpu_custom_call.1} parent=11 // pred_region
        _
      $region48: #{tpu_custom_call.1} parent=11 // pred_fallthru
        _
      // Predicated region
      $region49: #{tpu_custom_call.1} parent=11 // pred_check
        %p381 = pneg %p269
      $region50: #{tpu_custom_call.1} parent=11 // pred_check_branch
        %383 = sbr.rel (%p381) target = $region52
      $region51: #{tpu_custom_call.1} parent=11 // pred_region
        _
      $region52: #{tpu_custom_call.1} parent=11 // pred_fallthru
        _
      // Predicated region
      $region53: #{tpu_custom_call.1} parent=11 // pred_check
        %p384 = pneg %p290
      $region54: #{tpu_custom_call.1} parent=11 // pred_check_branch
        %386 = sbr.rel (%p384) target = $region56
      $region55: #{tpu_custom_call.1} parent=11 // pred_region
        _
      $region56: #{tpu_custom_call.1} parent=11 // pred_fallthru
        _
      // Predicated region
      $region57: #{tpu_custom_call.1} parent=11 // pred_check
        %p387 = pneg %p311
      $region58: #{tpu_custom_call.1} parent=11 // pred_check_branch
        %389 = sbr.rel (%p387) target = $region60
      $region59: #{tpu_custom_call.1} parent=11 // pred_region
        _
      $region60: #{tpu_custom_call.1} parent=11 // pred_fallthru
        _
    $region12: #{tpu_custom_call.1} parent=5 // pred_fallthru
      _
    %p390 = scmp.lt.s32.totalorder %s19, 4
    // Predicated region
    $region61: #{tpu_custom_call.1} parent=5 // pred_check
      %p391 = pneg %p390
    $region62: #{tpu_custom_call.1} parent=5 // pred_check_branch
      %393 = sbr.rel (%p391) target = $region64
    $region63: #{tpu_custom_call.1} parent=5 // pred_region
      // Predicated region
      $region65: #{tpu_custom_call.1} parent=63 // pred_check
        %p394 = pneg %p53
      $region66: #{tpu_custom_call.1} parent=63 // pred_check_branch
        %396 = sbr.rel (%p394) target = $region68
      $region67: #{tpu_custom_call.1} parent=63 // pred_region
        %p397 = scmp.lt.s32.totalorder %s26, 1
        %s398 = scalar_select %p397, %s26, 1
        %p399 = scmp.lt.s32.totalorder %s27, 1
        %s400 = scalar_select %p399, %s27, 1
        %s401 = smul.addr %s400, 20
        %s402 = smul.addr %s398, 40
        %s403 = sadd.s32 %s401, %s402
        %s404 = smul.addr %s403, 8
        %s405 = scalar_lea.vmem %s0, %s404
      $region68: #{tpu_custom_call.1} parent=63 // pred_fallthru
        _
    $region64: #{tpu_custom_call.1} parent=5 // pred_fallthru
      _
    %p406 = scmp.le.s32.totalorder 1, %s19
    %p407 = scmp.lt.s32.totalorder %s19, 5
    %p408 = pnand %p406, %p407
    %p409 = pneg %p408
    // Predicated region
    $region69: #{tpu_custom_call.1} parent=5 // pred_check
      _
    $region70: #{tpu_custom_call.1} parent=5 // pred_check_branch
      %411 = sbr.rel (%p408) target = $region72
    $region71: #{tpu_custom_call.1} parent=5 // pred_region
      %s412 = ssub.s32 %s19, 1
      %p413 = scmp.lt.s32.totalorder %s28, 1
      %s414 = scalar_select %p413, %s28, 1
      %p415 = scmp.lt.s32.totalorder %s29, 1
      %s416 = scalar_select %p415, %s29, 1
      %s417 = smul.addr %s416, 20
      %s418 = smul.addr %s414, 40
      %s419 = sadd.s32 %s417, %s418
      %s420 = smul.addr %s419, 8
      %s421 = scalar_lea.vmem %s0, %s420
      %p422 = pneg %p59
      %p423 = pneg %p56
      %p424 = pneg %p80
      %p425 = pneg %p77
      %p426 = pneg %p101
      %p427 = pneg %p98
      %p428 = pneg %p122
      %p429 = pneg %p119
      %p430 = pneg %p143
      %p431 = pneg %p140
      %p432 = pneg %p164
      %p433 = pneg %p161
      %p434 = pneg %p185
      %p435 = pneg %p182
      %p436 = pneg %p206
      %p437 = pneg %p203
      %p438 = pneg %p227
      %p439 = pneg %p224
      %p440 = pneg %p248
      %p441 = pneg %p245
      %p442 = pneg %p269
      %p443 = pneg %p266
      %p444 = pneg %p290
      %p445 = pneg %p287
      %p446 = pneg %p311
      %p447 = pneg %p308
      %p448 = pneg %p339
      %p449 = pneg %p336
      %s450 = smul.u32 16, %s29
      %p451 = scmp.lt.s32.totalorder %s28, 1
      %s452 = scalar_select %p451, %s28, 1
      %p453 = scmp.lt.s32.totalorder %s450, 31
      %s454 = scalar_select %p453, %s450, 31
      %s455 = smul.addr %s452, 32
      %s456 = sadd.s32 %s454, %s455
      %s457 = smul.addr %s456, 8
      %s458 = scalar_lea.vmem %s13, %s457
      %p459 = scmp.lt.s32.totalorder %s28, 1
      %s460 = scalar_select %p459, %s28, 1
      %p461 = scmp.lt.s32.totalorder %s29, 1
      %s462 = scalar_select %p461, %s29, 1
      %s463 = smul.addr %s462, 20
      %s464 = smul.addr %s460, 40
      %s465 = sadd.s32 %s463, %s464
      %s466 = smul.addr %s465, 8
      %s467 = scalar_lea.vmem %s0, %s466
      %s468 = smul.u32 16, %s29
      %p469 = scmp.lt.s32.totalorder %s28, 1
      %s470 = scalar_select %p469, %s28, 1
      %p471 = scmp.lt.s32.totalorder %s468, 31
      %s472 = scalar_select %p471, %s468, 31
      %s473 = smul.addr %s470, 32
      %s474 = sadd.s32 %s472, %s473
      %s475 = smul.addr %s474, 8
      %s476 = scalar_lea.vmem %s13, %s475
      %s477 = smul.u32 16, %s29
      %v479 = vld [vmem:[%s467] sm:$0xff]
      %v480 = vld [vmem:[%s467 + $0x8] sm:$0xff]
      %v481 = vld [vmem:[%s467 + $0x10] sm:$0xff]
      %v482 = vld [vmem:[%s467 + $0x18] sm:$0xff]
      %v483 = vld [vmem:[%s467 + $0x20] sm:$0xff]
      %v484 = vld [vmem:[%s467 + $0x28] sm:$0xff]
      %v485 = vld [vmem:[%s467 + $0x30] sm:$0xff]
      %v486 = vld [vmem:[%s467 + $0x38] sm:$0xff]
      %v487 = vld [vmem:[%s467 + $0x40] sm:$0xff]
      %v488 = vld [vmem:[%s467 + $0x48] sm:$0xff]
      %v489 = vld [vmem:[%s467 + $0x50] sm:$0xff]
      %v490 = vld [vmem:[%s467 + $0x58] sm:$0xff]
      %v491 = vld [vmem:[%s467 + $0x60] sm:$0xff]
      %v492 = vld [vmem:[%s467 + $0x68] sm:$0xff]
      %v493 = vld [vmem:[%s467 + $0x70] sm:$0xff]
      %v494 = vld [vmem:[%s467 + $0x78] sm:$0xff]
      %v495 = vld [vmem:[%s467 + $0x80] sm:$0xff]
      %v496 = vld [vmem:[%s467 + $0x88] sm:$0xff]
      %v497 = vld [vmem:[%s467 + $0x90] sm:$0xff]
      %v498 = vld [vmem:[%s467 + $0x98] sm:$0xff]
      %vm499 = vcmask 31744
      %v500 = vsel %vm499, %v479, 0.0
      %501 = vadd.xlane.f32.xlu0 %v500
      %v502 = vpop.xlane.xlu0 %501
      %v503 = vsel %vm499, %v480, 0.0
      %504 = vadd.xlane.f32.xlu0 %v503
      %v505 = vpop.xlane.xlu0 %504
      %v506 = vsel %vm499, %v481, 0.0
      %507 = vadd.xlane.f32.xlu0 %v506
      %v508 = vpop.xlane.xlu0 %507
      %v509 = vsel %vm499, %v482, 0.0
      %510 = vadd.xlane.f32.xlu0 %v509
      %v511 = vpop.xlane.xlu0 %510
      %v512 = vsel %vm499, %v483, 0.0
      %513 = vadd.xlane.f32.xlu0 %v512
      %v514 = vpop.xlane.xlu0 %513
      %v515 = vsel %vm499, %v484, 0.0
      %516 = vadd.xlane.f32.xlu0 %v515
      %v517 = vpop.xlane.xlu0 %516
      %v518 = vsel %vm499, %v485, 0.0
      %519 = vadd.xlane.f32.xlu0 %v518
      %v520 = vpop.xlane.xlu0 %519
      %v521 = vsel %vm499, %v486, 0.0
      %522 = vadd.xlane.f32.xlu0 %v521
      %v523 = vpop.xlane.xlu0 %522
      %v524 = vsel %vm499, %v487, 0.0
      %525 = vadd.xlane.f32.xlu0 %v524
      %v526 = vpop.xlane.xlu0 %525
      %v527 = vsel %vm499, %v488, 0.0
      %528 = vadd.xlane.f32.xlu0 %v527
      %v529 = vpop.xlane.xlu0 %528
      %v530 = vsel %vm499, %v489, 0.0
      %531 = vadd.xlane.f32.xlu0 %v530
      %v532 = vpop.xlane.xlu0 %531
      %v533 = vsel %vm499, %v490, 0.0
      %534 = vadd.xlane.f32.xlu0 %v533
      %v535 = vpop.xlane.xlu0 %534
      %v536 = vsel %vm499, %v491, 0.0
      %537 = vadd.xlane.f32.xlu0 %v536
      %v538 = vpop.xlane.xlu0 %537
      %v539 = vsel %vm499, %v492, 0.0
      %540 = vadd.xlane.f32.xlu0 %v539
      %v541 = vpop.xlane.xlu0 %540
      %v542 = vsel %vm499, %v493, 0.0
      %543 = vadd.xlane.f32.xlu0 %v542
      %v544 = vpop.xlane.xlu0 %543
      %v545 = vsel %vm499, %v494, 0.0
      %546 = vadd.xlane.f32.xlu0 %v545
      %v547 = vpop.xlane.xlu0 %546
      %v548 = vsel %vm499, %v495, 0.0
      %549 = vadd.xlane.f32.xlu0 %v548
      %v550 = vpop.xlane.xlu0 %549
      %v551 = vsel %vm499, %v496, 0.0
      %552 = vadd.xlane.f32.xlu0 %v551
      %v553 = vpop.xlane.xlu0 %552
      %v554 = vsel %vm499, %v497, 0.0
      %555 = vadd.xlane.f32.xlu0 %v554
      %v556 = vpop.xlane.xlu0 %555
      %v557 = vsel %vm499, %v498, 0.0
      %558 = vadd.xlane.f32.xlu0 %v557
      %v559 = vpop.xlane.xlu0 %558
      %v560 = vrcp.pop 4.0
      %v561 = vmul.f32 %v502, %v560
      %v562 = vmul.f32 %v505, %v560
      %v563 = vmul.f32 %v508, %v560
      %v564 = vmul.f32 %v511, %v560
      %v565 = vmul.f32 %v514, %v560
      %v566 = vmul.f32 %v517, %v560
      %v567 = vmul.f32 %v520, %v560
      %v568 = vmul.f32 %v523, %v560
      %v569 = vmul.f32 %v526, %v560
      %v570 = vmul.f32 %v529, %v560
      %v571 = vmul.f32 %v532, %v560
      %v572 = vmul.f32 %v535, %v560
      %v573 = vmul.f32 %v538, %v560
      %v574 = vmul.f32 %v541, %v560
      %v575 = vmul.f32 %v544, %v560
      %v576 = vmul.f32 %v547, %v560
      %v577 = vmul.f32 %v550, %v560
      %v578 = vmul.f32 %v553, %v560
      %v579 = vmul.f32 %v556, %v560
      %v580 = vmul.f32 %v559, %v560
      %v581 = vsub.f32 %v479, %v561
      %v582 = vsub.f32 %v480, %v562
      %v583 = vsub.f32 %v481, %v563
      %v584 = vsub.f32 %v482, %v564
      %v585 = vsub.f32 %v483, %v565
      %v586 = vsub.f32 %v484, %v566
      %v587 = vsub.f32 %v485, %v567
      %v588 = vsub.f32 %v486, %v568
      %v589 = vsub.f32 %v487, %v569
      %v590 = vsub.f32 %v488, %v570
      %v591 = vsub.f32 %v489, %v571
      %v592 = vsub.f32 %v490, %v572
      %v593 = vsub.f32 %v491, %v573
      %v594 = vsub.f32 %v492, %v574
      %v595 = vsub.f32 %v493, %v575
      %v596 = vsub.f32 %v494, %v576
      %v597 = vsub.f32 %v495, %v577
      %v598 = vsub.f32 %v496, %v578
      %v599 = vsub.f32 %v497, %v579
      %v600 = vsub.f32 %v498, %v580
      %v601 = vmul.f32 %v581, %v581
      %v602 = vmul.f32 %v582, %v582
      %v603 = vmul.f32 %v583, %v583
      %v604 = vmul.f32 %v584, %v584
      %v605 = vmul.f32 %v585, %v585
      %v606 = vmul.f32 %v586, %v586
      %v607 = vmul.f32 %v587, %v587
      %v608 = vmul.f32 %v588, %v588
      %v609 = vmul.f32 %v589, %v589
      %v610 = vmul.f32 %v590, %v590
      %v611 = vmul.f32 %v591, %v591
      %v612 = vmul.f32 %v592, %v592
      %v613 = vmul.f32 %v593, %v593
      %v614 = vmul.f32 %v594, %v594
      %v615 = vmul.f32 %v595, %v595
      %v616 = vmul.f32 %v596, %v596
      %v617 = vmul.f32 %v597, %v597
      %v618 = vmul.f32 %v598, %v598
      %v619 = vmul.f32 %v599, %v599
      %v620 = vmul.f32 %v600, %v600
      %v621 = vsel %vm499, %v601, 0.0
      %622 = vadd.xlane.f32.xlu0 %v621
      %v623 = vpop.xlane.xlu0 %622
      %v624 = vsel %vm499, %v602, 0.0
      %625 = vadd.xlane.f32.xlu0 %v624
      %v626 = vpop.xlane.xlu0 %625
      %v627 = vsel %vm499, %v603, 0.0
      %628 = vadd.xlane.f32.xlu0 %v627
      %v629 = vpop.xlane.xlu0 %628
      %v630 = vsel %vm499, %v604, 0.0
      %631 = vadd.xlane.f32.xlu0 %v630
      %v632 = vpop.xlane.xlu0 %631
      %v633 = vsel %vm499, %v605, 0.0
      %634 = vadd.xlane.f32.xlu0 %v633
      %v635 = vpop.xlane.xlu0 %634
      %v636 = vsel %vm499, %v606, 0.0
      %637 = vadd.xlane.f32.xlu0 %v636
      %v638 = vpop.xlane.xlu0 %637
      %v639 = vsel %vm499, %v607, 0.0
      %640 = vadd.xlane.f32.xlu0 %v639
      %v641 = vpop.xlane.xlu0 %640
      %v642 = vsel %vm499, %v608, 0.0
      %643 = vadd.xlane.f32.xlu0 %v642
      %v644 = vpop.xlane.xlu0 %643
      %v645 = vsel %vm499, %v609, 0.0
      %646 = vadd.xlane.f32.xlu0 %v645
      %v647 = vpop.xlane.xlu0 %646
      %v648 = vsel %vm499, %v610, 0.0
      %649 = vadd.xlane.f32.xlu0 %v648
      %v650 = vpop.xlane.xlu0 %649
      %v651 = vsel %vm499, %v611, 0.0
      %652 = vadd.xlane.f32.xlu0 %v651
      %v653 = vpop.xlane.xlu0 %652
      %v654 = vsel %vm499, %v612, 0.0
      %655 = vadd.xlane.f32.xlu0 %v654
      %v656 = vpop.xlane.xlu0 %655
      %v657 = vsel %vm499, %v613, 0.0
      %658 = vadd.xlane.f32.xlu0 %v657
      %v659 = vpop.xlane.xlu0 %658
      %v660 = vsel %vm499, %v614, 0.0
      %661 = vadd.xlane.f32.xlu0 %v660
      %v662 = vpop.xlane.xlu0 %661
      %v663 = vsel %vm499, %v615, 0.0
      %664 = vadd.xlane.f32.xlu0 %v663
      %v665 = vpop.xlane.xlu0 %664
      %v666 = vsel %vm499, %v616, 0.0
      %667 = vadd.xlane.f32.xlu0 %v666
      %v668 = vpop.xlane.xlu0 %667
      %v669 = vsel %vm499, %v617, 0.0
      %670 = vadd.xlane.f32.xlu0 %v669
      %v671 = vpop.xlane.xlu0 %670
      %v672 = vsel %vm499, %v618, 0.0
      %673 = vadd.xlane.f32.xlu0 %v672
      %v674 = vpop.xlane.xlu0 %673
      %v675 = vsel %vm499, %v619, 0.0
      %676 = vadd.xlane.f32.xlu0 %v675
      %v677 = vpop.xlane.xlu0 %676
      %v678 = vsel %vm499, %v620, 0.0
      %679 = vadd.xlane.f32.xlu0 %v678
      %v680 = vpop.xlane.xlu0 %679
      %v681 = vmul.f32 %v623, %v560
      %v682 = vmul.f32 %v626, %v560
      %v683 = vmul.f32 %v629, %v560
      %v684 = vmul.f32 %v632, %v560
      %v685 = vmul.f32 %v635, %v560
      %v686 = vmul.f32 %v638, %v560
      %v687 = vmul.f32 %v641, %v560
      %v688 = vmul.f32 %v644, %v560
      %v689 = vmul.f32 %v647, %v560
      %v690 = vmul.f32 %v650, %v560
      %v691 = vmul.f32 %v653, %v560
      %v692 = vmul.f32 %v656, %v560
      %v693 = vmul.f32 %v659, %v560
      %v694 = vmul.f32 %v662, %v560
      %v695 = vmul.f32 %v665, %v560
      %v696 = vmul.f32 %v668, %v560
      %v697 = vmul.f32 %v671, %v560
      %v698 = vmul.f32 %v674, %v560
      %v699 = vmul.f32 %v677, %v560
      %v700 = vmul.f32 %v680, %v560
      %v701 = vadd.f32 %v681, 1e-05
      %v702 = vadd.f32 %v682, 1e-05
      %v703 = vadd.f32 %v683, 1e-05
      %v704 = vadd.f32 %v684, 1e-05
      %v705 = vadd.f32 %v685, 1e-05
      %v706 = vadd.f32 %v686, 1e-05
      %v707 = vadd.f32 %v687, 1e-05
      %v708 = vadd.f32 %v688, 1e-05
      %v709 = vadd.f32 %v689, 1e-05
      %v710 = vadd.f32 %v690, 1e-05
      %v711 = vadd.f32 %v691, 1e-05
      %v712 = vadd.f32 %v692, 1e-05
      %v713 = vadd.f32 %v693, 1e-05
      %v714 = vadd.f32 %v694, 1e-05
      %v715 = vadd.f32 %v695, 1e-05
      %v716 = vadd.f32 %v696, 1e-05
      %v717 = vadd.f32 %v697, 1e-05
      %v718 = vadd.f32 %v698, 1e-05
      %v719 = vadd.f32 %v699, 1e-05
      %v720 = vadd.f32 %v700, 1e-05
      %v721 = vrsqrt.pop %v701
      %v722 = vrsqrt.pop %v702
      %v723 = vrsqrt.pop %v703
      %v724 = vrsqrt.pop %v704
      %v725 = vrsqrt.pop %v705
      %v726 = vrsqrt.pop %v706
      %v727 = vrsqrt.pop %v707
      %v728 = vrsqrt.pop %v708
      %v729 = vrsqrt.pop %v709
      %v730 = vrsqrt.pop %v710
      %v731 = vrsqrt.pop %v711
      %v732 = vrsqrt.pop %v712
      %v733 = vrsqrt.pop %v713
      %v734 = vrsqrt.pop %v714
      %v735 = vrsqrt.pop %v715
      %v736 = vrsqrt.pop %v716
      %v737 = vrsqrt.pop %v717
      %v738 = vrsqrt.pop %v718
      %v739 = vrsqrt.pop %v719
      %v740 = vrsqrt.pop %v720
      %v741 = vmul.f32 %v581, %v721
      %v742 = vmul.f32 %v582, %v722
      %v743 = vmul.f32 %v583, %v723
      %v744 = vmul.f32 %v584, %v724
      %v745 = vmul.f32 %v585, %v725
      %v746 = vmul.f32 %v586, %v726
      %v747 = vmul.f32 %v587, %v727
      %v748 = vmul.f32 %v588, %v728
      %v749 = vmul.f32 %v589, %v729
      %v750 = vmul.f32 %v590, %v730
      %v751 = vmul.f32 %v591, %v731
      %v752 = vmul.f32 %v592, %v732
      %v753 = vmul.f32 %v593, %v733
      %v754 = vmul.f32 %v594, %v734
      %v755 = vmul.f32 %v595, %v735
      %v756 = vmul.f32 %v596, %v736
      %v757 = vmul.f32 %v597, %v737
      %v758 = vmul.f32 %v598, %v738
      %v759 = vmul.f32 %v599, %v739
      %v760 = vmul.f32 %v600, %v740
      %v761 = vld [vmem:[%s1] sm:$0x1]
      %v763 = vlaneseq
      %v764 = vshrl.u32 %v763, 7
      %v765 = vsub.s32 0, %v764
      %v766 = vrot.slane %v761, %v765
      %v768 = vmul.f32 %v741, %v766
      %v769 = vmul.f32 %v742, %v766
      %v770 = vmul.f32 %v743, %v766
      %v771 = vmul.f32 %v744, %v766
      %v772 = vmul.f32 %v745, %v766
      %v773 = vmul.f32 %v746, %v766
      %v774 = vmul.f32 %v747, %v766
      %v775 = vmul.f32 %v748, %v766
      %v776 = vmul.f32 %v749, %v766
      %v777 = vmul.f32 %v750, %v766
      %v778 = vmul.f32 %v751, %v766
      %v779 = vmul.f32 %v752, %v766
      %v780 = vmul.f32 %v753, %v766
      %v781 = vmul.f32 %v754, %v766
      %v782 = vmul.f32 %v755, %v766
      %v783 = vmul.f32 %v756, %v766
      %v784 = vmul.f32 %v757, %v766
      %v785 = vmul.f32 %v758, %v766
      %v786 = vmul.f32 %v759, %v766
      %v787 = vmul.f32 %v760, %v766
      %v788 = vld [vmem:[%s2] sm:$0x1]
      %v790 = vlaneseq
      %v791 = vshrl.u32 %v790, 7
      %v792 = vsub.s32 0, %v791
      %v793 = vrot.slane %v788, %v792
      %v795 = vadd.f32 %v768, %v793
      %v796 = vadd.f32 %v769, %v793
      %v797 = vadd.f32 %v770, %v793
      %v798 = vadd.f32 %v771, %v793
      %v799 = vadd.f32 %v772, %v793
      %v800 = vadd.f32 %v773, %v793
      %v801 = vadd.f32 %v774, %v793
      %v802 = vadd.f32 %v775, %v793
      %v803 = vadd.f32 %v776, %v793
      %v804 = vadd.f32 %v777, %v793
      %v805 = vadd.f32 %v778, %v793
      %v806 = vadd.f32 %v779, %v793
      %v807 = vadd.f32 %v780, %v793
      %v808 = vadd.f32 %v781, %v793
      %v809 = vadd.f32 %v782, %v793
      %v810 = vadd.f32 %v783, %v793
      %v811 = vadd.f32 %v784, %v793
      %v812 = vadd.f32 %v785, %v793
      %v813 = vadd.f32 %v786, %v793
      %v814 = vadd.f32 %v787, %v793
      %v815 = vpack.c.bf16 %v796, %v795
      %v816 = vpack.c.bf16 %v798, %v797
      %v817 = vpack.c.bf16 %v800, %v799
      %v818 = vpack.c.bf16 %v802, %v801
      %v819 = vpack.c.bf16 %v804, %v803
      %v820 = vpack.c.bf16 %v806, %v805
      %v821 = vpack.c.bf16 %v808, %v807
      %v822 = vpack.c.bf16 %v810, %v809
      %v823 = vpack.c.bf16 %v812, %v811
      %v824 = vpack.c.bf16 %v814, %v813
      %v825 = vld [vmem:[%s3] sm:$0x3]
      %v827 = vsel %vm499, %v815, 0
      %v830 = vsel %vm499, %v816, 0
      %v833 = vsel %vm499, %v817, 0
      %v836 = vsel %vm499, %v818, 0
      %v839 = vsel %vm499, %v819, 0
      %v842 = vsel %vm499, %v820, 0
      %v845 = vsel %vm499, %v821, 0
      %v848 = vsel %vm499, %v822, 0
      %v851 = vsel %vm499, %v823, 0
      %v854 = vsel %vm499, %v824, 0
      %vm856 = vcmask 1041408
      %v858 = vsel %vm856, %v825, 0
      %860 = vmatprep.subr.bf16.mxu0 0
      %861 = vmatpush1.bf16.msra.mxu0 %v858
      %862 = vmatprep.subr.bf16.mxu0 0
      %863 = vmatpush1.bf16.msra.mxu0 0
      %864 = vmatprep.subr.bf16.mxu0 0
      %865 = vmatpush1.bf16.msra.mxu0 0
      %866 = vmatprep.subr.bf16.mxu0 0
      %867 = vmatpush1.bf16.msra.mxu0 0
      %868 = vmatprep.subr.bf16.mxu0 0
      %869 = vmatpush1.bf16.msra.mxu0 0
      %870 = vmatprep.subr.bf16.mxu0 0
      %871 = vmatpush1.bf16.msra.mxu0 0
      %872 = vmatprep.subr.bf16.mxu0 0
      %873 = vmatpush1.bf16.msra.mxu0 0
      %874 = vmatprep.subr.bf16.mxu0 0
      %875 = vmatpush1.bf16.msra.mxu0 0
      %876 = vmatprep.subr.bf16.mxu0 0
      %877 = vmatpush1.bf16.msra.mxu0 0
      %878 = vmatprep.subr.bf16.mxu0 0
      %879 = vmatpush1.bf16.msra.mxu0 0
      %880 = vmatprep.subr.bf16.mxu0 0
      %881 = vmatpush1.bf16.msra.mxu0 0
      %882 = vmatprep.subr.bf16.mxu0 0
      %883 = vmatpush1.bf16.msra.mxu0 0
      %884 = vmatprep.subr.bf16.mxu0 0
      %885 = vmatpush1.bf16.msra.mxu0 0
      %886 = vmatprep.subr.bf16.mxu0 0
      %887 = vmatpush1.bf16.msra.mxu0 0
      %888 = vmatprep.subr.bf16.mxu0 0
      %889 = vmatpush1.bf16.msra.mxu0 0
      %890 = vmatprep.subr.bf16.mxu0 0
      %891 = vmatpush1.bf16.msra.mxu0 0
      %892 = vmatprep.mubr.bf16.mxu0 0
      %893 = vmatmul.mubr.bf16.gmra.mrb[0].mxu0 %v827
      %v894 = vpop.f32.mrb[0].mxu0
      %v895 = vadd.f32 0.0, %v894
      %v896 = vpop.f32.mrb[0].mxu0
      %v897 = vpop.f32.mrb[0].mxu0
      %v898 = vadd.f32 0.0, %v897
      %v899 = vpop.f32.mrb[0].mxu0
      %900 = vmatprep.mubr.bf16.mxu0 0
      %901 = vmatmul.mubr.bf16.gmra.mrb[0].mxu0 %v830
      %v902 = vpop.f32.mrb[0].mxu0
      %v903 = vadd.f32 0.0, %v902
      %v904 = vpop.f32.mrb[0].mxu0
      %v905 = vpop.f32.mrb[0].mxu0
      %v906 = vadd.f32 0.0, %v905
      %v907 = vpop.f32.mrb[0].mxu0
      %908 = vmatprep.mubr.bf16.mxu0 0
      %909 = vmatmul.mubr.bf16.gmra.mrb[0].mxu0 %v833
      %v910 = vpop.f32.mrb[0].mxu0
      %v911 = vadd.f32 0.0, %v910
      %v912 = vpop.f32.mrb[0].mxu0
      %v913 = vpop.f32.mrb[0].mxu0
      %v914 = vadd.f32 0.0, %v913
      %v915 = vpop.f32.mrb[0].mxu0
      %916 = vmatprep.mubr.bf16.mxu0 0
      %917 = vmatmul.mubr.bf16.gmra.mrb[0].mxu0 %v836
      %v918 = vpop.f32.mrb[0].mxu0
      %v919 = vadd.f32 0.0, %v918
      %v920 = vpop.f32.mrb[0].mxu0
      %v921 = vpop.f32.mrb[0].mxu0
      %v922 = vadd.f32 0.0, %v921
      %v923 = vpop.f32.mrb[0].mxu0
      %924 = vmatprep.mubr.bf16.mxu0 0
      %925 = vmatmul.mubr.bf16.gmra.mrb[0].mxu0 %v839
      %v926 = vpop.f32.mrb[0].mxu0
      %v927 = vadd.f32 0.0, %v926
      %v928 = vpop.f32.mrb[0].mxu0
      %v929 = vpop.f32.mrb[0].mxu0
      %v930 = vadd.f32 0.0, %v929
      %v931 = vpop.f32.mrb[0].mxu0
      %932 = vmatprep.mubr.bf16.mxu0 0
      %933 = vmatmul.mubr.bf16.gmra.mrb[0].mxu0 %v842
      %v934 = vpop.f32.mrb[0].mxu0
      %v935 = vadd.f32 0.0, %v934
      %v936 = vpop.f32.mrb[0].mxu0
      %v937 = vpop.f32.mrb[0].mxu0
      %v938 = vadd.f32 0.0, %v937
      %v939 = vpop.f32.mrb[0].mxu0
      %940 = vmatprep.mubr.bf16.mxu0 0
      %941 = vmatmul.mubr.bf16.gmra.mrb[0].mxu0 %v845
      %v942 = vpop.f32.mrb[0].mxu0
      %v943 = vadd.f32 0.0, %v942
      %v944 = vpop.f32.mrb[0].mxu0
      %v945 = vpop.f32.mrb[0].mxu0
      %v946 = vadd.f32 0.0, %v945
      %v947 = vpop.f32.mrb[0].mxu0
      %948 = vmatprep.mubr.bf16.mxu0 0
      %949 = vmatmul.mubr.bf16.gmra.mrb[0].mxu0 %v848
      %v950 = vpop.f32.mrb[0].mxu0
      %v951 = vadd.f32 0.0, %v950
      %v952 = vpop.f32.mrb[0].mxu0
      %v953 = vpop.f32.mrb[0].mxu0
      %v954 = vadd.f32 0.0, %v953
      %v955 = vpop.f32.mrb[0].mxu0
      %956 = vmatprep.mubr.bf16.mxu0 0
      %957 = vmatmul.mubr.bf16.gmra.mrb[0].mxu0 %v851
      %v958 = vpop.f32.mrb[0].mxu0
      %v959 = vadd.f32 0.0, %v958
      %v960 = vpop.f32.mrb[0].mxu0
      %v961 = vpop.f32.mrb[0].mxu0
      %v962 = vadd.f32 0.0, %v961
      %v963 = vpop.f32.mrb[0].mxu0
      %964 = vmatprep.mubr.bf16.mxu0 0
      %965 = vmatmul.mubr.bf16.gmra.mrb[0].mxu0 %v854
      %v966 = vpop.f32.mrb[0].mxu0
      %v967 = vadd.f32 0.0, %v966
      %v968 = vpop.f32.mrb[0].mxu0
      %v969 = vpop.f32.mrb[0].mxu0
      %v970 = vadd.f32 0.0, %v969
      %v971 = vpop.f32.mrb[0].mxu0
      %972 = vdwg.mxu0
      %s973 = smul.u32 %s29, 128
      %s974 = ssub.s32 %s973, 16
      %s975 = scvt.s32.f32 %s974
      %v976 = vlaneseq
      %v977 = vshrl.u32 %v976, 7
      %v978 = vadd.s32 %v977, 16
      %v979 = vadd.s32 %v977, 24
      %v980 = vadd.s32 %v977, 32
      %v981 = vadd.s32 %v977, 40
      %v982 = vadd.s32 %v977, 48
      %v983 = vadd.s32 %v977, 56
      %v984 = vadd.s32 %v977, 64
      %v985 = vadd.s32 %v977, 72
      %v986 = vadd.s32 %v977, 80
      %v987 = vadd.s32 %v977, 88
      %v988 = vadd.s32 %v977, 96
      %v989 = vadd.s32 %v977, 104
      %v990 = vadd.s32 %v977, 112
      %v991 = vadd.s32 %v977, 120
      %v992 = vadd.s32 %v977, 128
      %v993 = vadd.s32 %v977, 136
      %v994 = vcvt.s32.f32 %v978
      %v995 = vcvt.s32.f32 %v979
      %v996 = vcvt.s32.f32 %v980
      %v997 = vcvt.s32.f32 %v981
      %v998 = vcvt.s32.f32 %v982
      %v999 = vcvt.s32.f32 %v983
      %v1000 = vcvt.s32.f32 %v984
      %v1001 = vcvt.s32.f32 %v985
      %v1002 = vcvt.s32.f32 %v986
      %v1003 = vcvt.s32.f32 %v987
      %v1004 = vcvt.s32.f32 %v988
      %v1005 = vcvt.s32.f32 %v989
      %v1006 = vcvt.s32.f32 %v990
      %v1007 = vcvt.s32.f32 %v991
      %v1008 = vcvt.s32.f32 %v992
      %v1009 = vcvt.s32.f32 %v993
      %v1010 = vstv %s975
      %v1011 = vadd.f32 %v994, %v1010
      %v1012 = vadd.f32 %v995, %v1010
      %v1013 = vadd.f32 %v996, %v1010
      %v1014 = vadd.f32 %v997, %v1010
      %v1015 = vadd.f32 %v998, %v1010
      %v1016 = vadd.f32 %v999, %v1010
      %v1017 = vadd.f32 %v1000, %v1010
      %v1018 = vadd.f32 %v1001, %v1010
      %v1019 = vadd.f32 %v1002, %v1010
      %v1020 = vadd.f32 %v1003, %v1010
      %v1021 = vadd.f32 %v1004, %v1010
      %v1022 = vadd.f32 %v1005, %v1010
      %v1023 = vadd.f32 %v1006, %v1010
      %v1024 = vadd.f32 %v1007, %v1010
      %v1025 = vadd.f32 %v1008, %v1010
      %v1026 = vadd.f32 %v1009, %v1010
      %v1027 = vadd.f32 %v1011, 0.5
      %v1028 = vadd.f32 %v1012, 0.5
      %v1029 = vadd.f32 %v1013, 0.5
      %v1030 = vadd.f32 %v1014, 0.5
      %v1031 = vadd.f32 %v1015, 0.5
      %v1032 = vadd.f32 %v1016, 0.5
      %v1033 = vadd.f32 %v1017, 0.5
      %v1034 = vadd.f32 %v1018, 0.5
      %v1035 = vadd.f32 %v1019, 0.5
      %v1036 = vadd.f32 %v1020, 0.5
      %v1037 = vadd.f32 %v1021, 0.5
      %v1038 = vadd.f32 %v1022, 0.5
      %v1039 = vadd.f32 %v1023, 0.5
      %v1040 = vadd.f32 %v1024, 0.5
      %v1041 = vadd.f32 %v1025, 0.5
      %v1042 = vadd.f32 %v1026, 0.5
      %v1043 = vmul.f32 %v1027, 0.0625
      %v1044 = vmul.f32 %v1028, 0.0625
      %v1045 = vmul.f32 %v1029, 0.0625
      %v1046 = vmul.f32 %v1030, 0.0625
      %v1047 = vmul.f32 %v1031, 0.0625
      %v1048 = vmul.f32 %v1032, 0.0625
      %v1049 = vmul.f32 %v1033, 0.0625
      %v1050 = vmul.f32 %v1034, 0.0625
      %v1051 = vmul.f32 %v1035, 0.0625
      %v1052 = vmul.f32 %v1036, 0.0625
      %v1053 = vmul.f32 %v1037, 0.0625
      %v1054 = vmul.f32 %v1038, 0.0625
      %v1055 = vmul.f32 %v1039, 0.0625
      %v1056 = vmul.f32 %v1040, 0.0625
      %v1057 = vmul.f32 %v1041, 0.0625
      %v1058 = vmul.f32 %v1042, 0.0625
      %v1059 = vfloor.f32 %v1043
      %v1060 = vfloor.f32 %v1044
      %v1061 = vfloor.f32 %v1045
      %v1062 = vfloor.f32 %v1046
      %v1063 = vfloor.f32 %v1047
      %v1064 = vfloor.f32 %v1048
      %v1065 = vfloor.f32 %v1049
      %v1066 = vfloor.f32 %v1050
      %v1067 = vfloor.f32 %v1051
      %v1068 = vfloor.f32 %v1052
      %v1069 = vfloor.f32 %v1053
      %v1070 = vfloor.f32 %v1054
      %v1071 = vfloor.f32 %v1055
      %v1072 = vfloor.f32 %v1056
      %v1073 = vfloor.f32 %v1057
      %v1074 = vfloor.f32 %v1058
      %v1075 = vmul.f32 %v1059, 16.0
      %v1076 = vmul.f32 %v1060, 16.0
      %v1077 = vmul.f32 %v1061, 16.0
      %v1078 = vmul.f32 %v1062, 16.0
      %v1079 = vmul.f32 %v1063, 16.0
      %v1080 = vmul.f32 %v1064, 16.0
      %v1081 = vmul.f32 %v1065, 16.0
      %v1082 = vmul.f32 %v1066, 16.0
      %v1083 = vmul.f32 %v1067, 16.0
      %v1084 = vmul.f32 %v1068, 16.0
      %v1085 = vmul.f32 %v1069, 16.0
      %v1086 = vmul.f32 %v1070, 16.0
      %v1087 = vmul.f32 %v1071, 16.0
      %v1088 = vmul.f32 %v1072, 16.0
      %v1089 = vmul.f32 %v1073, 16.0
      %v1090 = vmul.f32 %v1074, 16.0
      %v1091 = vsub.f32 %v1011, %v1075
      %v1092 = vsub.f32 %v1012, %v1076
      %v1093 = vsub.f32 %v1013, %v1077
      %v1094 = vsub.f32 %v1014, %v1078
      %v1095 = vsub.f32 %v1015, %v1079
      %v1096 = vsub.f32 %v1016, %v1080
      %v1097 = vsub.f32 %v1017, %v1081
      %v1098 = vsub.f32 %v1018, %v1082
      %v1099 = vsub.f32 %v1019, %v1083
      %v1100 = vsub.f32 %v1020, %v1084
      %v1101 = vsub.f32 %v1021, %v1085
      %v1102 = vsub.f32 %v1022, %v1086
      %v1103 = vsub.f32 %v1023, %v1087
      %v1104 = vsub.f32 %v1024, %v1088
      %v1105 = vsub.f32 %v1025, %v1089
      %v1106 = vsub.f32 %v1026, %v1090
      %vm1107 = vcmp.gt.f32.partialorder %v1059, 0.5
      %vm1108 = vcmp.gt.f32.partialorder %v1060, 0.5
      %vm1109 = vcmp.gt.f32.partialorder %v1061, 0.5
      %vm1110 = vcmp.gt.f32.partialorder %v1062, 0.5
      %vm1111 = vcmp.gt.f32.partialorder %v1063, 0.5
      %vm1112 = vcmp.gt.f32.partialorder %v1064, 0.5
      %vm1113 = vcmp.gt.f32.partialorder %v1065, 0.5
      %vm1114 = vcmp.gt.f32.partialorder %v1066, 0.5
      %vm1115 = vcmp.gt.f32.partialorder %v1067, 0.5
      %vm1116 = vcmp.gt.f32.partialorder %v1068, 0.5
      %vm1117 = vcmp.gt.f32.partialorder %v1069, 0.5
      %vm1118 = vcmp.gt.f32.partialorder %v1070, 0.5
      %vm1119 = vcmp.gt.f32.partialorder %v1071, 0.5
      %vm1120 = vcmp.gt.f32.partialorder %v1072, 0.5
      %vm1121 = vcmp.gt.f32.partialorder %v1073, 0.5
      %vm1122 = vcmp.gt.f32.partialorder %v1074, 0.5
      %v1123 = vsel %vm1107, 1.0, 0.0
      %v1124 = vsel %vm1108, 1.0, 0.0
      %v1125 = vsel %vm1109, 1.0, 0.0
      %v1126 = vsel %vm1110, 1.0, 0.0
      %v1127 = vsel %vm1111, 1.0, 0.0
      %v1128 = vsel %vm1112, 1.0, 0.0
      %v1129 = vsel %vm1113, 1.0, 0.0
      %v1130 = vsel %vm1114, 1.0, 0.0
      %v1131 = vsel %vm1115, 1.0, 0.0
      %v1132 = vsel %vm1116, 1.0, 0.0
      %v1133 = vsel %vm1117, 1.0, 0.0
      %v1134 = vsel %vm1118, 1.0, 0.0
      %v1135 = vsel %vm1119, 1.0, 0.0
      %v1136 = vsel %vm1120, 1.0, 0.0
      %v1137 = vsel %vm1121, 1.0, 0.0
      %v1138 = vsel %vm1122, 1.0, 0.0
      %vm1139 = vcmp.lt.f32.partialorder %v1059, 14.5
      %vm1140 = vcmp.lt.f32.partialorder %v1060, 14.5
      %vm1141 = vcmp.lt.f32.partialorder %v1061, 14.5
      %vm1142 = vcmp.lt.f32.partialorder %v1062, 14.5
      %vm1143 = vcmp.lt.f32.partialorder %v1063, 14.5
      %vm1144 = vcmp.lt.f32.partialorder %v1064, 14.5
      %vm1145 = vcmp.lt.f32.partialorder %v1065, 14.5
      %vm1146 = vcmp.lt.f32.partialorder %v1066, 14.5
      %vm1147 = vcmp.lt.f32.partialorder %v1067, 14.5
      %vm1148 = vcmp.lt.f32.partialorder %v1068, 14.5
      %vm1149 = vcmp.lt.f32.partialorder %v1069, 14.5
      %vm1150 = vcmp.lt.f32.partialorder %v1070, 14.5
      %vm1151 = vcmp.lt.f32.partialorder %v1071, 14.5
      %vm1152 = vcmp.lt.f32.partialorder %v1072, 14.5
      %vm1153 = vcmp.lt.f32.partialorder %v1073, 14.5
      %vm1154 = vcmp.lt.f32.partialorder %v1074, 14.5
      %v1155 = vsel %vm1139, 1.0, 0.0
      %v1156 = vsel %vm1140, 1.0, 0.0
      %v1157 = vsel %vm1141, 1.0, 0.0
      %v1158 = vsel %vm1142, 1.0, 0.0
      %v1159 = vsel %vm1143, 1.0, 0.0
      %v1160 = vsel %vm1144, 1.0, 0.0
      %v1161 = vsel %vm1145, 1.0, 0.0
      %v1162 = vsel %vm1146, 1.0, 0.0
      %v1163 = vsel %vm1147, 1.0, 0.0
      %v1164 = vsel %vm1148, 1.0, 0.0
      %v1165 = vsel %vm1149, 1.0, 0.0
      %v1166 = vsel %vm1150, 1.0, 0.0
      %v1167 = vsel %vm1151, 1.0, 0.0
      %v1168 = vsel %vm1152, 1.0, 0.0
      %v1169 = vsel %vm1153, 1.0, 0.0
      %v1170 = vsel %vm1154, 1.0, 0.0
      %vm1171 = vcmp.gt.f32.partialorder %v1091, 0.5
      %vm1172 = vcmp.gt.f32.partialorder %v1092, 0.5
      %vm1173 = vcmp.gt.f32.partialorder %v1093, 0.5
      %vm1174 = vcmp.gt.f32.partialorder %v1094, 0.5
      %vm1175 = vcmp.gt.f32.partialorder %v1095, 0.5
      %vm1176 = vcmp.gt.f32.partialorder %v1096, 0.5
      %vm1177 = vcmp.gt.f32.partialorder %v1097, 0.5
      %vm1178 = vcmp.gt.f32.partialorder %v1098, 0.5
      %vm1179 = vcmp.gt.f32.partialorder %v1099, 0.5
      %vm1180 = vcmp.gt.f32.partialorder %v1100, 0.5
      %vm1181 = vcmp.gt.f32.partialorder %v1101, 0.5
      %vm1182 = vcmp.gt.f32.partialorder %v1102, 0.5
      %vm1183 = vcmp.gt.f32.partialorder %v1103, 0.5
      %vm1184 = vcmp.gt.f32.partialorder %v1104, 0.5
      %vm1185 = vcmp.gt.f32.partialorder %v1105, 0.5
      %vm1186 = vcmp.gt.f32.partialorder %v1106, 0.5
      %v1187 = vsel %vm1171, 1.0, 0.0
      %v1188 = vsel %vm1172, 1.0, 0.0
      %v1189 = vsel %vm1173, 1.0, 0.0
      %v1190 = vsel %vm1174, 1.0, 0.0
      %v1191 = vsel %vm1175, 1.0, 0.0
      %v1192 = vsel %vm1176, 1.0, 0.0
      %v1193 = vsel %vm1177, 1.0, 0.0
      %v1194 = vsel %vm1178, 1.0, 0.0
      %v1195 = vsel %vm1179, 1.0, 0.0
      %v1196 = vsel %vm1180, 1.0, 0.0
      %v1197 = vsel %vm1181, 1.0, 0.0
      %v1198 = vsel %vm1182, 1.0, 0.0
      %v1199 = vsel %vm1183, 1.0, 0.0
      %v1200 = vsel %vm1184, 1.0, 0.0
      %v1201 = vsel %vm1185, 1.0, 0.0
      %v1202 = vsel %vm1186, 1.0, 0.0
      %vm1203 = vcmp.lt.f32.partialorder %v1091, 14.5
      %vm1204 = vcmp.lt.f32.partialorder %v1092, 14.5
      %vm1205 = vcmp.lt.f32.partialorder %v1093, 14.5
      %vm1206 = vcmp.lt.f32.partialorder %v1094, 14.5
      %vm1207 = vcmp.lt.f32.partialorder %v1095, 14.5
      %vm1208 = vcmp.lt.f32.partialorder %v1096, 14.5
      %vm1209 = vcmp.lt.f32.partialorder %v1097, 14.5
      %vm1210 = vcmp.lt.f32.partialorder %v1098, 14.5
      %vm1211 = vcmp.lt.f32.partialorder %v1099, 14.5
      %vm1212 = vcmp.lt.f32.partialorder %v1100, 14.5
      %vm1213 = vcmp.lt.f32.partialorder %v1101, 14.5
      %vm1214 = vcmp.lt.f32.partialorder %v1102, 14.5
      %vm1215 = vcmp.lt.f32.partialorder %v1103, 14.5
      %vm1216 = vcmp.lt.f32.partialorder %v1104, 14.5
      %vm1217 = vcmp.lt.f32.partialorder %v1105, 14.5
      %vm1218 = vcmp.lt.f32.partialorder %v1106, 14.5
      %v1219 = vsel %vm1203, 1.0, 0.0
      %v1220 = vsel %vm1204, 1.0, 0.0
      %v1221 = vsel %vm1205, 1.0, 0.0
      %v1222 = vsel %vm1206, 1.0, 0.0
      %v1223 = vsel %vm1207, 1.0, 0.0
      %v1224 = vsel %vm1208, 1.0, 0.0
      %v1225 = vsel %vm1209, 1.0, 0.0
      %v1226 = vsel %vm1210, 1.0, 0.0
      %v1227 = vsel %vm1211, 1.0, 0.0
      %v1228 = vsel %vm1212, 1.0, 0.0
      %v1229 = vsel %vm1213, 1.0, 0.0
      %v1230 = vsel %vm1214, 1.0, 0.0
      %v1231 = vsel %vm1215, 1.0, 0.0
      %v1232 = vsel %vm1216, 1.0, 0.0
      %v1233 = vsel %vm1217, 1.0, 0.0
      %v1234 = vsel %vm1218, 1.0, 0.0
      %v1235 = vmul.f32 %v1123, %v1187
      %v1236 = vmul.f32 %v1124, %v1188
      %v1237 = vmul.f32 %v1125, %v1189
      %v1238 = vmul.f32 %v1126, %v1190
      %v1239 = vmul.f32 %v1127, %v1191
      %v1240 = vmul.f32 %v1128, %v1192
      %v1241 = vmul.f32 %v1129, %v1193
      %v1242 = vmul.f32 %v1130, %v1194
      %v1243 = vmul.f32 %v1131, %v1195
      %v1244 = vmul.f32 %v1132, %v1196
      %v1245 = vmul.f32 %v1133, %v1197
      %v1246 = vmul.f32 %v1134, %v1198
      %v1247 = vmul.f32 %v1135, %v1199
      %v1248 = vmul.f32 %v1136, %v1200
      %v1249 = vmul.f32 %v1137, %v1201
      %v1250 = vmul.f32 %v1138, %v1202
      %v1251 = vmul.f32 %v1123, %v1219
      %v1252 = vmul.f32 %v1124, %v1220
      %v1253 = vmul.f32 %v1125, %v1221
      %v1254 = vmul.f32 %v1126, %v1222
      %v1255 = vmul.f32 %v1127, %v1223
      %v1256 = vmul.f32 %v1128, %v1224
      %v1257 = vmul.f32 %v1129, %v1225
      %v1258 = vmul.f32 %v1130, %v1226
      %v1259 = vmul.f32 %v1131, %v1227
      %v1260 = vmul.f32 %v1132, %v1228
      %v1261 = vmul.f32 %v1133, %v1229
      %v1262 = vmul.f32 %v1134, %v1230
      %v1263 = vmul.f32 %v1135, %v1231
      %v1264 = vmul.f32 %v1136, %v1232
      %v1265 = vmul.f32 %v1137, %v1233
      %v1266 = vmul.f32 %v1138, %v1234
      %v1267 = vmul.f32 %v1155, %v1187
      %v1268 = vmul.f32 %v1156, %v1188
      %v1269 = vmul.f32 %v1157, %v1189
      %v1270 = vmul.f32 %v1158, %v1190
      %v1271 = vmul.f32 %v1159, %v1191
      %v1272 = vmul.f32 %v1160, %v1192
      %v1273 = vmul.f32 %v1161, %v1193
      %v1274 = vmul.f32 %v1162, %v1194
      %v1275 = vmul.f32 %v1163, %v1195
      %v1276 = vmul.f32 %v1164, %v1196
      %v1277 = vmul.f32 %v1165, %v1197
      %v1278 = vmul.f32 %v1166, %v1198
      %v1279 = vmul.f32 %v1167, %v1199
      %v1280 = vmul.f32 %v1168, %v1200
      %v1281 = vmul.f32 %v1169, %v1201
      %v1282 = vmul.f32 %v1170, %v1202
      %v1283 = vmul.f32 %v1155, %v1219
      %v1284 = vmul.f32 %v1156, %v1220
      %v1285 = vmul.f32 %v1157, %v1221
      %v1286 = vmul.f32 %v1158, %v1222
      %v1287 = vmul.f32 %v1159, %v1223
      %v1288 = vmul.f32 %v1160, %v1224
      %v1289 = vmul.f32 %v1161, %v1225
      %v1290 = vmul.f32 %v1162, %v1226
      %v1291 = vmul.f32 %v1163, %v1227
      %v1292 = vmul.f32 %v1164, %v1228
      %v1293 = vmul.f32 %v1165, %v1229
      %v1294 = vmul.f32 %v1166, %v1230
      %v1295 = vmul.f32 %v1167, %v1231
      %v1296 = vmul.f32 %v1168, %v1232
      %v1297 = vmul.f32 %v1169, %v1233
      %v1298 = vmul.f32 %v1170, %v1234
      %v1299 = vld [vmem:[%s5] sm:$0xff]
      %v1300 = vld [vmem:[%s5 + $0x8] sm:$0x1]
      %v1301 = vld [vmem:[%s6] sm:$0x1]
      %v1302 = vlaneseq
      %v1303 = vshrl.u32 %v1302, 7
      %v1304 = vsub.s32 4, %v1303
      %v1305 = vrot.slane %v1299, %v1304
      %v1306 = vmul.f32 %v903, %v1305
      %v1307 = vmul.f32 %v906, %v1305
      %v1308 = vmul.f32 %v911, %v1305
      %v1309 = vmul.f32 %v914, %v1305
      %v1310 = vmul.f32 %v919, %v1305
      %v1311 = vmul.f32 %v922, %v1305
      %v1312 = vmul.f32 %v927, %v1305
      %v1313 = vmul.f32 %v930, %v1305
      %v1314 = vmul.f32 %v935, %v1305
      %v1315 = vmul.f32 %v938, %v1305
      %v1316 = vmul.f32 %v943, %v1305
      %v1317 = vmul.f32 %v946, %v1305
      %v1318 = vmul.f32 %v951, %v1305
      %v1319 = vmul.f32 %v954, %v1305
      %v1320 = vmul.f32 %v959, %v1305
      %v1321 = vmul.f32 %v962, %v1305
      %v1323 = vlaneseq
      %v1324 = vshrl.u32 %v1323, 7
      %v1325 = vsub.s32 0, %v1324
      %v1326 = vrot.slane %v1301, %v1325
      %v1328 = vadd.f32 %v1326, %v1306
      %v1329 = vadd.f32 %v1326, %v1307
      %v1330 = vadd.f32 %v1326, %v1308
      %v1331 = vadd.f32 %v1326, %v1309
      %v1332 = vadd.f32 %v1326, %v1310
      %v1333 = vadd.f32 %v1326, %v1311
      %v1334 = vadd.f32 %v1326, %v1312
      %v1335 = vadd.f32 %v1326, %v1313
      %v1336 = vadd.f32 %v1326, %v1314
      %v1337 = vadd.f32 %v1326, %v1315
      %v1338 = vadd.f32 %v1326, %v1316
      %v1339 = vadd.f32 %v1326, %v1317
      %v1340 = vadd.f32 %v1326, %v1318
      %v1341 = vadd.f32 %v1326, %v1319
      %v1342 = vadd.f32 %v1326, %v1320
      %v1343 = vadd.f32 %v1326, %v1321
      %v1344 = vrot.slane %v895, 7
      %v1345 = vrot.slane %v898, 7
      %v1346 = vrot.slane %v903, 7
      %v1347 = vrot.slane %v906, 7
      %v1348 = vrot.slane %v911, 7
      %v1349 = vrot.slane %v914, 7
      %v1350 = vrot.slane %v919, 7
      %v1351 = vrot.slane %v922, 7
      %v1352 = vrot.slane %v927, 7
      %v1353 = vrot.slane %v930, 7
      %v1354 = vrot.slane %v935, 7
      %v1355 = vrot.slane %v938, 7
      %v1356 = vrot.slane %v943, 7
      %v1357 = vrot.slane %v946, 7
      %v1358 = vrot.slane %v951, 7
      %v1359 = vrot.slane %v954, 7
      %v1360 = vrot.slane %v970, 7
      %vm1361 = vcmp.lt.s32.totalorder %v977, 1
      %v1362 = vsel %vm1361, %v1358, %v1359
      %v1363 = vsel %vm1361, %v1357, %v1358
      %v1364 = vsel %vm1361, %v1356, %v1357
      %v1365 = vsel %vm1361, %v1355, %v1356
      %v1366 = vsel %vm1361, %v1354, %v1355
      %v1367 = vsel %vm1361, %v1353, %v1354
      %v1368 = vsel %vm1361, %v1352, %v1353
      %v1369 = vsel %vm1361, %v1351, %v1352
      %v1370 = vsel %vm1361, %v1350, %v1351
      %v1371 = vsel %vm1361, %v1349, %v1350
      %v1372 = vsel %vm1361, %v1348, %v1349
      %v1373 = vsel %vm1361, %v1347, %v1348
      %v1374 = vsel %vm1361, %v1346, %v1347
      %v1375 = vsel %vm1361, %v1345, %v1346
      %v1376 = vsel %vm1361, %v1344, %v1345
      %v1377 = vsel %vm1361, %v1360, %v1344
      %v1378 = vmul.f32 %v1377, %v1235
      %v1379 = vmul.f32 %v1376, %v1236
      %v1380 = vmul.f32 %v1375, %v1237
      %v1381 = vmul.f32 %v1374, %v1238
      %v1382 = vmul.f32 %v1373, %v1239
      %v1383 = vmul.f32 %v1372, %v1240
      %v1384 = vmul.f32 %v1371, %v1241
      %v1385 = vmul.f32 %v1370, %v1242
      %v1386 = vmul.f32 %v1369, %v1243
      %v1387 = vmul.f32 %v1368, %v1244
      %v1388 = vmul.f32 %v1367, %v1245
      %v1389 = vmul.f32 %v1366, %v1246
      %v1390 = vmul.f32 %v1365, %v1247
      %v1391 = vmul.f32 %v1364, %v1248
      %v1392 = vmul.f32 %v1363, %v1249
      %v1393 = vmul.f32 %v1362, %v1250
      %v1394 = vlaneseq
      %v1395 = vshrl.u32 %v1394, 7
      %v1396 = vsub.s32 0, %v1395
      %v1397 = vrot.slane %v1299, %v1396
      %v1398 = vmul.f32 %v1378, %v1397
      %v1399 = vmul.f32 %v1379, %v1397
      %v1400 = vmul.f32 %v1380, %v1397
      %v1401 = vmul.f32 %v1381, %v1397
      %v1402 = vmul.f32 %v1382, %v1397
      %v1403 = vmul.f32 %v1383, %v1397
      %v1404 = vmul.f32 %v1384, %v1397
      %v1405 = vmul.f32 %v1385, %v1397
      %v1406 = vmul.f32 %v1386, %v1397
      %v1407 = vmul.f32 %v1387, %v1397
      %v1408 = vmul.f32 %v1388, %v1397
      %v1409 = vmul.f32 %v1389, %v1397
      %v1410 = vmul.f32 %v1390, %v1397
      %v1411 = vmul.f32 %v1391, %v1397
      %v1412 = vmul.f32 %v1392, %v1397
      %v1413 = vmul.f32 %v1393, %v1397
      %v1414 = vadd.f32 %v1328, %v1398
      %v1415 = vadd.f32 %v1329, %v1399
      %v1416 = vadd.f32 %v1330, %v1400
      %v1417 = vadd.f32 %v1331, %v1401
      %v1418 = vadd.f32 %v1332, %v1402
      %v1419 = vadd.f32 %v1333, %v1403
      %v1420 = vadd.f32 %v1334, %v1404
      %v1421 = vadd.f32 %v1335, %v1405
      %v1422 = vadd.f32 %v1336, %v1406
      %v1423 = vadd.f32 %v1337, %v1407
      %v1424 = vadd.f32 %v1338, %v1408
      %v1425 = vadd.f32 %v1339, %v1409
      %v1426 = vadd.f32 %v1340, %v1410
      %v1427 = vadd.f32 %v1341, %v1411
      %v1428 = vadd.f32 %v1342, %v1412
      %v1429 = vadd.f32 %v1343, %v1413
      %v1430 = vmul.f32 %v895, %v1123
      %v1431 = vmul.f32 %v898, %v1124
      %v1432 = vmul.f32 %v903, %v1125
      %v1433 = vmul.f32 %v906, %v1126
      %v1434 = vmul.f32 %v911, %v1127
      %v1435 = vmul.f32 %v914, %v1128
      %v1436 = vmul.f32 %v919, %v1129
      %v1437 = vmul.f32 %v922, %v1130
      %v1438 = vmul.f32 %v927, %v1131
      %v1439 = vmul.f32 %v930, %v1132
      %v1440 = vmul.f32 %v935, %v1133
      %v1441 = vmul.f32 %v938, %v1134
      %v1442 = vmul.f32 %v943, %v1135
      %v1443 = vmul.f32 %v946, %v1136
      %v1444 = vmul.f32 %v951, %v1137
      %v1445 = vmul.f32 %v954, %v1138
      %v1446 = vlaneseq
      %v1447 = vshrl.u32 %v1446, 7
      %v1448 = vsub.s32 1, %v1447
      %v1449 = vrot.slane %v1299, %v1448
      %v1450 = vmul.f32 %v1430, %v1449
      %v1451 = vmul.f32 %v1431, %v1449
      %v1452 = vmul.f32 %v1432, %v1449
      %v1453 = vmul.f32 %v1433, %v1449
      %v1454 = vmul.f32 %v1434, %v1449
      %v1455 = vmul.f32 %v1435, %v1449
      %v1456 = vmul.f32 %v1436, %v1449
      %v1457 = vmul.f32 %v1437, %v1449
      %v1458 = vmul.f32 %v1438, %v1449
      %v1459 = vmul.f32 %v1439, %v1449
      %v1460 = vmul.f32 %v1440, %v1449
      %v1461 = vmul.f32 %v1441, %v1449
      %v1462 = vmul.f32 %v1442, %v1449
      %v1463 = vmul.f32 %v1443, %v1449
      %v1464 = vmul.f32 %v1444, %v1449
      %v1465 = vmul.f32 %v1445, %v1449
      %v1466 = vadd.f32 %v1414, %v1450
      %v1467 = vadd.f32 %v1415, %v1451
      %v1468 = vadd.f32 %v1416, %v1452
      %v1469 = vadd.f32 %v1417, %v1453
      %v1470 = vadd.f32 %v1418, %v1454
      %v1471 = vadd.f32 %v1419, %v1455
      %v1472 = vadd.f32 %v1420, %v1456
      %v1473 = vadd.f32 %v1421, %v1457
      %v1474 = vadd.f32 %v1422, %v1458
      %v1475 = vadd.f32 %v1423, %v1459
      %v1476 = vadd.f32 %v1424, %v1460
      %v1477 = vadd.f32 %v1425, %v1461
      %v1478 = vadd.f32 %v1426, %v1462
      %v1479 = vadd.f32 %v1427, %v1463
      %v1480 = vadd.f32 %v1428, %v1464
      %v1481 = vadd.f32 %v1429, %v1465
      %v1482 = vrot.slane %v895, 1
      %v1483 = vrot.slane %v898, 1
      %v1484 = vrot.slane %v903, 1
      %v1485 = vrot.slane %v906, 1
      %v1486 = vrot.slane %v911, 1
      %v1487 = vrot.slane %v914, 1
      %v1488 = vrot.slane %v919, 1
      %v1489 = vrot.slane %v922, 1
      %v1490 = vrot.slane %v927, 1
      %v1491 = vrot.slane %v930, 1
      %v1492 = vrot.slane %v935, 1
      %v1493 = vrot.slane %v938, 1
      %v1494 = vrot.slane %v943, 1
      %v1495 = vrot.slane %v946, 1
      %v1496 = vrot.slane %v951, 1
      %v1497 = vrot.slane %v954, 1
      %v1498 = vrot.slane %v959, 1
      %vm1499 = vcmp.lt.s32.totalorder %v977, 7
      %v1500 = vsel %vm1499, %v1497, %v1498
      %v1501 = vsel %vm1499, %v1496, %v1497
      %v1502 = vsel %vm1499, %v1495, %v1496
      %v1503 = vsel %vm1499, %v1494, %v1495
      %v1504 = vsel %vm1499, %v1493, %v1494
      %v1505 = vsel %vm1499, %v1492, %v1493
      %v1506 = vsel %vm1499, %v1491, %v1492
      %v1507 = vsel %vm1499, %v1490, %v1491
      %v1508 = vsel %vm1499, %v1489, %v1490
      %v1509 = vsel %vm1499, %v1488, %v1489
      %v1510 = vsel %vm1499, %v1487, %v1488
      %v1511 = vsel %vm1499, %v1486, %v1487
      %v1512 = vsel %vm1499, %v1485, %v1486
      %v1513 = vsel %vm1499, %v1484, %v1485
      %v1514 = vsel %vm1499, %v1483, %v1484
      %v1515 = vsel %vm1499, %v1482, %v1483
      %v1516 = vmul.f32 %v1515, %v1251
      %v1517 = vmul.f32 %v1514, %v1252
      %v1518 = vmul.f32 %v1513, %v1253
      %v1519 = vmul.f32 %v1512, %v1254
      %v1520 = vmul.f32 %v1511, %v1255
      %v1521 = vmul.f32 %v1510, %v1256
      %v1522 = vmul.f32 %v1509, %v1257
      %v1523 = vmul.f32 %v1508, %v1258
      %v1524 = vmul.f32 %v1507, %v1259
      %v1525 = vmul.f32 %v1506, %v1260
      %v1526 = vmul.f32 %v1505, %v1261
      %v1527 = vmul.f32 %v1504, %v1262
      %v1528 = vmul.f32 %v1503, %v1263
      %v1529 = vmul.f32 %v1502, %v1264
      %v1530 = vmul.f32 %v1501, %v1265
      %v1531 = vmul.f32 %v1500, %v1266
      %v1532 = vlaneseq
      %v1533 = vshrl.u32 %v1532, 7
      %v1534 = vsub.s32 2, %v1533
      %v1535 = vrot.slane %v1299, %v1534
      %v1536 = vmul.f32 %v1516, %v1535
      %v1537 = vmul.f32 %v1517, %v1535
      %v1538 = vmul.f32 %v1518, %v1535
      %v1539 = vmul.f32 %v1519, %v1535
      %v1540 = vmul.f32 %v1520, %v1535
      %v1541 = vmul.f32 %v1521, %v1535
      %v1542 = vmul.f32 %v1522, %v1535
      %v1543 = vmul.f32 %v1523, %v1535
      %v1544 = vmul.f32 %v1524, %v1535
      %v1545 = vmul.f32 %v1525, %v1535
      %v1546 = vmul.f32 %v1526, %v1535
      %v1547 = vmul.f32 %v1527, %v1535
      %v1548 = vmul.f32 %v1528, %v1535
      %v1549 = vmul.f32 %v1529, %v1535
      %v1550 = vmul.f32 %v1530, %v1535
      %v1551 = vmul.f32 %v1531, %v1535
      %v1552 = vadd.f32 %v1466, %v1536
      %v1553 = vadd.f32 %v1467, %v1537
      %v1554 = vadd.f32 %v1468, %v1538
      %v1555 = vadd.f32 %v1469, %v1539
      %v1556 = vadd.f32 %v1470, %v1540
      %v1557 = vadd.f32 %v1471, %v1541
      %v1558 = vadd.f32 %v1472, %v1542
      %v1559 = vadd.f32 %v1473, %v1543
      %v1560 = vadd.f32 %v1474, %v1544
      %v1561 = vadd.f32 %v1475, %v1545
      %v1562 = vadd.f32 %v1476, %v1546
      %v1563 = vadd.f32 %v1477, %v1547
      %v1564 = vadd.f32 %v1478, %v1548
      %v1565 = vadd.f32 %v1479, %v1549
      %v1566 = vadd.f32 %v1480, %v1550
      %v1567 = vadd.f32 %v1481, %v1551
      %v1568 = vrot.slane %v959, 7
      %v1569 = vrot.slane %v962, 7
      %v1570 = vsel %vm1361, %v1568, %v1569
      %v1571 = vsel %vm1361, %v1359, %v1568
      %v1572 = vmul.f32 %v1375, %v1187
      %v1573 = vmul.f32 %v1374, %v1188
      %v1574 = vmul.f32 %v1373, %v1189
      %v1575 = vmul.f32 %v1372, %v1190
      %v1576 = vmul.f32 %v1371, %v1191
      %v1577 = vmul.f32 %v1370, %v1192
      %v1578 = vmul.f32 %v1369, %v1193
      %v1579 = vmul.f32 %v1368, %v1194
      %v1580 = vmul.f32 %v1367, %v1195
      %v1581 = vmul.f32 %v1366, %v1196
      %v1582 = vmul.f32 %v1365, %v1197
      %v1583 = vmul.f32 %v1364, %v1198
      %v1584 = vmul.f32 %v1363, %v1199
      %v1585 = vmul.f32 %v1362, %v1200
      %v1586 = vmul.f32 %v1571, %v1201
      %v1587 = vmul.f32 %v1570, %v1202
      %v1588 = vlaneseq
      %v1589 = vshrl.u32 %v1588, 7
      %v1590 = vsub.s32 3, %v1589
      %v1591 = vrot.slane %v1299, %v1590
      %v1592 = vmul.f32 %v1572, %v1591
      %v1593 = vmul.f32 %v1573, %v1591
      %v1594 = vmul.f32 %v1574, %v1591
      %v1595 = vmul.f32 %v1575, %v1591
      %v1596 = vmul.f32 %v1576, %v1591
      %v1597 = vmul.f32 %v1577, %v1591
      %v1598 = vmul.f32 %v1578, %v1591
      %v1599 = vmul.f32 %v1579, %v1591
      %v1600 = vmul.f32 %v1580, %v1591
      %v1601 = vmul.f32 %v1581, %v1591
      %v1602 = vmul.f32 %v1582, %v1591
      %v1603 = vmul.f32 %v1583, %v1591
      %v1604 = vmul.f32 %v1584, %v1591
      %v1605 = vmul.f32 %v1585, %v1591
      %v1606 = vmul.f32 %v1586, %v1591
      %v1607 = vmul.f32 %v1587, %v1591
      %v1608 = vadd.f32 %v1552, %v1592
      %v1609 = vadd.f32 %v1553, %v1593
      %v1610 = vadd.f32 %v1554, %v1594
      %v1611 = vadd.f32 %v1555, %v1595
      %v1612 = vadd.f32 %v1556, %v1596
      %v1613 = vadd.f32 %v1557, %v1597
      %v1614 = vadd.f32 %v1558, %v1598
      %v1615 = vadd.f32 %v1559, %v1599
      %v1616 = vadd.f32 %v1560, %v1600
      %v1617 = vadd.f32 %v1561, %v1601
      %v1618 = vadd.f32 %v1562, %v1602
      %v1619 = vadd.f32 %v1563, %v1603
      %v1620 = vadd.f32 %v1564, %v1604
      %v1621 = vadd.f32 %v1565, %v1605
      %v1622 = vadd.f32 %v1566, %v1606
      %v1623 = vadd.f32 %v1567, %v1607
      %v1624 = vrot.slane %v962, 1
      %v1625 = vrot.slane %v967, 1
      %v1626 = vsel %vm1499, %v1624, %v1625
      %v1627 = vsel %vm1499, %v1498, %v1624
      %v1628 = vmul.f32 %v1513, %v1219
      %v1629 = vmul.f32 %v1512, %v1220
      %v1630 = vmul.f32 %v1511, %v1221
      %v1631 = vmul.f32 %v1510, %v1222
      %v1632 = vmul.f32 %v1509, %v1223
      %v1633 = vmul.f32 %v1508, %v1224
      %v1634 = vmul.f32 %v1507, %v1225
      %v1635 = vmul.f32 %v1506, %v1226
      %v1636 = vmul.f32 %v1505, %v1227
      %v1637 = vmul.f32 %v1504, %v1228
      %v1638 = vmul.f32 %v1503, %v1229
      %v1639 = vmul.f32 %v1502, %v1230
      %v1640 = vmul.f32 %v1501, %v1231
      %v1641 = vmul.f32 %v1500, %v1232
      %v1642 = vmul.f32 %v1627, %v1233
      %v1643 = vmul.f32 %v1626, %v1234
      %v1644 = vlaneseq
      %v1645 = vshrl.u32 %v1644, 7
      %v1646 = vsub.s32 5, %v1645
      %v1647 = vrot.slane %v1299, %v1646
      %v1648 = vmul.f32 %v1628, %v1647
      %v1649 = vmul.f32 %v1629, %v1647
      %v1650 = vmul.f32 %v1630, %v1647
      %v1651 = vmul.f32 %v1631, %v1647
      %v1652 = vmul.f32 %v1632, %v1647
      %v1653 = vmul.f32 %v1633, %v1647
      %v1654 = vmul.f32 %v1634, %v1647
      %v1655 = vmul.f32 %v1635, %v1647
      %v1656 = vmul.f32 %v1636, %v1647
      %v1657 = vmul.f32 %v1637, %v1647
      %v1658 = vmul.f32 %v1638, %v1647
      %v1659 = vmul.f32 %v1639, %v1647
      %v1660 = vmul.f32 %v1640, %v1647
      %v1661 = vmul.f32 %v1641, %v1647
      %v1662 = vmul.f32 %v1642, %v1647
      %v1663 = vmul.f32 %v1643, %v1647
      %v1664 = vadd.f32 %v1608, %v1648
      %v1665 = vadd.f32 %v1609, %v1649
      %v1666 = vadd.f32 %v1610, %v1650
      %v1667 = vadd.f32 %v1611, %v1651
      %v1668 = vadd.f32 %v1612, %v1652
      %v1669 = vadd.f32 %v1613, %v1653
      %v1670 = vadd.f32 %v1614, %v1654
      %v1671 = vadd.f32 %v1615, %v1655
      %v1672 = vadd.f32 %v1616, %v1656
      %v1673 = vadd.f32 %v1617, %v1657
      %v1674 = vadd.f32 %v1618, %v1658
      %v1675 = vadd.f32 %v1619, %v1659
      %v1676 = vadd.f32 %v1620, %v1660
      %v1677 = vadd.f32 %v1621, %v1661
      %v1678 = vadd.f32 %v1622, %v1662
      %v1679 = vadd.f32 %v1623, %v1663
      %v1680 = vrot.slane %v967, 7
      %v1681 = vsel %vm1361, %v1680, %v1360
      %v1682 = vsel %vm1361, %v1569, %v1680
      %v1683 = vmul.f32 %v1373, %v1267
      %v1684 = vmul.f32 %v1372, %v1268
      %v1685 = vmul.f32 %v1371, %v1269
      %v1686 = vmul.f32 %v1370, %v1270
      %v1687 = vmul.f32 %v1369, %v1271
      %v1688 = vmul.f32 %v1368, %v1272
      %v1689 = vmul.f32 %v1367, %v1273
      %v1690 = vmul.f32 %v1366, %v1274
      %v1691 = vmul.f32 %v1365, %v1275
      %v1692 = vmul.f32 %v1364, %v1276
      %v1693 = vmul.f32 %v1363, %v1277
      %v1694 = vmul.f32 %v1362, %v1278
      %v1695 = vmul.f32 %v1571, %v1279
      %v1696 = vmul.f32 %v1570, %v1280
      %v1697 = vmul.f32 %v1682, %v1281
      %v1698 = vmul.f32 %v1681, %v1282
      %v1699 = vlaneseq
      %v1700 = vshrl.u32 %v1699, 7
      %v1701 = vsub.s32 6, %v1700
      %v1702 = vrot.slane %v1299, %v1701
      %v1703 = vmul.f32 %v1683, %v1702
      %v1704 = vmul.f32 %v1684, %v1702
      %v1705 = vmul.f32 %v1685, %v1702
      %v1706 = vmul.f32 %v1686, %v1702
      %v1707 = vmul.f32 %v1687, %v1702
      %v1708 = vmul.f32 %v1688, %v1702
      %v1709 = vmul.f32 %v1689, %v1702
      %v1710 = vmul.f32 %v1690, %v1702
      %v1711 = vmul.f32 %v1691, %v1702
      %v1712 = vmul.f32 %v1692, %v1702
      %v1713 = vmul.f32 %v1693, %v1702
      %v1714 = vmul.f32 %v1694, %v1702
      %v1715 = vmul.f32 %v1695, %v1702
      %v1716 = vmul.f32 %v1696, %v1702
      %v1717 = vmul.f32 %v1697, %v1702
      %v1718 = vmul.f32 %v1698, %v1702
      %v1719 = vadd.f32 %v1664, %v1703
      %v1720 = vadd.f32 %v1665, %v1704
      %v1721 = vadd.f32 %v1666, %v1705
      %v1722 = vadd.f32 %v1667, %v1706
      %v1723 = vadd.f32 %v1668, %v1707
      %v1724 = vadd.f32 %v1669, %v1708
      %v1725 = vadd.f32 %v1670, %v1709
      %v1726 = vadd.f32 %v1671, %v1710
      %v1727 = vadd.f32 %v1672, %v1711
      %v1728 = vadd.f32 %v1673, %v1712
      %v1729 = vadd.f32 %v1674, %v1713
      %v1730 = vadd.f32 %v1675, %v1714
      %v1731 = vadd.f32 %v1676, %v1715
      %v1732 = vadd.f32 %v1677, %v1716
      %v1733 = vadd.f32 %v1678, %v1717
      %v1734 = vadd.f32 %v1679, %v1718
      %v1735 = vmul.f32 %v911, %v1155
      %v1736 = vmul.f32 %v914, %v1156
      %v1737 = vmul.f32 %v919, %v1157
      %v1738 = vmul.f32 %v922, %v1158
      %v1739 = vmul.f32 %v927, %v1159
      %v1740 = vmul.f32 %v930, %v1160
      %v1741 = vmul.f32 %v935, %v1161
      %v1742 = vmul.f32 %v938, %v1162
      %v1743 = vmul.f32 %v943, %v1163
      %v1744 = vmul.f32 %v946, %v1164
      %v1745 = vmul.f32 %v951, %v1165
      %v1746 = vmul.f32 %v954, %v1166
      %v1747 = vmul.f32 %v959, %v1167
      %v1748 = vmul.f32 %v962, %v1168
      %v1749 = vmul.f32 %v967, %v1169
      %v1750 = vmul.f32 %v970, %v1170
      %v1751 = vlaneseq
      %v1752 = vshrl.u32 %v1751, 7
      %v1753 = vsub.s32 7, %v1752
      %v1754 = vrot.slane %v1299, %v1753
      %v1755 = vmul.f32 %v1735, %v1754
      %v1756 = vmul.f32 %v1736, %v1754
      %v1757 = vmul.f32 %v1737, %v1754
      %v1758 = vmul.f32 %v1738, %v1754
      %v1759 = vmul.f32 %v1739, %v1754
      %v1760 = vmul.f32 %v1740, %v1754
      %v1761 = vmul.f32 %v1741, %v1754
      %v1762 = vmul.f32 %v1742, %v1754
      %v1763 = vmul.f32 %v1743, %v1754
      %v1764 = vmul.f32 %v1744, %v1754
      %v1765 = vmul.f32 %v1745, %v1754
      %v1766 = vmul.f32 %v1746, %v1754
      %v1767 = vmul.f32 %v1747, %v1754
      %v1768 = vmul.f32 %v1748, %v1754
      %v1769 = vmul.f32 %v1749, %v1754
      %v1770 = vmul.f32 %v1750, %v1754
      %v1771 = vadd.f32 %v1719, %v1755
      %v1772 = vadd.f32 %v1720, %v1756
      %v1773 = vadd.f32 %v1721, %v1757
      %v1774 = vadd.f32 %v1722, %v1758
      %v1775 = vadd.f32 %v1723, %v1759
      %v1776 = vadd.f32 %v1724, %v1760
      %v1777 = vadd.f32 %v1725, %v1761
      %v1778 = vadd.f32 %v1726, %v1762
      %v1779 = vadd.f32 %v1727, %v1763
      %v1780 = vadd.f32 %v1728, %v1764
      %v1781 = vadd.f32 %v1729, %v1765
      %v1782 = vadd.f32 %v1730, %v1766
      %v1783 = vadd.f32 %v1731, %v1767
      %v1784 = vadd.f32 %v1732, %v1768
      %v1785 = vadd.f32 %v1733, %v1769
      %v1786 = vadd.f32 %v1734, %v1770
      %v1787 = vrot.slane %v970, 1
      %v1788 = vsel %vm1499, %v1625, %v1787
      %v1789 = vsel %vm1499, %v1787, %v1482
      %v1790 = vmul.f32 %v1511, %v1283
      %v1791 = vmul.f32 %v1510, %v1284
      %v1792 = vmul.f32 %v1509, %v1285
      %v1793 = vmul.f32 %v1508, %v1286
      %v1794 = vmul.f32 %v1507, %v1287
      %v1795 = vmul.f32 %v1506, %v1288
      %v1796 = vmul.f32 %v1505, %v1289
      %v1797 = vmul.f32 %v1504, %v1290
      %v1798 = vmul.f32 %v1503, %v1291
      %v1799 = vmul.f32 %v1502, %v1292
      %v1800 = vmul.f32 %v1501, %v1293
      %v1801 = vmul.f32 %v1500, %v1294
      %v1802 = vmul.f32 %v1627, %v1295
      %v1803 = vmul.f32 %v1626, %v1296
      %v1804 = vmul.f32 %v1788, %v1297
      %v1805 = vmul.f32 %v1789, %v1298
      %v1806 = vlaneseq
      %v1807 = vshrl.u32 %v1806, 7
      %v1808 = vsub.s32 0, %v1807
      %v1809 = vrot.slane %v1300, %v1808
      %v1810 = vmul.f32 %v1790, %v1809
      %v1811 = vmul.f32 %v1791, %v1809
      %v1812 = vmul.f32 %v1792, %v1809
      %v1813 = vmul.f32 %v1793, %v1809
      %v1814 = vmul.f32 %v1794, %v1809
      %v1815 = vmul.f32 %v1795, %v1809
      %v1816 = vmul.f32 %v1796, %v1809
      %v1817 = vmul.f32 %v1797, %v1809
      %v1818 = vmul.f32 %v1798, %v1809
      %v1819 = vmul.f32 %v1799, %v1809
      %v1820 = vmul.f32 %v1800, %v1809
      %v1821 = vmul.f32 %v1801, %v1809
      %v1822 = vmul.f32 %v1802, %v1809
      %v1823 = vmul.f32 %v1803, %v1809
      %v1824 = vmul.f32 %v1804, %v1809
      %v1825 = vmul.f32 %v1805, %v1809
      %v1826 = vadd.f32 %v1771, %v1810
      %v1827 = vadd.f32 %v1772, %v1811
      %v1828 = vadd.f32 %v1773, %v1812
      %v1829 = vadd.f32 %v1774, %v1813
      %v1830 = vadd.f32 %v1775, %v1814
      %v1831 = vadd.f32 %v1776, %v1815
      %v1832 = vadd.f32 %v1777, %v1816
      %v1833 = vadd.f32 %v1778, %v1817
      %v1834 = vadd.f32 %v1779, %v1818
      %v1835 = vadd.f32 %v1780, %v1819
      %v1836 = vadd.f32 %v1781, %v1820
      %v1837 = vadd.f32 %v1782, %v1821
      %v1838 = vadd.f32 %v1783, %v1822
      %v1839 = vadd.f32 %v1784, %v1823
      %v1840 = vadd.f32 %v1785, %v1824
      %v1841 = vadd.f32 %v1786, %v1825
      %v1842 = vsub.f32 0.0, %v1826
      %v1843 = vsub.f32 0.0, %v1827
      %v1844 = vsub.f32 0.0, %v1828
      %v1845 = vsub.f32 0.0, %v1829
      %v1846 = vsub.f32 0.0, %v1830
      %v1847 = vsub.f32 0.0, %v1831
      %v1848 = vsub.f32 0.0, %v1832
      %v1849 = vsub.f32 0.0, %v1833
      %v1850 = vsub.f32 0.0, %v1834
      %v1851 = vsub.f32 0.0, %v1835
      %v1852 = vsub.f32 0.0, %v1836
      %v1853 = vsub.f32 0.0, %v1837
      %v1854 = vsub.f32 0.0, %v1838
      %v1855 = vsub.f32 0.0, %v1839
      %v1856 = vsub.f32 0.0, %v1840
      %v1857 = vsub.f32 0.0, %v1841
      %v1858 = vmul.f32 %v1842, 1.442695
      %v1859 = vpow.pop %v1858
      %v1860 = vmul.f32 %v1843, 1.442695
      %v1861 = vpow.pop %v1860
      %v1862 = vmul.f32 %v1844, 1.442695
      %v1863 = vpow.pop %v1862
      %v1864 = vmul.f32 %v1845, 1.442695
      %v1865 = vpow.pop %v1864
      %v1866 = vmul.f32 %v1846, 1.442695
      %v1867 = vpow.pop %v1866
      %v1868 = vmul.f32 %v1847, 1.442695
      %v1869 = vpow.pop %v1868
      %v1870 = vmul.f32 %v1848, 1.442695
      %v1871 = vpow.pop %v1870
      %v1872 = vmul.f32 %v1849, 1.442695
      %v1873 = vpow.pop %v1872
      %v1874 = vmul.f32 %v1850, 1.442695
      %v1875 = vpow.pop %v1874
      %v1876 = vmul.f32 %v1851, 1.442695
      %v1877 = vpow.pop %v1876
      %v1878 = vmul.f32 %v1852, 1.442695
      %v1879 = vpow.pop %v1878
      %v1880 = vmul.f32 %v1853, 1.442695
      %v1881 = vpow.pop %v1880
      %v1882 = vmul.f32 %v1854, 1.442695
      %v1883 = vpow.pop %v1882
      %v1884 = vmul.f32 %v1855, 1.442695
      %v1885 = vpow.pop %v1884
      %v1886 = vmul.f32 %v1856, 1.442695
      %v1887 = vpow.pop %v1886
      %v1888 = vmul.f32 %v1857, 1.442695
      %v1889 = vpow.pop %v1888
      %v1890 = vadd.f32 %v1859, 1.0
      %v1891 = vadd.f32 %v1861, 1.0
      %v1892 = vadd.f32 %v1863, 1.0
      %v1893 = vadd.f32 %v1865, 1.0
      %v1894 = vadd.f32 %v1867, 1.0
      %v1895 = vadd.f32 %v1869, 1.0
      %v1896 = vadd.f32 %v1871, 1.0
      %v1897 = vadd.f32 %v1873, 1.0
      %v1898 = vadd.f32 %v1875, 1.0
      %v1899 = vadd.f32 %v1877, 1.0
      %v1900 = vadd.f32 %v1879, 1.0
      %v1901 = vadd.f32 %v1881, 1.0
      %v1902 = vadd.f32 %v1883, 1.0
      %v1903 = vadd.f32 %v1885, 1.0
      %v1904 = vadd.f32 %v1887, 1.0
      %v1905 = vadd.f32 %v1889, 1.0
      %v1906 = vrcp.pop %v1890
      %v1907 = vrcp.pop %v1891
      %v1908 = vrcp.pop %v1892
      %v1909 = vrcp.pop %v1893
      %v1910 = vrcp.pop %v1894
      %v1911 = vrcp.pop %v1895
      %v1912 = vrcp.pop %v1896
      %v1913 = vrcp.pop %v1897
      %v1914 = vrcp.pop %v1898
      %v1915 = vrcp.pop %v1899
      %v1916 = vrcp.pop %v1900
      %v1917 = vrcp.pop %v1901
      %v1918 = vrcp.pop %v1902
      %v1919 = vrcp.pop %v1903
      %v1920 = vrcp.pop %v1904
      %v1921 = vrcp.pop %v1905
      %v1922 = vmul.f32 %v1826, %v1906
      %v1923 = vmul.f32 %v1827, %v1907
      %v1924 = vmul.f32 %v1828, %v1908
      %v1925 = vmul.f32 %v1829, %v1909
      %v1926 = vmul.f32 %v1830, %v1910
      %v1927 = vmul.f32 %v1831, %v1911
      %v1928 = vmul.f32 %v1832, %v1912
      %v1929 = vmul.f32 %v1833, %v1913
      %v1930 = vmul.f32 %v1834, %v1914
      %v1931 = vmul.f32 %v1835, %v1915
      %v1932 = vmul.f32 %v1836, %v1916
      %v1933 = vmul.f32 %v1837, %v1917
      %v1934 = vmul.f32 %v1838, %v1918
      %v1935 = vmul.f32 %v1839, %v1919
      %v1936 = vmul.f32 %v1840, %v1920
      %v1937 = vmul.f32 %v1841, %v1921
      %v1938 = vld [vmem:[%s7] sm:$0x1]
      %v1940 = vlaneseq
      %v1941 = vshrl.u32 %v1940, 7
      %v1942 = vsub.s32 0, %v1941
      %v1943 = vrot.slane %v1938, %v1942
      %v1945 = vadd.f32 %v1922, %v1943
      %v1946 = vadd.f32 %v1923, %v1943
      %v1947 = vadd.f32 %v1924, %v1943
      %v1948 = vadd.f32 %v1925, %v1943
      %v1949 = vadd.f32 %v1926, %v1943
      %v1950 = vadd.f32 %v1927, %v1943
      %v1951 = vadd.f32 %v1928, %v1943
      %v1952 = vadd.f32 %v1929, %v1943
      %v1953 = vadd.f32 %v1930, %v1943
      %v1954 = vadd.f32 %v1931, %v1943
      %v1955 = vadd.f32 %v1932, %v1943
      %v1956 = vadd.f32 %v1933, %v1943
      %v1957 = vadd.f32 %v1934, %v1943
      %v1958 = vadd.f32 %v1935, %v1943
      %v1959 = vadd.f32 %v1936, %v1943
      %v1960 = vadd.f32 %v1937, %v1943
      %v1961 = vpack.c.bf16 %v1946, %v1945
      %v1962 = vpack.c.bf16 %v1948, %v1947
      %v1963 = vpack.c.bf16 %v1950, %v1949
      %v1964 = vpack.c.bf16 %v1952, %v1951
      %v1965 = vpack.c.bf16 %v1954, %v1953
      %v1966 = vpack.c.bf16 %v1956, %v1955
      %v1967 = vpack.c.bf16 %v1958, %v1957
      %v1968 = vpack.c.bf16 %v1960, %v1959
      %v1969 = vld [vmem:[%s8] sm:$0xf]
      %vm1970 = vcmask 64512
      %v1972 = vsel %vm1970, %v1961, 0
      %v1975 = vsel %vm1970, %v1962, 0
      %v1978 = vsel %vm1970, %v1963, 0
      %v1981 = vsel %vm1970, %v1964, 0
      %v1984 = vsel %vm1970, %v1965, 0
      %v1987 = vsel %vm1970, %v1966, 0
      %v1990 = vsel %vm1970, %v1967, 0
      %v1993 = vsel %vm1970, %v1968, 0
      %vm1995 = vcmask 1043456
      %v1997 = vsel %vm1995, %v1969, 0
      %1999 = vmatprep.subr.bf16.mxu0 0
      %2000 = vmatpush1.bf16.msra.mxu0 %v1997
      %2001 = vmatprep.subr.bf16.mxu0 0
      %2002 = vmatpush1.bf16.msra.mxu0 0
      %2003 = vmatprep.subr.bf16.mxu0 0
      %2004 = vmatpush1.bf16.msra.mxu0 0
      %2005 = vmatprep.subr.bf16.mxu0 0
      %2006 = vmatpush1.bf16.msra.mxu0 0
      %2007 = vmatprep.subr.bf16.mxu0 0
      %2008 = vmatpush1.bf16.msra.mxu0 0
      %2009 = vmatprep.subr.bf16.mxu0 0
      %2010 = vmatpush1.bf16.msra.mxu0 0
      %2011 = vmatprep.subr.bf16.mxu0 0
      %2012 = vmatpush1.bf16.msra.mxu0 0
      %2013 = vmatprep.subr.bf16.mxu0 0
      %2014 = vmatpush1.bf16.msra.mxu0 0
      %2015 = vmatprep.subr.bf16.mxu0 0
      %2016 = vmatpush1.bf16.msra.mxu0 0
      %2017 = vmatprep.subr.bf16.mxu0 0
      %2018 = vmatpush1.bf16.msra.mxu0 0
      %2019 = vmatprep.subr.bf16.mxu0 0
      %2020 = vmatpush1.bf16.msra.mxu0 0
      %2021 = vmatprep.subr.bf16.mxu0 0
      %2022 = vmatpush1.bf16.msra.mxu0 0
      %2023 = vmatprep.subr.bf16.mxu0 0
      %2024 = vmatpush1.bf16.msra.mxu0 0
      %2025 = vmatprep.subr.bf16.mxu0 0
      %2026 = vmatpush1.bf16.msra.mxu0 0
      %2027 = vmatprep.subr.bf16.mxu0 0
      %2028 = vmatpush1.bf16.msra.mxu0 0
      %2029 = vmatprep.subr.bf16.mxu0 0
      %2030 = vmatpush1.bf16.msra.mxu0 0
      %2031 = vmatprep.mubr.bf16.mxu0 0
      %2032 = vmatmul.mubr.bf16.gmra.mrb[0].mxu0 %v1972
      %v2033 = vpop.f32.mrb[0].mxu0
      %v2034 = vadd.f32 0.0, %v2033
      %v2035 = vpop.f32.mrb[0].mxu0
      %v2036 = vpop.f32.mrb[0].mxu0
      %v2037 = vadd.f32 0.0, %v2036
      %v2038 = vpop.f32.mrb[0].mxu0
      %2039 = vmatprep.mubr.bf16.mxu0 0
      %2040 = vmatmul.mubr.bf16.gmra.mrb[0].mxu0 %v1975
      %v2041 = vpop.f32.mrb[0].mxu0
      %v2042 = vadd.f32 0.0, %v2041
      %v2043 = vpop.f32.mrb[0].mxu0
      %v2044 = vpop.f32.mrb[0].mxu0
      %v2045 = vadd.f32 0.0, %v2044
      %v2046 = vpop.f32.mrb[0].mxu0
      %2047 = vmatprep.mubr.bf16.mxu0 0
      %2048 = vmatmul.mubr.bf16.gmra.mrb[0].mxu0 %v1978
      %v2049 = vpop.f32.mrb[0].mxu0
      %v2050 = vadd.f32 0.0, %v2049
      %v2051 = vpop.f32.mrb[0].mxu0
      %v2052 = vpop.f32.mrb[0].mxu0
      %v2053 = vadd.f32 0.0, %v2052
      %v2054 = vpop.f32.mrb[0].mxu0
      %2055 = vmatprep.mubr.bf16.mxu0 0
      %2056 = vmatmul.mubr.bf16.gmra.mrb[0].mxu0 %v1981
      %v2057 = vpop.f32.mrb[0].mxu0
      %v2058 = vadd.f32 0.0, %v2057
      %v2059 = vpop.f32.mrb[0].mxu0
      %v2060 = vpop.f32.mrb[0].mxu0
      %v2061 = vadd.f32 0.0, %v2060
      %v2062 = vpop.f32.mrb[0].mxu0
      %2063 = vmatprep.mubr.bf16.mxu0 0
      %2064 = vmatmul.mubr.bf16.gmra.mrb[0].mxu0 %v1984
      %v2065 = vpop.f32.mrb[0].mxu0
      %v2066 = vadd.f32 0.0, %v2065
      %v2067 = vpop.f32.mrb[0].mxu0
      %v2068 = vpop.f32.mrb[0].mxu0
      %v2069 = vadd.f32 0.0, %v2068
      %v2070 = vpop.f32.mrb[0].mxu0
      %2071 = vmatprep.mubr.bf16.mxu0 0
      %2072 = vmatmul.mubr.bf16.gmra.mrb[0].mxu0 %v1987
      %v2073 = vpop.f32.mrb[0].mxu0
      %v2074 = vadd.f32 0.0, %v2073
      %v2075 = vpop.f32.mrb[0].mxu0
      %v2076 = vpop.f32.mrb[0].mxu0
      %v2077 = vadd.f32 0.0, %v2076
      %v2078 = vpop.f32.mrb[0].mxu0
      %2079 = vmatprep.mubr.bf16.mxu0 0
      %2080 = vmatmul.mubr.bf16.gmra.mrb[0].mxu0 %v1990
      %v2081 = vpop.f32.mrb[0].mxu0
      %v2082 = vadd.f32 0.0, %v2081
      %v2083 = vpop.f32.mrb[0].mxu0
      %v2084 = vpop.f32.mrb[0].mxu0
      %v2085 = vadd.f32 0.0, %v2084
      %v2086 = vpop.f32.mrb[0].mxu0
      %2087 = vmatprep.mubr.bf16.mxu0 0
      %2088 = vmatmul.mubr.bf16.gmra.mrb[0].mxu0 %v1993
      %v2089 = vpop.f32.mrb[0].mxu0
      %v2090 = vadd.f32 0.0, %v2089
      %v2091 = vpop.f32.mrb[0].mxu0
      %v2092 = vpop.f32.mrb[0].mxu0
      %v2093 = vadd.f32 0.0, %v2092
      %v2094 = vpop.f32.mrb[0].mxu0
      %2095 = vdwg.mxu0
      %v2096 = vsub.f32 0.0, %v2034
      %v2097 = vsub.f32 0.0, %v2037
      %v2098 = vsub.f32 0.0, %v2042
      %v2099 = vsub.f32 0.0, %v2045
      %v2100 = vsub.f32 0.0, %v2050
      %v2101 = vsub.f32 0.0, %v2053
      %v2102 = vsub.f32 0.0, %v2058
      %v2103 = vsub.f32 0.0, %v2061
      %v2104 = vsub.f32 0.0, %v2066
      %v2105 = vsub.f32 0.0, %v2069
      %v2106 = vsub.f32 0.0, %v2074
      %v2107 = vsub.f32 0.0, %v2077
      %v2108 = vsub.f32 0.0, %v2082
      %v2109 = vsub.f32 0.0, %v2085
      %v2110 = vsub.f32 0.0, %v2090
      %v2111 = vsub.f32 0.0, %v2093
      %v2112 = vmul.f32 %v2096, 1.442695
      %v2113 = vpow.pop %v2112
      %v2114 = vmul.f32 %v2097, 1.442695
      %v2115 = vpow.pop %v2114
      %v2116 = vmul.f32 %v2098, 1.442695
      %v2117 = vpow.pop %v2116
      %v2118 = vmul.f32 %v2099, 1.442695
      %v2119 = vpow.pop %v2118
      %v2120 = vmul.f32 %v2100, 1.442695
      %v2121 = vpow.pop %v2120
      %v2122 = vmul.f32 %v2101, 1.442695
      %v2123 = vpow.pop %v2122
      %v2124 = vmul.f32 %v2102, 1.442695
      %v2125 = vpow.pop %v2124
      %v2126 = vmul.f32 %v2103, 1.442695
      %v2127 = vpow.pop %v2126
      %v2128 = vmul.f32 %v2104, 1.442695
      %v2129 = vpow.pop %v2128
      %v2130 = vmul.f32 %v2105, 1.442695
      %v2131 = vpow.pop %v2130
      %v2132 = vmul.f32 %v2106, 1.442695
      %v2133 = vpow.pop %v2132
      %v2134 = vmul.f32 %v2107, 1.442695
      %v2135 = vpow.pop %v2134
      %v2136 = vmul.f32 %v2108, 1.442695
      %v2137 = vpow.pop %v2136
      %v2138 = vmul.f32 %v2109, 1.442695
      %v2139 = vpow.pop %v2138
      %v2140 = vmul.f32 %v2110, 1.442695
      %v2141 = vpow.pop %v2140
      %v2142 = vmul.f32 %v2111, 1.442695
      %v2143 = vpow.pop %v2142
      %v2144 = vadd.f32 %v2113, 1.0
      %v2145 = vadd.f32 %v2115, 1.0
      %v2146 = vadd.f32 %v2117, 1.0
      %v2147 = vadd.f32 %v2119, 1.0
      %v2148 = vadd.f32 %v2121, 1.0
      %v2149 = vadd.f32 %v2123, 1.0
      %v2150 = vadd.f32 %v2125, 1.0
      %v2151 = vadd.f32 %v2127, 1.0
      %v2152 = vadd.f32 %v2129, 1.0
      %v2153 = vadd.f32 %v2131, 1.0
      %v2154 = vadd.f32 %v2133, 1.0
      %v2155 = vadd.f32 %v2135, 1.0
      %v2156 = vadd.f32 %v2137, 1.0
      %v2157 = vadd.f32 %v2139, 1.0
      %v2158 = vadd.f32 %v2141, 1.0
      %v2159 = vadd.f32 %v2143, 1.0
      %v2160 = vrcp.pop %v2144
      %v2161 = vrcp.pop %v2145
      %v2162 = vrcp.pop %v2146
      %v2163 = vrcp.pop %v2147
      %v2164 = vrcp.pop %v2148
      %v2165 = vrcp.pop %v2149
      %v2166 = vrcp.pop %v2150
      %v2167 = vrcp.pop %v2151
      %v2168 = vrcp.pop %v2152
      %v2169 = vrcp.pop %v2153
      %v2170 = vrcp.pop %v2154
      %v2171 = vrcp.pop %v2155
      %v2172 = vrcp.pop %v2156
      %v2173 = vrcp.pop %v2157
      %v2174 = vrcp.pop %v2158
      %v2175 = vrcp.pop %v2159
      %v2176 = vmul.f32 %v2034, %v2160
      %v2177 = vmul.f32 %v2037, %v2161
      %v2178 = vmul.f32 %v2042, %v2162
      %v2179 = vmul.f32 %v2045, %v2163
      %v2180 = vmul.f32 %v2050, %v2164
      %v2181 = vmul.f32 %v2053, %v2165
      %v2182 = vmul.f32 %v2058, %v2166
      %v2183 = vmul.f32 %v2061, %v2167
      %v2184 = vmul.f32 %v2066, %v2168
      %v2185 = vmul.f32 %v2069, %v2169
      %v2186 = vmul.f32 %v2074, %v2170
      %v2187 = vmul.f32 %v2077, %v2171
      %v2188 = vmul.f32 %v2082, %v2172
      %v2189 = vmul.f32 %v2085, %v2173
      %v2190 = vmul.f32 %v2090, %v2174
      %v2191 = vmul.f32 %v2093, %v2175
      %v2192 = vpack.c.bf16 %v2177, %v2176
      %v2193 = vpack.c.bf16 %v2179, %v2178
      %v2194 = vpack.c.bf16 %v2181, %v2180
      %v2195 = vpack.c.bf16 %v2183, %v2182
      %v2196 = vpack.c.bf16 %v2185, %v2184
      %v2197 = vpack.c.bf16 %v2187, %v2186
      %v2198 = vpack.c.bf16 %v2189, %v2188
      %v2199 = vpack.c.bf16 %v2191, %v2190
      %v2200 = vld [vmem:[%s9] sm:$0xf]
      %v2202 = vsel %vm1970, %v2192, 0
      %v2205 = vsel %vm1970, %v2193, 0
      %v2208 = vsel %vm1970, %v2194, 0
      %v2211 = vsel %vm1970, %v2195, 0
      %v2214 = vsel %vm1970, %v2196, 0
      %v2217 = vsel %vm1970, %v2197, 0
      %v2220 = vsel %vm1970, %v2198, 0
      %v2223 = vsel %vm1970, %v2199, 0
      %v2226 = vsel %vm1995, %v2200, 0
      %2228 = vmatprep.subr.bf16.mxu0 0
      %2229 = vmatpush1.bf16.msra.mxu0 %v2226
      %2230 = vmatprep.subr.bf16.mxu0 0
      %2231 = vmatpush1.bf16.msra.mxu0 0
      %2232 = vmatprep.subr.bf16.mxu0 0
      %2233 = vmatpush1.bf16.msra.mxu0 0
      %2234 = vmatprep.subr.bf16.mxu0 0
      %2235 = vmatpush1.bf16.msra.mxu0 0
      %2236 = vmatprep.subr.bf16.mxu0 0
      %2237 = vmatpush1.bf16.msra.mxu0 0
      %2238 = vmatprep.subr.bf16.mxu0 0
      %2239 = vmatpush1.bf16.msra.mxu0 0
      %2240 = vmatprep.subr.bf16.mxu0 0
      %2241 = vmatpush1.bf16.msra.mxu0 0
      %2242 = vmatprep.subr.bf16.mxu0 0
      %2243 = vmatpush1.bf16.msra.mxu0 0
      %2244 = vmatprep.subr.bf16.mxu0 0
      %2245 = vmatpush1.bf16.msra.mxu0 0
      %2246 = vmatprep.subr.bf16.mxu0 0
      %2247 = vmatpush1.bf16.msra.mxu0 0
      %2248 = vmatprep.subr.bf16.mxu0 0
      %2249 = vmatpush1.bf16.msra.mxu0 0
      %2250 = vmatprep.subr.bf16.mxu0 0
      %2251 = vmatpush1.bf16.msra.mxu0 0
      %2252 = vmatprep.subr.bf16.mxu0 0
      %2253 = vmatpush1.bf16.msra.mxu0 0
      %2254 = vmatprep.subr.bf16.mxu0 0
      %2255 = vmatpush1.bf16.msra.mxu0 0
      %2256 = vmatprep.subr.bf16.mxu0 0
      %2257 = vmatpush1.bf16.msra.mxu0 0
      %2258 = vmatprep.subr.bf16.mxu0 0
      %2259 = vmatpush1.bf16.msra.mxu0 0
      %2260 = vmatprep.mubr.bf16.mxu0 0
      %2261 = vmatmul.mubr.bf16.gmra.mrb[0].mxu0 %v2202
      %v2262 = vpop.f32.mrb[0].mxu0
      %v2263 = vadd.f32 0.0, %v2262
      %v2264 = vpop.f32.mrb[0].mxu0
      %v2265 = vpop.f32.mrb[0].mxu0
      %v2266 = vadd.f32 0.0, %v2265
      %v2267 = vpop.f32.mrb[0].mxu0
      %2268 = vmatprep.mubr.bf16.mxu0 0
      %2269 = vmatmul.mubr.bf16.gmra.mrb[0].mxu0 %v2205
      %v2270 = vpop.f32.mrb[0].mxu0
      %v2271 = vadd.f32 0.0, %v2270
      %v2272 = vpop.f32.mrb[0].mxu0
      %v2273 = vpop.f32.mrb[0].mxu0
      %v2274 = vadd.f32 0.0, %v2273
      %v2275 = vpop.f32.mrb[0].mxu0
      %2276 = vmatprep.mubr.bf16.mxu0 0
      %2277 = vmatmul.mubr.bf16.gmra.mrb[0].mxu0 %v2208
      %v2278 = vpop.f32.mrb[0].mxu0
      %v2279 = vadd.f32 0.0, %v2278
      %v2280 = vpop.f32.mrb[0].mxu0
      %v2281 = vpop.f32.mrb[0].mxu0
      %v2282 = vadd.f32 0.0, %v2281
      %v2283 = vpop.f32.mrb[0].mxu0
      %2284 = vmatprep.mubr.bf16.mxu0 0
      %2285 = vmatmul.mubr.bf16.gmra.mrb[0].mxu0 %v2211
      %v2286 = vpop.f32.mrb[0].mxu0
      %v2287 = vadd.f32 0.0, %v2286
      %v2288 = vpop.f32.mrb[0].mxu0
      %v2289 = vpop.f32.mrb[0].mxu0
      %v2290 = vadd.f32 0.0, %v2289
      %v2291 = vpop.f32.mrb[0].mxu0
      %2292 = vmatprep.mubr.bf16.mxu0 0
      %2293 = vmatmul.mubr.bf16.gmra.mrb[0].mxu0 %v2214
      %v2294 = vpop.f32.mrb[0].mxu0
      %v2295 = vadd.f32 0.0, %v2294
      %v2296 = vpop.f32.mrb[0].mxu0
      %v2297 = vpop.f32.mrb[0].mxu0
      %v2298 = vadd.f32 0.0, %v2297
      %v2299 = vpop.f32.mrb[0].mxu0
      %2300 = vmatprep.mubr.bf16.mxu0 0
      %2301 = vmatmul.mubr.bf16.gmra.mrb[0].mxu0 %v2217
      %v2302 = vpop.f32.mrb[0].mxu0
      %v2303 = vadd.f32 0.0, %v2302
      %v2304 = vpop.f32.mrb[0].mxu0
      %v2305 = vpop.f32.mrb[0].mxu0
      %v2306 = vadd.f32 0.0, %v2305
      %v2307 = vpop.f32.mrb[0].mxu0
      %2308 = vmatprep.mubr.bf16.mxu0 0
      %2309 = vmatmul.mubr.bf16.gmra.mrb[0].mxu0 %v2220
      %v2310 = vpop.f32.mrb[0].mxu0
      %v2311 = vadd.f32 0.0, %v2310
      %v2312 = vpop.f32.mrb[0].mxu0
      %v2313 = vpop.f32.mrb[0].mxu0
      %v2314 = vadd.f32 0.0, %v2313
      %v2315 = vpop.f32.mrb[0].mxu0
      %2316 = vmatprep.mubr.bf16.mxu0 0
      %2317 = vmatmul.mubr.bf16.gmra.mrb[0].mxu0 %v2223
      %v2318 = vpop.f32.mrb[0].mxu0
      %v2319 = vadd.f32 0.0, %v2318
      %v2320 = vpop.f32.mrb[0].mxu0
      %v2321 = vpop.f32.mrb[0].mxu0
      %v2322 = vadd.f32 0.0, %v2321
      %v2323 = vpop.f32.mrb[0].mxu0
      %2324 = vdwg.mxu0
      %v2325 = vsel %vm1970, %v2263, 0.0
      %2326 = vadd.xlane.f32.xlu0 %v2325
      %v2327 = vpop.xlane.xlu0 %2326
      %v2328 = vsel %vm1970, %v2266, 0.0
      %2329 = vadd.xlane.f32.xlu0 %v2328
      %v2330 = vpop.xlane.xlu0 %2329
      %v2331 = vsel %vm1970, %v2271, 0.0
      %2332 = vadd.xlane.f32.xlu0 %v2331
      %v2333 = vpop.xlane.xlu0 %2332
      %v2334 = vsel %vm1970, %v2274, 0.0
      %2335 = vadd.xlane.f32.xlu0 %v2334
      %v2336 = vpop.xlane.xlu0 %2335
      %v2337 = vsel %vm1970, %v2279, 0.0
      %2338 = vadd.xlane.f32.xlu0 %v2337
      %v2339 = vpop.xlane.xlu0 %2338
      %v2340 = vsel %vm1970, %v2282, 0.0
      %2341 = vadd.xlane.f32.xlu0 %v2340
      %v2342 = vpop.xlane.xlu0 %2341
      %v2343 = vsel %vm1970, %v2287, 0.0
      %2344 = vadd.xlane.f32.xlu0 %v2343
      %v2345 = vpop.xlane.xlu0 %2344
      %v2346 = vsel %vm1970, %v2290, 0.0
      %2347 = vadd.xlane.f32.xlu0 %v2346
      %v2348 = vpop.xlane.xlu0 %2347
      %v2349 = vsel %vm1970, %v2295, 0.0
      %2350 = vadd.xlane.f32.xlu0 %v2349
      %v2351 = vpop.xlane.xlu0 %2350
      %v2352 = vsel %vm1970, %v2298, 0.0
      %2353 = vadd.xlane.f32.xlu0 %v2352
      %v2354 = vpop.xlane.xlu0 %2353
      %v2355 = vsel %vm1970, %v2303, 0.0
      %2356 = vadd.xlane.f32.xlu0 %v2355
      %v2357 = vpop.xlane.xlu0 %2356
      %v2358 = vsel %vm1970, %v2306, 0.0
      %2359 = vadd.xlane.f32.xlu0 %v2358
      %v2360 = vpop.xlane.xlu0 %2359
      %v2361 = vsel %vm1970, %v2311, 0.0
      %2362 = vadd.xlane.f32.xlu0 %v2361
      %v2363 = vpop.xlane.xlu0 %2362
      %v2364 = vsel %vm1970, %v2314, 0.0
      %2365 = vadd.xlane.f32.xlu0 %v2364
      %v2366 = vpop.xlane.xlu0 %2365
      %v2367 = vsel %vm1970, %v2319, 0.0
      %2368 = vadd.xlane.f32.xlu0 %v2367
      %v2369 = vpop.xlane.xlu0 %2368
      %v2370 = vsel %vm1970, %v2322, 0.0
      %2371 = vadd.xlane.f32.xlu0 %v2370
      %v2372 = vpop.xlane.xlu0 %2371
      %v2373 = vrcp.pop 8.0
      %v2374 = vmul.f32 %v2327, %v2373
      %v2375 = vmul.f32 %v2330, %v2373
      %v2376 = vmul.f32 %v2333, %v2373
      %v2377 = vmul.f32 %v2336, %v2373
      %v2378 = vmul.f32 %v2339, %v2373
      %v2379 = vmul.f32 %v2342, %v2373
      %v2380 = vmul.f32 %v2345, %v2373
      %v2381 = vmul.f32 %v2348, %v2373
      %v2382 = vmul.f32 %v2351, %v2373
      %v2383 = vmul.f32 %v2354, %v2373
      %v2384 = vmul.f32 %v2357, %v2373
      %v2385 = vmul.f32 %v2360, %v2373
      %v2386 = vmul.f32 %v2363, %v2373
      %v2387 = vmul.f32 %v2366, %v2373
      %v2388 = vmul.f32 %v2369, %v2373
      %v2389 = vmul.f32 %v2372, %v2373
      %v2390 = vsub.f32 %v2263, %v2374
      %v2391 = vsub.f32 %v2266, %v2375
      %v2392 = vsub.f32 %v2271, %v2376
      %v2393 = vsub.f32 %v2274, %v2377
      %v2394 = vsub.f32 %v2279, %v2378
      %v2395 = vsub.f32 %v2282, %v2379
      %v2396 = vsub.f32 %v2287, %v2380
      %v2397 = vsub.f32 %v2290, %v2381
      %v2398 = vsub.f32 %v2295, %v2382
      %v2399 = vsub.f32 %v2298, %v2383
      %v2400 = vsub.f32 %v2303, %v2384
      %v2401 = vsub.f32 %v2306, %v2385
      %v2402 = vsub.f32 %v2311, %v2386
      %v2403 = vsub.f32 %v2314, %v2387
      %v2404 = vsub.f32 %v2319, %v2388
      %v2405 = vsub.f32 %v2322, %v2389
      %v2406 = vmul.f32 %v2390, %v2390
      %v2407 = vmul.f32 %v2391, %v2391
      %v2408 = vmul.f32 %v2392, %v2392
      %v2409 = vmul.f32 %v2393, %v2393
      %v2410 = vmul.f32 %v2394, %v2394
      %v2411 = vmul.f32 %v2395, %v2395
      %v2412 = vmul.f32 %v2396, %v2396
      %v2413 = vmul.f32 %v2397, %v2397
      %v2414 = vmul.f32 %v2398, %v2398
      %v2415 = vmul.f32 %v2399, %v2399
      %v2416 = vmul.f32 %v2400, %v2400
      %v2417 = vmul.f32 %v2401, %v2401
      %v2418 = vmul.f32 %v2402, %v2402
      %v2419 = vmul.f32 %v2403, %v2403
      %v2420 = vmul.f32 %v2404, %v2404
      %v2421 = vmul.f32 %v2405, %v2405
      %v2422 = vsel %vm1970, %v2406, 0.0
      %2423 = vadd.xlane.f32.xlu0 %v2422
      %v2424 = vpop.xlane.xlu0 %2423
      %v2425 = vsel %vm1970, %v2407, 0.0
      %2426 = vadd.xlane.f32.xlu0 %v2425
      %v2427 = vpop.xlane.xlu0 %2426
      %v2428 = vsel %vm1970, %v2408, 0.0
      %2429 = vadd.xlane.f32.xlu0 %v2428
      %v2430 = vpop.xlane.xlu0 %2429
      %v2431 = vsel %vm1970, %v2409, 0.0
      %2432 = vadd.xlane.f32.xlu0 %v2431
      %v2433 = vpop.xlane.xlu0 %2432
      %v2434 = vsel %vm1970, %v2410, 0.0
      %2435 = vadd.xlane.f32.xlu0 %v2434
      %v2436 = vpop.xlane.xlu0 %2435
      %v2437 = vsel %vm1970, %v2411, 0.0
      %2438 = vadd.xlane.f32.xlu0 %v2437
      %v2439 = vpop.xlane.xlu0 %2438
      %v2440 = vsel %vm1970, %v2412, 0.0
      %2441 = vadd.xlane.f32.xlu0 %v2440
      %v2442 = vpop.xlane.xlu0 %2441
      %v2443 = vsel %vm1970, %v2413, 0.0
      %2444 = vadd.xlane.f32.xlu0 %v2443
      %v2445 = vpop.xlane.xlu0 %2444
      %v2446 = vsel %vm1970, %v2414, 0.0
      %2447 = vadd.xlane.f32.xlu0 %v2446
      %v2448 = vpop.xlane.xlu0 %2447
      %v2449 = vsel %vm1970, %v2415, 0.0
      %2450 = vadd.xlane.f32.xlu0 %v2449
      %v2451 = vpop.xlane.xlu0 %2450
      %v2452 = vsel %vm1970, %v2416, 0.0
      %2453 = vadd.xlane.f32.xlu0 %v2452
      %v2454 = vpop.xlane.xlu0 %2453
      %v2455 = vsel %vm1970, %v2417, 0.0
      %2456 = vadd.xlane.f32.xlu0 %v2455
      %v2457 = vpop.xlane.xlu0 %2456
      %v2458 = vsel %vm1970, %v2418, 0.0
      %2459 = vadd.xlane.f32.xlu0 %v2458
      %v2460 = vpop.xlane.xlu0 %2459
      %v2461 = vsel %vm1970, %v2419, 0.0
      %2462 = vadd.xlane.f32.xlu0 %v2461
      %v2463 = vpop.xlane.xlu0 %2462
      %v2464 = vsel %vm1970, %v2420, 0.0
      %2465 = vadd.xlane.f32.xlu0 %v2464
      %v2466 = vpop.xlane.xlu0 %2465
      %v2467 = vsel %vm1970, %v2421, 0.0
      %2468 = vadd.xlane.f32.xlu0 %v2467
      %v2469 = vpop.xlane.xlu0 %2468
      %v2470 = vmul.f32 %v2424, %v2373
      %v2471 = vmul.f32 %v2427, %v2373
      %v2472 = vmul.f32 %v2430, %v2373
      %v2473 = vmul.f32 %v2433, %v2373
      %v2474 = vmul.f32 %v2436, %v2373
      %v2475 = vmul.f32 %v2439, %v2373
      %v2476 = vmul.f32 %v2442, %v2373
      %v2477 = vmul.f32 %v2445, %v2373
      %v2478 = vmul.f32 %v2448, %v2373
      %v2479 = vmul.f32 %v2451, %v2373
      %v2480 = vmul.f32 %v2454, %v2373
      %v2481 = vmul.f32 %v2457, %v2373
      %v2482 = vmul.f32 %v2460, %v2373
      %v2483 = vmul.f32 %v2463, %v2373
      %v2484 = vmul.f32 %v2466, %v2373
      %v2485 = vmul.f32 %v2469, %v2373
      %v2486 = vadd.f32 %v2470, 1e-05
      %v2487 = vadd.f32 %v2471, 1e-05
      %v2488 = vadd.f32 %v2472, 1e-05
      %v2489 = vadd.f32 %v2473, 1e-05
      %v2490 = vadd.f32 %v2474, 1e-05
      %v2491 = vadd.f32 %v2475, 1e-05
      %v2492 = vadd.f32 %v2476, 1e-05
      %v2493 = vadd.f32 %v2477, 1e-05
      %v2494 = vadd.f32 %v2478, 1e-05
      %v2495 = vadd.f32 %v2479, 1e-05
      %v2496 = vadd.f32 %v2480, 1e-05
      %v2497 = vadd.f32 %v2481, 1e-05
      %v2498 = vadd.f32 %v2482, 1e-05
      %v2499 = vadd.f32 %v2483, 1e-05
      %v2500 = vadd.f32 %v2484, 1e-05
      %v2501 = vadd.f32 %v2485, 1e-05
      %v2502 = vrsqrt.pop %v2486
      %v2503 = vrsqrt.pop %v2487
      %v2504 = vrsqrt.pop %v2488
      %v2505 = vrsqrt.pop %v2489
      %v2506 = vrsqrt.pop %v2490
      %v2507 = vrsqrt.pop %v2491
      %v2508 = vrsqrt.pop %v2492
      %v2509 = vrsqrt.pop %v2493
      %v2510 = vrsqrt.pop %v2494
      %v2511 = vrsqrt.pop %v2495
      %v2512 = vrsqrt.pop %v2496
      %v2513 = vrsqrt.pop %v2497
      %v2514 = vrsqrt.pop %v2498
      %v2515 = vrsqrt.pop %v2499
      %v2516 = vrsqrt.pop %v2500
      %v2517 = vrsqrt.pop %v2501
      %v2518 = vmul.f32 %v2390, %v2502
      %v2519 = vmul.f32 %v2391, %v2503
      %v2520 = vmul.f32 %v2392, %v2504
      %v2521 = vmul.f32 %v2393, %v2505
      %v2522 = vmul.f32 %v2394, %v2506
      %v2523 = vmul.f32 %v2395, %v2507
      %v2524 = vmul.f32 %v2396, %v2508
      %v2525 = vmul.f32 %v2397, %v2509
      %v2526 = vmul.f32 %v2398, %v2510
      %v2527 = vmul.f32 %v2399, %v2511
      %v2528 = vmul.f32 %v2400, %v2512
      %v2529 = vmul.f32 %v2401, %v2513
      %v2530 = vmul.f32 %v2402, %v2514
      %v2531 = vmul.f32 %v2403, %v2515
      %v2532 = vmul.f32 %v2404, %v2516
      %v2533 = vmul.f32 %v2405, %v2517
      %v2534 = vld [vmem:[%s10] sm:$0x1]
      %v2536 = vlaneseq
      %v2537 = vshrl.u32 %v2536, 7
      %v2538 = vsub.s32 0, %v2537
      %v2539 = vrot.slane %v2534, %v2538
      %v2541 = vmul.f32 %v2518, %v2539
      %v2542 = vmul.f32 %v2519, %v2539
      %v2543 = vmul.f32 %v2520, %v2539
      %v2544 = vmul.f32 %v2521, %v2539
      %v2545 = vmul.f32 %v2522, %v2539
      %v2546 = vmul.f32 %v2523, %v2539
      %v2547 = vmul.f32 %v2524, %v2539
      %v2548 = vmul.f32 %v2525, %v2539
      %v2549 = vmul.f32 %v2526, %v2539
      %v2550 = vmul.f32 %v2527, %v2539
      %v2551 = vmul.f32 %v2528, %v2539
      %v2552 = vmul.f32 %v2529, %v2539
      %v2553 = vmul.f32 %v2530, %v2539
      %v2554 = vmul.f32 %v2531, %v2539
      %v2555 = vmul.f32 %v2532, %v2539
      %v2556 = vmul.f32 %v2533, %v2539
      %v2557 = vld [vmem:[%s11] sm:$0x1]
      %v2559 = vlaneseq
      %v2560 = vshrl.u32 %v2559, 7
      %v2561 = vsub.s32 0, %v2560
      %v2562 = vrot.slane %v2557, %v2561
      %v2564 = vadd.f32 %v2541, %v2562
      %v2565 = vadd.f32 %v2542, %v2562
      %v2566 = vadd.f32 %v2543, %v2562
      %v2567 = vadd.f32 %v2544, %v2562
      %v2568 = vadd.f32 %v2545, %v2562
      %v2569 = vadd.f32 %v2546, %v2562
      %v2570 = vadd.f32 %v2547, %v2562
      %v2571 = vadd.f32 %v2548, %v2562
      %v2572 = vadd.f32 %v2549, %v2562
      %v2573 = vadd.f32 %v2550, %v2562
      %v2574 = vadd.f32 %v2551, %v2562
      %v2575 = vadd.f32 %v2552, %v2562
      %v2576 = vadd.f32 %v2553, %v2562
      %v2577 = vadd.f32 %v2554, %v2562
      %v2578 = vadd.f32 %v2555, %v2562
      %v2579 = vadd.f32 %v2556, %v2562
      %v2580 = vld [vmem:[%s4] sm:$0x3]
      %v2582 = vsel %vm856, %v2580, 0
      %2584 = vmatprep.subr.bf16.mxu0 0
      %2585 = vmatpush1.bf16.msra.mxu0 %v2582
      %2586 = vmatprep.subr.bf16.mxu0 0
      %2587 = vmatpush1.bf16.msra.mxu0 0
      %2588 = vmatprep.subr.bf16.mxu0 0
      %2589 = vmatpush1.bf16.msra.mxu0 0
      %2590 = vmatprep.subr.bf16.mxu0 0
      %2591 = vmatpush1.bf16.msra.mxu0 0
      %2592 = vmatprep.subr.bf16.mxu0 0
      %2593 = vmatpush1.bf16.msra.mxu0 0
      %2594 = vmatprep.subr.bf16.mxu0 0
      %2595 = vmatpush1.bf16.msra.mxu0 0
      %2596 = vmatprep.subr.bf16.mxu0 0
      %2597 = vmatpush1.bf16.msra.mxu0 0
      %2598 = vmatprep.subr.bf16.mxu0 0
      %2599 = vmatpush1.bf16.msra.mxu0 0
      %2600 = vmatprep.subr.bf16.mxu0 0
      %2601 = vmatpush1.bf16.msra.mxu0 0
      %2602 = vmatprep.subr.bf16.mxu0 0
      %2603 = vmatpush1.bf16.msra.mxu0 0
      %2604 = vmatprep.subr.bf16.mxu0 0
      %2605 = vmatpush1.bf16.msra.mxu0 0
      %2606 = vmatprep.subr.bf16.mxu0 0
      %2607 = vmatpush1.bf16.msra.mxu0 0
      %2608 = vmatprep.subr.bf16.mxu0 0
      %2609 = vmatpush1.bf16.msra.mxu0 0
      %2610 = vmatprep.subr.bf16.mxu0 0
      %2611 = vmatpush1.bf16.msra.mxu0 0
      %2612 = vmatprep.subr.bf16.mxu0 0
      %2613 = vmatpush1.bf16.msra.mxu0 0
      %2614 = vmatprep.subr.bf16.mxu0 0
      %2615 = vmatpush1.bf16.msra.mxu0 0
      %2616 = vmatprep.mubr.bf16.mxu0 0
      %2617 = vmatmul.mubr.bf16.gmra.mrb[0].mxu0 %v830
      %v2618 = vpop.f32.mrb[0].mxu0
      %v2619 = vadd.f32 0.0, %v2618
      %v2620 = vpop.f32.mrb[0].mxu0
      %v2621 = vpop.f32.mrb[0].mxu0
      %v2622 = vadd.f32 0.0, %v2621
      %v2623 = vpop.f32.mrb[0].mxu0
      %2624 = vmatprep.mubr.bf16.mxu0 0
      %2625 = vmatmul.mubr.bf16.gmra.mrb[0].mxu0 %v833
      %v2626 = vpop.f32.mrb[0].mxu0
      %v2627 = vadd.f32 0.0, %v2626
      %v2628 = vpop.f32.mrb[0].mxu0
      %v2629 = vpop.f32.mrb[0].mxu0
      %v2630 = vadd.f32 0.0, %v2629
      %v2631 = vpop.f32.mrb[0].mxu0
      %2632 = vmatprep.mubr.bf16.mxu0 0
      %2633 = vmatmul.mubr.bf16.gmra.mrb[0].mxu0 %v836
      %v2634 = vpop.f32.mrb[0].mxu0
      %v2635 = vadd.f32 0.0, %v2634
      %v2636 = vpop.f32.mrb[0].mxu0
      %v2637 = vpop.f32.mrb[0].mxu0
      %v2638 = vadd.f32 0.0, %v2637
      %v2639 = vpop.f32.mrb[0].mxu0
      %2640 = vmatprep.mubr.bf16.mxu0 0
      %2641 = vmatmul.mubr.bf16.gmra.mrb[0].mxu0 %v839
      %v2642 = vpop.f32.mrb[0].mxu0
      %v2643 = vadd.f32 0.0, %v2642
      %v2644 = vpop.f32.mrb[0].mxu0
      %v2645 = vpop.f32.mrb[0].mxu0
      %v2646 = vadd.f32 0.0, %v2645
      %v2647 = vpop.f32.mrb[0].mxu0
      %2648 = vmatprep.mubr.bf16.mxu0 0
      %2649 = vmatmul.mubr.bf16.gmra.mrb[0].mxu0 %v842
      %v2650 = vpop.f32.mrb[0].mxu0
      %v2651 = vadd.f32 0.0, %v2650
      %v2652 = vpop.f32.mrb[0].mxu0
      %v2653 = vpop.f32.mrb[0].mxu0
      %v2654 = vadd.f32 0.0, %v2653
      %v2655 = vpop.f32.mrb[0].mxu0
      %2656 = vmatprep.mubr.bf16.mxu0 0
      %2657 = vmatmul.mubr.bf16.gmra.mrb[0].mxu0 %v845
      %v2658 = vpop.f32.mrb[0].mxu0
      %v2659 = vadd.f32 0.0, %v2658
      %v2660 = vpop.f32.mrb[0].mxu0
      %v2661 = vpop.f32.mrb[0].mxu0
      %v2662 = vadd.f32 0.0, %v2661
      %v2663 = vpop.f32.mrb[0].mxu0
      %2664 = vmatprep.mubr.bf16.mxu0 0
      %2665 = vmatmul.mubr.bf16.gmra.mrb[0].mxu0 %v848
      %v2666 = vpop.f32.mrb[0].mxu0
      %v2667 = vadd.f32 0.0, %v2666
      %v2668 = vpop.f32.mrb[0].mxu0
      %v2669 = vpop.f32.mrb[0].mxu0
      %v2670 = vadd.f32 0.0, %v2669
      %v2671 = vpop.f32.mrb[0].mxu0
      %2672 = vmatprep.mubr.bf16.mxu0 0
      %2673 = vmatmul.mubr.bf16.gmra.mrb[0].mxu0 %v851
      %v2674 = vpop.f32.mrb[0].mxu0
      %v2675 = vadd.f32 0.0, %v2674
      %v2676 = vpop.f32.mrb[0].mxu0
      %v2677 = vpop.f32.mrb[0].mxu0
      %v2678 = vadd.f32 0.0, %v2677
      %v2679 = vpop.f32.mrb[0].mxu0
      %2680 = vdwg.mxu0
      %v2681 = vsub.f32 0.0, %v2619
      %v2682 = vsub.f32 0.0, %v2622
      %v2683 = vsub.f32 0.0, %v2627
      %v2684 = vsub.f32 0.0, %v2630
      %v2685 = vsub.f32 0.0, %v2635
      %v2686 = vsub.f32 0.0, %v2638
      %v2687 = vsub.f32 0.0, %v2643
      %v2688 = vsub.f32 0.0, %v2646
      %v2689 = vsub.f32 0.0, %v2651
      %v2690 = vsub.f32 0.0, %v2654
      %v2691 = vsub.f32 0.0, %v2659
      %v2692 = vsub.f32 0.0, %v2662
      %v2693 = vsub.f32 0.0, %v2667
      %v2694 = vsub.f32 0.0, %v2670
      %v2695 = vsub.f32 0.0, %v2675
      %v2696 = vsub.f32 0.0, %v2678
      %v2697 = vmul.f32 %v2681, 1.442695
      %v2698 = vpow.pop %v2697
      %v2699 = vmul.f32 %v2682, 1.442695
      %v2700 = vpow.pop %v2699
      %v2701 = vmul.f32 %v2683, 1.442695
      %v2702 = vpow.pop %v2701
      %v2703 = vmul.f32 %v2684, 1.442695
      %v2704 = vpow.pop %v2703
      %v2705 = vmul.f32 %v2685, 1.442695
      %v2706 = vpow.pop %v2705
      %v2707 = vmul.f32 %v2686, 1.442695
      %v2708 = vpow.pop %v2707
      %v2709 = vmul.f32 %v2687, 1.442695
      %v2710 = vpow.pop %v2709
      %v2711 = vmul.f32 %v2688, 1.442695
      %v2712 = vpow.pop %v2711
      %v2713 = vmul.f32 %v2689, 1.442695
      %v2714 = vpow.pop %v2713
      %v2715 = vmul.f32 %v2690, 1.442695
      %v2716 = vpow.pop %v2715
      %v2717 = vmul.f32 %v2691, 1.442695
      %v2718 = vpow.pop %v2717
      %v2719 = vmul.f32 %v2692, 1.442695
      %v2720 = vpow.pop %v2719
      %v2721 = vmul.f32 %v2693, 1.442695
      %v2722 = vpow.pop %v2721
      %v2723 = vmul.f32 %v2694, 1.442695
      %v2724 = vpow.pop %v2723
      %v2725 = vmul.f32 %v2695, 1.442695
      %v2726 = vpow.pop %v2725
      %v2727 = vmul.f32 %v2696, 1.442695
      %v2728 = vpow.pop %v2727
      %v2729 = vadd.f32 %v2698, 1.0
      %v2730 = vadd.f32 %v2700, 1.0
      %v2731 = vadd.f32 %v2702, 1.0
      %v2732 = vadd.f32 %v2704, 1.0
      %v2733 = vadd.f32 %v2706, 1.0
      %v2734 = vadd.f32 %v2708, 1.0
      %v2735 = vadd.f32 %v2710, 1.0
      %v2736 = vadd.f32 %v2712, 1.0
      %v2737 = vadd.f32 %v2714, 1.0
      %v2738 = vadd.f32 %v2716, 1.0
      %v2739 = vadd.f32 %v2718, 1.0
      %v2740 = vadd.f32 %v2720, 1.0
      %v2741 = vadd.f32 %v2722, 1.0
      %v2742 = vadd.f32 %v2724, 1.0
      %v2743 = vadd.f32 %v2726, 1.0
      %v2744 = vadd.f32 %v2728, 1.0
      %v2745 = vrcp.pop %v2729
      %v2746 = vrcp.pop %v2730
      %v2747 = vrcp.pop %v2731
      %v2748 = vrcp.pop %v2732
      %v2749 = vrcp.pop %v2733
      %v2750 = vrcp.pop %v2734
      %v2751 = vrcp.pop %v2735
      %v2752 = vrcp.pop %v2736
      %v2753 = vrcp.pop %v2737
      %v2754 = vrcp.pop %v2738
      %v2755 = vrcp.pop %v2739
      %v2756 = vrcp.pop %v2740
      %v2757 = vrcp.pop %v2741
      %v2758 = vrcp.pop %v2742
      %v2759 = vrcp.pop %v2743
      %v2760 = vrcp.pop %v2744
      %v2761 = vmul.f32 %v2619, %v2745
      %v2762 = vmul.f32 %v2622, %v2746
      %v2763 = vmul.f32 %v2627, %v2747
      %v2764 = vmul.f32 %v2630, %v2748
      %v2765 = vmul.f32 %v2635, %v2749
      %v2766 = vmul.f32 %v2638, %v2750
      %v2767 = vmul.f32 %v2643, %v2751
      %v2768 = vmul.f32 %v2646, %v2752
      %v2769 = vmul.f32 %v2651, %v2753
      %v2770 = vmul.f32 %v2654, %v2754
      %v2771 = vmul.f32 %v2659, %v2755
      %v2772 = vmul.f32 %v2662, %v2756
      %v2773 = vmul.f32 %v2667, %v2757
      %v2774 = vmul.f32 %v2670, %v2758
      %v2775 = vmul.f32 %v2675, %v2759
      %v2776 = vmul.f32 %v2678, %v2760
      %v2777 = vmul.f32 %v2564, %v2761
      %v2778 = vmul.f32 %v2565, %v2762
      %v2779 = vmul.f32 %v2566, %v2763
      %v2780 = vmul.f32 %v2567, %v2764
      %v2781 = vmul.f32 %v2568, %v2765
      %v2782 = vmul.f32 %v2569, %v2766
      %v2783 = vmul.f32 %v2570, %v2767
      %v2784 = vmul.f32 %v2571, %v2768
      %v2785 = vmul.f32 %v2572, %v2769
      %v2786 = vmul.f32 %v2573, %v2770
      %v2787 = vmul.f32 %v2574, %v2771
      %v2788 = vmul.f32 %v2575, %v2772
      %v2789 = vmul.f32 %v2576, %v2773
      %v2790 = vmul.f32 %v2577, %v2774
      %v2791 = vmul.f32 %v2578, %v2775
      %v2792 = vmul.f32 %v2579, %v2776
      %v2793 = vpack.c.bf16 %v2778, %v2777
      %v2794 = vpack.c.bf16 %v2780, %v2779
      %v2795 = vpack.c.bf16 %v2782, %v2781
      %v2796 = vpack.c.bf16 %v2784, %v2783
      %v2797 = vpack.c.bf16 %v2786, %v2785
      %v2798 = vpack.c.bf16 %v2788, %v2787
      %v2799 = vpack.c.bf16 %v2790, %v2789
      %v2800 = vpack.c.bf16 %v2792, %v2791
      %v2801 = vld [vmem:[%s12] sm:$0xf]
      %v2803 = vsel %vm1970, %v2793, 0
      %v2806 = vsel %vm1970, %v2794, 0
      %v2809 = vsel %vm1970, %v2795, 0
      %v2812 = vsel %vm1970, %v2796, 0
      %v2815 = vsel %vm1970, %v2797, 0
      %v2818 = vsel %vm1970, %v2798, 0
      %v2821 = vsel %vm1970, %v2799, 0
      %v2824 = vsel %vm1970, %v2800, 0
      %v2827 = vsel %vm1995, %v2801, 0
      %2829 = vmatprep.subr.bf16.mxu0 0
      %2830 = vmatpush1.bf16.msra.mxu0 %v2827
      %2831 = vmatprep.subr.bf16.mxu0 0
      %2832 = vmatpush1.bf16.msra.mxu0 0
      %2833 = vmatprep.subr.bf16.mxu0 0
      %2834 = vmatpush1.bf16.msra.mxu0 0
      %2835 = vmatprep.subr.bf16.mxu0 0
      %2836 = vmatpush1.bf16.msra.mxu0 0
      %2837 = vmatprep.subr.bf16.mxu0 0
      %2838 = vmatpush1.bf16.msra.mxu0 0
      %2839 = vmatprep.subr.bf16.mxu0 0
      %2840 = vmatpush1.bf16.msra.mxu0 0
      %2841 = vmatprep.subr.bf16.mxu0 0
      %2842 = vmatpush1.bf16.msra.mxu0 0
      %2843 = vmatprep.subr.bf16.mxu0 0
      %2844 = vmatpush1.bf16.msra.mxu0 0
      %2845 = vmatprep.subr.bf16.mxu0 0
      %2846 = vmatpush1.bf16.msra.mxu0 0
      %2847 = vmatprep.subr.bf16.mxu0 0
      %2848 = vmatpush1.bf16.msra.mxu0 0
      %2849 = vmatprep.subr.bf16.mxu0 0
      %2850 = vmatpush1.bf16.msra.mxu0 0
      %2851 = vmatprep.subr.bf16.mxu0 0
      %2852 = vmatpush1.bf16.msra.mxu0 0
      %2853 = vmatprep.subr.bf16.mxu0 0
      %2854 = vmatpush1.bf16.msra.mxu0 0
      %2855 = vmatprep.subr.bf16.mxu0 0
      %2856 = vmatpush1.bf16.msra.mxu0 0
      %2857 = vmatprep.subr.bf16.mxu0 0
      %2858 = vmatpush1.bf16.msra.mxu0 0
      %2859 = vmatprep.subr.bf16.mxu0 0
      %2860 = vmatpush1.bf16.msra.mxu0 0
      %2861 = vmatprep.mubr.bf16.mxu0 0
      %2862 = vmatmul.mubr.bf16.gmra.mrb[0].mxu0 %v2803
      %v2863 = vpop.f32.mrb[0].mxu0
      %v2864 = vadd.f32 0.0, %v2863
      %v2865 = vpop.f32.mrb[0].mxu0
      %v2866 = vpop.f32.mrb[0].mxu0
      %v2867 = vadd.f32 0.0, %v2866
      %v2868 = vpop.f32.mrb[0].mxu0
      %2869 = vmatprep.mubr.bf16.mxu0 0
      %2870 = vmatmul.mubr.bf16.gmra.mrb[0].mxu0 %v2806
      %v2871 = vpop.f32.mrb[0].mxu0
      %v2872 = vadd.f32 0.0, %v2871
      %v2873 = vpop.f32.mrb[0].mxu0
      %v2874 = vpop.f32.mrb[0].mxu0
      %v2875 = vadd.f32 0.0, %v2874
      %v2876 = vpop.f32.mrb[0].mxu0
      %2877 = vmatprep.mubr.bf16.mxu0 0
      %2878 = vmatmul.mubr.bf16.gmra.mrb[0].mxu0 %v2809
      %v2879 = vpop.f32.mrb[0].mxu0
      %v2880 = vadd.f32 0.0, %v2879
      %v2881 = vpop.f32.mrb[0].mxu0
      %v2882 = vpop.f32.mrb[0].mxu0
      %v2883 = vadd.f32 0.0, %v2882
      %v2884 = vpop.f32.mrb[0].mxu0
      %2885 = vmatprep.mubr.bf16.mxu0 0
      %2886 = vmatmul.mubr.bf16.gmra.mrb[0].mxu0 %v2812
      %v2887 = vpop.f32.mrb[0].mxu0
      %v2888 = vadd.f32 0.0, %v2887
      %v2889 = vpop.f32.mrb[0].mxu0
      %v2890 = vpop.f32.mrb[0].mxu0
      %v2891 = vadd.f32 0.0, %v2890
      %v2892 = vpop.f32.mrb[0].mxu0
      %2893 = vmatprep.mubr.bf16.mxu0 0
      %2894 = vmatmul.mubr.bf16.gmra.mrb[0].mxu0 %v2815
      %v2895 = vpop.f32.mrb[0].mxu0
      %v2896 = vadd.f32 0.0, %v2895
      %v2897 = vpop.f32.mrb[0].mxu0
      %v2898 = vpop.f32.mrb[0].mxu0
      %v2899 = vadd.f32 0.0, %v2898
      %v2900 = vpop.f32.mrb[0].mxu0
      %2901 = vmatprep.mubr.bf16.mxu0 0
      %2902 = vmatmul.mubr.bf16.gmra.mrb[0].mxu0 %v2818
      %v2903 = vpop.f32.mrb[0].mxu0
      %v2904 = vadd.f32 0.0, %v2903
      %v2905 = vpop.f32.mrb[0].mxu0
      %v2906 = vpop.f32.mrb[0].mxu0
      %v2907 = vadd.f32 0.0, %v2906
      %v2908 = vpop.f32.mrb[0].mxu0
      %2909 = vmatprep.mubr.bf16.mxu0 0
      %2910 = vmatmul.mubr.bf16.gmra.mrb[0].mxu0 %v2821
      %v2911 = vpop.f32.mrb[0].mxu0
      %v2912 = vadd.f32 0.0, %v2911
      %v2913 = vpop.f32.mrb[0].mxu0
      %v2914 = vpop.f32.mrb[0].mxu0
      %v2915 = vadd.f32 0.0, %v2914
      %v2916 = vpop.f32.mrb[0].mxu0
      %2917 = vmatprep.mubr.bf16.mxu0 0
      %2918 = vmatmul.mubr.bf16.gmra.mrb[0].mxu0 %v2824
      %v2919 = vpop.f32.mrb[0].mxu0
      %v2920 = vadd.f32 0.0, %v2919
      %v2921 = vpop.f32.mrb[0].mxu0
      %v2922 = vpop.f32.mrb[0].mxu0
      %v2923 = vadd.f32 0.0, %v2922
      %v2924 = vpop.f32.mrb[0].mxu0
      %2925 = vdwg.mxu0
      %v2926 = vadd.f32 %v481, %v2864
      %v2927 = vadd.f32 %v482, %v2867
      %v2928 = vadd.f32 %v483, %v2872
      %v2929 = vadd.f32 %v484, %v2875
      %v2930 = vadd.f32 %v485, %v2880
      %v2931 = vadd.f32 %v486, %v2883
      %v2932 = vadd.f32 %v487, %v2888
      %v2933 = vadd.f32 %v488, %v2891
      %v2934 = vadd.f32 %v489, %v2896
      %v2935 = vadd.f32 %v490, %v2899
      %v2936 = vadd.f32 %v491, %v2904
      %v2937 = vadd.f32 %v492, %v2907
      %v2938 = vadd.f32 %v493, %v2912
      %v2939 = vadd.f32 %v494, %v2915
      %v2940 = vadd.f32 %v495, %v2920
      %v2941 = vadd.f32 %v496, %v2923
      %2942 = vst.msk [vmem:[%s476] sm:$0xff] %vm499, %v2926
      %2943 = vst.msk [vmem:[%s476 + $0x8] sm:$0xff] %vm499, %v2927
      %2944 = vst.msk [vmem:[%s476 + $0x10] sm:$0xff] %vm499, %v2928
      %2945 = vst.msk [vmem:[%s476 + $0x18] sm:$0xff] %vm499, %v2929
      %2946 = vst.msk [vmem:[%s476 + $0x20] sm:$0xff] %vm499, %v2930
      %2947 = vst.msk [vmem:[%s476 + $0x28] sm:$0xff] %vm499, %v2931
      %2948 = vst.msk [vmem:[%s476 + $0x30] sm:$0xff] %vm499, %v2932
      %2949 = vst.msk [vmem:[%s476 + $0x38] sm:$0xff] %vm499, %v2933
      %2950 = vst.msk [vmem:[%s476 + $0x40] sm:$0xff] %vm499, %v2934
      %2951 = vst.msk [vmem:[%s476 + $0x48] sm:$0xff] %vm499, %v2935
      %2952 = vst.msk [vmem:[%s476 + $0x50] sm:$0xff] %vm499, %v2936
      %2953 = vst.msk [vmem:[%s476 + $0x58] sm:$0xff] %vm499, %v2937
      %2954 = vst.msk [vmem:[%s476 + $0x60] sm:$0xff] %vm499, %v2938
      %2955 = vst.msk [vmem:[%s476 + $0x68] sm:$0xff] %vm499, %v2939
      %2956 = vst.msk [vmem:[%s476 + $0x70] sm:$0xff] %vm499, %v2940
      %2957 = vst.msk [vmem:[%s476 + $0x78] sm:$0xff] %vm499, %v2941
      %s2958 = smul.u32 16, %s29
      %p2959 = scmp.lt.s32.totalorder %s28, 1
      %s2960 = scalar_select %p2959, %s28, 1
      %p2961 = scmp.lt.s32.totalorder %s2958, 31
      %s2962 = scalar_select %p2961, %s2958, 31
      %s2963 = smul.addr %s2960, 32
      %s2964 = sadd.s32 %s2962, %s2963
      %s2965 = smul.addr %s2964, 8
      %s2966 = scalar_lea.vmem %s13, %s2965
      // Predicated region
      $region73: #{tpu_custom_call.1} parent=71 // pred_check
        %p2967 = pneg %p336
      $region74: #{tpu_custom_call.1} parent=71 // pred_check_branch
        %2969 = sbr.rel (%p2967) target = $region76
      $region75: #{tpu_custom_call.1} parent=71 // pred_region
        %s2970 = smul.u32 16, %s29
      $region76: #{tpu_custom_call.1} parent=71 // pred_fallthru
        _
    $region72: #{tpu_custom_call.1} parent=5 // pred_fallthru
      _
    %p2971 = scmp.le.s32.totalorder 2, %s19
    // Predicated region
    $region77: #{tpu_custom_call.1} parent=5 // pred_check
      %p2972 = pneg %p2971
    $region78: #{tpu_custom_call.1} parent=5 // pred_check_branch
      %2974 = sbr.rel (%p2972) target = $region80
    $region79: #{tpu_custom_call.1} parent=5 // pred_region
      %s2975 = ssub.s32 %s19, 2
      // Predicated region
      $region81: #{tpu_custom_call.1} parent=79 // pred_check
        %p2976 = pneg %p342
      $region82: #{tpu_custom_call.1} parent=79 // pred_check_branch
        %2978 = sbr.rel (%p2976) target = $region84
      $region83: #{tpu_custom_call.1} parent=79 // pred_region
        %s2979 = smul.u32 16, %s31
        %p2980 = scmp.lt.s32.totalorder %s30, 1
        %s2981 = scalar_select %p2980, %s30, 1
        %p2982 = scmp.lt.s32.totalorder %s2979, 31
        %s2983 = scalar_select %p2982, %s2979, 31
        %s2984 = smul.addr %s2981, 32
        %s2985 = sadd.s32 %s2983, %s2984
        %s2986 = smul.addr %s2985, 8
        %s2987 = scalar_lea.vmem %s13, %s2986
      $region84: #{tpu_custom_call.1} parent=79 // pred_fallthru
        _
    $region80: #{tpu_custom_call.1} parent=5 // pred_fallthru
      _
  $region6: #{tpu_custom_call.1} parent=0 // loop_footer
    %s23 = sadd.s32 1, %s19
  $region7: #{tpu_custom_call.1} parent=0 // loop_footer_branch
    %18 = sbr.rel target = $region3
  $region8: #{tpu_custom_call.1} parent=0 // loop_exit
    _

</llo_original>
